<compile_context>
chip_gen: v7x
topology: tpu7x:2x2x1
jax: 0.10.0
libtpu: 0.0.40
codegen_flags: <defaults>
</compile_context>

<pallas_src>
import functools

import jax
import jax.numpy as jnp
from jax import lax
from jax.experimental import pallas as pl
from jax.experimental.pallas import tpu as pltpu

LANE = 128


def _round_up(x, m):
    return ((x + m - 1) // m) * m


def _pick_band_height(h):
    for th in (8, 16, 4, 2):
        if h % th == 0:
            return th
    return h


# ----------------------------------------------------------------------------
# Pallas kernels
# ----------------------------------------------------------------------------
def _conv3x3_acc(src_ref, w_ref, band_h, img_w, relu_input):
    """Accumulate the 9 shifted-window matmuls of a 3x3 'same' conv.

    src_ref: (band_h + 2, img_w + 2, Cin) bf16, spatially zero-padded band.
    w_ref:   (9, Cin, Cout) bf16, tap-major (ky * 3 + kx).
    returns  (band_h * img_w, Cout) f32 accumulator.
    """
    cin = src_ref.shape[-1]
    cout = w_ref.shape[-1]
    acc = jnp.zeros((band_h * img_w, cout), jnp.float32)
    tap = 0
    for ky in range(3):
        for kx in range(3):
            win = src_ref[ky:ky + band_h, kx:kx + img_w, :]        # (bh, W, Cin)
            if relu_input:
                win = jnp.maximum(win, 0)                          # relu(0-pad) = 0
            acc = acc + jnp.dot(win.reshape(band_h * img_w, cin), w_ref[tap],
                                preferred_element_type=jnp.float32)
            tap += 1
    return acc


def _conv1_kernel(x_ref, w_ref, b_ref, o_ref, *, band_h, img_w):
    """o = relu(conv1(relu(x)))  -- the trailing ReLU (input of conv2) is fused."""
    acc = _conv3x3_acc(x_ref, w_ref, band_h, img_w, relu_input=True)
    acc = acc + b_ref[...]
    acc = jnp.maximum(acc, 0.0)
    o_ref[...] = acc.astype(o_ref.dtype)


def _conv2_combine_kernel(*refs, band_h, img_w, learnable_sc, downsample):
    """o = avg_pool2(conv2(h) + shortcut(x)) for one (batch, row-band) block."""
    i = 0
    h_ref = refs[i]; i += 1            # (bh+2, W+2, Cp_out) bf16, already ReLU'd
    x_ref = refs[i]; i += 1            # (bh*W, Cp_in) bf16, raw input band
    w2_ref = refs[i]; i += 1           # (9, Cp_out, Cp_out) bf16
    b2_ref = refs[i]; i += 1           # (1, Cp_out) f32
    if learnable_sc:
        wsc_ref = refs[i]; i += 1      # (Cp_in, Cp_out) bf16
        bsc_ref = refs[i]; i += 1      # (1, Cp_out) f32
    o_ref = refs[i]; i += 1
    s_ref = refs[i] if downsample else None   # VMEM scratch (bh*W, Cp_out) f32

    acc = _conv3x3_acc(h_ref, w2_ref, band_h, img_w, relu_input=False)
    acc = acc + b2_ref[...]

    if learnable_sc:
        sc = jnp.dot(x_ref[...], wsc_ref[...], preferred_element_type=jnp.float32)
        sc = sc + bsc_ref[...]
    else:
        sc = x_ref[...].astype(jnp.float32)
    s = acc + sc

    if downsample:
        # 2x2 average pool: 4 strided sublane reads + 3 VPU adds per output row.
        s_ref[...] = s
        wo = img_w // 2
        for r in range(band_h // 2):
            base = 2 * r * img_w
            pooled = (s_ref[pl.ds(base, wo, stride=2), :]
                      + s_ref[pl.ds(base + 1, wo, stride=2), :]
                      + s_ref[pl.ds(base + img_w, wo, stride=2), :]
                      + s_ref[pl.ds(base + img_w + 1, wo, stride=2), :])
            o_ref[r * wo:(r + 1) * wo, :] = (0.25 * pooled).astype(o_ref.dtype)
    else:
        o_ref[...] = s.astype(o_ref.dtype)


# ----------------------------------------------------------------------------
# Parameter packing glue (plain JAX, runs once per forward on tiny tensors)
# ----------------------------------------------------------------------------
def _pack_conv3x3(w_oihw, cpi, cpo):
    o, ci, kh, kw = w_oihw.shape
    w = jnp.transpose(w_oihw, (2, 3, 1, 0)).reshape(kh * kw, ci, o)
    w = jnp.pad(w, ((0, 0), (0, cpi - ci), (0, cpo - o)))
    return w.astype(jnp.bfloat16)


def _pack_conv1x1(w_oihw, cpi, cpo):
    o, ci = w_oihw.shape[0], w_oihw.shape[1]
    w = jnp.transpose(w_oihw[:, :, 0, 0], (1, 0))
    w = jnp.pad(w, ((0, cpi - ci), (0, cpo - o)))
    return w.astype(jnp.bfloat16)


def _pack_bias(b, cpo):
    return jnp.pad(b, (0, cpo - b.shape[0])).astype(jnp.float32).reshape(1, cpo)


def _band_with_halo(x_padded, nb, band_h):
    # (N, H+2, W+2, C) -> (N, nb, band_h+2, W+2, C); duplicates 2 halo rows per
    # band so Pallas blocks stay non-overlapping rectangles.
    return jnp.stack([x_padded[:, b * band_h:b * band_h + band_h + 2]
                      for b in range(nb)], axis=1)


# ----------------------------------------------------------------------------
# ResBlock forward (Pallas path)
# ----------------------------------------------------------------------------
def resblock_forward(x_nchw, params, *, downsample, learnable_sc):
    x = jnp.transpose(x_nchw, (0, 2, 3, 1)).astype(jnp.float32)    # NCHW -> NHWC
    n, h, w, ci = x.shape
    co = params["w1"].shape[0]
    cpi = _round_up(ci, LANE)
    cpo = _round_up(co, LANE)
    if downsample:
        assert h % 2 == 0 and w % 2 == 0
    band_h = _pick_band_height(h)
    if downsample and band_h % 2:
        band_h = h
    nb = h // band_h
    wp = w + 2

    # Lane-pad channels; matmul operands travel as bf16 (f32 accumulation in-kernel).
    xb = jnp.pad(x, ((0, 0), (0, 0), (0, 0), (0, cpi - ci))).astype(jnp.bfloat16)
    x_sp = jnp.pad(xb, ((0, 0), (1, 1), (1, 1), (0, 0)))           # spatial halo
    x_band = _band_with_halo(x_sp, nb, band_h)                     # conv1 input
    x_flat = xb.reshape(n, nb, band_h * w, cpi)                    # shortcut input

    w1 = _pack_conv3x3(params["w1"], cpi, cpo)
    b1 = _pack_bias(params["b1"], cpo)
    w2 = _pack_conv3x3(params["w2"], cpo, cpo)
    b2 = _pack_bias(params["b2"], cpo)

    par2 = pltpu.CompilerParams(dimension_semantics=("parallel", "parallel"))

    # ---- kernel 1: h1 = relu(conv1(relu(x))) --------------------------------
    h1 = pl.pallas_call(
        functools.partial(_conv1_kernel, band_h=band_h, img_w=w),
        out_shape=jax.ShapeDtypeStruct((n, nb, band_h * w, cpo), jnp.bfloat16),
        grid=(n, nb),
        in_specs=[
            pl.BlockSpec((None, None, band_h + 2, wp, cpi),
                         lambda i, j: (i, j, 0, 0, 0)),
            pl.BlockSpec((9, cpi, cpo), lambda i, j: (0, 0, 0)),
            pl.BlockSpec((1, cpo), lambda i, j: (0, 0)),
        ],
        out_specs=pl.BlockSpec((None, None, band_h * w, cpo),
                               lambda i, j: (i, j, 0, 0)),
        compiler_params=par2,
    )(x_band, w1, b1)

    # Re-band h1 with a spatial halo for conv2 (cheap: +2 rows per band).
    h1_sp = jnp.pad(h1.reshape(n, h, w, cpo), ((0, 0), (1, 1), (1, 1), (0, 0)))
    h1_band = _band_with_halo(h1_sp, nb, band_h)

    bho = band_h // 2 if downsample else band_h
    wo = w // 2 if downsample else w

    # ---- kernel 2: out = pool2(conv2(h1) + shortcut(x)) ---------------------
    args = [h1_band, x_flat, w2, b2]
    in_specs = [
        pl.BlockSpec((None, None, band_h + 2, wp, cpo),
                     lambda i, j: (i, j, 0, 0, 0)),
        pl.BlockSpec((None, None, band_h * w, cpi), lambda i, j: (i, j, 0, 0)),
        pl.BlockSpec((9, cpo, cpo), lambda i, j: (0, 0, 0)),
        pl.BlockSpec((1, cpo), lambda i, j: (0, 0)),
    ]
    if learnable_sc:
        args += [_pack_conv1x1(params["wsc"], cpi, cpo),
                 _pack_bias(params["bsc"], cpo)]
        in_specs += [
            pl.BlockSpec((cpi, cpo), lambda i, j: (0, 0)),
            pl.BlockSpec((1, cpo), lambda i, j: (0, 0)),
        ]
    scratch = [pltpu.VMEM((band_h * w, cpo), jnp.float32)] if downsample else []

    out = pl.pallas_call(
        functools.partial(_conv2_combine_kernel, band_h=band_h, img_w=w,
                          learnable_sc=learnable_sc, downsample=downsample),
        out_shape=jax.ShapeDtypeStruct((n, nb, bho * wo, cpo), jnp.float32),
        grid=(n, nb),
        in_specs=in_specs,
        out_specs=pl.BlockSpec((None, None, bho * wo, cpo),
                               lambda i, j: (i, j, 0, 0)),
        scratch_shapes=scratch,
        compiler_params=par2,
    )(*args)

    out = out.reshape(n, nb * bho, wo, cpo)[:, :, :, :co]
    return jnp.transpose(out, (0, 3, 1, 2))                        # NHWC -> NCHW


# ----------------------------------------------------------------------------
# Parameter init (spectral_norm semantics) and pure-JAX reference
# ----------------------------------------------------------------------------
def spectral_normalize(w, key, eps=1e-4, n_iter=5):
    o = w.shape[0]
    wm = w.reshape(o, -1)
    u = jax.random.normal(key, (o,), dtype=w.dtype)
    u = u / jnp.maximum(jnp.linalg.norm(u), eps)
    v = None
    for _ in range(n_iter):
        v = wm.T @ u
        v = v / jnp.maximum(jnp.linalg.norm(v), eps)
        u = wm @ v
        u = u / jnp.maximum(jnp.linalg.norm(u), eps)
    sigma = u @ (wm @ v)
    return w / sigma


def init_resblock_params(key, in_ch, out_ch, ksize=3, downsample=False):
    learnable_sc = (in_ch != out_ch) or downsample
    keys = jax.random.split(key, 9)

    def conv_init(kw, kb, o, i, k):
        fan_in = i * k * k
        bound = 1.0 / (fan_in ** 0.5)
        w = jax.random.uniform(kw, (o, i, k, k), minval=-bound, maxval=bound,
                               dtype=jnp.float32)
        b = jax.random.uniform(kb, (o,), minval=-bound, maxval=bound,
                               dtype=jnp.float32)
        return w, b

    w1, b1 = conv_init(keys[0], keys[1], out_ch, in_ch, ksize)
    w2, b2 = conv_init(keys[2], keys[3], out_ch, out_ch, ksize)
    w1 = spectral_normalize(w1, keys[6])
    w2 = spectral_normalize(w2, keys[7])
    params = dict(w1=w1, b1=b1, w2=w2, b2=b2)
    if learnable_sc:
        wsc, bsc = conv_init(keys[4], keys[5], out_ch, in_ch, 1)
        wsc = spectral_normalize(wsc, keys[8])
        params.update(wsc=wsc, bsc=bsc)
    return params, learnable_sc


def resblock_reference(x_nchw, params, *, downsample, learnable_sc):
    def conv(x, w, b, pad):
        y = lax.conv_general_dilated(
            x, w, window_strides=(1, 1), padding=[(pad, pad), (pad, pad)],
            dimension_numbers=("NCHW", "OIHW", "NCHW"))
        return y + b[None, :, None, None]

    def avgpool2(x):
        n, c, h, w = x.shape
        return x.reshape(n, c, h // 2, 2, w // 2, 2).mean(axis=(3, 5))

    h = conv(jax.nn.relu(x_nchw), params["w1"], params["b1"], 1)
    h = conv(jax.nn.relu(h), params["w2"], params["b2"], 1)
    if downsample:
        h = avgpool2(h)
    if learnable_sc:
        s = conv(x_nchw, params["wsc"], params["bsc"], 0)
        if downsample:
            s = avgpool2(s)
    else:
        s = x_nchw
    return h + s


if __name__ == "__main__":
    key = jax.random.PRNGKey(0)
    in_ch, out_ch = 4, 8
    n, h, w = 2, 16, 16
    downsample = True                                  # exercises c_sc + avg_pool

    kx, kp = jax.random.split(key)
    x = jax.random.normal(kx, (n, in_ch, h, w), dtype=jnp.float32)  # NCHW like PyTorch
    params, learnable_sc = init_resblock_params(kp, in_ch, out_ch,
                                                downsample=downsample)

    fwd = jax.jit(functools.partial(resblock_forward, downsample=downsample,
                                    learnable_sc=learnable_sc))
    out = jax.block_until_ready(fwd(x, params))

    ref = resblock_reference(x, params, downsample=downsample,
                             learnable_sc=learnable_sc)
    assert out.shape == ref.shape, (out.shape, ref.shape)
    err = float(jnp.max(jnp.abs(out - ref)))
    tol = 5e-2 * max(1.0, float(jnp.max(jnp.abs(ref))))   # bf16 MXU operands
    assert err < tol, f"max abs err {err} (tol {tol})"
    print("KERNEL_OK")
</pallas_src>

<mosaic_0001>
module attributes {stable_mosaic.version = 11 : i64} {
  func.func @_conv1_kernel(%arg0: i32, %arg1: i32, %arg2: memref<1x1x10x18x128xbf16, #tpu.memory_space<vmem>>, %arg3: memref<9x128x128xbf16, #tpu.memory_space<vmem>>, %arg4: memref<1x128xf32, #tpu.memory_space<vmem>>, %arg5: memref<1x1x128x128xbf16, #tpu.memory_space<vmem>>) attributes {dimension_semantics = [#tpu.dimension_semantics<parallel>, #tpu.dimension_semantics<parallel>], iteration_bounds = array<i64: 2, 2>, scalar_prefetch = 0 : i64, scratch_operands = 0 : i64, tpu.core_type = #tpu.core_type<tc>, window_params = [{transform_indices = @transform_0, window_bounds = array<i64: 1, 1, 10, 18, 128>}, {pipeline_mode = #tpu.pipeline_mode<synchronous>, transform_indices = @transform_1, window_bounds = array<i64: 9, 128, 128>}, {pipeline_mode = #tpu.pipeline_mode<synchronous>, transform_indices = @transform_2, window_bounds = array<i64: 1, 128>}, {transform_indices = @transform_3, window_bounds = array<i64: 1, 1, 128, 128>}]} {
    %cst = arith.constant 0.000000e+00 : f32
    %0 = vector.broadcast %cst : f32 to vector<128x128xf32>
    %c0 = arith.constant 0 : index
    %c0_0 = arith.constant 0 : index
    %c0_1 = arith.constant 0 : index
    %c0_2 = arith.constant 0 : index
    %c0_3 = arith.constant 0 : index
    %1 = vector.load %arg2[%c0, %c0_0, %c0_1, %c0_2, %c0_3] : memref<1x1x10x18x128xbf16, #tpu.memory_space<vmem>>, vector<1x1x8x16x128xbf16>
    %2 = vector.shape_cast %1 : vector<1x1x8x16x128xbf16> to vector<8x16x128xbf16>
    %cst_4 = arith.constant 0.000000e+00 : bf16
    %3 = vector.broadcast %cst_4 : bf16 to vector<8x16x128xbf16>
    %4 = arith.maximumf %2, %3 : vector<8x16x128xbf16>
    %5 = vector.shape_cast %4 : vector<8x16x128xbf16> to vector<128x128xbf16>
    %c0_5 = arith.constant 0 : index
    %c0_6 = arith.constant 0 : index
    %c0_7 = arith.constant 0 : index
    %6 = vector.load %arg3[%c0_5, %c0_6, %c0_7] : memref<9x128x128xbf16, #tpu.memory_space<vmem>>, vector<1x128x128xbf16>
    %7 = vector.shape_cast %6 : vector<1x128x128xbf16> to vector<128x128xbf16>
    %cst_8 = arith.constant dense<0.000000e+00> : vector<128x128xf32>
    %8 = tpu.matmul %5, %7, %cst_8 {dimension_numbers = #tpu.dot_dimension_numbers<[1], [0], [0], [1], [0, 0, 1, 1], [], []>} : vector<128x128xbf16>, vector<128x128xbf16>, vector<128x128xf32> -> vector<128x128xf32>
    %9 = arith.addf %0, %8 : vector<128x128xf32>
    %c0_9 = arith.constant 0 : index
    %c0_10 = arith.constant 0 : index
    %c0_11 = arith.constant 0 : index
    %c1 = arith.constant 1 : index
    %c0_12 = arith.constant 0 : index
    %10 = vector.load %arg2[%c0_9, %c0_10, %c0_11, %c1, %c0_12] : memref<1x1x10x18x128xbf16, #tpu.memory_space<vmem>>, vector<1x1x8x16x128xbf16>
    %11 = vector.shape_cast %10 : vector<1x1x8x16x128xbf16> to vector<8x16x128xbf16>
    %cst_13 = arith.constant 0.000000e+00 : bf16
    %12 = vector.broadcast %cst_13 : bf16 to vector<8x16x128xbf16>
    %13 = arith.maximumf %11, %12 : vector<8x16x128xbf16>
    %14 = vector.shape_cast %13 : vector<8x16x128xbf16> to vector<128x128xbf16>
    %c1_14 = arith.constant 1 : index
    %c0_15 = arith.constant 0 : index
    %c0_16 = arith.constant 0 : index
    %15 = vector.load %arg3[%c1_14, %c0_15, %c0_16] : memref<9x128x128xbf16, #tpu.memory_space<vmem>>, vector<1x128x128xbf16>
    %16 = vector.shape_cast %15 : vector<1x128x128xbf16> to vector<128x128xbf16>
    %cst_17 = arith.constant dense<0.000000e+00> : vector<128x128xf32>
    %17 = tpu.matmul %14, %16, %cst_17 {dimension_numbers = #tpu.dot_dimension_numbers<[1], [0], [0], [1], [0, 0, 1, 1], [], []>} : vector<128x128xbf16>, vector<128x128xbf16>, vector<128x128xf32> -> vector<128x128xf32>
    %18 = arith.addf %9, %17 : vector<128x128xf32>
    %c0_18 = arith.constant 0 : index
    %c0_19 = arith.constant 0 : index
    %c0_20 = arith.constant 0 : index
    %c2 = arith.constant 2 : index
    %c0_21 = arith.constant 0 : index
    %19 = vector.load %arg2[%c0_18, %c0_19, %c0_20, %c2, %c0_21] : memref<1x1x10x18x128xbf16, #tpu.memory_space<vmem>>, vector<1x1x8x16x128xbf16>
    %20 = vector.shape_cast %19 : vector<1x1x8x16x128xbf16> to vector<8x16x128xbf16>
    %cst_22 = arith.constant 0.000000e+00 : bf16
    %21 = vector.broadcast %cst_22 : bf16 to vector<8x16x128xbf16>
    %22 = arith.maximumf %20, %21 : vector<8x16x128xbf16>
    %23 = vector.shape_cast %22 : vector<8x16x128xbf16> to vector<128x128xbf16>
    %c2_23 = arith.constant 2 : index
    %c0_24 = arith.constant 0 : index
    %c0_25 = arith.constant 0 : index
    %24 = vector.load %arg3[%c2_23, %c0_24, %c0_25] : memref<9x128x128xbf16, #tpu.memory_space<vmem>>, vector<1x128x128xbf16>
    %25 = vector.shape_cast %24 : vector<1x128x128xbf16> to vector<128x128xbf16>
    %cst_26 = arith.constant dense<0.000000e+00> : vector<128x128xf32>
    %26 = tpu.matmul %23, %25, %cst_26 {dimension_numbers = #tpu.dot_dimension_numbers<[1], [0], [0], [1], [0, 0, 1, 1], [], []>} : vector<128x128xbf16>, vector<128x128xbf16>, vector<128x128xf32> -> vector<128x128xf32>
    %27 = arith.addf %18, %26 : vector<128x128xf32>
    %c0_27 = arith.constant 0 : index
    %c0_28 = arith.constant 0 : index
    %c1_29 = arith.constant 1 : index
    %c0_30 = arith.constant 0 : index
    %c0_31 = arith.constant 0 : index
    %28 = vector.load %arg2[%c0_27, %c0_28, %c1_29, %c0_30, %c0_31] : memref<1x1x10x18x128xbf16, #tpu.memory_space<vmem>>, vector<1x1x8x16x128xbf16>
    %29 = vector.shape_cast %28 : vector<1x1x8x16x128xbf16> to vector<8x16x128xbf16>
    %cst_32 = arith.constant 0.000000e+00 : bf16
    %30 = vector.broadcast %cst_32 : bf16 to vector<8x16x128xbf16>
    %31 = arith.maximumf %29, %30 : vector<8x16x128xbf16>
    %32 = vector.shape_cast %31 : vector<8x16x128xbf16> to vector<128x128xbf16>
    %c3 = arith.constant 3 : index
    %c0_33 = arith.constant 0 : index
    %c0_34 = arith.constant 0 : index
    %33 = vector.load %arg3[%c3, %c0_33, %c0_34] : memref<9x128x128xbf16, #tpu.memory_space<vmem>>, vector<1x128x128xbf16>
    %34 = vector.shape_cast %33 : vector<1x128x128xbf16> to vector<128x128xbf16>
    %cst_35 = arith.constant dense<0.000000e+00> : vector<128x128xf32>
    %35 = tpu.matmul %32, %34, %cst_35 {dimension_numbers = #tpu.dot_dimension_numbers<[1], [0], [0], [1], [0, 0, 1, 1], [], []>} : vector<128x128xbf16>, vector<128x128xbf16>, vector<128x128xf32> -> vector<128x128xf32>
    %36 = arith.addf %27, %35 : vector<128x128xf32>
    %c0_36 = arith.constant 0 : index
    %c0_37 = arith.constant 0 : index
    %c1_38 = arith.constant 1 : index
    %c1_39 = arith.constant 1 : index
    %c0_40 = arith.constant 0 : index
    %37 = vector.load %arg2[%c0_36, %c0_37, %c1_38, %c1_39, %c0_40] : memref<1x1x10x18x128xbf16, #tpu.memory_space<vmem>>, vector<1x1x8x16x128xbf16>
    %38 = vector.shape_cast %37 : vector<1x1x8x16x128xbf16> to vector<8x16x128xbf16>
    %cst_41 = arith.constant 0.000000e+00 : bf16
    %39 = vector.broadcast %cst_41 : bf16 to vector<8x16x128xbf16>
    %40 = arith.maximumf %38, %39 : vector<8x16x128xbf16>
    %41 = vector.shape_cast %40 : vector<8x16x128xbf16> to vector<128x128xbf16>
    %c4 = arith.constant 4 : index
    %c0_42 = arith.constant 0 : index
    %c0_43 = arith.constant 0 : index
    %42 = vector.load %arg3[%c4, %c0_42, %c0_43] : memref<9x128x128xbf16, #tpu.memory_space<vmem>>, vector<1x128x128xbf16>
    %43 = vector.shape_cast %42 : vector<1x128x128xbf16> to vector<128x128xbf16>
    %cst_44 = arith.constant dense<0.000000e+00> : vector<128x128xf32>
    %44 = tpu.matmul %41, %43, %cst_44 {dimension_numbers = #tpu.dot_dimension_numbers<[1], [0], [0], [1], [0, 0, 1, 1], [], []>} : vector<128x128xbf16>, vector<128x128xbf16>, vector<128x128xf32> -> vector<128x128xf32>
    %45 = arith.addf %36, %44 : vector<128x128xf32>
    %c0_45 = arith.constant 0 : index
    %c0_46 = arith.constant 0 : index
    %c1_47 = arith.constant 1 : index
    %c2_48 = arith.constant 2 : index
    %c0_49 = arith.constant 0 : index
    %46 = vector.load %arg2[%c0_45, %c0_46, %c1_47, %c2_48, %c0_49] : memref<1x1x10x18x128xbf16, #tpu.memory_space<vmem>>, vector<1x1x8x16x128xbf16>
    %47 = vector.shape_cast %46 : vector<1x1x8x16x128xbf16> to vector<8x16x128xbf16>
    %cst_50 = arith.constant 0.000000e+00 : bf16
    %48 = vector.broadcast %cst_50 : bf16 to vector<8x16x128xbf16>
    %49 = arith.maximumf %47, %48 : vector<8x16x128xbf16>
    %50 = vector.shape_cast %49 : vector<8x16x128xbf16> to vector<128x128xbf16>
    %c5 = arith.constant 5 : index
    %c0_51 = arith.constant 0 : index
    %c0_52 = arith.constant 0 : index
    %51 = vector.load %arg3[%c5, %c0_51, %c0_52] : memref<9x128x128xbf16, #tpu.memory_space<vmem>>, vector<1x128x128xbf16>
    %52 = vector.shape_cast %51 : vector<1x128x128xbf16> to vector<128x128xbf16>
    %cst_53 = arith.constant dense<0.000000e+00> : vector<128x128xf32>
    %53 = tpu.matmul %50, %52, %cst_53 {dimension_numbers = #tpu.dot_dimension_numbers<[1], [0], [0], [1], [0, 0, 1, 1], [], []>} : vector<128x128xbf16>, vector<128x128xbf16>, vector<128x128xf32> -> vector<128x128xf32>
    %54 = arith.addf %45, %53 : vector<128x128xf32>
    %c0_54 = arith.constant 0 : index
    %c0_55 = arith.constant 0 : index
    %c2_56 = arith.constant 2 : index
    %c0_57 = arith.constant 0 : index
    %c0_58 = arith.constant 0 : index
    %55 = vector.load %arg2[%c0_54, %c0_55, %c2_56, %c0_57, %c0_58] : memref<1x1x10x18x128xbf16, #tpu.memory_space<vmem>>, vector<1x1x8x16x128xbf16>
    %56 = vector.shape_cast %55 : vector<1x1x8x16x128xbf16> to vector<8x16x128xbf16>
    %cst_59 = arith.constant 0.000000e+00 : bf16
    %57 = vector.broadcast %cst_59 : bf16 to vector<8x16x128xbf16>
    %58 = arith.maximumf %56, %57 : vector<8x16x128xbf16>
    %59 = vector.shape_cast %58 : vector<8x16x128xbf16> to vector<128x128xbf16>
    %c6 = arith.constant 6 : index
    %c0_60 = arith.constant 0 : index
    %c0_61 = arith.constant 0 : index
    %60 = vector.load %arg3[%c6, %c0_60, %c0_61] : memref<9x128x128xbf16, #tpu.memory_space<vmem>>, vector<1x128x128xbf16>
    %61 = vector.shape_cast %60 : vector<1x128x128xbf16> to vector<128x128xbf16>
    %cst_62 = arith.constant dense<0.000000e+00> : vector<128x128xf32>
    %62 = tpu.matmul %59, %61, %cst_62 {dimension_numbers = #tpu.dot_dimension_numbers<[1], [0], [0], [1], [0, 0, 1, 1], [], []>} : vector<128x128xbf16>, vector<128x128xbf16>, vector<128x128xf32> -> vector<128x128xf32>
    %63 = arith.addf %54, %62 : vector<128x128xf32>
    %c0_63 = arith.constant 0 : index
    %c0_64 = arith.constant 0 : index
    %c2_65 = arith.constant 2 : index
    %c1_66 = arith.constant 1 : index
    %c0_67 = arith.constant 0 : index
    %64 = vector.load %arg2[%c0_63, %c0_64, %c2_65, %c1_66, %c0_67] : memref<1x1x10x18x128xbf16, #tpu.memory_space<vmem>>, vector<1x1x8x16x128xbf16>
    %65 = vector.shape_cast %64 : vector<1x1x8x16x128xbf16> to vector<8x16x128xbf16>
    %cst_68 = arith.constant 0.000000e+00 : bf16
    %66 = vector.broadcast %cst_68 : bf16 to vector<8x16x128xbf16>
    %67 = arith.maximumf %65, %66 : vector<8x16x128xbf16>
    %68 = vector.shape_cast %67 : vector<8x16x128xbf16> to vector<128x128xbf16>
    %c7 = arith.constant 7 : index
    %c0_69 = arith.constant 0 : index
    %c0_70 = arith.constant 0 : index
    %69 = vector.load %arg3[%c7, %c0_69, %c0_70] : memref<9x128x128xbf16, #tpu.memory_space<vmem>>, vector<1x128x128xbf16>
    %70 = vector.shape_cast %69 : vector<1x128x128xbf16> to vector<128x128xbf16>
    %cst_71 = arith.constant dense<0.000000e+00> : vector<128x128xf32>
    %71 = tpu.matmul %68, %70, %cst_71 {dimension_numbers = #tpu.dot_dimension_numbers<[1], [0], [0], [1], [0, 0, 1, 1], [], []>} : vector<128x128xbf16>, vector<128x128xbf16>, vector<128x128xf32> -> vector<128x128xf32>
    %72 = arith.addf %63, %71 : vector<128x128xf32>
    %c0_72 = arith.constant 0 : index
    %c0_73 = arith.constant 0 : index
    %c2_74 = arith.constant 2 : index
    %c2_75 = arith.constant 2 : index
    %c0_76 = arith.constant 0 : index
    %73 = vector.load %arg2[%c0_72, %c0_73, %c2_74, %c2_75, %c0_76] : memref<1x1x10x18x128xbf16, #tpu.memory_space<vmem>>, vector<1x1x8x16x128xbf16>
    %74 = vector.shape_cast %73 : vector<1x1x8x16x128xbf16> to vector<8x16x128xbf16>
    %cst_77 = arith.constant 0.000000e+00 : bf16
    %75 = vector.broadcast %cst_77 : bf16 to vector<8x16x128xbf16>
    %76 = arith.maximumf %74, %75 : vector<8x16x128xbf16>
    %77 = vector.shape_cast %76 : vector<8x16x128xbf16> to vector<128x128xbf16>
    %c8 = arith.constant 8 : index
    %c0_78 = arith.constant 0 : index
    %c0_79 = arith.constant 0 : index
    %78 = vector.load %arg3[%c8, %c0_78, %c0_79] : memref<9x128x128xbf16, #tpu.memory_space<vmem>>, vector<1x128x128xbf16>
    %79 = vector.shape_cast %78 : vector<1x128x128xbf16> to vector<128x128xbf16>
    %cst_80 = arith.constant dense<0.000000e+00> : vector<128x128xf32>
    %80 = tpu.matmul %77, %79, %cst_80 {dimension_numbers = #tpu.dot_dimension_numbers<[1], [0], [0], [1], [0, 0, 1, 1], [], []>} : vector<128x128xbf16>, vector<128x128xbf16>, vector<128x128xf32> -> vector<128x128xf32>
    %81 = arith.addf %72, %80 : vector<128x128xf32>
    %c0_81 = arith.constant 0 : index
    %c0_82 = arith.constant 0 : index
    %82 = vector.load %arg4[%c0_81, %c0_82] : memref<1x128xf32, #tpu.memory_space<vmem>>, vector<1x128xf32>
    %83 = vector.broadcast %82 : vector<1x128xf32> to vector<128x128xf32>
    %84 = arith.addf %81, %83 : vector<128x128xf32>
    %cst_83 = arith.constant 0.000000e+00 : f32
    %85 = vector.broadcast %cst_83 : f32 to vector<128x128xf32>
    %86 = arith.maximumf %84, %85 : vector<128x128xf32>
    %87 = arith.truncf %86 : vector<128x128xf32> to vector<128x128xbf16>
    %c0_84 = arith.constant 0 : index
    %c0_85 = arith.constant 0 : index
    %c0_86 = arith.constant 0 : index
    %c0_87 = arith.constant 0 : index
    %88 = vector.load %arg5[%c0_84, %c0_85, %c0_86, %c0_87] : memref<1x1x128x128xbf16, #tpu.memory_space<vmem>>, vector<1x1x128x128xbf16>
    %89 = vector.shape_cast %88 : vector<1x1x128x128xbf16> to vector<128x128xbf16>
    %90 = vector.shape_cast %87 : vector<128x128xbf16> to vector<1x1x128x128xbf16>
    tpu.vector_store %arg5[%c0_84, %c0_85, %c0_86, %c0_87], %90 {strides = array<i32>} : memref<1x1x128x128xbf16, #tpu.memory_space<vmem>>, vector<1x1x128x128xbf16>,
    return
  }
  func.func @transform_0(%arg0: i32, %arg1: i32) -> (i32, i32, i32, i32, i32) {
    %c0_i32 = arith.constant 0 : i32
    %c0_i32_0 = arith.constant 0 : i32
    %c0_i32_1 = arith.constant 0 : i32
    %c0_i32_2 = arith.constant 0 : i32
    return %arg0, %arg1, %c0_i32, %c0_i32_0, %c0_i32_1 : i32, i32, i32, i32, i32
  }
  func.func @transform_1(%arg0: i32, %arg1: i32) -> (i32, i32, i32) {
    %c0_i32 = arith.constant 0 : i32
    %c0_i32_0 = arith.constant 0 : i32
    %c0_i32_1 = arith.constant 0 : i32
    %c0_i32_2 = arith.constant 0 : i32
    return %c0_i32, %c0_i32_0, %c0_i32_1 : i32, i32, i32
  }
  func.func @transform_2(%arg0: i32, %arg1: i32) -> (i32, i32) {
    %c0_i32 = arith.constant 0 : i32
    %c0_i32_0 = arith.constant 0 : i32
    %c0_i32_1 = arith.constant 0 : i32
    return %c0_i32, %c0_i32_0 : i32, i32
  }
  func.func @transform_3(%arg0: i32, %arg1: i32) -> (i32, i32, i32, i32) {
    %c0_i32 = arith.constant 0 : i32
    %c0_i32_0 = arith.constant 0 : i32
    %c0_i32_1 = arith.constant 0 : i32
    return %arg0, %arg1, %c0_i32, %c0_i32_0 : i32, i32, i32, i32
  }
}

module attributes {stable_mosaic.version = 11 : i64} {
  func.func @_conv2_combine_kernel(%arg0: i32, %arg1: i32, %arg2: memref<1x1x10x18x128xbf16, #tpu.memory_space<vmem>>, %arg3: memref<1x1x128x128xbf16, #tpu.memory_space<vmem>>, %arg4: memref<9x128x128xbf16, #tpu.memory_space<vmem>>, %arg5: memref<1x128xf32, #tpu.memory_space<vmem>>, %arg6: memref<128x128xbf16, #tpu.memory_space<vmem>>, %arg7: memref<1x128xf32, #tpu.memory_space<vmem>>, %arg8: memref<1x1x32x128xf32, #tpu.memory_space<vmem>>, %arg9: memref<128x128xf32, #tpu.memory_space<vmem>>) attributes {dimension_semantics = [#tpu.dimension_semantics<parallel>, #tpu.dimension_semantics<parallel>], iteration_bounds = array<i64: 2, 2>, scalar_prefetch = 0 : i64, scratch_operands = 1 : i64, tpu.core_type = #tpu.core_type<tc>, window_params = [{transform_indices = @transform_0, window_bounds = array<i64: 1, 1, 10, 18, 128>}, {transform_indices = @transform_1, window_bounds = array<i64: 1, 1, 128, 128>}, {pipeline_mode = #tpu.pipeline_mode<synchronous>, transform_indices = @transform_2, window_bounds = array<i64: 9, 128, 128>}, {pipeline_mode = #tpu.pipeline_mode<synchronous>, transform_indices = @transform_3, window_bounds = array<i64: 1, 128>}, {pipeline_mode = #tpu.pipeline_mode<synchronous>, transform_indices = @transform_4, window_bounds = array<i64: 128, 128>}, {pipeline_mode = #tpu.pipeline_mode<synchronous>, transform_indices = @transform_5, window_bounds = array<i64: 1, 128>}, {transform_indices = @transform_6, window_bounds = array<i64: 1, 1, 32, 128>}]} {
    %cst = arith.constant 0.000000e+00 : f32
    %0 = vector.broadcast %cst : f32 to vector<128x128xf32>
    %c0 = arith.constant 0 : index
    %c0_0 = arith.constant 0 : index
    %c0_1 = arith.constant 0 : index
    %c0_2 = arith.constant 0 : index
    %c0_3 = arith.constant 0 : index
    %1 = vector.load %arg2[%c0, %c0_0, %c0_1, %c0_2, %c0_3] : memref<1x1x10x18x128xbf16, #tpu.memory_space<vmem>>, vector<1x1x8x16x128xbf16>
    %2 = vector.shape_cast %1 : vector<1x1x8x16x128xbf16> to vector<8x16x128xbf16>
    %3 = vector.shape_cast %2 : vector<8x16x128xbf16> to vector<128x128xbf16>
    %c0_4 = arith.constant 0 : index
    %c0_5 = arith.constant 0 : index
    %c0_6 = arith.constant 0 : index
    %4 = vector.load %arg4[%c0_4, %c0_5, %c0_6] : memref<9x128x128xbf16, #tpu.memory_space<vmem>>, vector<1x128x128xbf16>
    %5 = vector.shape_cast %4 : vector<1x128x128xbf16> to vector<128x128xbf16>
    %cst_7 = arith.constant dense<0.000000e+00> : vector<128x128xf32>
    %6 = tpu.matmul %3, %5, %cst_7 {dimension_numbers = #tpu.dot_dimension_numbers<[1], [0], [0], [1], [0, 0, 1, 1], [], []>} : vector<128x128xbf16>, vector<128x128xbf16>, vector<128x128xf32> -> vector<128x128xf32>
    %7 = arith.addf %0, %6 : vector<128x128xf32>
    %c0_8 = arith.constant 0 : index
    %c0_9 = arith.constant 0 : index
    %c0_10 = arith.constant 0 : index
    %c1 = arith.constant 1 : index
    %c0_11 = arith.constant 0 : index
    %8 = vector.load %arg2[%c0_8, %c0_9, %c0_10, %c1, %c0_11] : memref<1x1x10x18x128xbf16, #tpu.memory_space<vmem>>, vector<1x1x8x16x128xbf16>
    %9 = vector.shape_cast %8 : vector<1x1x8x16x128xbf16> to vector<8x16x128xbf16>
    %10 = vector.shape_cast %9 : vector<8x16x128xbf16> to vector<128x128xbf16>
    %c1_12 = arith.constant 1 : index
    %c0_13 = arith.constant 0 : index
    %c0_14 = arith.constant 0 : index
    %11 = vector.load %arg4[%c1_12, %c0_13, %c0_14] : memref<9x128x128xbf16, #tpu.memory_space<vmem>>, vector<1x128x128xbf16>
    %12 = vector.shape_cast %11 : vector<1x128x128xbf16> to vector<128x128xbf16>
    %cst_15 = arith.constant dense<0.000000e+00> : vector<128x128xf32>
    %13 = tpu.matmul %10, %12, %cst_15 {dimension_numbers = #tpu.dot_dimension_numbers<[1], [0], [0], [1], [0, 0, 1, 1], [], []>} : vector<128x128xbf16>, vector<128x128xbf16>, vector<128x128xf32> -> vector<128x128xf32>
    %14 = arith.addf %7, %13 : vector<128x128xf32>
    %c0_16 = arith.constant 0 : index
    %c0_17 = arith.constant 0 : index
    %c0_18 = arith.constant 0 : index
    %c2 = arith.constant 2 : index
    %c0_19 = arith.constant 0 : index
    %15 = vector.load %arg2[%c0_16, %c0_17, %c0_18, %c2, %c0_19] : memref<1x1x10x18x128xbf16, #tpu.memory_space<vmem>>, vector<1x1x8x16x128xbf16>
    %16 = vector.shape_cast %15 : vector<1x1x8x16x128xbf16> to vector<8x16x128xbf16>
    %17 = vector.shape_cast %16 : vector<8x16x128xbf16> to vector<128x128xbf16>
    %c2_20 = arith.constant 2 : index
    %c0_21 = arith.constant 0 : index
    %c0_22 = arith.constant 0 : index
    %18 = vector.load %arg4[%c2_20, %c0_21, %c0_22] : memref<9x128x128xbf16, #tpu.memory_space<vmem>>, vector<1x128x128xbf16>
    %19 = vector.shape_cast %18 : vector<1x128x128xbf16> to vector<128x128xbf16>
    %cst_23 = arith.constant dense<0.000000e+00> : vector<128x128xf32>
    %20 = tpu.matmul %17, %19, %cst_23 {dimension_numbers = #tpu.dot_dimension_numbers<[1], [0], [0], [1], [0, 0, 1, 1], [], []>} : vector<128x128xbf16>, vector<128x128xbf16>, vector<128x128xf32> -> vector<128x128xf32>
    %21 = arith.addf %14, %20 : vector<128x128xf32>
    %c0_24 = arith.constant 0 : index
    %c0_25 = arith.constant 0 : index
    %c1_26 = arith.constant 1 : index
    %c0_27 = arith.constant 0 : index
    %c0_28 = arith.constant 0 : index
    %22 = vector.load %arg2[%c0_24, %c0_25, %c1_26, %c0_27, %c0_28] : memref<1x1x10x18x128xbf16, #tpu.memory_space<vmem>>, vector<1x1x8x16x128xbf16>
    %23 = vector.shape_cast %22 : vector<1x1x8x16x128xbf16> to vector<8x16x128xbf16>
    %24 = vector.shape_cast %23 : vector<8x16x128xbf16> to vector<128x128xbf16>
    %c3 = arith.constant 3 : index
    %c0_29 = arith.constant 0 : index
    %c0_30 = arith.constant 0 : index
    %25 = vector.load %arg4[%c3, %c0_29, %c0_30] : memref<9x128x128xbf16, #tpu.memory_space<vmem>>, vector<1x128x128xbf16>
    %26 = vector.shape_cast %25 : vector<1x128x128xbf16> to vector<128x128xbf16>
    %cst_31 = arith.constant dense<0.000000e+00> : vector<128x128xf32>
    %27 = tpu.matmul %24, %26, %cst_31 {dimension_numbers = #tpu.dot_dimension_numbers<[1], [0], [0], [1], [0, 0, 1, 1], [], []>} : vector<128x128xbf16>, vector<128x128xbf16>, vector<128x128xf32> -> vector<128x128xf32>
    %28 = arith.addf %21, %27 : vector<128x128xf32>
    %c0_32 = arith.constant 0 : index
    %c0_33 = arith.constant 0 : index
    %c1_34 = arith.constant 1 : index
    %c1_35 = arith.constant 1 : index
    %c0_36 = arith.constant 0 : index
    %29 = vector.load %arg2[%c0_32, %c0_33, %c1_34, %c1_35, %c0_36] : memref<1x1x10x18x128xbf16, #tpu.memory_space<vmem>>, vector<1x1x8x16x128xbf16>
    %30 = vector.shape_cast %29 : vector<1x1x8x16x128xbf16> to vector<8x16x128xbf16>
    %31 = vector.shape_cast %30 : vector<8x16x128xbf16> to vector<128x128xbf16>
    %c4 = arith.constant 4 : index
    %c0_37 = arith.constant 0 : index
    %c0_38 = arith.constant 0 : index
    %32 = vector.load %arg4[%c4, %c0_37, %c0_38] : memref<9x128x128xbf16, #tpu.memory_space<vmem>>, vector<1x128x128xbf16>
    %33 = vector.shape_cast %32 : vector<1x128x128xbf16> to vector<128x128xbf16>
    %cst_39 = arith.constant dense<0.000000e+00> : vector<128x128xf32>
    %34 = tpu.matmul %31, %33, %cst_39 {dimension_numbers = #tpu.dot_dimension_numbers<[1], [0], [0], [1], [0, 0, 1, 1], [], []>} : vector<128x128xbf16>, vector<128x128xbf16>, vector<128x128xf32> -> vector<128x128xf32>
    %35 = arith.addf %28, %34 : vector<128x128xf32>
    %c0_40 = arith.constant 0 : index
    %c0_41 = arith.constant 0 : index
    %c1_42 = arith.constant 1 : index
    %c2_43 = arith.constant 2 : index
    %c0_44 = arith.constant 0 : index
    %36 = vector.load %arg2[%c0_40, %c0_41, %c1_42, %c2_43, %c0_44] : memref<1x1x10x18x128xbf16, #tpu.memory_space<vmem>>, vector<1x1x8x16x128xbf16>
    %37 = vector.shape_cast %36 : vector<1x1x8x16x128xbf16> to vector<8x16x128xbf16>
    %38 = vector.shape_cast %37 : vector<8x16x128xbf16> to vector<128x128xbf16>
    %c5 = arith.constant 5 : index
    %c0_45 = arith.constant 0 : index
    %c0_46 = arith.constant 0 : index
    %39 = vector.load %arg4[%c5, %c0_45, %c0_46] : memref<9x128x128xbf16, #tpu.memory_space<vmem>>, vector<1x128x128xbf16>
    %40 = vector.shape_cast %39 : vector<1x128x128xbf16> to vector<128x128xbf16>
    %cst_47 = arith.constant dense<0.000000e+00> : vector<128x128xf32>
    %41 = tpu.matmul %38, %40, %cst_47 {dimension_numbers = #tpu.dot_dimension_numbers<[1], [0], [0], [1], [0, 0, 1, 1], [], []>} : vector<128x128xbf16>, vector<128x128xbf16>, vector<128x128xf32> -> vector<128x128xf32>
    %42 = arith.addf %35, %41 : vector<128x128xf32>
    %c0_48 = arith.constant 0 : index
    %c0_49 = arith.constant 0 : index
    %c2_50 = arith.constant 2 : index
    %c0_51 = arith.constant 0 : index
    %c0_52 = arith.constant 0 : index
    %43 = vector.load %arg2[%c0_48, %c0_49, %c2_50, %c0_51, %c0_52] : memref<1x1x10x18x128xbf16, #tpu.memory_space<vmem>>, vector<1x1x8x16x128xbf16>
    %44 = vector.shape_cast %43 : vector<1x1x8x16x128xbf16> to vector<8x16x128xbf16>
    %45 = vector.shape_cast %44 : vector<8x16x128xbf16> to vector<128x128xbf16>
    %c6 = arith.constant 6 : index
    %c0_53 = arith.constant 0 : index
    %c0_54 = arith.constant 0 : index
    %46 = vector.load %arg4[%c6, %c0_53, %c0_54] : memref<9x128x128xbf16, #tpu.memory_space<vmem>>, vector<1x128x128xbf16>
    %47 = vector.shape_cast %46 : vector<1x128x128xbf16> to vector<128x128xbf16>
    %cst_55 = arith.constant dense<0.000000e+00> : vector<128x128xf32>
    %48 = tpu.matmul %45, %47, %cst_55 {dimension_numbers = #tpu.dot_dimension_numbers<[1], [0], [0], [1], [0, 0, 1, 1], [], []>} : vector<128x128xbf16>, vector<128x128xbf16>, vector<128x128xf32> -> vector<128x128xf32>
    %49 = arith.addf %42, %48 : vector<128x128xf32>
    %c0_56 = arith.constant 0 : index
    %c0_57 = arith.constant 0 : index
    %c2_58 = arith.constant 2 : index
    %c1_59 = arith.constant 1 : index
    %c0_60 = arith.constant 0 : index
    %50 = vector.load %arg2[%c0_56, %c0_57, %c2_58, %c1_59, %c0_60] : memref<1x1x10x18x128xbf16, #tpu.memory_space<vmem>>, vector<1x1x8x16x128xbf16>
    %51 = vector.shape_cast %50 : vector<1x1x8x16x128xbf16> to vector<8x16x128xbf16>
    %52 = vector.shape_cast %51 : vector<8x16x128xbf16> to vector<128x128xbf16>
    %c7 = arith.constant 7 : index
    %c0_61 = arith.constant 0 : index
    %c0_62 = arith.constant 0 : index
    %53 = vector.load %arg4[%c7, %c0_61, %c0_62] : memref<9x128x128xbf16, #tpu.memory_space<vmem>>, vector<1x128x128xbf16>
    %54 = vector.shape_cast %53 : vector<1x128x128xbf16> to vector<128x128xbf16>
    %cst_63 = arith.constant dense<0.000000e+00> : vector<128x128xf32>
    %55 = tpu.matmul %52, %54, %cst_63 {dimension_numbers = #tpu.dot_dimension_numbers<[1], [0], [0], [1], [0, 0, 1, 1], [], []>} : vector<128x128xbf16>, vector<128x128xbf16>, vector<128x128xf32> -> vector<128x128xf32>
    %56 = arith.addf %49, %55 : vector<128x128xf32>
    %c0_64 = arith.constant 0 : index
    %c0_65 = arith.constant 0 : index
    %c2_66 = arith.constant 2 : index
    %c2_67 = arith.constant 2 : index
    %c0_68 = arith.constant 0 : index
    %57 = vector.load %arg2[%c0_64, %c0_65, %c2_66, %c2_67, %c0_68] : memref<1x1x10x18x128xbf16, #tpu.memory_space<vmem>>, vector<1x1x8x16x128xbf16>
    %58 = vector.shape_cast %57 : vector<1x1x8x16x128xbf16> to vector<8x16x128xbf16>
    %59 = vector.shape_cast %58 : vector<8x16x128xbf16> to vector<128x128xbf16>
    %c8 = arith.constant 8 : index
    %c0_69 = arith.constant 0 : index
    %c0_70 = arith.constant 0 : index
    %60 = vector.load %arg4[%c8, %c0_69, %c0_70] : memref<9x128x128xbf16, #tpu.memory_space<vmem>>, vector<1x128x128xbf16>
    %61 = vector.shape_cast %60 : vector<1x128x128xbf16> to vector<128x128xbf16>
    %cst_71 = arith.constant dense<0.000000e+00> : vector<128x128xf32>
    %62 = tpu.matmul %59, %61, %cst_71 {dimension_numbers = #tpu.dot_dimension_numbers<[1], [0], [0], [1], [0, 0, 1, 1], [], []>} : vector<128x128xbf16>, vector<128x128xbf16>, vector<128x128xf32> -> vector<128x128xf32>
    %63 = arith.addf %56, %62 : vector<128x128xf32>
    %c0_72 = arith.constant 0 : index
    %c0_73 = arith.constant 0 : index
    %64 = vector.load %arg5[%c0_72, %c0_73] : memref<1x128xf32, #tpu.memory_space<vmem>>, vector<1x128xf32>
    %65 = vector.broadcast %64 : vector<1x128xf32> to vector<128x128xf32>
    %66 = arith.addf %63, %65 : vector<128x128xf32>
    %c0_74 = arith.constant 0 : index
    %c0_75 = arith.constant 0 : index
    %c0_76 = arith.constant 0 : index
    %c0_77 = arith.constant 0 : index
    %67 = vector.load %arg3[%c0_74, %c0_75, %c0_76, %c0_77] : memref<1x1x128x128xbf16, #tpu.memory_space<vmem>>, vector<1x1x128x128xbf16>
    %68 = vector.shape_cast %67 : vector<1x1x128x128xbf16> to vector<128x128xbf16>
    %c0_78 = arith.constant 0 : index
    %c0_79 = arith.constant 0 : index
    %69 = vector.load %arg6[%c0_78, %c0_79] : memref<128x128xbf16, #tpu.memory_space<vmem>>, vector<128x128xbf16>
    %cst_80 = arith.constant dense<0.000000e+00> : vector<128x128xf32>
    %70 = tpu.matmul %68, %69, %cst_80 {dimension_numbers = #tpu.dot_dimension_numbers<[1], [0], [0], [1], [0, 0, 1, 1], [], []>} : vector<128x128xbf16>, vector<128x128xbf16>, vector<128x128xf32> -> vector<128x128xf32>
    %c0_81 = arith.constant 0 : index
    %c0_82 = arith.constant 0 : index
    %71 = vector.load %arg7[%c0_81, %c0_82] : memref<1x128xf32, #tpu.memory_space<vmem>>, vector<1x128xf32>
    %72 = vector.broadcast %71 : vector<1x128xf32> to vector<128x128xf32>
    %73 = arith.addf %70, %72 : vector<128x128xf32>
    %74 = arith.addf %66, %73 : vector<128x128xf32>
    %c0_83 = arith.constant 0 : index
    %c0_84 = arith.constant 0 : index
    %75 = vector.load %arg9[%c0_83, %c0_84] : memref<128x128xf32, #tpu.memory_space<vmem>>, vector<128x128xf32>
    tpu.vector_store %arg9[%c0_83, %c0_84], %74 {strides = array<i32>} : memref<128x128xf32, #tpu.memory_space<vmem>>, vector<128x128xf32>,
    %c0_85 = arith.constant 0 : index
    %c0_86 = arith.constant 0 : index
    %76 = tpu.strided_load %arg9[%c0_85, %c0_86] {strides = array<i32: 2, 1>} : memref<128x128xf32, #tpu.memory_space<vmem>>, vector<8x128xf32>
    %c1_87 = arith.constant 1 : index
    %c0_88 = arith.constant 0 : index
    %77 = tpu.strided_load %arg9[%c1_87, %c0_88] {strides = array<i32: 2, 1>} : memref<128x128xf32, #tpu.memory_space<vmem>>, vector<8x128xf32>
    %78 = arith.addf %76, %77 : vector<8x128xf32>
    %c16 = arith.constant 16 : index
    %c0_89 = arith.constant 0 : index
    %79 = tpu.strided_load %arg9[%c16, %c0_89] {strides = array<i32: 2, 1>} : memref<128x128xf32, #tpu.memory_space<vmem>>, vector<8x128xf32>
    %80 = arith.addf %78, %79 : vector<8x128xf32>
    %c17 = arith.constant 17 : index
    %c0_90 = arith.constant 0 : index
    %81 = tpu.strided_load %arg9[%c17, %c0_90] {strides = array<i32: 2, 1>} : memref<128x128xf32, #tpu.memory_space<vmem>>, vector<8x128xf32>
    %82 = arith.addf %80, %81 : vector<8x128xf32>
    %cst_91 = arith.constant 2.500000e-01 : f32
    %83 = vector.broadcast %cst_91 : f32 to vector<8x128xf32>
    %84 = arith.mulf %83, %82 : vector<8x128xf32>
    %c0_92 = arith.constant 0 : index
    %c0_93 = arith.constant 0 : index
    %c0_94 = arith.constant 0 : index
    %c0_95 = arith.constant 0 : index
    %85 = vector.load %arg8[%c0_92, %c0_93, %c0_94, %c0_95] : memref<1x1x32x128xf32, #tpu.memory_space<vmem>>, vector<1x1x8x128xf32>
    %86 = vector.shape_cast %85 : vector<1x1x8x128xf32> to vector<8x128xf32>
    %87 = vector.shape_cast %84 : vector<8x128xf32> to vector<1x1x8x128xf32>
    tpu.vector_store %arg8[%c0_92, %c0_93, %c0_94, %c0_95], %87 {strides = array<i32>} : memref<1x1x32x128xf32, #tpu.memory_space<vmem>>, vector<1x1x8x128xf32>,
    %c32 = arith.constant 32 : index
    %c0_96 = arith.constant 0 : index
    %88 = tpu.strided_load %arg9[%c32, %c0_96] {strides = array<i32: 2, 1>} : memref<128x128xf32, #tpu.memory_space<vmem>>, vector<8x128xf32>
    %c33 = arith.constant 33 : index
    %c0_97 = arith.constant 0 : index
    %89 = tpu.strided_load %arg9[%c33, %c0_97] {strides = array<i32: 2, 1>} : memref<128x128xf32, #tpu.memory_space<vmem>>, vector<8x128xf32>
    %90 = arith.addf %88, %89 : vector<8x128xf32>
    %c48 = arith.constant 48 : index
    %c0_98 = arith.constant 0 : index
    %91 = tpu.strided_load %arg9[%c48, %c0_98] {strides = array<i32: 2, 1>} : memref<128x128xf32, #tpu.memory_space<vmem>>, vector<8x128xf32>
    %92 = arith.addf %90, %91 : vector<8x128xf32>
    %c49 = arith.constant 49 : index
    %c0_99 = arith.constant 0 : index
    %93 = tpu.strided_load %arg9[%c49, %c0_99] {strides = array<i32: 2, 1>} : memref<128x128xf32, #tpu.memory_space<vmem>>, vector<8x128xf32>
    %94 = arith.addf %92, %93 : vector<8x128xf32>
    %cst_100 = arith.constant 2.500000e-01 : f32
    %95 = vector.broadcast %cst_100 : f32 to vector<8x128xf32>
    %96 = arith.mulf %95, %94 : vector<8x128xf32>
    %c0_101 = arith.constant 0 : index
    %c0_102 = arith.constant 0 : index
    %c8_103 = arith.constant 8 : index
    %c0_104 = arith.constant 0 : index
    %97 = vector.load %arg8[%c0_101, %c0_102, %c8_103, %c0_104] : memref<1x1x32x128xf32, #tpu.memory_space<vmem>>, vector<1x1x8x128xf32>
    %98 = vector.shape_cast %97 : vector<1x1x8x128xf32> to vector<8x128xf32>
    %99 = vector.shape_cast %96 : vector<8x128xf32> to vector<1x1x8x128xf32>
    tpu.vector_store %arg8[%c0_101, %c0_102, %c8_103, %c0_104], %99 {strides = array<i32>} : memref<1x1x32x128xf32, #tpu.memory_space<vmem>>, vector<1x1x8x128xf32>,
    %c64 = arith.constant 64 : index
    %c0_105 = arith.constant 0 : index
    %100 = tpu.strided_load %arg9[%c64, %c0_105] {strides = array<i32: 2, 1>} : memref<128x128xf32, #tpu.memory_space<vmem>>, vector<8x128xf32>
    %c65 = arith.constant 65 : index
    %c0_106 = arith.constant 0 : index
    %101 = tpu.strided_load %arg9[%c65, %c0_106] {strides = array<i32: 2, 1>} : memref<128x128xf32, #tpu.memory_space<vmem>>, vector<8x128xf32>
    %102 = arith.addf %100, %101 : vector<8x128xf32>
    %c80 = arith.constant 80 : index
    %c0_107 = arith.constant 0 : index
    %103 = tpu.strided_load %arg9[%c80, %c0_107] {strides = array<i32: 2, 1>} : memref<128x128xf32, #tpu.memory_space<vmem>>, vector<8x128xf32>
    %104 = arith.addf %102, %103 : vector<8x128xf32>
    %c81 = arith.constant 81 : index
    %c0_108 = arith.constant 0 : index
    %105 = tpu.strided_load %arg9[%c81, %c0_108] {strides = array<i32: 2, 1>} : memref<128x128xf32, #tpu.memory_space<vmem>>, vector<8x128xf32>
    %106 = arith.addf %104, %105 : vector<8x128xf32>
    %cst_109 = arith.constant 2.500000e-01 : f32
    %107 = vector.broadcast %cst_109 : f32 to vector<8x128xf32>
    %108 = arith.mulf %107, %106 : vector<8x128xf32>
    %c0_110 = arith.constant 0 : index
    %c0_111 = arith.constant 0 : index
    %c16_112 = arith.constant 16 : index
    %c0_113 = arith.constant 0 : index
    %109 = vector.load %arg8[%c0_110, %c0_111, %c16_112, %c0_113] : memref<1x1x32x128xf32, #tpu.memory_space<vmem>>, vector<1x1x8x128xf32>
    %110 = vector.shape_cast %109 : vector<1x1x8x128xf32> to vector<8x128xf32>
    %111 = vector.shape_cast %108 : vector<8x128xf32> to vector<1x1x8x128xf32>
    tpu.vector_store %arg8[%c0_110, %c0_111, %c16_112, %c0_113], %111 {strides = array<i32>} : memref<1x1x32x128xf32, #tpu.memory_space<vmem>>, vector<1x1x8x128xf32>,
    %c96 = arith.constant 96 : index
    %c0_114 = arith.constant 0 : index
    %112 = tpu.strided_load %arg9[%c96, %c0_114] {strides = array<i32: 2, 1>} : memref<128x128xf32, #tpu.memory_space<vmem>>, vector<8x128xf32>
    %c97 = arith.constant 97 : index
    %c0_115 = arith.constant 0 : index
    %113 = tpu.strided_load %arg9[%c97, %c0_115] {strides = array<i32: 2, 1>} : memref<128x128xf32, #tpu.memory_space<vmem>>, vector<8x128xf32>
    %114 = arith.addf %112, %113 : vector<8x128xf32>
    %c112 = arith.constant 112 : index
    %c0_116 = arith.constant 0 : index
    %115 = tpu.strided_load %arg9[%c112, %c0_116] {strides = array<i32: 2, 1>} : memref<128x128xf32, #tpu.memory_space<vmem>>, vector<8x128xf32>
    %116 = arith.addf %114, %115 : vector<8x128xf32>
    %c113 = arith.constant 113 : index
    %c0_117 = arith.constant 0 : index
    %117 = tpu.strided_load %arg9[%c113, %c0_117] {strides = array<i32: 2, 1>} : memref<128x128xf32, #tpu.memory_space<vmem>>, vector<8x128xf32>
    %118 = arith.addf %116, %117 : vector<8x128xf32>
    %cst_118 = arith.constant 2.500000e-01 : f32
    %119 = vector.broadcast %cst_118 : f32 to vector<8x128xf32>
    %120 = arith.mulf %119, %118 : vector<8x128xf32>
    %c0_119 = arith.constant 0 : index
    %c0_120 = arith.constant 0 : index
    %c24 = arith.constant 24 : index
    %c0_121 = arith.constant 0 : index
    %121 = vector.load %arg8[%c0_119, %c0_120, %c24, %c0_121] : memref<1x1x32x128xf32, #tpu.memory_space<vmem>>, vector<1x1x8x128xf32>
    %122 = vector.shape_cast %121 : vector<1x1x8x128xf32> to vector<8x128xf32>
    %123 = vector.shape_cast %120 : vector<8x128xf32> to vector<1x1x8x128xf32>
    tpu.vector_store %arg8[%c0_119, %c0_120, %c24, %c0_121], %123 {strides = array<i32>} : memref<1x1x32x128xf32, #tpu.memory_space<vmem>>, vector<1x1x8x128xf32>,
    return
  }
  func.func @transform_0(%arg0: i32, %arg1: i32) -> (i32, i32, i32, i32, i32) {
    %c0_i32 = arith.constant 0 : i32
    %c0_i32_0 = arith.constant 0 : i32
    %c0_i32_1 = arith.constant 0 : i32
    %c0_i32_2 = arith.constant 0 : i32
    return %arg0, %arg1, %c0_i32, %c0_i32_0, %c0_i32_1 : i32, i32, i32, i32, i32
  }
  func.func @transform_1(%arg0: i32, %arg1: i32) -> (i32, i32, i32, i32) {
    %c0_i32 = arith.constant 0 : i32
    %c0_i32_0 = arith.constant 0 : i32
    %c0_i32_1 = arith.constant 0 : i32
    return %arg0, %arg1, %c0_i32, %c0_i32_0 : i32, i32, i32, i32
  }
  func.func @transform_2(%arg0: i32, %arg1: i32) -> (i32, i32, i32) {
    %c0_i32 = arith.constant 0 : i32
    %c0_i32_0 = arith.constant 0 : i32
    %c0_i32_1 = arith.constant 0 : i32
    %c0_i32_2 = arith.constant 0 : i32
    return %c0_i32, %c0_i32_0, %c0_i32_1 : i32, i32, i32
  }
  func.func @transform_3(%arg0: i32, %arg1: i32) -> (i32, i32) {
    %c0_i32 = arith.constant 0 : i32
    %c0_i32_0 = arith.constant 0 : i32
    %c0_i32_1 = arith.constant 0 : i32
    return %c0_i32, %c0_i32_0 : i32, i32
  }
  func.func @transform_4(%arg0: i32, %arg1: i32) -> (i32, i32) {
    %c0_i32 = arith.constant 0 : i32
    %c0_i32_0 = arith.constant 0 : i32
    %c0_i32_1 = arith.constant 0 : i32
    return %c0_i32, %c0_i32_0 : i32, i32
  }
  func.func @transform_5(%arg0: i32, %arg1: i32) -> (i32, i32) {
    %c0_i32 = arith.constant 0 : i32
    %c0_i32_0 = arith.constant 0 : i32
    %c0_i32_1 = arith.constant 0 : i32
    return %c0_i32, %c0_i32_0 : i32, i32
  }
  func.func @transform_6(%arg0: i32, %arg1: i32) -> (i32, i32, i32, i32) {
    %c0_i32 = arith.constant 0 : i32
    %c0_i32_0 = arith.constant 0 : i32
    %c0_i32_1 = arith.constant 0 : i32
    return %arg0, %arg1, %c0_i32, %c0_i32_0 : i32, i32, i32, i32
  }
}

</mosaic_0001>

<llo_original>
// kernel: resblock_forward.2
$region0: #{resblock_forward.2}
  #allocation0 [shape = 'u32[]', space=smem, size = 0x4, offset = 0x4, fixed_abs, tag = 'smem constant byte address 0x4 - core index']
  #allocation1 [shape = 'u32[144,128]{1,0:T(1,128)}', space=vmem, size = 0x12000, scoped, tag = 'internal scratch']
  %s0 = inlined_call_operand.vmem [shape: bf16[2,2,10,18,128], index: 0, kind: input, shape index: {}]
  %s1 = inlined_call_operand.vmem [shape: bf16[9,128,128], index: 1, kind: input, shape index: {}]
  %s2 = inlined_call_operand.vmem [shape: f32[1,128], index: 2, kind: input, shape index: {}]
  %s3 = inlined_call_operand.vmem [shape: bf16[2,2,128,128], index: 3, kind: output, shape index: {}]
  %s4 = sld [smem:[#allocation0]]
  $region45: #{resblock_forward.2} parent=0
    _
  %s6 = ssub.s32 1, %s4
  %s7 = scalar_select 0, %s6, %s4
  loop: start=0, step=1, limit=6
  $region2: #{resblock_forward.2} parent=0 // loop_pre_header
    _
  $region3: #{resblock_forward.2} parent=0 // loop_header
    %s9 = sphi 0, %s13
    %p10 = scmp.ge.s32.totalorder %s9, 6
    %s16 = sphi 0, %s28
    %s17 = sphi 0, %s24
    %s18 = sphi 0, %s16
    %s19 = sphi 0, %s17
    %s20 = sphi 0, %s18
    %s21 = sphi 0, %s19
    %s33 = sphi 0, %s35
    %s36 = sphi 0, %s33
    %s37 = sphi 0, %s36
    %s53 = sphi 0, %s37
    %s57 = sphi 0, %s57
    %s59 = sphi 0, %s57
    %s60 = sphi 0, %s59
    %s74 = sphi 0, %s60
    %s78 = sphi 0, %s78
    %s80 = sphi 0, %s78
    %s81 = sphi 0, %s80
    %s95 = sphi 0, %s81
    %s103 = sphi 0, %s105
    %s106 = sphi 0, %s103
    %s107 = sphi 0, %s106
    %s123 = sphi 0, %s107
  $region4: #{resblock_forward.2} parent=0 // loop_header_branch
    %12 = sbr.rel (%p10) target = $region8
  $region5: #{resblock_forward.2} parent=0 // loop_body
    %s14 = ssub.s32 %s9, 1
    %s15 = ssub.s32 %s9, 2
    %s22 = sadd.s32 1, %s17
    %p23 = scmp.ge.s32.totalorder %s22, 2
    %s24 = scalar_select %p23, 0, %s22
    %s25 = sadd.s32 1, %s16
    %s26 = scalar_select %p23, %s25, %s16
    %p27 = scmp.ge.s32.totalorder %s26, 2
    %s28 = scalar_select %p27, 0, %s26
    %s29 = ssub.s32 %s16, %s28
    %s30 = ssub.s32 %s17, %s24
    %s31 = sor.u32 %s29, %s30
    %p32 = scmp.eq.s32.totalorder %s31, 0
    %s34 = sadd.s32 %s33, 1
    %s35 = scalar_select %p32, %s33, %s34
    %p38 = pneg %p32
    %p39 = scmp.eq.s32.totalorder %s9, 3
    %p40 = por %p38, %p39
    %p41 = scmp.ne.s32.totalorder %s33, %s36
    %p42 = scmp.eq.s32.totalorder %s9, 0
    %p43 = por %p41, %p42
    %p44 = scmp.ne.s32.totalorder %s33, %s36
    %p45 = scmp.eq.s32.totalorder %s14, 3
    %p46 = por %p44, %p45
    %p47 = scmp.ne.s32.totalorder %s36, %s37
    %p48 = scmp.eq.s32.totalorder %s14, 0
    %p49 = por %p47, %p48
    %p50 = scmp.ne.s32.totalorder %s36, %s37
    %p51 = scmp.eq.s32.totalorder %s15, 3
    %p52 = por %p50, %p51
    %p54 = scmp.ne.s32.totalorder %s37, %s53
    %p55 = scmp.eq.s32.totalorder %s15, 0
    %p56 = por %p54, %p55
    %s58 = sadd.s32 %s57, 1
    %p61 = scmp.eq.s32.totalorder %s9, 3
    %p62 = scmp.ne.s32.totalorder %s57, %s59
    %p63 = scmp.eq.s32.totalorder %s9, 0
    %p64 = por %p62, %p63
    %p65 = scmp.ne.s32.totalorder %s57, %s59
    %p66 = scmp.eq.s32.totalorder %s14, 3
    %p67 = por %p65, %p66
    %p68 = scmp.ne.s32.totalorder %s59, %s60
    %p69 = scmp.eq.s32.totalorder %s14, 0
    %p70 = por %p68, %p69
    %p71 = scmp.ne.s32.totalorder %s59, %s60
    %p72 = scmp.eq.s32.totalorder %s15, 3
    %p73 = por %p71, %p72
    %p75 = scmp.ne.s32.totalorder %s60, %s74
    %p76 = scmp.eq.s32.totalorder %s15, 0
    %p77 = por %p75, %p76
    %s79 = sadd.s32 %s78, 1
    %p82 = scmp.eq.s32.totalorder %s9, 3
    %p83 = scmp.ne.s32.totalorder %s78, %s80
    %p84 = scmp.eq.s32.totalorder %s9, 0
    %p85 = por %p83, %p84
    %p86 = scmp.ne.s32.totalorder %s78, %s80
    %p87 = scmp.eq.s32.totalorder %s14, 3
    %p88 = por %p86, %p87
    %p89 = scmp.ne.s32.totalorder %s80, %s81
    %p90 = scmp.eq.s32.totalorder %s14, 0
    %p91 = por %p89, %p90
    %p92 = scmp.ne.s32.totalorder %s80, %s81
    %p93 = scmp.eq.s32.totalorder %s15, 3
    %p94 = por %p92, %p93
    %p96 = scmp.ne.s32.totalorder %s81, %s95
    %p97 = scmp.eq.s32.totalorder %s15, 0
    %p98 = por %p96, %p97
    %s99 = ssub.s32 %s16, %s28
    %s100 = ssub.s32 %s17, %s24
    %s101 = sor.u32 %s99, %s100
    %p102 = scmp.eq.s32.totalorder %s101, 0
    %s104 = sadd.s32 %s103, 1
    %s105 = scalar_select %p102, %s103, %s104
    %p108 = pneg %p102
    %p109 = scmp.eq.s32.totalorder %s9, 3
    %p110 = por %p108, %p109
    %p111 = scmp.ne.s32.totalorder %s103, %s106
    %p112 = scmp.eq.s32.totalorder %s9, 0
    %p113 = por %p111, %p112
    %p114 = scmp.ne.s32.totalorder %s103, %s106
    %p115 = scmp.eq.s32.totalorder %s14, 3
    %p116 = por %p114, %p115
    %p117 = scmp.ne.s32.totalorder %s106, %s107
    %p118 = scmp.eq.s32.totalorder %s14, 0
    %p119 = por %p117, %p118
    %p120 = scmp.ne.s32.totalorder %s106, %s107
    %p121 = scmp.eq.s32.totalorder %s15, 3
    %p122 = por %p120, %p121
    %p124 = scmp.ne.s32.totalorder %s107, %s123
    %p125 = scmp.eq.s32.totalorder %s15, 0
    %p126 = por %p124, %p125
    %p127 = scmp.le.s32.totalorder 1, %s9
    %p128 = scmp.lt.s32.totalorder %s9, 5
    %p129 = pnand %p127, %p128
    %p130 = pneg %p129
    // Predicated region
    $region9: #{resblock_forward.2} parent=5 // pred_check
      _
    $region10: #{resblock_forward.2} parent=5 // pred_check_branch
      %132 = sbr.rel (%p129) target = $region12
    $region11: #{resblock_forward.2} parent=5 // pred_region
      %s133 = ssub.s32 %s9, 1
      // Predicated region
      $region13: #{resblock_forward.2} parent=11 // pred_check
        %p134 = pneg %p70
      $region14: #{resblock_forward.2} parent=11 // pred_check_branch
        %136 = sbr.rel (%p134) target = $region16
      $region15: #{resblock_forward.2} parent=11 // pred_region
        _
      $region16: #{resblock_forward.2} parent=11 // pred_fallthru
        _
      // Predicated region
      $region17: #{resblock_forward.2} parent=11 // pred_check
        %p137 = pneg %p91
      $region18: #{resblock_forward.2} parent=11 // pred_check_branch
        %139 = sbr.rel (%p137) target = $region20
      $region19: #{resblock_forward.2} parent=11 // pred_region
        _
      $region20: #{resblock_forward.2} parent=11 // pred_fallthru
        _
    $region12: #{resblock_forward.2} parent=5 // pred_fallthru
      _
    %p140 = scmp.lt.s32.totalorder %s9, 4
    // Predicated region
    $region21: #{resblock_forward.2} parent=5 // pred_check
      %p141 = pneg %p140
    $region22: #{resblock_forward.2} parent=5 // pred_check_branch
      %143 = sbr.rel (%p141) target = $region24
    $region23: #{resblock_forward.2} parent=5 // pred_region
      // Predicated region
      $region25: #{resblock_forward.2} parent=23 // pred_check
        %p144 = pneg %p43
      $region26: #{resblock_forward.2} parent=23 // pred_check_branch
        %146 = sbr.rel (%p144) target = $region28
      $region27: #{resblock_forward.2} parent=23 // pred_region
        %p147 = scmp.lt.s32.totalorder %s16, 1
        %s148 = scalar_select %p147, %s16, 1
        %p149 = scmp.lt.s32.totalorder %s17, 1
        %s150 = scalar_select %p149, %s17, 1
        %s151 = smul.addr %s150, 30
        %s152 = smul.addr %s148, 60
        %s153 = sadd.s32 %s151, %s152
        %s154 = smul.addr %s153, 4
        %s155 = scalar_lea.vmem %s0, %s154
      $region28: #{resblock_forward.2} parent=23 // pred_fallthru
        _
    $region24: #{resblock_forward.2} parent=5 // pred_fallthru
      _
    %p156 = scmp.le.s32.totalorder 1, %s9
    %p157 = scmp.lt.s32.totalorder %s9, 5
    %p158 = pnand %p156, %p157
    %p159 = pneg %p158
    // Predicated region
    $region29: #{resblock_forward.2} parent=5 // pred_check
      _
    $region30: #{resblock_forward.2} parent=5 // pred_check_branch
      %161 = sbr.rel (%p158) target = $region32
    $region31: #{resblock_forward.2} parent=5 // pred_region
      %s162 = ssub.s32 %s9, 1
      %p163 = scmp.lt.s32.totalorder %s18, 1
      %s164 = scalar_select %p163, %s18, 1
      %p165 = scmp.lt.s32.totalorder %s19, 1
      %s166 = scalar_select %p165, %s19, 1
      %s167 = smul.addr %s166, 30
      %s168 = smul.addr %s164, 60
      %s169 = sadd.s32 %s167, %s168
      %s170 = smul.addr %s169, 4
      %s171 = scalar_lea.vmem %s0, %s170
      %p172 = pneg %p49
      %p173 = pneg %p46
      %p174 = pneg %p70
      %p175 = pneg %p67
      %p176 = pneg %p91
      %p177 = pneg %p88
      %p178 = pneg %p119
      %p179 = pneg %p116
      %p180 = scmp.lt.s32.totalorder %s18, 1
      %s181 = scalar_select %p180, %s18, 1
      %p182 = scmp.lt.s32.totalorder %s19, 1
      %s183 = scalar_select %p182, %s19, 1
      %s184 = smul.addr %s183, 16
      %s185 = smul.addr %s181, 32
      %s186 = sadd.s32 %s184, %s185
      %s187 = smul.addr %s186, 4
      %s188 = scalar_lea.vmem %s3, %s187
      %p189 = scmp.lt.s32.totalorder %s18, 1
      %s190 = scalar_select %p189, %s18, 1
      %p191 = scmp.lt.s32.totalorder %s19, 1
      %s192 = scalar_select %p191, %s19, 1
      %s193 = smul.addr %s192, 30
      %s194 = smul.addr %s190, 60
      %s195 = sadd.s32 %s193, %s194
      %s196 = smul.addr %s195, 4
      %s197 = scalar_lea.vmem %s0, %s196
      %p198 = scmp.lt.s32.totalorder %s18, 1
      %s199 = scalar_select %p198, %s18, 1
      %p200 = scmp.lt.s32.totalorder %s19, 1
      %s201 = scalar_select %p200, %s19, 1
      %s202 = smul.addr %s201, 16
      %s203 = smul.addr %s199, 32
      %s204 = sadd.s32 %s202, %s203
      %s205 = smul.addr %s204, 4
      %s206 = scalar_lea.vmem %s3, %s205
      %v208 = vld [vmem:[%s197] sm:$0xf]
      %v209 = vld [vmem:[%s197 + $0x4] sm:$0xf]
      %v210 = vld [vmem:[%s197 + $0xc] sm:$0xf]
      %v211 = vld [vmem:[%s197 + $0x10] sm:$0xf]
      %v212 = vld [vmem:[%s197 + $0x18] sm:$0xf]
      %v213 = vld [vmem:[%s197 + $0x1c] sm:$0xf]
      %v214 = vld [vmem:[%s197 + $0x24] sm:$0xf]
      %v215 = vld [vmem:[%s197 + $0x28] sm:$0xf]
      %v216 = vld [vmem:[%s197 + $0x30] sm:$0xf]
      %v217 = vld [vmem:[%s197 + $0x34] sm:$0xf]
      %v218 = vld [vmem:[%s197 + $0x3c] sm:$0xf]
      %v219 = vld [vmem:[%s197 + $0x40] sm:$0xf]
      %v220 = vld [vmem:[%s197 + $0x48] sm:$0xf]
      %v221 = vld [vmem:[%s197 + $0x4c] sm:$0xf]
      %v222 = vld [vmem:[%s197 + $0x54] sm:$0xf]
      %v223 = vld [vmem:[%s197 + $0x58] sm:$0xf]
      %v224 = vmax.bf16 %v208, 0
      %v225 = vmax.bf16 %v209, 0
      %v226 = vmax.bf16 %v210, 0
      %v227 = vmax.bf16 %v211, 0
      %v228 = vmax.bf16 %v212, 0
      %v229 = vmax.bf16 %v213, 0
      %v230 = vmax.bf16 %v214, 0
      %v231 = vmax.bf16 %v215, 0
      %v232 = vmax.bf16 %v216, 0
      %v233 = vmax.bf16 %v217, 0
      %v234 = vmax.bf16 %v218, 0
      %v235 = vmax.bf16 %v219, 0
      %v236 = vmax.bf16 %v220, 0
      %v237 = vmax.bf16 %v221, 0
      %v238 = vmax.bf16 %v222, 0
      %v239 = vmax.bf16 %v223, 0
      %v240 = vld [vmem:[%s1] sm:$0xf]
      %v241 = vld [vmem:[%s1 + $0x4] sm:$0xf]
      %v242 = vld [vmem:[%s1 + $0x8] sm:$0xf]
      %v243 = vld [vmem:[%s1 + $0xc] sm:$0xf]
      %v244 = vld [vmem:[%s1 + $0x10] sm:$0xf]
      %v245 = vld [vmem:[%s1 + $0x14] sm:$0xf]
      %v246 = vld [vmem:[%s1 + $0x18] sm:$0xf]
      %v247 = vld [vmem:[%s1 + $0x1c] sm:$0xf]
      %v248 = vld [vmem:[%s1 + $0x20] sm:$0xf]
      %v249 = vld [vmem:[%s1 + $0x24] sm:$0xf]
      %v250 = vld [vmem:[%s1 + $0x28] sm:$0xf]
      %v251 = vld [vmem:[%s1 + $0x2c] sm:$0xf]
      %v252 = vld [vmem:[%s1 + $0x30] sm:$0xf]
      %v253 = vld [vmem:[%s1 + $0x34] sm:$0xf]
      %v254 = vld [vmem:[%s1 + $0x38] sm:$0xf]
      %v255 = vld [vmem:[%s1 + $0x3c] sm:$0xf]
      %v256 = vld [vmem:[%s197 + $0x8] sm:$0x1]
      %v257 = vld [vmem:[%s197 + $0x14] sm:$0x1]
      %v258 = vld [vmem:[%s197 + $0x20] sm:$0x1]
      %v259 = vld [vmem:[%s197 + $0x2c] sm:$0x1]
      %v260 = vld [vmem:[%s197 + $0x38] sm:$0x1]
      %v261 = vld [vmem:[%s197 + $0x44] sm:$0x1]
      %v262 = vld [vmem:[%s197 + $0x50] sm:$0x1]
      %v263 = vld [vmem:[%s197 + $0x5c] sm:$0x1]
      %v264 = vmax.bf16 %v256, 0
      %v265 = vmax.bf16 %v257, 0
      %v266 = vmax.bf16 %v258, 0
      %v267 = vmax.bf16 %v259, 0
      %v268 = vmax.bf16 %v260, 0
      %v269 = vmax.bf16 %v261, 0
      %v270 = vmax.bf16 %v262, 0
      %v271 = vmax.bf16 %v263, 0
      %vm272 = vsmask.f32 3328
      %vm273 = vsmask.f32 7440
      %vm274 = vmor %vm272, %vm273
      %v276 = vshrl.u32 %v224, 16
      %v278 = vrot.slane %v276, 4
      %v279 = vshll.u32 %v224, 16
      %v281 = vrot.slane %v279, 5
      %v282 = vor.u32 %v278, %v281
      %v283 = vrot.slane %v282, 4
      %v285 = vshll.u32 %v225, 16
      %v287 = vrot.slane %v285, 5
      %v288 = vsel %vm274, %v283, %v287
      %v289 = vshrl.u32 %v225, 16
      %v291 = vrot.slane %v289, 4
      %v292 = vor.u32 %v291, %v287
      %v293 = vrot.slane %v292, 4
      %v295 = vshll.u32 %v264, 16
      %v297 = vrot.slane %v295, 5
      %v298 = vsel %vm274, %v293, %v297
      %v300 = vshrl.u32 %v226, 16
      %v302 = vrot.slane %v300, 4
      %v303 = vshll.u32 %v226, 16
      %v305 = vrot.slane %v303, 5
      %v306 = vor.u32 %v302, %v305
      %v307 = vrot.slane %v306, 4
      %v309 = vshll.u32 %v227, 16
      %v311 = vrot.slane %v309, 5
      %v312 = vsel %vm274, %v307, %v311
      %v313 = vshrl.u32 %v227, 16
      %v315 = vrot.slane %v313, 4
      %v316 = vor.u32 %v315, %v311
      %v317 = vrot.slane %v316, 4
      %v319 = vshll.u32 %v265, 16
      %v321 = vrot.slane %v319, 5
      %v322 = vsel %vm274, %v317, %v321
      %v324 = vshrl.u32 %v228, 16
      %v326 = vrot.slane %v324, 4
      %v327 = vshll.u32 %v228, 16
      %v329 = vrot.slane %v327, 5
      %v330 = vor.u32 %v326, %v329
      %v331 = vrot.slane %v330, 4
      %v333 = vshll.u32 %v229, 16
      %v335 = vrot.slane %v333, 5
      %v336 = vsel %vm274, %v331, %v335
      %v337 = vshrl.u32 %v229, 16
      %v339 = vrot.slane %v337, 4
      %v340 = vor.u32 %v339, %v335
      %v341 = vrot.slane %v340, 4
      %v343 = vshll.u32 %v266, 16
      %v345 = vrot.slane %v343, 5
      %v346 = vsel %vm274, %v341, %v345
      %v348 = vshrl.u32 %v230, 16
      %v350 = vrot.slane %v348, 4
      %v351 = vshll.u32 %v230, 16
      %v353 = vrot.slane %v351, 5
      %v354 = vor.u32 %v350, %v353
      %v355 = vrot.slane %v354, 4
      %v357 = vshll.u32 %v231, 16
      %v359 = vrot.slane %v357, 5
      %v360 = vsel %vm274, %v355, %v359
      %v361 = vshrl.u32 %v231, 16
      %v363 = vrot.slane %v361, 4
      %v364 = vor.u32 %v363, %v359
      %v365 = vrot.slane %v364, 4
      %v367 = vshll.u32 %v267, 16
      %v369 = vrot.slane %v367, 5
      %v370 = vsel %vm274, %v365, %v369
      %v372 = vshrl.u32 %v232, 16
      %v374 = vrot.slane %v372, 4
      %v375 = vshll.u32 %v232, 16
      %v377 = vrot.slane %v375, 5
      %v378 = vor.u32 %v374, %v377
      %v379 = vrot.slane %v378, 4
      %v381 = vshll.u32 %v233, 16
      %v383 = vrot.slane %v381, 5
      %v384 = vsel %vm274, %v379, %v383
      %v385 = vshrl.u32 %v233, 16
      %v387 = vrot.slane %v385, 4
      %v388 = vor.u32 %v387, %v383
      %v389 = vrot.slane %v388, 4
      %v391 = vshll.u32 %v268, 16
      %v393 = vrot.slane %v391, 5
      %v394 = vsel %vm274, %v389, %v393
      %v396 = vshrl.u32 %v234, 16
      %v398 = vrot.slane %v396, 4
      %v399 = vshll.u32 %v234, 16
      %v401 = vrot.slane %v399, 5
      %v402 = vor.u32 %v398, %v401
      %v403 = vrot.slane %v402, 4
      %v405 = vshll.u32 %v235, 16
      %v407 = vrot.slane %v405, 5
      %v408 = vsel %vm274, %v403, %v407
      %v409 = vshrl.u32 %v235, 16
      %v411 = vrot.slane %v409, 4
      %v412 = vor.u32 %v411, %v407
      %v413 = vrot.slane %v412, 4
      %v415 = vshll.u32 %v269, 16
      %v417 = vrot.slane %v415, 5
      %v418 = vsel %vm274, %v413, %v417
      %v420 = vshrl.u32 %v236, 16
      %v422 = vrot.slane %v420, 4
      %v423 = vshll.u32 %v236, 16
      %v425 = vrot.slane %v423, 5
      %v426 = vor.u32 %v422, %v425
      %v427 = vrot.slane %v426, 4
      %v429 = vshll.u32 %v237, 16
      %v431 = vrot.slane %v429, 5
      %v432 = vsel %vm274, %v427, %v431
      %v433 = vshrl.u32 %v237, 16
      %v435 = vrot.slane %v433, 4
      %v436 = vor.u32 %v435, %v431
      %v437 = vrot.slane %v436, 4
      %v439 = vshll.u32 %v270, 16
      %v441 = vrot.slane %v439, 5
      %v442 = vsel %vm274, %v437, %v441
      %v444 = vshrl.u32 %v238, 16
      %v446 = vrot.slane %v444, 4
      %v447 = vshll.u32 %v238, 16
      %v449 = vrot.slane %v447, 5
      %v450 = vor.u32 %v446, %v449
      %v451 = vrot.slane %v450, 4
      %v453 = vshll.u32 %v239, 16
      %v455 = vrot.slane %v453, 5
      %v456 = vsel %vm274, %v451, %v455
      %v457 = vshrl.u32 %v239, 16
      %v459 = vrot.slane %v457, 4
      %v460 = vor.u32 %v459, %v455
      %v461 = vrot.slane %v460, 4
      %v463 = vshll.u32 %v271, 16
      %v465 = vrot.slane %v463, 5
      %v466 = vsel %vm274, %v461, %v465
      %s467 = scalar_lea.vmem %s1, 64
      %v468 = vld [vmem:[%s467] sm:$0xf]
      %v469 = vld [vmem:[%s467 + $0x4] sm:$0xf]
      %v470 = vld [vmem:[%s467 + $0x8] sm:$0xf]
      %v471 = vld [vmem:[%s467 + $0xc] sm:$0xf]
      %v472 = vld [vmem:[%s467 + $0x10] sm:$0xf]
      %v473 = vld [vmem:[%s467 + $0x14] sm:$0xf]
      %v474 = vld [vmem:[%s467 + $0x18] sm:$0xf]
      %v475 = vld [vmem:[%s467 + $0x1c] sm:$0xf]
      %v476 = vld [vmem:[%s467 + $0x20] sm:$0xf]
      %v477 = vld [vmem:[%s467 + $0x24] sm:$0xf]
      %v478 = vld [vmem:[%s467 + $0x28] sm:$0xf]
      %v479 = vld [vmem:[%s467 + $0x2c] sm:$0xf]
      %v480 = vld [vmem:[%s467 + $0x30] sm:$0xf]
      %v481 = vld [vmem:[%s467 + $0x34] sm:$0xf]
      %v482 = vld [vmem:[%s467 + $0x38] sm:$0xf]
      %v483 = vld [vmem:[%s467 + $0x3c] sm:$0xf]
      %v484 = vunpack.c.l.b16 %v288
      %v485 = vunpack.c.l.b16 %v298
      %v486 = vunpack.c.l.b16 %v312
      %v487 = vunpack.c.l.b16 %v322
      %v488 = vunpack.c.l.b16 %v336
      %v489 = vunpack.c.l.b16 %v346
      %v490 = vunpack.c.l.b16 %v360
      %v491 = vunpack.c.l.b16 %v370
      %v492 = vunpack.c.l.b16 %v384
      %v493 = vunpack.c.l.b16 %v394
      %v494 = vunpack.c.l.b16 %v408
      %v495 = vunpack.c.l.b16 %v418
      %v496 = vunpack.c.l.b16 %v432
      %v497 = vunpack.c.l.b16 %v442
      %v498 = vunpack.c.l.b16 %v456
      %v499 = vunpack.c.l.b16 %v466
      %v500 = vpack.c.b16 %v485, %v484
      %v501 = vpack.c.b16 %v487, %v486
      %v502 = vpack.c.b16 %v489, %v488
      %v503 = vpack.c.b16 %v491, %v490
      %v504 = vpack.c.b16 %v493, %v492
      %v505 = vpack.c.b16 %v495, %v494
      %v506 = vpack.c.b16 %v497, %v496
      %v507 = vpack.c.b16 %v499, %v498
      %v532 = vunpack.c.l.b16 %v468
      %v533 = vunpack.c.l.b16 %v469
      %v534 = vunpack.c.l.b16 %v470
      %v535 = vunpack.c.l.b16 %v471
      %v536 = vunpack.c.l.b16 %v472
      %v537 = vunpack.c.l.b16 %v473
      %v538 = vunpack.c.l.b16 %v474
      %v539 = vunpack.c.l.b16 %v475
      %v540 = vunpack.c.l.b16 %v476
      %v541 = vunpack.c.l.b16 %v477
      %v542 = vunpack.c.l.b16 %v478
      %v543 = vunpack.c.l.b16 %v479
      %v544 = vunpack.c.l.b16 %v480
      %v545 = vunpack.c.l.b16 %v481
      %v546 = vunpack.c.l.b16 %v482
      %v547 = vunpack.c.l.b16 %v483
      %v548 = vpack.c.b16 %v533, %v532
      %v549 = vpack.c.b16 %v535, %v534
      %v550 = vpack.c.b16 %v537, %v536
      %v551 = vpack.c.b16 %v539, %v538
      %v552 = vpack.c.b16 %v541, %v540
      %v553 = vpack.c.b16 %v543, %v542
      %v554 = vpack.c.b16 %v545, %v544
      %v555 = vpack.c.b16 %v547, %v546
      %564 = vmatprep.subr.bf16.mxu0 0
      %565 = vmatpush1.bf16.msra.mxu0 %v548
      %566 = vmatprep.subr.bf16.mxu0 0
      %567 = vmatpush1.bf16.msra.mxu0 %v549
      %568 = vmatprep.subr.bf16.mxu0 0
      %569 = vmatpush1.bf16.msra.mxu0 %v550
      %570 = vmatprep.subr.bf16.mxu0 0
      %571 = vmatpush1.bf16.msra.mxu0 %v551
      %572 = vmatprep.subr.bf16.mxu0 0
      %573 = vmatpush1.bf16.msra.mxu0 %v552
      %574 = vmatprep.subr.bf16.mxu0 0
      %575 = vmatpush1.bf16.msra.mxu0 %v553
      %576 = vmatprep.subr.bf16.mxu0 0
      %577 = vmatpush1.bf16.msra.mxu0 %v554
      %578 = vmatprep.subr.bf16.mxu0 0
      %579 = vmatpush1.bf16.msra.mxu0 %v555
      %580 = vmatprep.subr.bf16.mxu0 0
      %581 = vmatpush1.bf16.msra.mxu0 0
      %582 = vmatprep.subr.bf16.mxu0 0
      %583 = vmatpush1.bf16.msra.mxu0 0
      %584 = vmatprep.subr.bf16.mxu0 0
      %585 = vmatpush1.bf16.msra.mxu0 0
      %586 = vmatprep.subr.bf16.mxu0 0
      %587 = vmatpush1.bf16.msra.mxu0 0
      %588 = vmatprep.subr.bf16.mxu0 0
      %589 = vmatpush1.bf16.msra.mxu0 0
      %590 = vmatprep.subr.bf16.mxu0 0
      %591 = vmatpush1.bf16.msra.mxu0 0
      %592 = vmatprep.subr.bf16.mxu0 0
      %593 = vmatpush1.bf16.msra.mxu0 0
      %594 = vmatprep.subr.bf16.mxu0 0
      %595 = vmatpush1.bf16.msra.mxu0 0
      %596 = vmatprep.mubr.bf16.mxu0 0
      %597 = vmatmul.mubr.bf16.gmra.mrb[0].mxu0 %v500
      %v598 = vpop.f32.mrb[0].mxu0
      %v599 = vadd.f32 0.0, %v598
      %v600 = vpop.f32.mrb[0].mxu0
      %v601 = vpop.f32.mrb[0].mxu0
      %v602 = vadd.f32 0.0, %v601
      %v603 = vpop.f32.mrb[0].mxu0
      %604 = vmatprep.mubr.bf16.mxu0 0
      %605 = vmatmul.mubr.bf16.gmra.mrb[0].mxu0 %v501
      %v606 = vpop.f32.mrb[0].mxu0
      %v607 = vadd.f32 0.0, %v606
      %v608 = vpop.f32.mrb[0].mxu0
      %v609 = vpop.f32.mrb[0].mxu0
      %v610 = vadd.f32 0.0, %v609
      %v611 = vpop.f32.mrb[0].mxu0
      %612 = vmatprep.mubr.bf16.mxu0 0
      %613 = vmatmul.mubr.bf16.gmra.mrb[0].mxu0 %v502
      %v614 = vpop.f32.mrb[0].mxu0
      %v615 = vadd.f32 0.0, %v614
      %v616 = vpop.f32.mrb[0].mxu0
      %v617 = vpop.f32.mrb[0].mxu0
      %v618 = vadd.f32 0.0, %v617
      %v619 = vpop.f32.mrb[0].mxu0
      %620 = vmatprep.mubr.bf16.mxu0 0
      %621 = vmatmul.mubr.bf16.gmra.mrb[0].mxu0 %v503
      %v622 = vpop.f32.mrb[0].mxu0
      %v623 = vadd.f32 0.0, %v622
      %v624 = vpop.f32.mrb[0].mxu0
      %v625 = vpop.f32.mrb[0].mxu0
      %v626 = vadd.f32 0.0, %v625
      %v627 = vpop.f32.mrb[0].mxu0
      %628 = vmatprep.mubr.bf16.mxu0 0
      %629 = vmatmul.mubr.bf16.gmra.mrb[0].mxu0 %v504
      %v630 = vpop.f32.mrb[0].mxu0
      %v631 = vadd.f32 0.0, %v630
      %v632 = vpop.f32.mrb[0].mxu0
      %v633 = vpop.f32.mrb[0].mxu0
      %v634 = vadd.f32 0.0, %v633
      %v635 = vpop.f32.mrb[0].mxu0
      %636 = vmatprep.mubr.bf16.mxu0 0
      %637 = vmatmul.mubr.bf16.gmra.mrb[0].mxu0 %v505
      %v638 = vpop.f32.mrb[0].mxu0
      %v639 = vadd.f32 0.0, %v638
      %v640 = vpop.f32.mrb[0].mxu0
      %v641 = vpop.f32.mrb[0].mxu0
      %v642 = vadd.f32 0.0, %v641
      %v643 = vpop.f32.mrb[0].mxu0
      %644 = vmatprep.mubr.bf16.mxu0 0
      %645 = vmatmul.mubr.bf16.gmra.mrb[0].mxu0 %v506
      %v646 = vpop.f32.mrb[0].mxu0
      %v647 = vadd.f32 0.0, %v646
      %v648 = vpop.f32.mrb[0].mxu0
      %v649 = vpop.f32.mrb[0].mxu0
      %v650 = vadd.f32 0.0, %v649
      %v651 = vpop.f32.mrb[0].mxu0
      %652 = vmatprep.mubr.bf16.mxu0 0
      %653 = vmatmul.mubr.bf16.gmra.mrb[0].mxu0 %v507
      %v654 = vpop.f32.mrb[0].mxu0
      %v655 = vadd.f32 0.0, %v654
      %v656 = vpop.f32.mrb[0].mxu0
      %v657 = vpop.f32.mrb[0].mxu0
      %v658 = vadd.f32 0.0, %v657
      %v659 = vpop.f32.mrb[0].mxu0
      %660 = vdwg.mxu0
      %v677 = vunpack.c.l.b16 %v224
      %v678 = vunpack.c.l.b16 %v225
      %v679 = vunpack.c.l.b16 %v226
      %v680 = vunpack.c.l.b16 %v227
      %v681 = vunpack.c.l.b16 %v228
      %v682 = vunpack.c.l.b16 %v229
      %v683 = vunpack.c.l.b16 %v230
      %v684 = vunpack.c.l.b16 %v231
      %v685 = vunpack.c.l.b16 %v232
      %v686 = vunpack.c.l.b16 %v233
      %v687 = vunpack.c.l.b16 %v234
      %v688 = vunpack.c.l.b16 %v235
      %v689 = vunpack.c.l.b16 %v236
      %v690 = vunpack.c.l.b16 %v237
      %v691 = vunpack.c.l.b16 %v238
      %v692 = vunpack.c.l.b16 %v239
      %v693 = vpack.c.b16 %v678, %v677
      %v694 = vpack.c.b16 %v680, %v679
      %v695 = vpack.c.b16 %v682, %v681
      %v696 = vpack.c.b16 %v684, %v683
      %v697 = vpack.c.b16 %v686, %v685
      %v698 = vpack.c.b16 %v688, %v687
      %v699 = vpack.c.b16 %v690, %v689
      %v700 = vpack.c.b16 %v692, %v691
      %v725 = vunpack.c.l.b16 %v240
      %v726 = vunpack.c.l.b16 %v241
      %v727 = vunpack.c.l.b16 %v242
      %v728 = vunpack.c.l.b16 %v243
      %v729 = vunpack.c.l.b16 %v244
      %v730 = vunpack.c.l.b16 %v245
      %v731 = vunpack.c.l.b16 %v246
      %v732 = vunpack.c.l.b16 %v247
      %v733 = vunpack.c.l.b16 %v248
      %v734 = vunpack.c.l.b16 %v249
      %v735 = vunpack.c.l.b16 %v250
      %v736 = vunpack.c.l.b16 %v251
      %v737 = vunpack.c.l.b16 %v252
      %v738 = vunpack.c.l.b16 %v253
      %v739 = vunpack.c.l.b16 %v254
      %v740 = vunpack.c.l.b16 %v255
      %v741 = vpack.c.b16 %v726, %v725
      %v742 = vpack.c.b16 %v728, %v727
      %v743 = vpack.c.b16 %v730, %v729
      %v744 = vpack.c.b16 %v732, %v731
      %v745 = vpack.c.b16 %v734, %v733
      %v746 = vpack.c.b16 %v736, %v735
      %v747 = vpack.c.b16 %v738, %v737
      %v748 = vpack.c.b16 %v740, %v739
      %757 = vmatprep.subr.bf16.mxu0 0
      %758 = vmatpush1.bf16.msra.mxu0 %v741
      %759 = vmatprep.subr.bf16.mxu0 0
      %760 = vmatpush1.bf16.msra.mxu0 %v742
      %761 = vmatprep.subr.bf16.mxu0 0
      %762 = vmatpush1.bf16.msra.mxu0 %v743
      %763 = vmatprep.subr.bf16.mxu0 0
      %764 = vmatpush1.bf16.msra.mxu0 %v744
      %765 = vmatprep.subr.bf16.mxu0 0
      %766 = vmatpush1.bf16.msra.mxu0 %v745
      %767 = vmatprep.subr.bf16.mxu0 0
      %768 = vmatpush1.bf16.msra.mxu0 %v746
      %769 = vmatprep.subr.bf16.mxu0 0
      %770 = vmatpush1.bf16.msra.mxu0 %v747
      %771 = vmatprep.subr.bf16.mxu0 0
      %772 = vmatpush1.bf16.msra.mxu0 %v748
      %773 = vmatprep.subr.bf16.mxu0 0
      %774 = vmatpush1.bf16.msra.mxu0 0
      %775 = vmatprep.subr.bf16.mxu0 0
      %776 = vmatpush1.bf16.msra.mxu0 0
      %777 = vmatprep.subr.bf16.mxu0 0
      %778 = vmatpush1.bf16.msra.mxu0 0
      %779 = vmatprep.subr.bf16.mxu0 0
      %780 = vmatpush1.bf16.msra.mxu0 0
      %781 = vmatprep.subr.bf16.mxu0 0
      %782 = vmatpush1.bf16.msra.mxu0 0
      %783 = vmatprep.subr.bf16.mxu0 0
      %784 = vmatpush1.bf16.msra.mxu0 0
      %785 = vmatprep.subr.bf16.mxu0 0
      %786 = vmatpush1.bf16.msra.mxu0 0
      %787 = vmatprep.subr.bf16.mxu0 0
      %788 = vmatpush1.bf16.msra.mxu0 0
      %789 = vmatprep.mubr.bf16.mxu0 0
      %790 = vmatmul.mubr.bf16.gmra.mrb[0].mxu0 %v693
      %v791 = vpop.f32.mrb[0].mxu0
      %v792 = vadd.f32 %v599, %v791
      %v793 = vpop.f32.mrb[0].mxu0
      %v794 = vpop.f32.mrb[0].mxu0
      %v795 = vadd.f32 %v602, %v794
      %v796 = vpop.f32.mrb[0].mxu0
      %797 = vmatprep.mubr.bf16.mxu0 0
      %798 = vmatmul.mubr.bf16.gmra.mrb[0].mxu0 %v694
      %v799 = vpop.f32.mrb[0].mxu0
      %v800 = vadd.f32 %v607, %v799
      %v801 = vpop.f32.mrb[0].mxu0
      %v802 = vpop.f32.mrb[0].mxu0
      %v803 = vadd.f32 %v610, %v802
      %v804 = vpop.f32.mrb[0].mxu0
      %805 = vmatprep.mubr.bf16.mxu0 0
      %806 = vmatmul.mubr.bf16.gmra.mrb[0].mxu0 %v695
      %v807 = vpop.f32.mrb[0].mxu0
      %v808 = vadd.f32 %v615, %v807
      %v809 = vpop.f32.mrb[0].mxu0
      %v810 = vpop.f32.mrb[0].mxu0
      %v811 = vadd.f32 %v618, %v810
      %v812 = vpop.f32.mrb[0].mxu0
      %813 = vmatprep.mubr.bf16.mxu0 0
      %814 = vmatmul.mubr.bf16.gmra.mrb[0].mxu0 %v696
      %v815 = vpop.f32.mrb[0].mxu0
      %v816 = vadd.f32 %v623, %v815
      %v817 = vpop.f32.mrb[0].mxu0
      %v818 = vpop.f32.mrb[0].mxu0
      %v819 = vadd.f32 %v626, %v818
      %v820 = vpop.f32.mrb[0].mxu0
      %821 = vmatprep.mubr.bf16.mxu0 0
      %822 = vmatmul.mubr.bf16.gmra.mrb[0].mxu0 %v697
      %v823 = vpop.f32.mrb[0].mxu0
      %v824 = vadd.f32 %v631, %v823
      %v825 = vpop.f32.mrb[0].mxu0
      %v826 = vpop.f32.mrb[0].mxu0
      %v827 = vadd.f32 %v634, %v826
      %v828 = vpop.f32.mrb[0].mxu0
      %829 = vmatprep.mubr.bf16.mxu0 0
      %830 = vmatmul.mubr.bf16.gmra.mrb[0].mxu0 %v698
      %v831 = vpop.f32.mrb[0].mxu0
      %v832 = vadd.f32 %v639, %v831
      %v833 = vpop.f32.mrb[0].mxu0
      %v834 = vpop.f32.mrb[0].mxu0
      %v835 = vadd.f32 %v642, %v834
      %v836 = vpop.f32.mrb[0].mxu0
      %837 = vmatprep.mubr.bf16.mxu0 0
      %838 = vmatmul.mubr.bf16.gmra.mrb[0].mxu0 %v699
      %v839 = vpop.f32.mrb[0].mxu0
      %v840 = vadd.f32 %v647, %v839
      %v841 = vpop.f32.mrb[0].mxu0
      %v842 = vpop.f32.mrb[0].mxu0
      %v843 = vadd.f32 %v650, %v842
      %v844 = vpop.f32.mrb[0].mxu0
      %845 = vmatprep.mubr.bf16.mxu0 0
      %846 = vmatmul.mubr.bf16.gmra.mrb[0].mxu0 %v700
      %v847 = vpop.f32.mrb[0].mxu0
      %v848 = vadd.f32 %v655, %v847
      %v849 = vpop.f32.mrb[0].mxu0
      %v850 = vpop.f32.mrb[0].mxu0
      %v851 = vadd.f32 %v658, %v850
      %v852 = vpop.f32.mrb[0].mxu0
      %853 = vdwg.mxu0
      %v854 = vld [vmem:[%s197] sm:$0xe]
      %v855 = vld [vmem:[%s197 + $0xc] sm:$0xe]
      %v856 = vld [vmem:[%s197 + $0x18] sm:$0xe]
      %v857 = vld [vmem:[%s197 + $0x24] sm:$0xe]
      %v858 = vld [vmem:[%s197 + $0x30] sm:$0xe]
      %v859 = vld [vmem:[%s197 + $0x3c] sm:$0xe]
      %v860 = vld [vmem:[%s197 + $0x48] sm:$0xe]
      %v861 = vld [vmem:[%s197 + $0x54] sm:$0xe]
      %v862 = vmax.bf16 %v854, 0
      %v863 = vmax.bf16 %v855, 0
      %v864 = vmax.bf16 %v856, 0
      %v865 = vmax.bf16 %v857, 0
      %v866 = vmax.bf16 %v858, 0
      %v867 = vmax.bf16 %v859, 0
      %v868 = vmax.bf16 %v860, 0
      %v869 = vmax.bf16 %v861, 0
      %vm886 = vcmask 1042432
      %vm887 = vcmask 1046532
      %vm888 = vmor %vm886, %vm887
      %v889 = vrot.slane %v862, 5
      %v890 = vrot.slane %v889, 4
      %v891 = vrot.slane %v225, 5
      %v892 = vsel %vm888, %v890, %v891
      %v893 = vrot.slane %v891, 4
      %v894 = vrot.slane %v264, 5
      %v895 = vsel %vm888, %v893, %v894
      %v896 = vrot.slane %v863, 5
      %v897 = vrot.slane %v896, 4
      %v898 = vrot.slane %v227, 5
      %v899 = vsel %vm888, %v897, %v898
      %v900 = vrot.slane %v898, 4
      %v901 = vrot.slane %v265, 5
      %v902 = vsel %vm888, %v900, %v901
      %v903 = vrot.slane %v864, 5
      %v904 = vrot.slane %v903, 4
      %v905 = vrot.slane %v229, 5
      %v906 = vsel %vm888, %v904, %v905
      %v907 = vrot.slane %v905, 4
      %v908 = vrot.slane %v266, 5
      %v909 = vsel %vm888, %v907, %v908
      %v910 = vrot.slane %v865, 5
      %v911 = vrot.slane %v910, 4
      %v912 = vrot.slane %v231, 5
      %v913 = vsel %vm888, %v911, %v912
      %v914 = vrot.slane %v912, 4
      %v915 = vrot.slane %v267, 5
      %v916 = vsel %vm888, %v914, %v915
      %v917 = vrot.slane %v866, 5
      %v918 = vrot.slane %v917, 4
      %v919 = vrot.slane %v233, 5
      %v920 = vsel %vm888, %v918, %v919
      %v921 = vrot.slane %v919, 4
      %v922 = vrot.slane %v268, 5
      %v923 = vsel %vm888, %v921, %v922
      %v924 = vrot.slane %v867, 5
      %v925 = vrot.slane %v924, 4
      %v926 = vrot.slane %v235, 5
      %v927 = vsel %vm888, %v925, %v926
      %v928 = vrot.slane %v926, 4
      %v929 = vrot.slane %v269, 5
      %v930 = vsel %vm888, %v928, %v929
      %v931 = vrot.slane %v868, 5
      %v932 = vrot.slane %v931, 4
      %v933 = vrot.slane %v237, 5
      %v934 = vsel %vm888, %v932, %v933
      %v935 = vrot.slane %v933, 4
      %v936 = vrot.slane %v270, 5
      %v937 = vsel %vm888, %v935, %v936
      %v938 = vrot.slane %v869, 5
      %v939 = vrot.slane %v938, 4
      %v940 = vrot.slane %v239, 5
      %v941 = vsel %vm888, %v939, %v940
      %v942 = vrot.slane %v940, 4
      %v943 = vrot.slane %v271, 5
      %v944 = vsel %vm888, %v942, %v943
      %s945 = scalar_lea.vmem %s1, 128
      %v946 = vld [vmem:[%s945] sm:$0xf]
      %v947 = vld [vmem:[%s945 + $0x4] sm:$0xf]
      %v948 = vld [vmem:[%s945 + $0x8] sm:$0xf]
      %v949 = vld [vmem:[%s945 + $0xc] sm:$0xf]
      %v950 = vld [vmem:[%s945 + $0x10] sm:$0xf]
      %v951 = vld [vmem:[%s945 + $0x14] sm:$0xf]
      %v952 = vld [vmem:[%s945 + $0x18] sm:$0xf]
      %v953 = vld [vmem:[%s945 + $0x1c] sm:$0xf]
      %v954 = vld [vmem:[%s945 + $0x20] sm:$0xf]
      %v955 = vld [vmem:[%s945 + $0x24] sm:$0xf]
      %v956 = vld [vmem:[%s945 + $0x28] sm:$0xf]
      %v957 = vld [vmem:[%s945 + $0x2c] sm:$0xf]
      %v958 = vld [vmem:[%s945 + $0x30] sm:$0xf]
      %v959 = vld [vmem:[%s945 + $0x34] sm:$0xf]
      %v960 = vld [vmem:[%s945 + $0x38] sm:$0xf]
      %v961 = vld [vmem:[%s945 + $0x3c] sm:$0xf]
      %v962 = vunpack.c.l.b16 %v892
      %v963 = vunpack.c.l.b16 %v895
      %v964 = vunpack.c.l.b16 %v899
      %v965 = vunpack.c.l.b16 %v902
      %v966 = vunpack.c.l.b16 %v906
      %v967 = vunpack.c.l.b16 %v909
      %v968 = vunpack.c.l.b16 %v913
      %v969 = vunpack.c.l.b16 %v916
      %v970 = vunpack.c.l.b16 %v920
      %v971 = vunpack.c.l.b16 %v923
      %v972 = vunpack.c.l.b16 %v927
      %v973 = vunpack.c.l.b16 %v930
      %v974 = vunpack.c.l.b16 %v934
      %v975 = vunpack.c.l.b16 %v937
      %v976 = vunpack.c.l.b16 %v941
      %v977 = vunpack.c.l.b16 %v944
      %v978 = vpack.c.b16 %v963, %v962
      %v979 = vpack.c.b16 %v965, %v964
      %v980 = vpack.c.b16 %v967, %v966
      %v981 = vpack.c.b16 %v969, %v968
      %v982 = vpack.c.b16 %v971, %v970
      %v983 = vpack.c.b16 %v973, %v972
      %v984 = vpack.c.b16 %v975, %v974
      %v985 = vpack.c.b16 %v977, %v976
      %v1010 = vunpack.c.l.b16 %v946
      %v1011 = vunpack.c.l.b16 %v947
      %v1012 = vunpack.c.l.b16 %v948
      %v1013 = vunpack.c.l.b16 %v949
      %v1014 = vunpack.c.l.b16 %v950
      %v1015 = vunpack.c.l.b16 %v951
      %v1016 = vunpack.c.l.b16 %v952
      %v1017 = vunpack.c.l.b16 %v953
      %v1018 = vunpack.c.l.b16 %v954
      %v1019 = vunpack.c.l.b16 %v955
      %v1020 = vunpack.c.l.b16 %v956
      %v1021 = vunpack.c.l.b16 %v957
      %v1022 = vunpack.c.l.b16 %v958
      %v1023 = vunpack.c.l.b16 %v959
      %v1024 = vunpack.c.l.b16 %v960
      %v1025 = vunpack.c.l.b16 %v961
      %v1026 = vpack.c.b16 %v1011, %v1010
      %v1027 = vpack.c.b16 %v1013, %v1012
      %v1028 = vpack.c.b16 %v1015, %v1014
      %v1029 = vpack.c.b16 %v1017, %v1016
      %v1030 = vpack.c.b16 %v1019, %v1018
      %v1031 = vpack.c.b16 %v1021, %v1020
      %v1032 = vpack.c.b16 %v1023, %v1022
      %v1033 = vpack.c.b16 %v1025, %v1024
      %1042 = vmatprep.subr.bf16.mxu0 0
      %1043 = vmatpush1.bf16.msra.mxu0 %v1026
      %1044 = vmatprep.subr.bf16.mxu0 0
      %1045 = vmatpush1.bf16.msra.mxu0 %v1027
      %1046 = vmatprep.subr.bf16.mxu0 0
      %1047 = vmatpush1.bf16.msra.mxu0 %v1028
      %1048 = vmatprep.subr.bf16.mxu0 0
      %1049 = vmatpush1.bf16.msra.mxu0 %v1029
      %1050 = vmatprep.subr.bf16.mxu0 0
      %1051 = vmatpush1.bf16.msra.mxu0 %v1030
      %1052 = vmatprep.subr.bf16.mxu0 0
      %1053 = vmatpush1.bf16.msra.mxu0 %v1031
      %1054 = vmatprep.subr.bf16.mxu0 0
      %1055 = vmatpush1.bf16.msra.mxu0 %v1032
      %1056 = vmatprep.subr.bf16.mxu0 0
      %1057 = vmatpush1.bf16.msra.mxu0 %v1033
      %1058 = vmatprep.subr.bf16.mxu0 0
      %1059 = vmatpush1.bf16.msra.mxu0 0
      %1060 = vmatprep.subr.bf16.mxu0 0
      %1061 = vmatpush1.bf16.msra.mxu0 0
      %1062 = vmatprep.subr.bf16.mxu0 0
      %1063 = vmatpush1.bf16.msra.mxu0 0
      %1064 = vmatprep.subr.bf16.mxu0 0
      %1065 = vmatpush1.bf16.msra.mxu0 0
      %1066 = vmatprep.subr.bf16.mxu0 0
      %1067 = vmatpush1.bf16.msra.mxu0 0
      %1068 = vmatprep.subr.bf16.mxu0 0
      %1069 = vmatpush1.bf16.msra.mxu0 0
      %1070 = vmatprep.subr.bf16.mxu0 0
      %1071 = vmatpush1.bf16.msra.mxu0 0
      %1072 = vmatprep.subr.bf16.mxu0 0
      %1073 = vmatpush1.bf16.msra.mxu0 0
      %1074 = vmatprep.mubr.bf16.mxu0 0
      %1075 = vmatmul.mubr.bf16.gmra.mrb[0].mxu0 %v978
      %v1076 = vpop.f32.mrb[0].mxu0
      %v1077 = vadd.f32 0.0, %v1076
      %v1078 = vpop.f32.mrb[0].mxu0
      %v1079 = vpop.f32.mrb[0].mxu0
      %v1080 = vadd.f32 0.0, %v1079
      %v1081 = vpop.f32.mrb[0].mxu0
      %1082 = vmatprep.mubr.bf16.mxu0 0
      %1083 = vmatmul.mubr.bf16.gmra.mrb[0].mxu0 %v979
      %v1084 = vpop.f32.mrb[0].mxu0
      %v1085 = vadd.f32 0.0, %v1084
      %v1086 = vpop.f32.mrb[0].mxu0
      %v1087 = vpop.f32.mrb[0].mxu0
      %v1088 = vadd.f32 0.0, %v1087
      %v1089 = vpop.f32.mrb[0].mxu0
      %1090 = vmatprep.mubr.bf16.mxu0 0
      %1091 = vmatmul.mubr.bf16.gmra.mrb[0].mxu0 %v980
      %v1092 = vpop.f32.mrb[0].mxu0
      %v1093 = vadd.f32 0.0, %v1092
      %v1094 = vpop.f32.mrb[0].mxu0
      %v1095 = vpop.f32.mrb[0].mxu0
      %v1096 = vadd.f32 0.0, %v1095
      %v1097 = vpop.f32.mrb[0].mxu0
      %1098 = vmatprep.mubr.bf16.mxu0 0
      %1099 = vmatmul.mubr.bf16.gmra.mrb[0].mxu0 %v981
      %v1100 = vpop.f32.mrb[0].mxu0
      %v1101 = vadd.f32 0.0, %v1100
      %v1102 = vpop.f32.mrb[0].mxu0
      %v1103 = vpop.f32.mrb[0].mxu0
      %v1104 = vadd.f32 0.0, %v1103
      %v1105 = vpop.f32.mrb[0].mxu0
      %1106 = vmatprep.mubr.bf16.mxu0 0
      %1107 = vmatmul.mubr.bf16.gmra.mrb[0].mxu0 %v982
      %v1108 = vpop.f32.mrb[0].mxu0
      %v1109 = vadd.f32 0.0, %v1108
      %v1110 = vpop.f32.mrb[0].mxu0
      %v1111 = vpop.f32.mrb[0].mxu0
      %v1112 = vadd.f32 0.0, %v1111
      %v1113 = vpop.f32.mrb[0].mxu0
      %1114 = vmatprep.mubr.bf16.mxu0 0
      %1115 = vmatmul.mubr.bf16.gmra.mrb[0].mxu0 %v983
      %v1116 = vpop.f32.mrb[0].mxu0
      %v1117 = vadd.f32 0.0, %v1116
      %v1118 = vpop.f32.mrb[0].mxu0
      %v1119 = vpop.f32.mrb[0].mxu0
      %v1120 = vadd.f32 0.0, %v1119
      %v1121 = vpop.f32.mrb[0].mxu0
      %1122 = vmatprep.mubr.bf16.mxu0 0
      %1123 = vmatmul.mubr.bf16.gmra.mrb[0].mxu0 %v984
      %v1124 = vpop.f32.mrb[0].mxu0
      %v1125 = vadd.f32 0.0, %v1124
      %v1126 = vpop.f32.mrb[0].mxu0
      %v1127 = vpop.f32.mrb[0].mxu0
      %v1128 = vadd.f32 0.0, %v1127
      %v1129 = vpop.f32.mrb[0].mxu0
      %1130 = vmatprep.mubr.bf16.mxu0 0
      %1131 = vmatmul.mubr.bf16.gmra.mrb[0].mxu0 %v985
      %v1132 = vpop.f32.mrb[0].mxu0
      %v1133 = vadd.f32 0.0, %v1132
      %v1134 = vpop.f32.mrb[0].mxu0
      %v1135 = vpop.f32.mrb[0].mxu0
      %v1136 = vadd.f32 0.0, %v1135
      %v1137 = vpop.f32.mrb[0].mxu0
      %1138 = vdwg.mxu0
      %v1139 = vadd.f32 %v792, %v1077
      %v1140 = vadd.f32 %v795, %v1080
      %v1141 = vadd.f32 %v800, %v1085
      %v1142 = vadd.f32 %v803, %v1088
      %v1143 = vadd.f32 %v808, %v1093
      %v1144 = vadd.f32 %v811, %v1096
      %v1145 = vadd.f32 %v816, %v1101
      %v1146 = vadd.f32 %v819, %v1104
      %v1147 = vadd.f32 %v824, %v1109
      %v1148 = vadd.f32 %v827, %v1112
      %v1149 = vadd.f32 %v832, %v1117
      %v1150 = vadd.f32 %v835, %v1120
      %v1151 = vadd.f32 %v840, %v1125
      %v1152 = vadd.f32 %v843, %v1128
      %v1153 = vadd.f32 %v848, %v1133
      %v1154 = vadd.f32 %v851, %v1136
      %s1155 = scalar_lea.vmem %s197, 12
      %v1156 = vld [vmem:[%s1155] sm:$0xf]
      %v1157 = vld [vmem:[%s1155 + $0x4] sm:$0xf]
      %v1158 = vld [vmem:[%s1155 + $0xc] sm:$0xf]
      %v1159 = vld [vmem:[%s1155 + $0x10] sm:$0xf]
      %v1160 = vld [vmem:[%s1155 + $0x18] sm:$0xf]
      %v1161 = vld [vmem:[%s1155 + $0x1c] sm:$0xf]
      %v1162 = vld [vmem:[%s1155 + $0x24] sm:$0xf]
      %v1163 = vld [vmem:[%s1155 + $0x28] sm:$0xf]
      %v1164 = vld [vmem:[%s1155 + $0x30] sm:$0xf]
      %v1165 = vld [vmem:[%s1155 + $0x34] sm:$0xf]
      %v1166 = vld [vmem:[%s1155 + $0x3c] sm:$0xf]
      %v1167 = vld [vmem:[%s1155 + $0x40] sm:$0xf]
      %v1168 = vld [vmem:[%s1155 + $0x48] sm:$0xf]
      %v1169 = vld [vmem:[%s1155 + $0x4c] sm:$0xf]
      %v1170 = vld [vmem:[%s1155 + $0x54] sm:$0xf]
      %v1171 = vld [vmem:[%s1155 + $0x58] sm:$0xf]
      %v1172 = vmax.bf16 %v1156, 0
      %v1173 = vmax.bf16 %v1157, 0
      %v1174 = vmax.bf16 %v1158, 0
      %v1175 = vmax.bf16 %v1159, 0
      %v1176 = vmax.bf16 %v1160, 0
      %v1177 = vmax.bf16 %v1161, 0
      %v1178 = vmax.bf16 %v1162, 0
      %v1179 = vmax.bf16 %v1163, 0
      %v1180 = vmax.bf16 %v1164, 0
      %v1181 = vmax.bf16 %v1165, 0
      %v1182 = vmax.bf16 %v1166, 0
      %v1183 = vmax.bf16 %v1167, 0
      %v1184 = vmax.bf16 %v1168, 0
      %v1185 = vmax.bf16 %v1169, 0
      %v1186 = vmax.bf16 %v1170, 0
      %v1187 = vmax.bf16 %v1171, 0
      %s1188 = scalar_lea.vmem %s1, 192
      %v1189 = vld [vmem:[%s1188] sm:$0xf]
      %v1190 = vld [vmem:[%s1188 + $0x4] sm:$0xf]
      %v1191 = vld [vmem:[%s1188 + $0x8] sm:$0xf]
      %v1192 = vld [vmem:[%s1188 + $0xc] sm:$0xf]
      %v1193 = vld [vmem:[%s1188 + $0x10] sm:$0xf]
      %v1194 = vld [vmem:[%s1188 + $0x14] sm:$0xf]
      %v1195 = vld [vmem:[%s1188 + $0x18] sm:$0xf]
      %v1196 = vld [vmem:[%s1188 + $0x1c] sm:$0xf]
      %v1197 = vld [vmem:[%s1188 + $0x20] sm:$0xf]
      %v1198 = vld [vmem:[%s1188 + $0x24] sm:$0xf]
      %v1199 = vld [vmem:[%s1188 + $0x28] sm:$0xf]
      %v1200 = vld [vmem:[%s1188 + $0x2c] sm:$0xf]
      %v1201 = vld [vmem:[%s1188 + $0x30] sm:$0xf]
      %v1202 = vld [vmem:[%s1188 + $0x34] sm:$0xf]
      %v1203 = vld [vmem:[%s1188 + $0x38] sm:$0xf]
      %v1204 = vld [vmem:[%s1188 + $0x3c] sm:$0xf]
      %v1221 = vunpack.c.l.b16 %v1172
      %v1222 = vunpack.c.l.b16 %v1173
      %v1223 = vunpack.c.l.b16 %v1174
      %v1224 = vunpack.c.l.b16 %v1175
      %v1225 = vunpack.c.l.b16 %v1176
      %v1226 = vunpack.c.l.b16 %v1177
      %v1227 = vunpack.c.l.b16 %v1178
      %v1228 = vunpack.c.l.b16 %v1179
      %v1229 = vunpack.c.l.b16 %v1180
      %v1230 = vunpack.c.l.b16 %v1181
      %v1231 = vunpack.c.l.b16 %v1182
      %v1232 = vunpack.c.l.b16 %v1183
      %v1233 = vunpack.c.l.b16 %v1184
      %v1234 = vunpack.c.l.b16 %v1185
      %v1235 = vunpack.c.l.b16 %v1186
      %v1236 = vunpack.c.l.b16 %v1187
      %v1237 = vpack.c.b16 %v1222, %v1221
      %v1238 = vpack.c.b16 %v1224, %v1223
      %v1239 = vpack.c.b16 %v1226, %v1225
      %v1240 = vpack.c.b16 %v1228, %v1227
      %v1241 = vpack.c.b16 %v1230, %v1229
      %v1242 = vpack.c.b16 %v1232, %v1231
      %v1243 = vpack.c.b16 %v1234, %v1233
      %v1244 = vpack.c.b16 %v1236, %v1235
      %v1269 = vunpack.c.l.b16 %v1189
      %v1270 = vunpack.c.l.b16 %v1190
      %v1271 = vunpack.c.l.b16 %v1191
      %v1272 = vunpack.c.l.b16 %v1192
      %v1273 = vunpack.c.l.b16 %v1193
      %v1274 = vunpack.c.l.b16 %v1194
      %v1275 = vunpack.c.l.b16 %v1195
      %v1276 = vunpack.c.l.b16 %v1196
      %v1277 = vunpack.c.l.b16 %v1197
      %v1278 = vunpack.c.l.b16 %v1198
      %v1279 = vunpack.c.l.b16 %v1199
      %v1280 = vunpack.c.l.b16 %v1200
      %v1281 = vunpack.c.l.b16 %v1201
      %v1282 = vunpack.c.l.b16 %v1202
      %v1283 = vunpack.c.l.b16 %v1203
      %v1284 = vunpack.c.l.b16 %v1204
      %v1285 = vpack.c.b16 %v1270, %v1269
      %v1286 = vpack.c.b16 %v1272, %v1271
      %v1287 = vpack.c.b16 %v1274, %v1273
      %v1288 = vpack.c.b16 %v1276, %v1275
      %v1289 = vpack.c.b16 %v1278, %v1277
      %v1290 = vpack.c.b16 %v1280, %v1279
      %v1291 = vpack.c.b16 %v1282, %v1281
      %v1292 = vpack.c.b16 %v1284, %v1283
      %1301 = vmatprep.subr.bf16.mxu0 0
      %1302 = vmatpush1.bf16.msra.mxu0 %v1285
      %1303 = vmatprep.subr.bf16.mxu0 0
      %1304 = vmatpush1.bf16.msra.mxu0 %v1286
      %1305 = vmatprep.subr.bf16.mxu0 0
      %1306 = vmatpush1.bf16.msra.mxu0 %v1287
      %1307 = vmatprep.subr.bf16.mxu0 0
      %1308 = vmatpush1.bf16.msra.mxu0 %v1288
      %1309 = vmatprep.subr.bf16.mxu0 0
      %1310 = vmatpush1.bf16.msra.mxu0 %v1289
      %1311 = vmatprep.subr.bf16.mxu0 0
      %1312 = vmatpush1.bf16.msra.mxu0 %v1290
      %1313 = vmatprep.subr.bf16.mxu0 0
      %1314 = vmatpush1.bf16.msra.mxu0 %v1291
      %1315 = vmatprep.subr.bf16.mxu0 0
      %1316 = vmatpush1.bf16.msra.mxu0 %v1292
      %1317 = vmatprep.subr.bf16.mxu0 0
      %1318 = vmatpush1.bf16.msra.mxu0 0
      %1319 = vmatprep.subr.bf16.mxu0 0
      %1320 = vmatpush1.bf16.msra.mxu0 0
      %1321 = vmatprep.subr.bf16.mxu0 0
      %1322 = vmatpush1.bf16.msra.mxu0 0
      %1323 = vmatprep.subr.bf16.mxu0 0
      %1324 = vmatpush1.bf16.msra.mxu0 0
      %1325 = vmatprep.subr.bf16.mxu0 0
      %1326 = vmatpush1.bf16.msra.mxu0 0
      %1327 = vmatprep.subr.bf16.mxu0 0
      %1328 = vmatpush1.bf16.msra.mxu0 0
      %1329 = vmatprep.subr.bf16.mxu0 0
      %1330 = vmatpush1.bf16.msra.mxu0 0
      %1331 = vmatprep.subr.bf16.mxu0 0
      %1332 = vmatpush1.bf16.msra.mxu0 0
      %1333 = vmatprep.mubr.bf16.mxu0 0
      %1334 = vmatmul.mubr.bf16.gmra.mrb[0].mxu0 %v1237
      %v1335 = vpop.f32.mrb[0].mxu0
      %v1336 = vadd.f32 0.0, %v1335
      %v1337 = vpop.f32.mrb[0].mxu0
      %v1338 = vpop.f32.mrb[0].mxu0
      %v1339 = vadd.f32 0.0, %v1338
      %v1340 = vpop.f32.mrb[0].mxu0
      %1341 = vmatprep.mubr.bf16.mxu0 0
      %1342 = vmatmul.mubr.bf16.gmra.mrb[0].mxu0 %v1238
      %v1343 = vpop.f32.mrb[0].mxu0
      %v1344 = vadd.f32 0.0, %v1343
      %v1345 = vpop.f32.mrb[0].mxu0
      %v1346 = vpop.f32.mrb[0].mxu0
      %v1347 = vadd.f32 0.0, %v1346
      %v1348 = vpop.f32.mrb[0].mxu0
      %1349 = vmatprep.mubr.bf16.mxu0 0
      %1350 = vmatmul.mubr.bf16.gmra.mrb[0].mxu0 %v1239
      %v1351 = vpop.f32.mrb[0].mxu0
      %v1352 = vadd.f32 0.0, %v1351
      %v1353 = vpop.f32.mrb[0].mxu0
      %v1354 = vpop.f32.mrb[0].mxu0
      %v1355 = vadd.f32 0.0, %v1354
      %v1356 = vpop.f32.mrb[0].mxu0
      %1357 = vmatprep.mubr.bf16.mxu0 0
      %1358 = vmatmul.mubr.bf16.gmra.mrb[0].mxu0 %v1240
      %v1359 = vpop.f32.mrb[0].mxu0
      %v1360 = vadd.f32 0.0, %v1359
      %v1361 = vpop.f32.mrb[0].mxu0
      %v1362 = vpop.f32.mrb[0].mxu0
      %v1363 = vadd.f32 0.0, %v1362
      %v1364 = vpop.f32.mrb[0].mxu0
      %1365 = vmatprep.mubr.bf16.mxu0 0
      %1366 = vmatmul.mubr.bf16.gmra.mrb[0].mxu0 %v1241
      %v1367 = vpop.f32.mrb[0].mxu0
      %v1368 = vadd.f32 0.0, %v1367
      %v1369 = vpop.f32.mrb[0].mxu0
      %v1370 = vpop.f32.mrb[0].mxu0
      %v1371 = vadd.f32 0.0, %v1370
      %v1372 = vpop.f32.mrb[0].mxu0
      %1373 = vmatprep.mubr.bf16.mxu0 0
      %1374 = vmatmul.mubr.bf16.gmra.mrb[0].mxu0 %v1242
      %v1375 = vpop.f32.mrb[0].mxu0
      %v1376 = vadd.f32 0.0, %v1375
      %v1377 = vpop.f32.mrb[0].mxu0
      %v1378 = vpop.f32.mrb[0].mxu0
      %v1379 = vadd.f32 0.0, %v1378
      %v1380 = vpop.f32.mrb[0].mxu0
      %1381 = vmatprep.mubr.bf16.mxu0 0
      %1382 = vmatmul.mubr.bf16.gmra.mrb[0].mxu0 %v1243
      %v1383 = vpop.f32.mrb[0].mxu0
      %v1384 = vadd.f32 0.0, %v1383
      %v1385 = vpop.f32.mrb[0].mxu0
      %v1386 = vpop.f32.mrb[0].mxu0
      %v1387 = vadd.f32 0.0, %v1386
      %v1388 = vpop.f32.mrb[0].mxu0
      %1389 = vmatprep.mubr.bf16.mxu0 0
      %1390 = vmatmul.mubr.bf16.gmra.mrb[0].mxu0 %v1244
      %v1391 = vpop.f32.mrb[0].mxu0
      %v1392 = vadd.f32 0.0, %v1391
      %v1393 = vpop.f32.mrb[0].mxu0
      %v1394 = vpop.f32.mrb[0].mxu0
      %v1395 = vadd.f32 0.0, %v1394
      %v1396 = vpop.f32.mrb[0].mxu0
      %1397 = vdwg.mxu0
      %v1398 = vadd.f32 %v1139, %v1336
      %v1399 = vadd.f32 %v1140, %v1339
      %v1400 = vadd.f32 %v1141, %v1344
      %v1401 = vadd.f32 %v1142, %v1347
      %v1402 = vadd.f32 %v1143, %v1352
      %v1403 = vadd.f32 %v1144, %v1355
      %v1404 = vadd.f32 %v1145, %v1360
      %v1405 = vadd.f32 %v1146, %v1363
      %v1406 = vadd.f32 %v1147, %v1368
      %v1407 = vadd.f32 %v1148, %v1371
      %v1408 = vadd.f32 %v1149, %v1376
      %v1409 = vadd.f32 %v1150, %v1379
      %v1410 = vadd.f32 %v1151, %v1384
      %v1411 = vadd.f32 %v1152, %v1387
      %v1412 = vadd.f32 %v1153, %v1392
      %v1413 = vadd.f32 %v1154, %v1395
      %v1414 = vld [vmem:[%s1155] sm:$0xf]
      %v1415 = vld [vmem:[%s1155 + $0x4] sm:$0xf]
      %v1416 = vld [vmem:[%s1155 + $0x8] sm:$0x1]
      %v1417 = vld [vmem:[%s1155 + $0xc] sm:$0xf]
      %v1418 = vld [vmem:[%s1155 + $0x10] sm:$0xf]
      %v1419 = vld [vmem:[%s1155 + $0x14] sm:$0x1]
      %v1420 = vld [vmem:[%s1155 + $0x18] sm:$0xf]
      %v1421 = vld [vmem:[%s1155 + $0x1c] sm:$0xf]
      %v1422 = vld [vmem:[%s1155 + $0x20] sm:$0x1]
      %v1423 = vld [vmem:[%s1155 + $0x24] sm:$0xf]
      %v1424 = vld [vmem:[%s1155 + $0x28] sm:$0xf]
      %v1425 = vld [vmem:[%s1155 + $0x2c] sm:$0x1]
      %v1426 = vld [vmem:[%s1155 + $0x30] sm:$0xf]
      %v1427 = vld [vmem:[%s1155 + $0x34] sm:$0xf]
      %v1428 = vld [vmem:[%s1155 + $0x38] sm:$0x1]
      %v1429 = vld [vmem:[%s1155 + $0x3c] sm:$0xf]
      %v1430 = vld [vmem:[%s1155 + $0x40] sm:$0xf]
      %v1431 = vld [vmem:[%s1155 + $0x44] sm:$0x1]
      %v1432 = vld [vmem:[%s1155 + $0x48] sm:$0xf]
      %v1433 = vld [vmem:[%s1155 + $0x4c] sm:$0xf]
      %v1434 = vld [vmem:[%s1155 + $0x50] sm:$0x1]
      %v1435 = vld [vmem:[%s1155 + $0x54] sm:$0xf]
      %v1436 = vld [vmem:[%s1155 + $0x58] sm:$0xf]
      %v1437 = vld [vmem:[%s1155 + $0x5c] sm:$0x1]
      %v1438 = vmax.bf16 %v1414, 0
      %v1439 = vmax.bf16 %v1415, 0
      %v1440 = vmax.bf16 %v1416, 0
      %v1441 = vmax.bf16 %v1417, 0
      %v1442 = vmax.bf16 %v1418, 0
      %v1443 = vmax.bf16 %v1419, 0
      %v1444 = vmax.bf16 %v1420, 0
      %v1445 = vmax.bf16 %v1421, 0
      %v1446 = vmax.bf16 %v1422, 0
      %v1447 = vmax.bf16 %v1423, 0
      %v1448 = vmax.bf16 %v1424, 0
      %v1449 = vmax.bf16 %v1425, 0
      %v1450 = vmax.bf16 %v1426, 0
      %v1451 = vmax.bf16 %v1427, 0
      %v1452 = vmax.bf16 %v1428, 0
      %v1453 = vmax.bf16 %v1429, 0
      %v1454 = vmax.bf16 %v1430, 0
      %v1455 = vmax.bf16 %v1431, 0
      %v1456 = vmax.bf16 %v1432, 0
      %v1457 = vmax.bf16 %v1433, 0
      %v1458 = vmax.bf16 %v1434, 0
      %v1459 = vmax.bf16 %v1435, 0
      %v1460 = vmax.bf16 %v1436, 0
      %v1461 = vmax.bf16 %v1437, 0
      %v1463 = vshrl.u32 %v1438, 16
      %v1465 = vrot.slane %v1463, 4
      %v1466 = vshll.u32 %v1438, 16
      %v1468 = vrot.slane %v1466, 5
      %v1469 = vor.u32 %v1465, %v1468
      %v1470 = vrot.slane %v1469, 4
      %v1472 = vshll.u32 %v1439, 16
      %v1474 = vrot.slane %v1472, 5
      %v1475 = vsel %vm274, %v1470, %v1474
      %v1476 = vshrl.u32 %v1439, 16
      %v1478 = vrot.slane %v1476, 4
      %v1479 = vor.u32 %v1478, %v1474
      %v1480 = vrot.slane %v1479, 4
      %v1482 = vshll.u32 %v1440, 16
      %v1484 = vrot.slane %v1482, 5
      %v1485 = vsel %vm274, %v1480, %v1484
      %v1487 = vshrl.u32 %v1441, 16
      %v1489 = vrot.slane %v1487, 4
      %v1490 = vshll.u32 %v1441, 16
      %v1492 = vrot.slane %v1490, 5
      %v1493 = vor.u32 %v1489, %v1492
      %v1494 = vrot.slane %v1493, 4
      %v1496 = vshll.u32 %v1442, 16
      %v1498 = vrot.slane %v1496, 5
      %v1499 = vsel %vm274, %v1494, %v1498
      %v1500 = vshrl.u32 %v1442, 16
      %v1502 = vrot.slane %v1500, 4
      %v1503 = vor.u32 %v1502, %v1498
      %v1504 = vrot.slane %v1503, 4
      %v1506 = vshll.u32 %v1443, 16
      %v1508 = vrot.slane %v1506, 5
      %v1509 = vsel %vm274, %v1504, %v1508
      %v1511 = vshrl.u32 %v1444, 16
      %v1513 = vrot.slane %v1511, 4
      %v1514 = vshll.u32 %v1444, 16
      %v1516 = vrot.slane %v1514, 5
      %v1517 = vor.u32 %v1513, %v1516
      %v1518 = vrot.slane %v1517, 4
      %v1520 = vshll.u32 %v1445, 16
      %v1522 = vrot.slane %v1520, 5
      %v1523 = vsel %vm274, %v1518, %v1522
      %v1524 = vshrl.u32 %v1445, 16
      %v1526 = vrot.slane %v1524, 4
      %v1527 = vor.u32 %v1526, %v1522
      %v1528 = vrot.slane %v1527, 4
      %v1530 = vshll.u32 %v1446, 16
      %v1532 = vrot.slane %v1530, 5
      %v1533 = vsel %vm274, %v1528, %v1532
      %v1535 = vshrl.u32 %v1447, 16
      %v1537 = vrot.slane %v1535, 4
      %v1538 = vshll.u32 %v1447, 16
      %v1540 = vrot.slane %v1538, 5
      %v1541 = vor.u32 %v1537, %v1540
      %v1542 = vrot.slane %v1541, 4
      %v1544 = vshll.u32 %v1448, 16
      %v1546 = vrot.slane %v1544, 5
      %v1547 = vsel %vm274, %v1542, %v1546
      %v1548 = vshrl.u32 %v1448, 16
      %v1550 = vrot.slane %v1548, 4
      %v1551 = vor.u32 %v1550, %v1546
      %v1552 = vrot.slane %v1551, 4
      %v1554 = vshll.u32 %v1449, 16
      %v1556 = vrot.slane %v1554, 5
      %v1557 = vsel %vm274, %v1552, %v1556
      %v1559 = vshrl.u32 %v1450, 16
      %v1561 = vrot.slane %v1559, 4
      %v1562 = vshll.u32 %v1450, 16
      %v1564 = vrot.slane %v1562, 5
      %v1565 = vor.u32 %v1561, %v1564
      %v1566 = vrot.slane %v1565, 4
      %v1568 = vshll.u32 %v1451, 16
      %v1570 = vrot.slane %v1568, 5
      %v1571 = vsel %vm274, %v1566, %v1570
      %v1572 = vshrl.u32 %v1451, 16
      %v1574 = vrot.slane %v1572, 4
      %v1575 = vor.u32 %v1574, %v1570
      %v1576 = vrot.slane %v1575, 4
      %v1578 = vshll.u32 %v1452, 16
      %v1580 = vrot.slane %v1578, 5
      %v1581 = vsel %vm274, %v1576, %v1580
      %v1583 = vshrl.u32 %v1453, 16
      %v1585 = vrot.slane %v1583, 4
      %v1586 = vshll.u32 %v1453, 16
      %v1588 = vrot.slane %v1586, 5
      %v1589 = vor.u32 %v1585, %v1588
      %v1590 = vrot.slane %v1589, 4
      %v1592 = vshll.u32 %v1454, 16
      %v1594 = vrot.slane %v1592, 5
      %v1595 = vsel %vm274, %v1590, %v1594
      %v1596 = vshrl.u32 %v1454, 16
      %v1598 = vrot.slane %v1596, 4
      %v1599 = vor.u32 %v1598, %v1594
      %v1600 = vrot.slane %v1599, 4
      %v1602 = vshll.u32 %v1455, 16
      %v1604 = vrot.slane %v1602, 5
      %v1605 = vsel %vm274, %v1600, %v1604
      %v1607 = vshrl.u32 %v1456, 16
      %v1609 = vrot.slane %v1607, 4
      %v1610 = vshll.u32 %v1456, 16
      %v1612 = vrot.slane %v1610, 5
      %v1613 = vor.u32 %v1609, %v1612
      %v1614 = vrot.slane %v1613, 4
      %v1616 = vshll.u32 %v1457, 16
      %v1618 = vrot.slane %v1616, 5
      %v1619 = vsel %vm274, %v1614, %v1618
      %v1620 = vshrl.u32 %v1457, 16
      %v1622 = vrot.slane %v1620, 4
      %v1623 = vor.u32 %v1622, %v1618
      %v1624 = vrot.slane %v1623, 4
      %v1626 = vshll.u32 %v1458, 16
      %v1628 = vrot.slane %v1626, 5
      %v1629 = vsel %vm274, %v1624, %v1628
      %v1631 = vshrl.u32 %v1459, 16
      %v1633 = vrot.slane %v1631, 4
      %v1634 = vshll.u32 %v1459, 16
      %v1636 = vrot.slane %v1634, 5
      %v1637 = vor.u32 %v1633, %v1636
      %v1638 = vrot.slane %v1637, 4
      %v1640 = vshll.u32 %v1460, 16
      %v1642 = vrot.slane %v1640, 5
      %v1643 = vsel %vm274, %v1638, %v1642
      %v1644 = vshrl.u32 %v1460, 16
      %v1646 = vrot.slane %v1644, 4
      %v1647 = vor.u32 %v1646, %v1642
      %v1648 = vrot.slane %v1647, 4
      %v1650 = vshll.u32 %v1461, 16
      %v1652 = vrot.slane %v1650, 5
      %v1653 = vsel %vm274, %v1648, %v1652
      %s1654 = scalar_lea.vmem %s1, 256
      %v1655 = vld [vmem:[%s1654] sm:$0xf]
      %v1656 = vld [vmem:[%s1654 + $0x4] sm:$0xf]
      %v1657 = vld [vmem:[%s1654 + $0x8] sm:$0xf]
      %v1658 = vld [vmem:[%s1654 + $0xc] sm:$0xf]
      %v1659 = vld [vmem:[%s1654 + $0x10] sm:$0xf]
      %v1660 = vld [vmem:[%s1654 + $0x14] sm:$0xf]
      %v1661 = vld [vmem:[%s1654 + $0x18] sm:$0xf]
      %v1662 = vld [vmem:[%s1654 + $0x1c] sm:$0xf]
      %v1663 = vld [vmem:[%s1654 + $0x20] sm:$0xf]
      %v1664 = vld [vmem:[%s1654 + $0x24] sm:$0xf]
      %v1665 = vld [vmem:[%s1654 + $0x28] sm:$0xf]
      %v1666 = vld [vmem:[%s1654 + $0x2c] sm:$0xf]
      %v1667 = vld [vmem:[%s1654 + $0x30] sm:$0xf]
      %v1668 = vld [vmem:[%s1654 + $0x34] sm:$0xf]
      %v1669 = vld [vmem:[%s1654 + $0x38] sm:$0xf]
      %v1670 = vld [vmem:[%s1654 + $0x3c] sm:$0xf]
      %v1671 = vunpack.c.l.b16 %v1475
      %v1672 = vunpack.c.l.b16 %v1485
      %v1673 = vunpack.c.l.b16 %v1499
      %v1674 = vunpack.c.l.b16 %v1509
      %v1675 = vunpack.c.l.b16 %v1523
      %v1676 = vunpack.c.l.b16 %v1533
      %v1677 = vunpack.c.l.b16 %v1547
      %v1678 = vunpack.c.l.b16 %v1557
      %v1679 = vunpack.c.l.b16 %v1571
      %v1680 = vunpack.c.l.b16 %v1581
      %v1681 = vunpack.c.l.b16 %v1595
      %v1682 = vunpack.c.l.b16 %v1605
      %v1683 = vunpack.c.l.b16 %v1619
      %v1684 = vunpack.c.l.b16 %v1629
      %v1685 = vunpack.c.l.b16 %v1643
      %v1686 = vunpack.c.l.b16 %v1653
      %v1687 = vpack.c.b16 %v1672, %v1671
      %v1688 = vpack.c.b16 %v1674, %v1673
      %v1689 = vpack.c.b16 %v1676, %v1675
      %v1690 = vpack.c.b16 %v1678, %v1677
      %v1691 = vpack.c.b16 %v1680, %v1679
      %v1692 = vpack.c.b16 %v1682, %v1681
      %v1693 = vpack.c.b16 %v1684, %v1683
      %v1694 = vpack.c.b16 %v1686, %v1685
      %v1719 = vunpack.c.l.b16 %v1655
      %v1720 = vunpack.c.l.b16 %v1656
      %v1721 = vunpack.c.l.b16 %v1657
      %v1722 = vunpack.c.l.b16 %v1658
      %v1723 = vunpack.c.l.b16 %v1659
      %v1724 = vunpack.c.l.b16 %v1660
      %v1725 = vunpack.c.l.b16 %v1661
      %v1726 = vunpack.c.l.b16 %v1662
      %v1727 = vunpack.c.l.b16 %v1663
      %v1728 = vunpack.c.l.b16 %v1664
      %v1729 = vunpack.c.l.b16 %v1665
      %v1730 = vunpack.c.l.b16 %v1666
      %v1731 = vunpack.c.l.b16 %v1667
      %v1732 = vunpack.c.l.b16 %v1668
      %v1733 = vunpack.c.l.b16 %v1669
      %v1734 = vunpack.c.l.b16 %v1670
      %v1735 = vpack.c.b16 %v1720, %v1719
      %v1736 = vpack.c.b16 %v1722, %v1721
      %v1737 = vpack.c.b16 %v1724, %v1723
      %v1738 = vpack.c.b16 %v1726, %v1725
      %v1739 = vpack.c.b16 %v1728, %v1727
      %v1740 = vpack.c.b16 %v1730, %v1729
      %v1741 = vpack.c.b16 %v1732, %v1731
      %v1742 = vpack.c.b16 %v1734, %v1733
      %1751 = vmatprep.subr.bf16.mxu0 0
      %1752 = vmatpush1.bf16.msra.mxu0 %v1735
      %1753 = vmatprep.subr.bf16.mxu0 0
      %1754 = vmatpush1.bf16.msra.mxu0 %v1736
      %1755 = vmatprep.subr.bf16.mxu0 0
      %1756 = vmatpush1.bf16.msra.mxu0 %v1737
      %1757 = vmatprep.subr.bf16.mxu0 0
      %1758 = vmatpush1.bf16.msra.mxu0 %v1738
      %1759 = vmatprep.subr.bf16.mxu0 0
      %1760 = vmatpush1.bf16.msra.mxu0 %v1739
      %1761 = vmatprep.subr.bf16.mxu0 0
      %1762 = vmatpush1.bf16.msra.mxu0 %v1740
      %1763 = vmatprep.subr.bf16.mxu0 0
      %1764 = vmatpush1.bf16.msra.mxu0 %v1741
      %1765 = vmatprep.subr.bf16.mxu0 0
      %1766 = vmatpush1.bf16.msra.mxu0 %v1742
      %1767 = vmatprep.subr.bf16.mxu0 0
      %1768 = vmatpush1.bf16.msra.mxu0 0
      %1769 = vmatprep.subr.bf16.mxu0 0
      %1770 = vmatpush1.bf16.msra.mxu0 0
      %1771 = vmatprep.subr.bf16.mxu0 0
      %1772 = vmatpush1.bf16.msra.mxu0 0
      %1773 = vmatprep.subr.bf16.mxu0 0
      %1774 = vmatpush1.bf16.msra.mxu0 0
      %1775 = vmatprep.subr.bf16.mxu0 0
      %1776 = vmatpush1.bf16.msra.mxu0 0
      %1777 = vmatprep.subr.bf16.mxu0 0
      %1778 = vmatpush1.bf16.msra.mxu0 0
      %1779 = vmatprep.subr.bf16.mxu0 0
      %1780 = vmatpush1.bf16.msra.mxu0 0
      %1781 = vmatprep.subr.bf16.mxu0 0
      %1782 = vmatpush1.bf16.msra.mxu0 0
      %1783 = vmatprep.mubr.bf16.mxu0 0
      %1784 = vmatmul.mubr.bf16.gmra.mrb[0].mxu0 %v1687
      %v1785 = vpop.f32.mrb[0].mxu0
      %v1786 = vadd.f32 0.0, %v1785
      %v1787 = vpop.f32.mrb[0].mxu0
      %v1788 = vpop.f32.mrb[0].mxu0
      %v1789 = vadd.f32 0.0, %v1788
      %v1790 = vpop.f32.mrb[0].mxu0
      %1791 = vmatprep.mubr.bf16.mxu0 0
      %1792 = vmatmul.mubr.bf16.gmra.mrb[0].mxu0 %v1688
      %v1793 = vpop.f32.mrb[0].mxu0
      %v1794 = vadd.f32 0.0, %v1793
      %v1795 = vpop.f32.mrb[0].mxu0
      %v1796 = vpop.f32.mrb[0].mxu0
      %v1797 = vadd.f32 0.0, %v1796
      %v1798 = vpop.f32.mrb[0].mxu0
      %1799 = vmatprep.mubr.bf16.mxu0 0
      %1800 = vmatmul.mubr.bf16.gmra.mrb[0].mxu0 %v1689
      %v1801 = vpop.f32.mrb[0].mxu0
      %v1802 = vadd.f32 0.0, %v1801
      %v1803 = vpop.f32.mrb[0].mxu0
      %v1804 = vpop.f32.mrb[0].mxu0
      %v1805 = vadd.f32 0.0, %v1804
      %v1806 = vpop.f32.mrb[0].mxu0
      %1807 = vmatprep.mubr.bf16.mxu0 0
      %1808 = vmatmul.mubr.bf16.gmra.mrb[0].mxu0 %v1690
      %v1809 = vpop.f32.mrb[0].mxu0
      %v1810 = vadd.f32 0.0, %v1809
      %v1811 = vpop.f32.mrb[0].mxu0
      %v1812 = vpop.f32.mrb[0].mxu0
      %v1813 = vadd.f32 0.0, %v1812
      %v1814 = vpop.f32.mrb[0].mxu0
      %1815 = vmatprep.mubr.bf16.mxu0 0
      %1816 = vmatmul.mubr.bf16.gmra.mrb[0].mxu0 %v1691
      %v1817 = vpop.f32.mrb[0].mxu0
      %v1818 = vadd.f32 0.0, %v1817
      %v1819 = vpop.f32.mrb[0].mxu0
      %v1820 = vpop.f32.mrb[0].mxu0
      %v1821 = vadd.f32 0.0, %v1820
      %v1822 = vpop.f32.mrb[0].mxu0
      %1823 = vmatprep.mubr.bf16.mxu0 0
      %1824 = vmatmul.mubr.bf16.gmra.mrb[0].mxu0 %v1692
      %v1825 = vpop.f32.mrb[0].mxu0
      %v1826 = vadd.f32 0.0, %v1825
      %v1827 = vpop.f32.mrb[0].mxu0
      %v1828 = vpop.f32.mrb[0].mxu0
      %v1829 = vadd.f32 0.0, %v1828
      %v1830 = vpop.f32.mrb[0].mxu0
      %1831 = vmatprep.mubr.bf16.mxu0 0
      %1832 = vmatmul.mubr.bf16.gmra.mrb[0].mxu0 %v1693
      %v1833 = vpop.f32.mrb[0].mxu0
      %v1834 = vadd.f32 0.0, %v1833
      %v1835 = vpop.f32.mrb[0].mxu0
      %v1836 = vpop.f32.mrb[0].mxu0
      %v1837 = vadd.f32 0.0, %v1836
      %v1838 = vpop.f32.mrb[0].mxu0
      %1839 = vmatprep.mubr.bf16.mxu0 0
      %1840 = vmatmul.mubr.bf16.gmra.mrb[0].mxu0 %v1694
      %v1841 = vpop.f32.mrb[0].mxu0
      %v1842 = vadd.f32 0.0, %v1841
      %v1843 = vpop.f32.mrb[0].mxu0
      %v1844 = vpop.f32.mrb[0].mxu0
      %v1845 = vadd.f32 0.0, %v1844
      %v1846 = vpop.f32.mrb[0].mxu0
      %1847 = vdwg.mxu0
      %v1848 = vadd.f32 %v1398, %v1786
      %v1849 = vadd.f32 %v1399, %v1789
      %v1850 = vadd.f32 %v1400, %v1794
      %v1851 = vadd.f32 %v1401, %v1797
      %v1852 = vadd.f32 %v1402, %v1802
      %v1853 = vadd.f32 %v1403, %v1805
      %v1854 = vadd.f32 %v1404, %v1810
      %v1855 = vadd.f32 %v1405, %v1813
      %v1856 = vadd.f32 %v1406, %v1818
      %v1857 = vadd.f32 %v1407, %v1821
      %v1858 = vadd.f32 %v1408, %v1826
      %v1859 = vadd.f32 %v1409, %v1829
      %v1860 = vadd.f32 %v1410, %v1834
      %v1861 = vadd.f32 %v1411, %v1837
      %v1862 = vadd.f32 %v1412, %v1842
      %v1863 = vadd.f32 %v1413, %v1845
      %v1864 = vld [vmem:[%s1155] sm:$0xe]
      %v1865 = vld [vmem:[%s1155 + $0xc] sm:$0xe]
      %v1866 = vld [vmem:[%s1155 + $0x18] sm:$0xe]
      %v1867 = vld [vmem:[%s1155 + $0x24] sm:$0xe]
      %v1868 = vld [vmem:[%s1155 + $0x30] sm:$0xe]
      %v1869 = vld [vmem:[%s1155 + $0x3c] sm:$0xe]
      %v1870 = vld [vmem:[%s1155 + $0x48] sm:$0xe]
      %v1871 = vld [vmem:[%s1155 + $0x54] sm:$0xe]
      %v1872 = vmax.bf16 %v1864, 0
      %v1873 = vmax.bf16 %v1865, 0
      %v1874 = vmax.bf16 %v1866, 0
      %v1875 = vmax.bf16 %v1867, 0
      %v1876 = vmax.bf16 %v1868, 0
      %v1877 = vmax.bf16 %v1869, 0
      %v1878 = vmax.bf16 %v1870, 0
      %v1879 = vmax.bf16 %v1871, 0
      %v1904 = vrot.slane %v1872, 5
      %v1905 = vrot.slane %v1904, 4
      %v1906 = vrot.slane %v1439, 5
      %v1907 = vsel %vm888, %v1905, %v1906
      %v1908 = vrot.slane %v1906, 4
      %v1909 = vrot.slane %v1440, 5
      %v1910 = vsel %vm888, %v1908, %v1909
      %v1911 = vrot.slane %v1873, 5
      %v1912 = vrot.slane %v1911, 4
      %v1913 = vrot.slane %v1442, 5
      %v1914 = vsel %vm888, %v1912, %v1913
      %v1915 = vrot.slane %v1913, 4
      %v1916 = vrot.slane %v1443, 5
      %v1917 = vsel %vm888, %v1915, %v1916
      %v1918 = vrot.slane %v1874, 5
      %v1919 = vrot.slane %v1918, 4
      %v1920 = vrot.slane %v1445, 5
      %v1921 = vsel %vm888, %v1919, %v1920
      %v1922 = vrot.slane %v1920, 4
      %v1923 = vrot.slane %v1446, 5
      %v1924 = vsel %vm888, %v1922, %v1923
      %v1925 = vrot.slane %v1875, 5
      %v1926 = vrot.slane %v1925, 4
      %v1927 = vrot.slane %v1448, 5
      %v1928 = vsel %vm888, %v1926, %v1927
      %v1929 = vrot.slane %v1927, 4
      %v1930 = vrot.slane %v1449, 5
      %v1931 = vsel %vm888, %v1929, %v1930
      %v1932 = vrot.slane %v1876, 5
      %v1933 = vrot.slane %v1932, 4
      %v1934 = vrot.slane %v1451, 5
      %v1935 = vsel %vm888, %v1933, %v1934
      %v1936 = vrot.slane %v1934, 4
      %v1937 = vrot.slane %v1452, 5
      %v1938 = vsel %vm888, %v1936, %v1937
      %v1939 = vrot.slane %v1877, 5
      %v1940 = vrot.slane %v1939, 4
      %v1941 = vrot.slane %v1454, 5
      %v1942 = vsel %vm888, %v1940, %v1941
      %v1943 = vrot.slane %v1941, 4
      %v1944 = vrot.slane %v1455, 5
      %v1945 = vsel %vm888, %v1943, %v1944
      %v1946 = vrot.slane %v1878, 5
      %v1947 = vrot.slane %v1946, 4
      %v1948 = vrot.slane %v1457, 5
      %v1949 = vsel %vm888, %v1947, %v1948
      %v1950 = vrot.slane %v1948, 4
      %v1951 = vrot.slane %v1458, 5
      %v1952 = vsel %vm888, %v1950, %v1951
      %v1953 = vrot.slane %v1879, 5
      %v1954 = vrot.slane %v1953, 4
      %v1955 = vrot.slane %v1460, 5
      %v1956 = vsel %vm888, %v1954, %v1955
      %v1957 = vrot.slane %v1955, 4
      %v1958 = vrot.slane %v1461, 5
      %v1959 = vsel %vm888, %v1957, %v1958
      %s1960 = scalar_lea.vmem %s1, 320
      %v1961 = vld [vmem:[%s1960] sm:$0xf]
      %v1962 = vld [vmem:[%s1960 + $0x4] sm:$0xf]
      %v1963 = vld [vmem:[%s1960 + $0x8] sm:$0xf]
      %v1964 = vld [vmem:[%s1960 + $0xc] sm:$0xf]
      %v1965 = vld [vmem:[%s1960 + $0x10] sm:$0xf]
      %v1966 = vld [vmem:[%s1960 + $0x14] sm:$0xf]
      %v1967 = vld [vmem:[%s1960 + $0x18] sm:$0xf]
      %v1968 = vld [vmem:[%s1960 + $0x1c] sm:$0xf]
      %v1969 = vld [vmem:[%s1960 + $0x20] sm:$0xf]
      %v1970 = vld [vmem:[%s1960 + $0x24] sm:$0xf]
      %v1971 = vld [vmem:[%s1960 + $0x28] sm:$0xf]
      %v1972 = vld [vmem:[%s1960 + $0x2c] sm:$0xf]
      %v1973 = vld [vmem:[%s1960 + $0x30] sm:$0xf]
      %v1974 = vld [vmem:[%s1960 + $0x34] sm:$0xf]
      %v1975 = vld [vmem:[%s1960 + $0x38] sm:$0xf]
      %v1976 = vld [vmem:[%s1960 + $0x3c] sm:$0xf]
      %v1977 = vunpack.c.l.b16 %v1907
      %v1978 = vunpack.c.l.b16 %v1910
      %v1979 = vunpack.c.l.b16 %v1914
      %v1980 = vunpack.c.l.b16 %v1917
      %v1981 = vunpack.c.l.b16 %v1921
      %v1982 = vunpack.c.l.b16 %v1924
      %v1983 = vunpack.c.l.b16 %v1928
      %v1984 = vunpack.c.l.b16 %v1931
      %v1985 = vunpack.c.l.b16 %v1935
      %v1986 = vunpack.c.l.b16 %v1938
      %v1987 = vunpack.c.l.b16 %v1942
      %v1988 = vunpack.c.l.b16 %v1945
      %v1989 = vunpack.c.l.b16 %v1949
      %v1990 = vunpack.c.l.b16 %v1952
      %v1991 = vunpack.c.l.b16 %v1956
      %v1992 = vunpack.c.l.b16 %v1959
      %v1993 = vpack.c.b16 %v1978, %v1977
      %v1994 = vpack.c.b16 %v1980, %v1979
      %v1995 = vpack.c.b16 %v1982, %v1981
      %v1996 = vpack.c.b16 %v1984, %v1983
      %v1997 = vpack.c.b16 %v1986, %v1985
      %v1998 = vpack.c.b16 %v1988, %v1987
      %v1999 = vpack.c.b16 %v1990, %v1989
      %v2000 = vpack.c.b16 %v1992, %v1991
      %v2025 = vunpack.c.l.b16 %v1961
      %v2026 = vunpack.c.l.b16 %v1962
      %v2027 = vunpack.c.l.b16 %v1963
      %v2028 = vunpack.c.l.b16 %v1964
      %v2029 = vunpack.c.l.b16 %v1965
      %v2030 = vunpack.c.l.b16 %v1966
      %v2031 = vunpack.c.l.b16 %v1967
      %v2032 = vunpack.c.l.b16 %v1968
      %v2033 = vunpack.c.l.b16 %v1969
      %v2034 = vunpack.c.l.b16 %v1970
      %v2035 = vunpack.c.l.b16 %v1971
      %v2036 = vunpack.c.l.b16 %v1972
      %v2037 = vunpack.c.l.b16 %v1973
      %v2038 = vunpack.c.l.b16 %v1974
      %v2039 = vunpack.c.l.b16 %v1975
      %v2040 = vunpack.c.l.b16 %v1976
      %v2041 = vpack.c.b16 %v2026, %v2025
      %v2042 = vpack.c.b16 %v2028, %v2027
      %v2043 = vpack.c.b16 %v2030, %v2029
      %v2044 = vpack.c.b16 %v2032, %v2031
      %v2045 = vpack.c.b16 %v2034, %v2033
      %v2046 = vpack.c.b16 %v2036, %v2035
      %v2047 = vpack.c.b16 %v2038, %v2037
      %v2048 = vpack.c.b16 %v2040, %v2039
      %2057 = vmatprep.subr.bf16.mxu0 0
      %2058 = vmatpush1.bf16.msra.mxu0 %v2041
      %2059 = vmatprep.subr.bf16.mxu0 0
      %2060 = vmatpush1.bf16.msra.mxu0 %v2042
      %2061 = vmatprep.subr.bf16.mxu0 0
      %2062 = vmatpush1.bf16.msra.mxu0 %v2043
      %2063 = vmatprep.subr.bf16.mxu0 0
      %2064 = vmatpush1.bf16.msra.mxu0 %v2044
      %2065 = vmatprep.subr.bf16.mxu0 0
      %2066 = vmatpush1.bf16.msra.mxu0 %v2045
      %2067 = vmatprep.subr.bf16.mxu0 0
      %2068 = vmatpush1.bf16.msra.mxu0 %v2046
      %2069 = vmatprep.subr.bf16.mxu0 0
      %2070 = vmatpush1.bf16.msra.mxu0 %v2047
      %2071 = vmatprep.subr.bf16.mxu0 0
      %2072 = vmatpush1.bf16.msra.mxu0 %v2048
      %2073 = vmatprep.subr.bf16.mxu0 0
      %2074 = vmatpush1.bf16.msra.mxu0 0
      %2075 = vmatprep.subr.bf16.mxu0 0
      %2076 = vmatpush1.bf16.msra.mxu0 0
      %2077 = vmatprep.subr.bf16.mxu0 0
      %2078 = vmatpush1.bf16.msra.mxu0 0
      %2079 = vmatprep.subr.bf16.mxu0 0
      %2080 = vmatpush1.bf16.msra.mxu0 0
      %2081 = vmatprep.subr.bf16.mxu0 0
      %2082 = vmatpush1.bf16.msra.mxu0 0
      %2083 = vmatprep.subr.bf16.mxu0 0
      %2084 = vmatpush1.bf16.msra.mxu0 0
      %2085 = vmatprep.subr.bf16.mxu0 0
      %2086 = vmatpush1.bf16.msra.mxu0 0
      %2087 = vmatprep.subr.bf16.mxu0 0
      %2088 = vmatpush1.bf16.msra.mxu0 0
      %2089 = vmatprep.mubr.bf16.mxu0 0
      %2090 = vmatmul.mubr.bf16.gmra.mrb[0].mxu0 %v1993
      %v2091 = vpop.f32.mrb[0].mxu0
      %v2092 = vadd.f32 0.0, %v2091
      %v2093 = vpop.f32.mrb[0].mxu0
      %v2094 = vpop.f32.mrb[0].mxu0
      %v2095 = vadd.f32 0.0, %v2094
      %v2096 = vpop.f32.mrb[0].mxu0
      %2097 = vmatprep.mubr.bf16.mxu0 0
      %2098 = vmatmul.mubr.bf16.gmra.mrb[0].mxu0 %v1994
      %v2099 = vpop.f32.mrb[0].mxu0
      %v2100 = vadd.f32 0.0, %v2099
      %v2101 = vpop.f32.mrb[0].mxu0
      %v2102 = vpop.f32.mrb[0].mxu0
      %v2103 = vadd.f32 0.0, %v2102
      %v2104 = vpop.f32.mrb[0].mxu0
      %2105 = vmatprep.mubr.bf16.mxu0 0
      %2106 = vmatmul.mubr.bf16.gmra.mrb[0].mxu0 %v1995
      %v2107 = vpop.f32.mrb[0].mxu0
      %v2108 = vadd.f32 0.0, %v2107
      %v2109 = vpop.f32.mrb[0].mxu0
      %v2110 = vpop.f32.mrb[0].mxu0
      %v2111 = vadd.f32 0.0, %v2110
      %v2112 = vpop.f32.mrb[0].mxu0
      %2113 = vmatprep.mubr.bf16.mxu0 0
      %2114 = vmatmul.mubr.bf16.gmra.mrb[0].mxu0 %v1996
      %v2115 = vpop.f32.mrb[0].mxu0
      %v2116 = vadd.f32 0.0, %v2115
      %v2117 = vpop.f32.mrb[0].mxu0
      %v2118 = vpop.f32.mrb[0].mxu0
      %v2119 = vadd.f32 0.0, %v2118
      %v2120 = vpop.f32.mrb[0].mxu0
      %2121 = vmatprep.mubr.bf16.mxu0 0
      %2122 = vmatmul.mubr.bf16.gmra.mrb[0].mxu0 %v1997
      %v2123 = vpop.f32.mrb[0].mxu0
      %v2124 = vadd.f32 0.0, %v2123
      %v2125 = vpop.f32.mrb[0].mxu0
      %v2126 = vpop.f32.mrb[0].mxu0
      %v2127 = vadd.f32 0.0, %v2126
      %v2128 = vpop.f32.mrb[0].mxu0
      %2129 = vmatprep.mubr.bf16.mxu0 0
      %2130 = vmatmul.mubr.bf16.gmra.mrb[0].mxu0 %v1998
      %v2131 = vpop.f32.mrb[0].mxu0
      %v2132 = vadd.f32 0.0, %v2131
      %v2133 = vpop.f32.mrb[0].mxu0
      %v2134 = vpop.f32.mrb[0].mxu0
      %v2135 = vadd.f32 0.0, %v2134
      %v2136 = vpop.f32.mrb[0].mxu0
      %2137 = vmatprep.mubr.bf16.mxu0 0
      %2138 = vmatmul.mubr.bf16.gmra.mrb[0].mxu0 %v1999
      %v2139 = vpop.f32.mrb[0].mxu0
      %v2140 = vadd.f32 0.0, %v2139
      %v2141 = vpop.f32.mrb[0].mxu0
      %v2142 = vpop.f32.mrb[0].mxu0
      %v2143 = vadd.f32 0.0, %v2142
      %v2144 = vpop.f32.mrb[0].mxu0
      %2145 = vmatprep.mubr.bf16.mxu0 0
      %2146 = vmatmul.mubr.bf16.gmra.mrb[0].mxu0 %v2000
      %v2147 = vpop.f32.mrb[0].mxu0
      %v2148 = vadd.f32 0.0, %v2147
      %v2149 = vpop.f32.mrb[0].mxu0
      %v2150 = vpop.f32.mrb[0].mxu0
      %v2151 = vadd.f32 0.0, %v2150
      %v2152 = vpop.f32.mrb[0].mxu0
      %2153 = vdwg.mxu0
      %v2154 = vadd.f32 %v1848, %v2092
      %v2155 = vadd.f32 %v1849, %v2095
      %v2156 = vadd.f32 %v1850, %v2100
      %v2157 = vadd.f32 %v1851, %v2103
      %v2158 = vadd.f32 %v1852, %v2108
      %v2159 = vadd.f32 %v1853, %v2111
      %v2160 = vadd.f32 %v1854, %v2116
      %v2161 = vadd.f32 %v1855, %v2119
      %v2162 = vadd.f32 %v1856, %v2124
      %v2163 = vadd.f32 %v1857, %v2127
      %v2164 = vadd.f32 %v1858, %v2132
      %v2165 = vadd.f32 %v1859, %v2135
      %v2166 = vadd.f32 %v1860, %v2140
      %v2167 = vadd.f32 %v1861, %v2143
      %v2168 = vadd.f32 %v1862, %v2148
      %v2169 = vadd.f32 %v1863, %v2151
      %s2170 = scalar_lea.vmem %s197, 24
      %v2171 = vld [vmem:[%s2170] sm:$0xf]
      %v2172 = vld [vmem:[%s2170 + $0x4] sm:$0xf]
      %v2173 = vld [vmem:[%s2170 + $0xc] sm:$0xf]
      %v2174 = vld [vmem:[%s2170 + $0x10] sm:$0xf]
      %v2175 = vld [vmem:[%s2170 + $0x18] sm:$0xf]
      %v2176 = vld [vmem:[%s2170 + $0x1c] sm:$0xf]
      %v2177 = vld [vmem:[%s2170 + $0x24] sm:$0xf]
      %v2178 = vld [vmem:[%s2170 + $0x28] sm:$0xf]
      %v2179 = vld [vmem:[%s2170 + $0x30] sm:$0xf]
      %v2180 = vld [vmem:[%s2170 + $0x34] sm:$0xf]
      %v2181 = vld [vmem:[%s2170 + $0x3c] sm:$0xf]
      %v2182 = vld [vmem:[%s2170 + $0x40] sm:$0xf]
      %v2183 = vld [vmem:[%s2170 + $0x48] sm:$0xf]
      %v2184 = vld [vmem:[%s2170 + $0x4c] sm:$0xf]
      %v2185 = vld [vmem:[%s2170 + $0x54] sm:$0xf]
      %v2186 = vld [vmem:[%s2170 + $0x58] sm:$0xf]
      %v2187 = vmax.bf16 %v2171, 0
      %v2188 = vmax.bf16 %v2172, 0
      %v2189 = vmax.bf16 %v2173, 0
      %v2190 = vmax.bf16 %v2174, 0
      %v2191 = vmax.bf16 %v2175, 0
      %v2192 = vmax.bf16 %v2176, 0
      %v2193 = vmax.bf16 %v2177, 0
      %v2194 = vmax.bf16 %v2178, 0
      %v2195 = vmax.bf16 %v2179, 0
      %v2196 = vmax.bf16 %v2180, 0
      %v2197 = vmax.bf16 %v2181, 0
      %v2198 = vmax.bf16 %v2182, 0
      %v2199 = vmax.bf16 %v2183, 0
      %v2200 = vmax.bf16 %v2184, 0
      %v2201 = vmax.bf16 %v2185, 0
      %v2202 = vmax.bf16 %v2186, 0
      %s2203 = scalar_lea.vmem %s1, 384
      %v2204 = vld [vmem:[%s2203] sm:$0xf]
      %v2205 = vld [vmem:[%s2203 + $0x4] sm:$0xf]
      %v2206 = vld [vmem:[%s2203 + $0x8] sm:$0xf]
      %v2207 = vld [vmem:[%s2203 + $0xc] sm:$0xf]
      %v2208 = vld [vmem:[%s2203 + $0x10] sm:$0xf]
      %v2209 = vld [vmem:[%s2203 + $0x14] sm:$0xf]
      %v2210 = vld [vmem:[%s2203 + $0x18] sm:$0xf]
      %v2211 = vld [vmem:[%s2203 + $0x1c] sm:$0xf]
      %v2212 = vld [vmem:[%s2203 + $0x20] sm:$0xf]
      %v2213 = vld [vmem:[%s2203 + $0x24] sm:$0xf]
      %v2214 = vld [vmem:[%s2203 + $0x28] sm:$0xf]
      %v2215 = vld [vmem:[%s2203 + $0x2c] sm:$0xf]
      %v2216 = vld [vmem:[%s2203 + $0x30] sm:$0xf]
      %v2217 = vld [vmem:[%s2203 + $0x34] sm:$0xf]
      %v2218 = vld [vmem:[%s2203 + $0x38] sm:$0xf]
      %v2219 = vld [vmem:[%s2203 + $0x3c] sm:$0xf]
      %v2236 = vunpack.c.l.b16 %v2187
      %v2237 = vunpack.c.l.b16 %v2188
      %v2238 = vunpack.c.l.b16 %v2189
      %v2239 = vunpack.c.l.b16 %v2190
      %v2240 = vunpack.c.l.b16 %v2191
      %v2241 = vunpack.c.l.b16 %v2192
      %v2242 = vunpack.c.l.b16 %v2193
      %v2243 = vunpack.c.l.b16 %v2194
      %v2244 = vunpack.c.l.b16 %v2195
      %v2245 = vunpack.c.l.b16 %v2196
      %v2246 = vunpack.c.l.b16 %v2197
      %v2247 = vunpack.c.l.b16 %v2198
      %v2248 = vunpack.c.l.b16 %v2199
      %v2249 = vunpack.c.l.b16 %v2200
      %v2250 = vunpack.c.l.b16 %v2201
      %v2251 = vunpack.c.l.b16 %v2202
      %v2252 = vpack.c.b16 %v2237, %v2236
      %v2253 = vpack.c.b16 %v2239, %v2238
      %v2254 = vpack.c.b16 %v2241, %v2240
      %v2255 = vpack.c.b16 %v2243, %v2242
      %v2256 = vpack.c.b16 %v2245, %v2244
      %v2257 = vpack.c.b16 %v2247, %v2246
      %v2258 = vpack.c.b16 %v2249, %v2248
      %v2259 = vpack.c.b16 %v2251, %v2250
      %v2284 = vunpack.c.l.b16 %v2204
      %v2285 = vunpack.c.l.b16 %v2205
      %v2286 = vunpack.c.l.b16 %v2206
      %v2287 = vunpack.c.l.b16 %v2207
      %v2288 = vunpack.c.l.b16 %v2208
      %v2289 = vunpack.c.l.b16 %v2209
      %v2290 = vunpack.c.l.b16 %v2210
      %v2291 = vunpack.c.l.b16 %v2211
      %v2292 = vunpack.c.l.b16 %v2212
      %v2293 = vunpack.c.l.b16 %v2213
      %v2294 = vunpack.c.l.b16 %v2214
      %v2295 = vunpack.c.l.b16 %v2215
      %v2296 = vunpack.c.l.b16 %v2216
      %v2297 = vunpack.c.l.b16 %v2217
      %v2298 = vunpack.c.l.b16 %v2218
      %v2299 = vunpack.c.l.b16 %v2219
      %v2300 = vpack.c.b16 %v2285, %v2284
      %v2301 = vpack.c.b16 %v2287, %v2286
      %v2302 = vpack.c.b16 %v2289, %v2288
      %v2303 = vpack.c.b16 %v2291, %v2290
      %v2304 = vpack.c.b16 %v2293, %v2292
      %v2305 = vpack.c.b16 %v2295, %v2294
      %v2306 = vpack.c.b16 %v2297, %v2296
      %v2307 = vpack.c.b16 %v2299, %v2298
      %2316 = vmatprep.subr.bf16.mxu0 0
      %2317 = vmatpush1.bf16.msra.mxu0 %v2300
      %2318 = vmatprep.subr.bf16.mxu0 0
      %2319 = vmatpush1.bf16.msra.mxu0 %v2301
      %2320 = vmatprep.subr.bf16.mxu0 0
      %2321 = vmatpush1.bf16.msra.mxu0 %v2302
      %2322 = vmatprep.subr.bf16.mxu0 0
      %2323 = vmatpush1.bf16.msra.mxu0 %v2303
      %2324 = vmatprep.subr.bf16.mxu0 0
      %2325 = vmatpush1.bf16.msra.mxu0 %v2304
      %2326 = vmatprep.subr.bf16.mxu0 0
      %2327 = vmatpush1.bf16.msra.mxu0 %v2305
      %2328 = vmatprep.subr.bf16.mxu0 0
      %2329 = vmatpush1.bf16.msra.mxu0 %v2306
      %2330 = vmatprep.subr.bf16.mxu0 0
      %2331 = vmatpush1.bf16.msra.mxu0 %v2307
      %2332 = vmatprep.subr.bf16.mxu0 0
      %2333 = vmatpush1.bf16.msra.mxu0 0
      %2334 = vmatprep.subr.bf16.mxu0 0
      %2335 = vmatpush1.bf16.msra.mxu0 0
      %2336 = vmatprep.subr.bf16.mxu0 0
      %2337 = vmatpush1.bf16.msra.mxu0 0
      %2338 = vmatprep.subr.bf16.mxu0 0
      %2339 = vmatpush1.bf16.msra.mxu0 0
      %2340 = vmatprep.subr.bf16.mxu0 0
      %2341 = vmatpush1.bf16.msra.mxu0 0
      %2342 = vmatprep.subr.bf16.mxu0 0
      %2343 = vmatpush1.bf16.msra.mxu0 0
      %2344 = vmatprep.subr.bf16.mxu0 0
      %2345 = vmatpush1.bf16.msra.mxu0 0
      %2346 = vmatprep.subr.bf16.mxu0 0
      %2347 = vmatpush1.bf16.msra.mxu0 0
      %2348 = vmatprep.mubr.bf16.mxu0 0
      %2349 = vmatmul.mubr.bf16.gmra.mrb[0].mxu0 %v2252
      %v2350 = vpop.f32.mrb[0].mxu0
      %v2351 = vadd.f32 0.0, %v2350
      %v2352 = vpop.f32.mrb[0].mxu0
      %v2353 = vpop.f32.mrb[0].mxu0
      %v2354 = vadd.f32 0.0, %v2353
      %v2355 = vpop.f32.mrb[0].mxu0
      %2356 = vmatprep.mubr.bf16.mxu0 0
      %2357 = vmatmul.mubr.bf16.gmra.mrb[0].mxu0 %v2253
      %v2358 = vpop.f32.mrb[0].mxu0
      %v2359 = vadd.f32 0.0, %v2358
      %v2360 = vpop.f32.mrb[0].mxu0
      %v2361 = vpop.f32.mrb[0].mxu0
      %v2362 = vadd.f32 0.0, %v2361
      %v2363 = vpop.f32.mrb[0].mxu0
      %2364 = vmatprep.mubr.bf16.mxu0 0
      %2365 = vmatmul.mubr.bf16.gmra.mrb[0].mxu0 %v2254
      %v2366 = vpop.f32.mrb[0].mxu0
      %v2367 = vadd.f32 0.0, %v2366
      %v2368 = vpop.f32.mrb[0].mxu0
      %v2369 = vpop.f32.mrb[0].mxu0
      %v2370 = vadd.f32 0.0, %v2369
      %v2371 = vpop.f32.mrb[0].mxu0
      %2372 = vmatprep.mubr.bf16.mxu0 0
      %2373 = vmatmul.mubr.bf16.gmra.mrb[0].mxu0 %v2255
      %v2374 = vpop.f32.mrb[0].mxu0
      %v2375 = vadd.f32 0.0, %v2374
      %v2376 = vpop.f32.mrb[0].mxu0
      %v2377 = vpop.f32.mrb[0].mxu0
      %v2378 = vadd.f32 0.0, %v2377
      %v2379 = vpop.f32.mrb[0].mxu0
      %2380 = vmatprep.mubr.bf16.mxu0 0
      %2381 = vmatmul.mubr.bf16.gmra.mrb[0].mxu0 %v2256
      %v2382 = vpop.f32.mrb[0].mxu0
      %v2383 = vadd.f32 0.0, %v2382
      %v2384 = vpop.f32.mrb[0].mxu0
      %v2385 = vpop.f32.mrb[0].mxu0
      %v2386 = vadd.f32 0.0, %v2385
      %v2387 = vpop.f32.mrb[0].mxu0
      %2388 = vmatprep.mubr.bf16.mxu0 0
      %2389 = vmatmul.mubr.bf16.gmra.mrb[0].mxu0 %v2257
      %v2390 = vpop.f32.mrb[0].mxu0
      %v2391 = vadd.f32 0.0, %v2390
      %v2392 = vpop.f32.mrb[0].mxu0
      %v2393 = vpop.f32.mrb[0].mxu0
      %v2394 = vadd.f32 0.0, %v2393
      %v2395 = vpop.f32.mrb[0].mxu0
      %2396 = vmatprep.mubr.bf16.mxu0 0
      %2397 = vmatmul.mubr.bf16.gmra.mrb[0].mxu0 %v2258
      %v2398 = vpop.f32.mrb[0].mxu0
      %v2399 = vadd.f32 0.0, %v2398
      %v2400 = vpop.f32.mrb[0].mxu0
      %v2401 = vpop.f32.mrb[0].mxu0
      %v2402 = vadd.f32 0.0, %v2401
      %v2403 = vpop.f32.mrb[0].mxu0
      %2404 = vmatprep.mubr.bf16.mxu0 0
      %2405 = vmatmul.mubr.bf16.gmra.mrb[0].mxu0 %v2259
      %v2406 = vpop.f32.mrb[0].mxu0
      %v2407 = vadd.f32 0.0, %v2406
      %v2408 = vpop.f32.mrb[0].mxu0
      %v2409 = vpop.f32.mrb[0].mxu0
      %v2410 = vadd.f32 0.0, %v2409
      %v2411 = vpop.f32.mrb[0].mxu0
      %2412 = vdwg.mxu0
      %v2413 = vadd.f32 %v2154, %v2351
      %v2414 = vadd.f32 %v2155, %v2354
      %v2415 = vadd.f32 %v2156, %v2359
      %v2416 = vadd.f32 %v2157, %v2362
      %v2417 = vadd.f32 %v2158, %v2367
      %v2418 = vadd.f32 %v2159, %v2370
      %v2419 = vadd.f32 %v2160, %v2375
      %v2420 = vadd.f32 %v2161, %v2378
      %v2421 = vadd.f32 %v2162, %v2383
      %v2422 = vadd.f32 %v2163, %v2386
      %v2423 = vadd.f32 %v2164, %v2391
      %v2424 = vadd.f32 %v2165, %v2394
      %v2425 = vadd.f32 %v2166, %v2399
      %v2426 = vadd.f32 %v2167, %v2402
      %v2427 = vadd.f32 %v2168, %v2407
      %v2428 = vadd.f32 %v2169, %v2410
      %v2429 = vld [vmem:[%s2170] sm:$0xf]
      %v2430 = vld [vmem:[%s2170 + $0x4] sm:$0xf]
      %v2431 = vld [vmem:[%s2170 + $0x8] sm:$0x1]
      %v2432 = vld [vmem:[%s2170 + $0xc] sm:$0xf]
      %v2433 = vld [vmem:[%s2170 + $0x10] sm:$0xf]
      %v2434 = vld [vmem:[%s2170 + $0x14] sm:$0x1]
      %v2435 = vld [vmem:[%s2170 + $0x18] sm:$0xf]
      %v2436 = vld [vmem:[%s2170 + $0x1c] sm:$0xf]
      %v2437 = vld [vmem:[%s2170 + $0x20] sm:$0x1]
      %v2438 = vld [vmem:[%s2170 + $0x24] sm:$0xf]
      %v2439 = vld [vmem:[%s2170 + $0x28] sm:$0xf]
      %v2440 = vld [vmem:[%s2170 + $0x2c] sm:$0x1]
      %v2441 = vld [vmem:[%s2170 + $0x30] sm:$0xf]
      %v2442 = vld [vmem:[%s2170 + $0x34] sm:$0xf]
      %v2443 = vld [vmem:[%s2170 + $0x38] sm:$0x1]
      %v2444 = vld [vmem:[%s2170 + $0x3c] sm:$0xf]
      %v2445 = vld [vmem:[%s2170 + $0x40] sm:$0xf]
      %v2446 = vld [vmem:[%s2170 + $0x44] sm:$0x1]
      %v2447 = vld [vmem:[%s2170 + $0x48] sm:$0xf]
      %v2448 = vld [vmem:[%s2170 + $0x4c] sm:$0xf]
      %v2449 = vld [vmem:[%s2170 + $0x50] sm:$0x1]
      %v2450 = vld [vmem:[%s2170 + $0x54] sm:$0xf]
      %v2451 = vld [vmem:[%s2170 + $0x58] sm:$0xf]
      %v2452 = vld [vmem:[%s2170 + $0x5c] sm:$0x1]
      %v2453 = vmax.bf16 %v2429, 0
      %v2454 = vmax.bf16 %v2430, 0
      %v2455 = vmax.bf16 %v2431, 0
      %v2456 = vmax.bf16 %v2432, 0
      %v2457 = vmax.bf16 %v2433, 0
      %v2458 = vmax.bf16 %v2434, 0
      %v2459 = vmax.bf16 %v2435, 0
      %v2460 = vmax.bf16 %v2436, 0
      %v2461 = vmax.bf16 %v2437, 0
      %v2462 = vmax.bf16 %v2438, 0
      %v2463 = vmax.bf16 %v2439, 0
      %v2464 = vmax.bf16 %v2440, 0
      %v2465 = vmax.bf16 %v2441, 0
      %v2466 = vmax.bf16 %v2442, 0
      %v2467 = vmax.bf16 %v2443, 0
      %v2468 = vmax.bf16 %v2444, 0
      %v2469 = vmax.bf16 %v2445, 0
      %v2470 = vmax.bf16 %v2446, 0
      %v2471 = vmax.bf16 %v2447, 0
      %v2472 = vmax.bf16 %v2448, 0
      %v2473 = vmax.bf16 %v2449, 0
      %v2474 = vmax.bf16 %v2450, 0
      %v2475 = vmax.bf16 %v2451, 0
      %v2476 = vmax.bf16 %v2452, 0
      %v2478 = vshrl.u32 %v2453, 16
      %v2480 = vrot.slane %v2478, 4
      %v2481 = vshll.u32 %v2453, 16
      %v2483 = vrot.slane %v2481, 5
      %v2484 = vor.u32 %v2480, %v2483
      %v2485 = vrot.slane %v2484, 4
      %v2487 = vshll.u32 %v2454, 16
      %v2489 = vrot.slane %v2487, 5
      %v2490 = vsel %vm274, %v2485, %v2489
      %v2491 = vshrl.u32 %v2454, 16
      %v2493 = vrot.slane %v2491, 4
      %v2494 = vor.u32 %v2493, %v2489
      %v2495 = vrot.slane %v2494, 4
      %v2497 = vshll.u32 %v2455, 16
      %v2499 = vrot.slane %v2497, 5
      %v2500 = vsel %vm274, %v2495, %v2499
      %v2502 = vshrl.u32 %v2456, 16
      %v2504 = vrot.slane %v2502, 4
      %v2505 = vshll.u32 %v2456, 16
      %v2507 = vrot.slane %v2505, 5
      %v2508 = vor.u32 %v2504, %v2507
      %v2509 = vrot.slane %v2508, 4
      %v2511 = vshll.u32 %v2457, 16
      %v2513 = vrot.slane %v2511, 5
      %v2514 = vsel %vm274, %v2509, %v2513
      %v2515 = vshrl.u32 %v2457, 16
      %v2517 = vrot.slane %v2515, 4
      %v2518 = vor.u32 %v2517, %v2513
      %v2519 = vrot.slane %v2518, 4
      %v2521 = vshll.u32 %v2458, 16
      %v2523 = vrot.slane %v2521, 5
      %v2524 = vsel %vm274, %v2519, %v2523
      %v2526 = vshrl.u32 %v2459, 16
      %v2528 = vrot.slane %v2526, 4
      %v2529 = vshll.u32 %v2459, 16
      %v2531 = vrot.slane %v2529, 5
      %v2532 = vor.u32 %v2528, %v2531
      %v2533 = vrot.slane %v2532, 4
      %v2535 = vshll.u32 %v2460, 16
      %v2537 = vrot.slane %v2535, 5
      %v2538 = vsel %vm274, %v2533, %v2537
      %v2539 = vshrl.u32 %v2460, 16
      %v2541 = vrot.slane %v2539, 4
      %v2542 = vor.u32 %v2541, %v2537
      %v2543 = vrot.slane %v2542, 4
      %v2545 = vshll.u32 %v2461, 16
      %v2547 = vrot.slane %v2545, 5
      %v2548 = vsel %vm274, %v2543, %v2547
      %v2550 = vshrl.u32 %v2462, 16
      %v2552 = vrot.slane %v2550, 4
      %v2553 = vshll.u32 %v2462, 16
      %v2555 = vrot.slane %v2553, 5
      %v2556 = vor.u32 %v2552, %v2555
      %v2557 = vrot.slane %v2556, 4
      %v2559 = vshll.u32 %v2463, 16
      %v2561 = vrot.slane %v2559, 5
      %v2562 = vsel %vm274, %v2557, %v2561
      %v2563 = vshrl.u32 %v2463, 16
      %v2565 = vrot.slane %v2563, 4
      %v2566 = vor.u32 %v2565, %v2561
      %v2567 = vrot.slane %v2566, 4
      %v2569 = vshll.u32 %v2464, 16
      %v2571 = vrot.slane %v2569, 5
      %v2572 = vsel %vm274, %v2567, %v2571
      %v2574 = vshrl.u32 %v2465, 16
      %v2576 = vrot.slane %v2574, 4
      %v2577 = vshll.u32 %v2465, 16
      %v2579 = vrot.slane %v2577, 5
      %v2580 = vor.u32 %v2576, %v2579
      %v2581 = vrot.slane %v2580, 4
      %v2583 = vshll.u32 %v2466, 16
      %v2585 = vrot.slane %v2583, 5
      %v2586 = vsel %vm274, %v2581, %v2585
      %v2587 = vshrl.u32 %v2466, 16
      %v2589 = vrot.slane %v2587, 4
      %v2590 = vor.u32 %v2589, %v2585
      %v2591 = vrot.slane %v2590, 4
      %v2593 = vshll.u32 %v2467, 16
      %v2595 = vrot.slane %v2593, 5
      %v2596 = vsel %vm274, %v2591, %v2595
      %v2598 = vshrl.u32 %v2468, 16
      %v2600 = vrot.slane %v2598, 4
      %v2601 = vshll.u32 %v2468, 16
      %v2603 = vrot.slane %v2601, 5
      %v2604 = vor.u32 %v2600, %v2603
      %v2605 = vrot.slane %v2604, 4
      %v2607 = vshll.u32 %v2469, 16
      %v2609 = vrot.slane %v2607, 5
      %v2610 = vsel %vm274, %v2605, %v2609
      %v2611 = vshrl.u32 %v2469, 16
      %v2613 = vrot.slane %v2611, 4
      %v2614 = vor.u32 %v2613, %v2609
      %v2615 = vrot.slane %v2614, 4
      %v2617 = vshll.u32 %v2470, 16
      %v2619 = vrot.slane %v2617, 5
      %v2620 = vsel %vm274, %v2615, %v2619
      %v2622 = vshrl.u32 %v2471, 16
      %v2624 = vrot.slane %v2622, 4
      %v2625 = vshll.u32 %v2471, 16
      %v2627 = vrot.slane %v2625, 5
      %v2628 = vor.u32 %v2624, %v2627
      %v2629 = vrot.slane %v2628, 4
      %v2631 = vshll.u32 %v2472, 16
      %v2633 = vrot.slane %v2631, 5
      %v2634 = vsel %vm274, %v2629, %v2633
      %v2635 = vshrl.u32 %v2472, 16
      %v2637 = vrot.slane %v2635, 4
      %v2638 = vor.u32 %v2637, %v2633
      %v2639 = vrot.slane %v2638, 4
      %v2641 = vshll.u32 %v2473, 16
      %v2643 = vrot.slane %v2641, 5
      %v2644 = vsel %vm274, %v2639, %v2643
      %v2646 = vshrl.u32 %v2474, 16
      %v2648 = vrot.slane %v2646, 4
      %v2649 = vshll.u32 %v2474, 16
      %v2651 = vrot.slane %v2649, 5
      %v2652 = vor.u32 %v2648, %v2651
      %v2653 = vrot.slane %v2652, 4
      %v2655 = vshll.u32 %v2475, 16
      %v2657 = vrot.slane %v2655, 5
      %v2658 = vsel %vm274, %v2653, %v2657
      %v2659 = vshrl.u32 %v2475, 16
      %v2661 = vrot.slane %v2659, 4
      %v2662 = vor.u32 %v2661, %v2657
      %v2663 = vrot.slane %v2662, 4
      %v2665 = vshll.u32 %v2476, 16
      %v2667 = vrot.slane %v2665, 5
      %v2668 = vsel %vm274, %v2663, %v2667
      %s2669 = scalar_lea.vmem %s1, 448
      %v2670 = vld [vmem:[%s2669] sm:$0xf]
      %v2671 = vld [vmem:[%s2669 + $0x4] sm:$0xf]
      %v2672 = vld [vmem:[%s2669 + $0x8] sm:$0xf]
      %v2673 = vld [vmem:[%s2669 + $0xc] sm:$0xf]
      %v2674 = vld [vmem:[%s2669 + $0x10] sm:$0xf]
      %v2675 = vld [vmem:[%s2669 + $0x14] sm:$0xf]
      %v2676 = vld [vmem:[%s2669 + $0x18] sm:$0xf]
      %v2677 = vld [vmem:[%s2669 + $0x1c] sm:$0xf]
      %v2678 = vld [vmem:[%s2669 + $0x20] sm:$0xf]
      %v2679 = vld [vmem:[%s2669 + $0x24] sm:$0xf]
      %v2680 = vld [vmem:[%s2669 + $0x28] sm:$0xf]
      %v2681 = vld [vmem:[%s2669 + $0x2c] sm:$0xf]
      %v2682 = vld [vmem:[%s2669 + $0x30] sm:$0xf]
      %v2683 = vld [vmem:[%s2669 + $0x34] sm:$0xf]
      %v2684 = vld [vmem:[%s2669 + $0x38] sm:$0xf]
      %v2685 = vld [vmem:[%s2669 + $0x3c] sm:$0xf]
      %v2686 = vunpack.c.l.b16 %v2490
      %v2687 = vunpack.c.l.b16 %v2500
      %v2688 = vunpack.c.l.b16 %v2514
      %v2689 = vunpack.c.l.b16 %v2524
      %v2690 = vunpack.c.l.b16 %v2538
      %v2691 = vunpack.c.l.b16 %v2548
      %v2692 = vunpack.c.l.b16 %v2562
      %v2693 = vunpack.c.l.b16 %v2572
      %v2694 = vunpack.c.l.b16 %v2586
      %v2695 = vunpack.c.l.b16 %v2596
      %v2696 = vunpack.c.l.b16 %v2610
      %v2697 = vunpack.c.l.b16 %v2620
      %v2698 = vunpack.c.l.b16 %v2634
      %v2699 = vunpack.c.l.b16 %v2644
      %v2700 = vunpack.c.l.b16 %v2658
      %v2701 = vunpack.c.l.b16 %v2668
      %v2702 = vpack.c.b16 %v2687, %v2686
      %v2703 = vpack.c.b16 %v2689, %v2688
      %v2704 = vpack.c.b16 %v2691, %v2690
      %v2705 = vpack.c.b16 %v2693, %v2692
      %v2706 = vpack.c.b16 %v2695, %v2694
      %v2707 = vpack.c.b16 %v2697, %v2696
      %v2708 = vpack.c.b16 %v2699, %v2698
      %v2709 = vpack.c.b16 %v2701, %v2700
      %v2734 = vunpack.c.l.b16 %v2670
      %v2735 = vunpack.c.l.b16 %v2671
      %v2736 = vunpack.c.l.b16 %v2672
      %v2737 = vunpack.c.l.b16 %v2673
      %v2738 = vunpack.c.l.b16 %v2674
      %v2739 = vunpack.c.l.b16 %v2675
      %v2740 = vunpack.c.l.b16 %v2676
      %v2741 = vunpack.c.l.b16 %v2677
      %v2742 = vunpack.c.l.b16 %v2678
      %v2743 = vunpack.c.l.b16 %v2679
      %v2744 = vunpack.c.l.b16 %v2680
      %v2745 = vunpack.c.l.b16 %v2681
      %v2746 = vunpack.c.l.b16 %v2682
      %v2747 = vunpack.c.l.b16 %v2683
      %v2748 = vunpack.c.l.b16 %v2684
      %v2749 = vunpack.c.l.b16 %v2685
      %v2750 = vpack.c.b16 %v2735, %v2734
      %v2751 = vpack.c.b16 %v2737, %v2736
      %v2752 = vpack.c.b16 %v2739, %v2738
      %v2753 = vpack.c.b16 %v2741, %v2740
      %v2754 = vpack.c.b16 %v2743, %v2742
      %v2755 = vpack.c.b16 %v2745, %v2744
      %v2756 = vpack.c.b16 %v2747, %v2746
      %v2757 = vpack.c.b16 %v2749, %v2748
      %2766 = vmatprep.subr.bf16.mxu0 0
      %2767 = vmatpush1.bf16.msra.mxu0 %v2750
      %2768 = vmatprep.subr.bf16.mxu0 0
      %2769 = vmatpush1.bf16.msra.mxu0 %v2751
      %2770 = vmatprep.subr.bf16.mxu0 0
      %2771 = vmatpush1.bf16.msra.mxu0 %v2752
      %2772 = vmatprep.subr.bf16.mxu0 0
      %2773 = vmatpush1.bf16.msra.mxu0 %v2753
      %2774 = vmatprep.subr.bf16.mxu0 0
      %2775 = vmatpush1.bf16.msra.mxu0 %v2754
      %2776 = vmatprep.subr.bf16.mxu0 0
      %2777 = vmatpush1.bf16.msra.mxu0 %v2755
      %2778 = vmatprep.subr.bf16.mxu0 0
      %2779 = vmatpush1.bf16.msra.mxu0 %v2756
      %2780 = vmatprep.subr.bf16.mxu0 0
      %2781 = vmatpush1.bf16.msra.mxu0 %v2757
      %2782 = vmatprep.subr.bf16.mxu0 0
      %2783 = vmatpush1.bf16.msra.mxu0 0
      %2784 = vmatprep.subr.bf16.mxu0 0
      %2785 = vmatpush1.bf16.msra.mxu0 0
      %2786 = vmatprep.subr.bf16.mxu0 0
      %2787 = vmatpush1.bf16.msra.mxu0 0
      %2788 = vmatprep.subr.bf16.mxu0 0
      %2789 = vmatpush1.bf16.msra.mxu0 0
      %2790 = vmatprep.subr.bf16.mxu0 0
      %2791 = vmatpush1.bf16.msra.mxu0 0
      %2792 = vmatprep.subr.bf16.mxu0 0
      %2793 = vmatpush1.bf16.msra.mxu0 0
      %2794 = vmatprep.subr.bf16.mxu0 0
      %2795 = vmatpush1.bf16.msra.mxu0 0
      %2796 = vmatprep.subr.bf16.mxu0 0
      %2797 = vmatpush1.bf16.msra.mxu0 0
      %2798 = vmatprep.mubr.bf16.mxu0 0
      %2799 = vmatmul.mubr.bf16.gmra.mrb[0].mxu0 %v2702
      %v2800 = vpop.f32.mrb[0].mxu0
      %v2801 = vadd.f32 0.0, %v2800
      %v2802 = vpop.f32.mrb[0].mxu0
      %v2803 = vpop.f32.mrb[0].mxu0
      %v2804 = vadd.f32 0.0, %v2803
      %v2805 = vpop.f32.mrb[0].mxu0
      %2806 = vmatprep.mubr.bf16.mxu0 0
      %2807 = vmatmul.mubr.bf16.gmra.mrb[0].mxu0 %v2703
      %v2808 = vpop.f32.mrb[0].mxu0
      %v2809 = vadd.f32 0.0, %v2808
      %v2810 = vpop.f32.mrb[0].mxu0
      %v2811 = vpop.f32.mrb[0].mxu0
      %v2812 = vadd.f32 0.0, %v2811
      %v2813 = vpop.f32.mrb[0].mxu0
      %2814 = vmatprep.mubr.bf16.mxu0 0
      %2815 = vmatmul.mubr.bf16.gmra.mrb[0].mxu0 %v2704
      %v2816 = vpop.f32.mrb[0].mxu0
      %v2817 = vadd.f32 0.0, %v2816
      %v2818 = vpop.f32.mrb[0].mxu0
      %v2819 = vpop.f32.mrb[0].mxu0
      %v2820 = vadd.f32 0.0, %v2819
      %v2821 = vpop.f32.mrb[0].mxu0
      %2822 = vmatprep.mubr.bf16.mxu0 0
      %2823 = vmatmul.mubr.bf16.gmra.mrb[0].mxu0 %v2705
      %v2824 = vpop.f32.mrb[0].mxu0
      %v2825 = vadd.f32 0.0, %v2824
      %v2826 = vpop.f32.mrb[0].mxu0
      %v2827 = vpop.f32.mrb[0].mxu0
      %v2828 = vadd.f32 0.0, %v2827
      %v2829 = vpop.f32.mrb[0].mxu0
      %2830 = vmatprep.mubr.bf16.mxu0 0
      %2831 = vmatmul.mubr.bf16.gmra.mrb[0].mxu0 %v2706
      %v2832 = vpop.f32.mrb[0].mxu0
      %v2833 = vadd.f32 0.0, %v2832
      %v2834 = vpop.f32.mrb[0].mxu0
      %v2835 = vpop.f32.mrb[0].mxu0
      %v2836 = vadd.f32 0.0, %v2835
      %v2837 = vpop.f32.mrb[0].mxu0
      %2838 = vmatprep.mubr.bf16.mxu0 0
      %2839 = vmatmul.mubr.bf16.gmra.mrb[0].mxu0 %v2707
      %v2840 = vpop.f32.mrb[0].mxu0
      %v2841 = vadd.f32 0.0, %v2840
      %v2842 = vpop.f32.mrb[0].mxu0
      %v2843 = vpop.f32.mrb[0].mxu0
      %v2844 = vadd.f32 0.0, %v2843
      %v2845 = vpop.f32.mrb[0].mxu0
      %2846 = vmatprep.mubr.bf16.mxu0 0
      %2847 = vmatmul.mubr.bf16.gmra.mrb[0].mxu0 %v2708
      %v2848 = vpop.f32.mrb[0].mxu0
      %v2849 = vadd.f32 0.0, %v2848
      %v2850 = vpop.f32.mrb[0].mxu0
      %v2851 = vpop.f32.mrb[0].mxu0
      %v2852 = vadd.f32 0.0, %v2851
      %v2853 = vpop.f32.mrb[0].mxu0
      %2854 = vmatprep.mubr.bf16.mxu0 0
      %2855 = vmatmul.mubr.bf16.gmra.mrb[0].mxu0 %v2709
      %v2856 = vpop.f32.mrb[0].mxu0
      %v2857 = vadd.f32 0.0, %v2856
      %v2858 = vpop.f32.mrb[0].mxu0
      %v2859 = vpop.f32.mrb[0].mxu0
      %v2860 = vadd.f32 0.0, %v2859
      %v2861 = vpop.f32.mrb[0].mxu0
      %2862 = vdwg.mxu0
      %v2863 = vadd.f32 %v2413, %v2801
      %v2864 = vadd.f32 %v2414, %v2804
      %v2865 = vadd.f32 %v2415, %v2809
      %v2866 = vadd.f32 %v2416, %v2812
      %v2867 = vadd.f32 %v2417, %v2817
      %v2868 = vadd.f32 %v2418, %v2820
      %v2869 = vadd.f32 %v2419, %v2825
      %v2870 = vadd.f32 %v2420, %v2828
      %v2871 = vadd.f32 %v2421, %v2833
      %v2872 = vadd.f32 %v2422, %v2836
      %v2873 = vadd.f32 %v2423, %v2841
      %v2874 = vadd.f32 %v2424, %v2844
      %v2875 = vadd.f32 %v2425, %v2849
      %v2876 = vadd.f32 %v2426, %v2852
      %v2877 = vadd.f32 %v2427, %v2857
      %v2878 = vadd.f32 %v2428, %v2860
      %v2879 = vld [vmem:[%s2170] sm:$0xe]
      %v2880 = vld [vmem:[%s2170 + $0xc] sm:$0xe]
      %v2881 = vld [vmem:[%s2170 + $0x18] sm:$0xe]
      %v2882 = vld [vmem:[%s2170 + $0x24] sm:$0xe]
      %v2883 = vld [vmem:[%s2170 + $0x30] sm:$0xe]
      %v2884 = vld [vmem:[%s2170 + $0x3c] sm:$0xe]
      %v2885 = vld [vmem:[%s2170 + $0x48] sm:$0xe]
      %v2886 = vld [vmem:[%s2170 + $0x54] sm:$0xe]
      %v2887 = vmax.bf16 %v2879, 0
      %v2888 = vmax.bf16 %v2880, 0
      %v2889 = vmax.bf16 %v2881, 0
      %v2890 = vmax.bf16 %v2882, 0
      %v2891 = vmax.bf16 %v2883, 0
      %v2892 = vmax.bf16 %v2884, 0
      %v2893 = vmax.bf16 %v2885, 0
      %v2894 = vmax.bf16 %v2886, 0
      %v2919 = vrot.slane %v2887, 5
      %v2920 = vrot.slane %v2919, 4
      %v2921 = vrot.slane %v2454, 5
      %v2922 = vsel %vm888, %v2920, %v2921
      %v2923 = vrot.slane %v2921, 4
      %v2924 = vrot.slane %v2455, 5
      %v2925 = vsel %vm888, %v2923, %v2924
      %v2926 = vrot.slane %v2888, 5
      %v2927 = vrot.slane %v2926, 4
      %v2928 = vrot.slane %v2457, 5
      %v2929 = vsel %vm888, %v2927, %v2928
      %v2930 = vrot.slane %v2928, 4
      %v2931 = vrot.slane %v2458, 5
      %v2932 = vsel %vm888, %v2930, %v2931
      %v2933 = vrot.slane %v2889, 5
      %v2934 = vrot.slane %v2933, 4
      %v2935 = vrot.slane %v2460, 5
      %v2936 = vsel %vm888, %v2934, %v2935
      %v2937 = vrot.slane %v2935, 4
      %v2938 = vrot.slane %v2461, 5
      %v2939 = vsel %vm888, %v2937, %v2938
      %v2940 = vrot.slane %v2890, 5
      %v2941 = vrot.slane %v2940, 4
      %v2942 = vrot.slane %v2463, 5
      %v2943 = vsel %vm888, %v2941, %v2942
      %v2944 = vrot.slane %v2942, 4
      %v2945 = vrot.slane %v2464, 5
      %v2946 = vsel %vm888, %v2944, %v2945
      %v2947 = vrot.slane %v2891, 5
      %v2948 = vrot.slane %v2947, 4
      %v2949 = vrot.slane %v2466, 5
      %v2950 = vsel %vm888, %v2948, %v2949
      %v2951 = vrot.slane %v2949, 4
      %v2952 = vrot.slane %v2467, 5
      %v2953 = vsel %vm888, %v2951, %v2952
      %v2954 = vrot.slane %v2892, 5
      %v2955 = vrot.slane %v2954, 4
      %v2956 = vrot.slane %v2469, 5
      %v2957 = vsel %vm888, %v2955, %v2956
      %v2958 = vrot.slane %v2956, 4
      %v2959 = vrot.slane %v2470, 5
      %v2960 = vsel %vm888, %v2958, %v2959
      %v2961 = vrot.slane %v2893, 5
      %v2962 = vrot.slane %v2961, 4
      %v2963 = vrot.slane %v2472, 5
      %v2964 = vsel %vm888, %v2962, %v2963
      %v2965 = vrot.slane %v2963, 4
      %v2966 = vrot.slane %v2473, 5
      %v2967 = vsel %vm888, %v2965, %v2966
      %v2968 = vrot.slane %v2894, 5
      %v2969 = vrot.slane %v2968, 4
      %v2970 = vrot.slane %v2475, 5
      %v2971 = vsel %vm888, %v2969, %v2970
      %v2972 = vrot.slane %v2970, 4
      %v2973 = vrot.slane %v2476, 5
      %v2974 = vsel %vm888, %v2972, %v2973
      %s2975 = scalar_lea.vmem %s1, 512
      %v2976 = vld [vmem:[%s2975] sm:$0xf]
      %v2977 = vld [vmem:[%s2975 + $0x4] sm:$0xf]
      %v2978 = vld [vmem:[%s2975 + $0x8] sm:$0xf]
      %v2979 = vld [vmem:[%s2975 + $0xc] sm:$0xf]
      %v2980 = vld [vmem:[%s2975 + $0x10] sm:$0xf]
      %v2981 = vld [vmem:[%s2975 + $0x14] sm:$0xf]
      %v2982 = vld [vmem:[%s2975 + $0x18] sm:$0xf]
      %v2983 = vld [vmem:[%s2975 + $0x1c] sm:$0xf]
      %v2984 = vld [vmem:[%s2975 + $0x20] sm:$0xf]
      %v2985 = vld [vmem:[%s2975 + $0x24] sm:$0xf]
      %v2986 = vld [vmem:[%s2975 + $0x28] sm:$0xf]
      %v2987 = vld [vmem:[%s2975 + $0x2c] sm:$0xf]
      %v2988 = vld [vmem:[%s2975 + $0x30] sm:$0xf]
      %v2989 = vld [vmem:[%s2975 + $0x34] sm:$0xf]
      %v2990 = vld [vmem:[%s2975 + $0x38] sm:$0xf]
      %v2991 = vld [vmem:[%s2975 + $0x3c] sm:$0xf]
      %v2992 = vunpack.c.l.b16 %v2922
      %v2993 = vunpack.c.l.b16 %v2925
      %v2994 = vunpack.c.l.b16 %v2929
      %v2995 = vunpack.c.l.b16 %v2932
      %v2996 = vunpack.c.l.b16 %v2936
      %v2997 = vunpack.c.l.b16 %v2939
      %v2998 = vunpack.c.l.b16 %v2943
      %v2999 = vunpack.c.l.b16 %v2946
      %v3000 = vunpack.c.l.b16 %v2950
      %v3001 = vunpack.c.l.b16 %v2953
      %v3002 = vunpack.c.l.b16 %v2957
      %v3003 = vunpack.c.l.b16 %v2960
      %v3004 = vunpack.c.l.b16 %v2964
      %v3005 = vunpack.c.l.b16 %v2967
      %v3006 = vunpack.c.l.b16 %v2971
      %v3007 = vunpack.c.l.b16 %v2974
      %v3008 = vpack.c.b16 %v2993, %v2992
      %v3009 = vpack.c.b16 %v2995, %v2994
      %v3010 = vpack.c.b16 %v2997, %v2996
      %v3011 = vpack.c.b16 %v2999, %v2998
      %v3012 = vpack.c.b16 %v3001, %v3000
      %v3013 = vpack.c.b16 %v3003, %v3002
      %v3014 = vpack.c.b16 %v3005, %v3004
      %v3015 = vpack.c.b16 %v3007, %v3006
      %v3040 = vunpack.c.l.b16 %v2976
      %v3041 = vunpack.c.l.b16 %v2977
      %v3042 = vunpack.c.l.b16 %v2978
      %v3043 = vunpack.c.l.b16 %v2979
      %v3044 = vunpack.c.l.b16 %v2980
      %v3045 = vunpack.c.l.b16 %v2981
      %v3046 = vunpack.c.l.b16 %v2982
      %v3047 = vunpack.c.l.b16 %v2983
      %v3048 = vunpack.c.l.b16 %v2984
      %v3049 = vunpack.c.l.b16 %v2985
      %v3050 = vunpack.c.l.b16 %v2986
      %v3051 = vunpack.c.l.b16 %v2987
      %v3052 = vunpack.c.l.b16 %v2988
      %v3053 = vunpack.c.l.b16 %v2989
      %v3054 = vunpack.c.l.b16 %v2990
      %v3055 = vunpack.c.l.b16 %v2991
      %v3056 = vpack.c.b16 %v3041, %v3040
      %v3057 = vpack.c.b16 %v3043, %v3042
      %v3058 = vpack.c.b16 %v3045, %v3044
      %v3059 = vpack.c.b16 %v3047, %v3046
      %v3060 = vpack.c.b16 %v3049, %v3048
      %v3061 = vpack.c.b16 %v3051, %v3050
      %v3062 = vpack.c.b16 %v3053, %v3052
      %v3063 = vpack.c.b16 %v3055, %v3054
      %3072 = vmatprep.subr.bf16.mxu0 0
      %3073 = vmatpush1.bf16.msra.mxu0 %v3056
      %3074 = vmatprep.subr.bf16.mxu0 0
      %3075 = vmatpush1.bf16.msra.mxu0 %v3057
      %3076 = vmatprep.subr.bf16.mxu0 0
      %3077 = vmatpush1.bf16.msra.mxu0 %v3058
      %3078 = vmatprep.subr.bf16.mxu0 0
      %3079 = vmatpush1.bf16.msra.mxu0 %v3059
      %3080 = vmatprep.subr.bf16.mxu0 0
      %3081 = vmatpush1.bf16.msra.mxu0 %v3060
      %3082 = vmatprep.subr.bf16.mxu0 0
      %3083 = vmatpush1.bf16.msra.mxu0 %v3061
      %3084 = vmatprep.subr.bf16.mxu0 0
      %3085 = vmatpush1.bf16.msra.mxu0 %v3062
      %3086 = vmatprep.subr.bf16.mxu0 0
      %3087 = vmatpush1.bf16.msra.mxu0 %v3063
      %3088 = vmatprep.subr.bf16.mxu0 0
      %3089 = vmatpush1.bf16.msra.mxu0 0
      %3090 = vmatprep.subr.bf16.mxu0 0
      %3091 = vmatpush1.bf16.msra.mxu0 0
      %3092 = vmatprep.subr.bf16.mxu0 0
      %3093 = vmatpush1.bf16.msra.mxu0 0
      %3094 = vmatprep.subr.bf16.mxu0 0
      %3095 = vmatpush1.bf16.msra.mxu0 0
      %3096 = vmatprep.subr.bf16.mxu0 0
      %3097 = vmatpush1.bf16.msra.mxu0 0
      %3098 = vmatprep.subr.bf16.mxu0 0
      %3099 = vmatpush1.bf16.msra.mxu0 0
      %3100 = vmatprep.subr.bf16.mxu0 0
      %3101 = vmatpush1.bf16.msra.mxu0 0
      %3102 = vmatprep.subr.bf16.mxu0 0
      %3103 = vmatpush1.bf16.msra.mxu0 0
      %3104 = vmatprep.mubr.bf16.mxu0 0
      %3105 = vmatmul.mubr.bf16.gmra.mrb[0].mxu0 %v3008
      %v3106 = vpop.f32.mrb[0].mxu0
      %v3107 = vadd.f32 0.0, %v3106
      %v3108 = vpop.f32.mrb[0].mxu0
      %v3109 = vpop.f32.mrb[0].mxu0
      %v3110 = vadd.f32 0.0, %v3109
      %v3111 = vpop.f32.mrb[0].mxu0
      %3112 = vmatprep.mubr.bf16.mxu0 0
      %3113 = vmatmul.mubr.bf16.gmra.mrb[0].mxu0 %v3009
      %v3114 = vpop.f32.mrb[0].mxu0
      %v3115 = vadd.f32 0.0, %v3114
      %v3116 = vpop.f32.mrb[0].mxu0
      %v3117 = vpop.f32.mrb[0].mxu0
      %v3118 = vadd.f32 0.0, %v3117
      %v3119 = vpop.f32.mrb[0].mxu0
      %3120 = vmatprep.mubr.bf16.mxu0 0
      %3121 = vmatmul.mubr.bf16.gmra.mrb[0].mxu0 %v3010
      %v3122 = vpop.f32.mrb[0].mxu0
      %v3123 = vadd.f32 0.0, %v3122
      %v3124 = vpop.f32.mrb[0].mxu0
      %v3125 = vpop.f32.mrb[0].mxu0
      %v3126 = vadd.f32 0.0, %v3125
      %v3127 = vpop.f32.mrb[0].mxu0
      %3128 = vmatprep.mubr.bf16.mxu0 0
      %3129 = vmatmul.mubr.bf16.gmra.mrb[0].mxu0 %v3011
      %v3130 = vpop.f32.mrb[0].mxu0
      %v3131 = vadd.f32 0.0, %v3130
      %v3132 = vpop.f32.mrb[0].mxu0
      %v3133 = vpop.f32.mrb[0].mxu0
      %v3134 = vadd.f32 0.0, %v3133
      %v3135 = vpop.f32.mrb[0].mxu0
      %3136 = vmatprep.mubr.bf16.mxu0 0
      %3137 = vmatmul.mubr.bf16.gmra.mrb[0].mxu0 %v3012
      %v3138 = vpop.f32.mrb[0].mxu0
      %v3139 = vadd.f32 0.0, %v3138
      %v3140 = vpop.f32.mrb[0].mxu0
      %v3141 = vpop.f32.mrb[0].mxu0
      %v3142 = vadd.f32 0.0, %v3141
      %v3143 = vpop.f32.mrb[0].mxu0
      %3144 = vmatprep.mubr.bf16.mxu0 0
      %3145 = vmatmul.mubr.bf16.gmra.mrb[0].mxu0 %v3013
      %v3146 = vpop.f32.mrb[0].mxu0
      %v3147 = vadd.f32 0.0, %v3146
      %v3148 = vpop.f32.mrb[0].mxu0
      %v3149 = vpop.f32.mrb[0].mxu0
      %v3150 = vadd.f32 0.0, %v3149
      %v3151 = vpop.f32.mrb[0].mxu0
      %3152 = vmatprep.mubr.bf16.mxu0 0
      %3153 = vmatmul.mubr.bf16.gmra.mrb[0].mxu0 %v3014
      %v3154 = vpop.f32.mrb[0].mxu0
      %v3155 = vadd.f32 0.0, %v3154
      %v3156 = vpop.f32.mrb[0].mxu0
      %v3157 = vpop.f32.mrb[0].mxu0
      %v3158 = vadd.f32 0.0, %v3157
      %v3159 = vpop.f32.mrb[0].mxu0
      %3160 = vmatprep.mubr.bf16.mxu0 0
      %3161 = vmatmul.mubr.bf16.gmra.mrb[0].mxu0 %v3015
      %v3162 = vpop.f32.mrb[0].mxu0
      %v3163 = vadd.f32 0.0, %v3162
      %v3164 = vpop.f32.mrb[0].mxu0
      %v3165 = vpop.f32.mrb[0].mxu0
      %v3166 = vadd.f32 0.0, %v3165
      %v3167 = vpop.f32.mrb[0].mxu0
      %3168 = vdwg.mxu0
      %v3169 = vadd.f32 %v2863, %v3107
      %v3170 = vadd.f32 %v2864, %v3110
      %v3171 = vadd.f32 %v2865, %v3115
      %v3172 = vadd.f32 %v2866, %v3118
      %v3173 = vadd.f32 %v2867, %v3123
      %v3174 = vadd.f32 %v2868, %v3126
      %v3175 = vadd.f32 %v2869, %v3131
      %v3176 = vadd.f32 %v2870, %v3134
      %v3177 = vadd.f32 %v2871, %v3139
      %v3178 = vadd.f32 %v2872, %v3142
      %v3179 = vadd.f32 %v2873, %v3147
      %v3180 = vadd.f32 %v2874, %v3150
      %v3181 = vadd.f32 %v2875, %v3155
      %v3182 = vadd.f32 %v2876, %v3158
      %v3183 = vadd.f32 %v2877, %v3163
      %v3184 = vadd.f32 %v2878, %v3166
      %v3185 = vld [vmem:[%s2] sm:$0x1]
      %v3187 = vlaneseq
      %v3188 = vshrl.u32 %v3187, 7
      %v3189 = vsub.s32 0, %v3188
      %v3190 = vrot.slane %v3185, %v3189
      %v3192 = vadd.f32 %v3169, %v3190
      %v3193 = vadd.f32 %v3170, %v3190
      %v3194 = vadd.f32 %v3171, %v3190
      %v3195 = vadd.f32 %v3172, %v3190
      %v3196 = vadd.f32 %v3173, %v3190
      %v3197 = vadd.f32 %v3174, %v3190
      %v3198 = vadd.f32 %v3175, %v3190
      %v3199 = vadd.f32 %v3176, %v3190
      %v3200 = vadd.f32 %v3177, %v3190
      %v3201 = vadd.f32 %v3178, %v3190
      %v3202 = vadd.f32 %v3179, %v3190
      %v3203 = vadd.f32 %v3180, %v3190
      %v3204 = vadd.f32 %v3181, %v3190
      %v3205 = vadd.f32 %v3182, %v3190
      %v3206 = vadd.f32 %v3183, %v3190
      %v3207 = vadd.f32 %v3184, %v3190
      %v3208 = vmax.f32 %v3192, 0.0
      %v3209 = vmax.f32 %v3193, 0.0
      %v3210 = vmax.f32 %v3194, 0.0
      %v3211 = vmax.f32 %v3195, 0.0
      %v3212 = vmax.f32 %v3196, 0.0
      %v3213 = vmax.f32 %v3197, 0.0
      %v3214 = vmax.f32 %v3198, 0.0
      %v3215 = vmax.f32 %v3199, 0.0
      %v3216 = vmax.f32 %v3200, 0.0
      %v3217 = vmax.f32 %v3201, 0.0
      %v3218 = vmax.f32 %v3202, 0.0
      %v3219 = vmax.f32 %v3203, 0.0
      %v3220 = vmax.f32 %v3204, 0.0
      %v3221 = vmax.f32 %v3205, 0.0
      %v3222 = vmax.f32 %v3206, 0.0
      %v3223 = vmax.f32 %v3207, 0.0
      %v3224 = vpack.c.bf16 %v3209, %v3208
      %v3225 = vpack.c.bf16 %v3211, %v3210
      %v3226 = vpack.c.bf16 %v3213, %v3212
      %v3227 = vpack.c.bf16 %v3215, %v3214
      %v3228 = vpack.c.bf16 %v3217, %v3216
      %v3229 = vpack.c.bf16 %v3219, %v3218
      %v3230 = vpack.c.bf16 %v3221, %v3220
      %v3231 = vpack.c.bf16 %v3223, %v3222
      %v3240 = vunpack.c.l.b16 %v3224
      %v3241 = vunpack.c.h.b16 %v3224
      %v3242 = vunpack.c.l.b16 %v3225
      %v3243 = vunpack.c.h.b16 %v3225
      %v3244 = vunpack.c.l.b16 %v3226
      %v3245 = vunpack.c.h.b16 %v3226
      %v3246 = vunpack.c.l.b16 %v3227
      %v3247 = vunpack.c.h.b16 %v3227
      %v3248 = vunpack.c.l.b16 %v3228
      %v3249 = vunpack.c.h.b16 %v3228
      %v3250 = vunpack.c.l.b16 %v3229
      %v3251 = vunpack.c.h.b16 %v3229
      %v3252 = vunpack.c.l.b16 %v3230
      %v3253 = vunpack.c.h.b16 %v3230
      %v3254 = vunpack.c.l.b16 %v3231
      %v3255 = vunpack.c.h.b16 %v3231
      %v3256 = vpack.c.b16 %v3240, %v3240
      %v3257 = vpack.c.b16 %v3241, %v3241
      %v3258 = vpack.c.b16 %v3242, %v3242
      %v3259 = vpack.c.b16 %v3243, %v3243
      %v3260 = vpack.c.b16 %v3244, %v3244
      %v3261 = vpack.c.b16 %v3245, %v3245
      %v3262 = vpack.c.b16 %v3246, %v3246
      %v3263 = vpack.c.b16 %v3247, %v3247
      %v3264 = vpack.c.b16 %v3248, %v3248
      %v3265 = vpack.c.b16 %v3249, %v3249
      %v3266 = vpack.c.b16 %v3250, %v3250
      %v3267 = vpack.c.b16 %v3251, %v3251
      %v3268 = vpack.c.b16 %v3252, %v3252
      %v3269 = vpack.c.b16 %v3253, %v3253
      %v3270 = vpack.c.b16 %v3254, %v3254
      %v3271 = vpack.c.b16 %v3255, %v3255
      %3288 = vst [vmem:[%s206] sm:$0xf] %v3256
      %3289 = vst [vmem:[%s206 + $0x4] sm:$0xf] %v3257
      %3290 = vst [vmem:[%s206 + $0x8] sm:$0xf] %v3258
      %3291 = vst [vmem:[%s206 + $0xc] sm:$0xf] %v3259
      %3292 = vst [vmem:[%s206 + $0x10] sm:$0xf] %v3260
      %3293 = vst [vmem:[%s206 + $0x14] sm:$0xf] %v3261
      %3294 = vst [vmem:[%s206 + $0x18] sm:$0xf] %v3262
      %3295 = vst [vmem:[%s206 + $0x1c] sm:$0xf] %v3263
      %3296 = vst [vmem:[%s206 + $0x20] sm:$0xf] %v3264
      %3297 = vst [vmem:[%s206 + $0x24] sm:$0xf] %v3265
      %3298 = vst [vmem:[%s206 + $0x28] sm:$0xf] %v3266
      %3299 = vst [vmem:[%s206 + $0x2c] sm:$0xf] %v3267
      %3300 = vst [vmem:[%s206 + $0x30] sm:$0xf] %v3268
      %3301 = vst [vmem:[%s206 + $0x34] sm:$0xf] %v3269
      %3302 = vst [vmem:[%s206 + $0x38] sm:$0xf] %v3270
      %3303 = vst [vmem:[%s206 + $0x3c] sm:$0xf] %v3271
      %p3304 = scmp.lt.s32.totalorder %s18, 1
      %s3305 = scalar_select %p3304, %s18, 1
      %p3306 = scmp.lt.s32.totalorder %s19, 1
      %s3307 = scalar_select %p3306, %s19, 1
      %s3308 = smul.addr %s3307, 16
      %s3309 = smul.addr %s3305, 32
      %s3310 = sadd.s32 %s3308, %s3309
      %s3311 = smul.addr %s3310, 4
      %s3312 = scalar_lea.vmem %s3, %s3311
      // Predicated region
      $region33: #{resblock_forward.2} parent=31 // pred_check
        %p3313 = pneg %p116
      $region34: #{resblock_forward.2} parent=31 // pred_check_branch
        %3315 = sbr.rel (%p3313) target = $region36
      $region35: #{resblock_forward.2} parent=31 // pred_region
        _
      $region36: #{resblock_forward.2} parent=31 // pred_fallthru
        _
    $region32: #{resblock_forward.2} parent=5 // pred_fallthru
      _
    %p3316 = scmp.le.s32.totalorder 2, %s9
    // Predicated region
    $region37: #{resblock_forward.2} parent=5 // pred_check
      %p3317 = pneg %p3316
    $region38: #{resblock_forward.2} parent=5 // pred_check_branch
      %3319 = sbr.rel (%p3317) target = $region40
    $region39: #{resblock_forward.2} parent=5 // pred_region
      %s3320 = ssub.s32 %s9, 2
      // Predicated region
      $region41: #{resblock_forward.2} parent=39 // pred_check
        %p3321 = pneg %p122
      $region42: #{resblock_forward.2} parent=39 // pred_check_branch
        %3323 = sbr.rel (%p3321) target = $region44
      $region43: #{resblock_forward.2} parent=39 // pred_region
        %p3324 = scmp.lt.s32.totalorder %s20, 1
        %s3325 = scalar_select %p3324, %s20, 1
        %p3326 = scmp.lt.s32.totalorder %s21, 1
        %s3327 = scalar_select %p3326, %s21, 1
        %s3328 = smul.addr %s3327, 16
        %s3329 = smul.addr %s3325, 32
        %s3330 = sadd.s32 %s3328, %s3329
        %s3331 = smul.addr %s3330, 4
        %s3332 = scalar_lea.vmem %s3, %s3331
      $region44: #{resblock_forward.2} parent=39 // pred_fallthru
        _
    $region40: #{resblock_forward.2} parent=5 // pred_fallthru
      _
  $region6: #{resblock_forward.2} parent=0 // loop_footer
    %s13 = sadd.s32 1, %s9
  $region7: #{resblock_forward.2} parent=0 // loop_footer_branch
    %8 = sbr.rel target = $region3
  $region8: #{resblock_forward.2} parent=0 // loop_exit
    _

// kernel: resblock_forward.3
$region0: #{resblock_forward.3}
  #allocation0 [shape = 'u32[]', space=smem, size = 0x4, offset = 0x4, fixed_abs, tag = 'smem constant byte address 0x4 - core index']
  #allocation1 [shape = 'u32[144,128]{1,0:T(1,128)}', space=vmem, size = 0x12000, scoped, tag = 'internal scratch']
  #allocation2 [shape = 'f32[128,128]{1,0:T(8,128)}', space=vmem, size = 0x10000, scoped, tag = 'scratch operand']
  %s0 = inlined_call_operand.vmem [shape: bf16[2,2,10,18,128], index: 0, kind: input, shape index: {}]
  %s1 = inlined_call_operand.vmem [shape: bf16[2,2,128,128], index: 1, kind: input, shape index: {}]
  %s2 = inlined_call_operand.vmem [shape: bf16[9,128,128], index: 2, kind: input, shape index: {}]
  %s3 = inlined_call_operand.vmem [shape: f32[1,128], index: 3, kind: input, shape index: {}]
  %s4 = inlined_call_operand.vmem [shape: bf16[128,128], index: 4, kind: input, shape index: {}]
  %s5 = inlined_call_operand.vmem [shape: f32[1,128], index: 5, kind: input, shape index: {}]
  %s6 = inlined_call_operand.vmem [shape: f32[2,2,32,128], index: 6, kind: output, shape index: {}]
  %s7 = sld [smem:[#allocation0]]
  $region57: #{resblock_forward.3} parent=0
    _
  %s9 = ssub.s32 1, %s7
  %s10 = scalar_select 0, %s9, %s7
  loop: start=0, step=1, limit=6
  $region2: #{resblock_forward.3} parent=0 // loop_pre_header
    _
  $region3: #{resblock_forward.3} parent=0 // loop_header
    %s12 = sphi 0, %s16
    %p13 = scmp.ge.s32.totalorder %s12, 6
    %s19 = sphi 0, %s31
    %s20 = sphi 0, %s27
    %s21 = sphi 0, %s19
    %s22 = sphi 0, %s20
    %s23 = sphi 0, %s21
    %s24 = sphi 0, %s22
    %s36 = sphi 0, %s38
    %s39 = sphi 0, %s36
    %s40 = sphi 0, %s39
    %s56 = sphi 0, %s40
    %s64 = sphi 0, %s66
    %s67 = sphi 0, %s64
    %s68 = sphi 0, %s67
    %s84 = sphi 0, %s68
    %s88 = sphi 0, %s88
    %s90 = sphi 0, %s88
    %s91 = sphi 0, %s90
    %s105 = sphi 0, %s91
    %s109 = sphi 0, %s109
    %s111 = sphi 0, %s109
    %s112 = sphi 0, %s111
    %s126 = sphi 0, %s112
    %s130 = sphi 0, %s130
    %s132 = sphi 0, %s130
    %s133 = sphi 0, %s132
    %s147 = sphi 0, %s133
    %s151 = sphi 0, %s151
    %s153 = sphi 0, %s151
    %s154 = sphi 0, %s153
    %s168 = sphi 0, %s154
    %s176 = sphi 0, %s178
    %s179 = sphi 0, %s176
    %s180 = sphi 0, %s179
    %s196 = sphi 0, %s180
  $region4: #{resblock_forward.3} parent=0 // loop_header_branch
    %15 = sbr.rel (%p13) target = $region8
  $region5: #{resblock_forward.3} parent=0 // loop_body
    %s17 = ssub.s32 %s12, 1
    %s18 = ssub.s32 %s12, 2
    %s25 = sadd.s32 1, %s20
    %p26 = scmp.ge.s32.totalorder %s25, 2
    %s27 = scalar_select %p26, 0, %s25
    %s28 = sadd.s32 1, %s19
    %s29 = scalar_select %p26, %s28, %s19
    %p30 = scmp.ge.s32.totalorder %s29, 2
    %s31 = scalar_select %p30, 0, %s29
    %s32 = ssub.s32 %s19, %s31
    %s33 = ssub.s32 %s20, %s27
    %s34 = sor.u32 %s32, %s33
    %p35 = scmp.eq.s32.totalorder %s34, 0
    %s37 = sadd.s32 %s36, 1
    %s38 = scalar_select %p35, %s36, %s37
    %p41 = pneg %p35
    %p42 = scmp.eq.s32.totalorder %s12, 3
    %p43 = por %p41, %p42
    %p44 = scmp.ne.s32.totalorder %s36, %s39
    %p45 = scmp.eq.s32.totalorder %s12, 0
    %p46 = por %p44, %p45
    %p47 = scmp.ne.s32.totalorder %s36, %s39
    %p48 = scmp.eq.s32.totalorder %s17, 3
    %p49 = por %p47, %p48
    %p50 = scmp.ne.s32.totalorder %s39, %s40
    %p51 = scmp.eq.s32.totalorder %s17, 0
    %p52 = por %p50, %p51
    %p53 = scmp.ne.s32.totalorder %s39, %s40
    %p54 = scmp.eq.s32.totalorder %s18, 3
    %p55 = por %p53, %p54
    %p57 = scmp.ne.s32.totalorder %s40, %s56
    %p58 = scmp.eq.s32.totalorder %s18, 0
    %p59 = por %p57, %p58
    %s60 = ssub.s32 %s19, %s31
    %s61 = ssub.s32 %s20, %s27
    %s62 = sor.u32 %s60, %s61
    %p63 = scmp.eq.s32.totalorder %s62, 0
    %s65 = sadd.s32 %s64, 1
    %s66 = scalar_select %p63, %s64, %s65
    %p69 = pneg %p63
    %p70 = scmp.eq.s32.totalorder %s12, 3
    %p71 = por %p69, %p70
    %p72 = scmp.ne.s32.totalorder %s64, %s67
    %p73 = scmp.eq.s32.totalorder %s12, 0
    %p74 = por %p72, %p73
    %p75 = scmp.ne.s32.totalorder %s64, %s67
    %p76 = scmp.eq.s32.totalorder %s17, 3
    %p77 = por %p75, %p76
    %p78 = scmp.ne.s32.totalorder %s67, %s68
    %p79 = scmp.eq.s32.totalorder %s17, 0
    %p80 = por %p78, %p79
    %p81 = scmp.ne.s32.totalorder %s67, %s68
    %p82 = scmp.eq.s32.totalorder %s18, 3
    %p83 = por %p81, %p82
    %p85 = scmp.ne.s32.totalorder %s68, %s84
    %p86 = scmp.eq.s32.totalorder %s18, 0
    %p87 = por %p85, %p86
    %s89 = sadd.s32 %s88, 1
    %p92 = scmp.eq.s32.totalorder %s12, 3
    %p93 = scmp.ne.s32.totalorder %s88, %s90
    %p94 = scmp.eq.s32.totalorder %s12, 0
    %p95 = por %p93, %p94
    %p96 = scmp.ne.s32.totalorder %s88, %s90
    %p97 = scmp.eq.s32.totalorder %s17, 3
    %p98 = por %p96, %p97
    %p99 = scmp.ne.s32.totalorder %s90, %s91
    %p100 = scmp.eq.s32.totalorder %s17, 0
    %p101 = por %p99, %p100
    %p102 = scmp.ne.s32.totalorder %s90, %s91
    %p103 = scmp.eq.s32.totalorder %s18, 3
    %p104 = por %p102, %p103
    %p106 = scmp.ne.s32.totalorder %s91, %s105
    %p107 = scmp.eq.s32.totalorder %s18, 0
    %p108 = por %p106, %p107
    %s110 = sadd.s32 %s109, 1
    %p113 = scmp.eq.s32.totalorder %s12, 3
    %p114 = scmp.ne.s32.totalorder %s109, %s111
    %p115 = scmp.eq.s32.totalorder %s12, 0
    %p116 = por %p114, %p115
    %p117 = scmp.ne.s32.totalorder %s109, %s111
    %p118 = scmp.eq.s32.totalorder %s17, 3
    %p119 = por %p117, %p118
    %p120 = scmp.ne.s32.totalorder %s111, %s112
    %p121 = scmp.eq.s32.totalorder %s17, 0
    %p122 = por %p120, %p121
    %p123 = scmp.ne.s32.totalorder %s111, %s112
    %p124 = scmp.eq.s32.totalorder %s18, 3
    %p125 = por %p123, %p124
    %p127 = scmp.ne.s32.totalorder %s112, %s126
    %p128 = scmp.eq.s32.totalorder %s18, 0
    %p129 = por %p127, %p128
    %s131 = sadd.s32 %s130, 1
    %p134 = scmp.eq.s32.totalorder %s12, 3
    %p135 = scmp.ne.s32.totalorder %s130, %s132
    %p136 = scmp.eq.s32.totalorder %s12, 0
    %p137 = por %p135, %p136
    %p138 = scmp.ne.s32.totalorder %s130, %s132
    %p139 = scmp.eq.s32.totalorder %s17, 3
    %p140 = por %p138, %p139
    %p141 = scmp.ne.s32.totalorder %s132, %s133
    %p142 = scmp.eq.s32.totalorder %s17, 0
    %p143 = por %p141, %p142
    %p144 = scmp.ne.s32.totalorder %s132, %s133
    %p145 = scmp.eq.s32.totalorder %s18, 3
    %p146 = por %p144, %p145
    %p148 = scmp.ne.s32.totalorder %s133, %s147
    %p149 = scmp.eq.s32.totalorder %s18, 0
    %p150 = por %p148, %p149
    %s152 = sadd.s32 %s151, 1
    %p155 = scmp.eq.s32.totalorder %s12, 3
    %p156 = scmp.ne.s32.totalorder %s151, %s153
    %p157 = scmp.eq.s32.totalorder %s12, 0
    %p158 = por %p156, %p157
    %p159 = scmp.ne.s32.totalorder %s151, %s153
    %p160 = scmp.eq.s32.totalorder %s17, 3
    %p161 = por %p159, %p160
    %p162 = scmp.ne.s32.totalorder %s153, %s154
    %p163 = scmp.eq.s32.totalorder %s17, 0
    %p164 = por %p162, %p163
    %p165 = scmp.ne.s32.totalorder %s153, %s154
    %p166 = scmp.eq.s32.totalorder %s18, 3
    %p167 = por %p165, %p166
    %p169 = scmp.ne.s32.totalorder %s154, %s168
    %p170 = scmp.eq.s32.totalorder %s18, 0
    %p171 = por %p169, %p170
    %s172 = ssub.s32 %s19, %s31
    %s173 = ssub.s32 %s20, %s27
    %s174 = sor.u32 %s172, %s173
    %p175 = scmp.eq.s32.totalorder %s174, 0
    %s177 = sadd.s32 %s176, 1
    %s178 = scalar_select %p175, %s176, %s177
    %p181 = pneg %p175
    %p182 = scmp.eq.s32.totalorder %s12, 3
    %p183 = por %p181, %p182
    %p184 = scmp.ne.s32.totalorder %s176, %s179
    %p185 = scmp.eq.s32.totalorder %s12, 0
    %p186 = por %p184, %p185
    %p187 = scmp.ne.s32.totalorder %s176, %s179
    %p188 = scmp.eq.s32.totalorder %s17, 3
    %p189 = por %p187, %p188
    %p190 = scmp.ne.s32.totalorder %s179, %s180
    %p191 = scmp.eq.s32.totalorder %s17, 0
    %p192 = por %p190, %p191
    %p193 = scmp.ne.s32.totalorder %s179, %s180
    %p194 = scmp.eq.s32.totalorder %s18, 3
    %p195 = por %p193, %p194
    %p197 = scmp.ne.s32.totalorder %s180, %s196
    %p198 = scmp.eq.s32.totalorder %s18, 0
    %p199 = por %p197, %p198
    %p200 = scmp.le.s32.totalorder 1, %s12
    %p201 = scmp.lt.s32.totalorder %s12, 5
    %p202 = pnand %p200, %p201
    %p203 = pneg %p202
    // Predicated region
    $region9: #{resblock_forward.3} parent=5 // pred_check
      _
    $region10: #{resblock_forward.3} parent=5 // pred_check_branch
      %205 = sbr.rel (%p202) target = $region12
    $region11: #{resblock_forward.3} parent=5 // pred_region
      %s206 = ssub.s32 %s12, 1
      // Predicated region
      $region13: #{resblock_forward.3} parent=11 // pred_check
        %p207 = pneg %p101
      $region14: #{resblock_forward.3} parent=11 // pred_check_branch
        %209 = sbr.rel (%p207) target = $region16
      $region15: #{resblock_forward.3} parent=11 // pred_region
        _
      $region16: #{resblock_forward.3} parent=11 // pred_fallthru
        _
      // Predicated region
      $region17: #{resblock_forward.3} parent=11 // pred_check
        %p210 = pneg %p122
      $region18: #{resblock_forward.3} parent=11 // pred_check_branch
        %212 = sbr.rel (%p210) target = $region20
      $region19: #{resblock_forward.3} parent=11 // pred_region
        _
      $region20: #{resblock_forward.3} parent=11 // pred_fallthru
        _
      // Predicated region
      $region21: #{resblock_forward.3} parent=11 // pred_check
        %p213 = pneg %p143
      $region22: #{resblock_forward.3} parent=11 // pred_check_branch
        %215 = sbr.rel (%p213) target = $region24
      $region23: #{resblock_forward.3} parent=11 // pred_region
        _
      $region24: #{resblock_forward.3} parent=11 // pred_fallthru
        _
      // Predicated region
      $region25: #{resblock_forward.3} parent=11 // pred_check
        %p216 = pneg %p164
      $region26: #{resblock_forward.3} parent=11 // pred_check_branch
        %218 = sbr.rel (%p216) target = $region28
      $region27: #{resblock_forward.3} parent=11 // pred_region
        _
      $region28: #{resblock_forward.3} parent=11 // pred_fallthru
        _
    $region12: #{resblock_forward.3} parent=5 // pred_fallthru
      _
    %p219 = scmp.lt.s32.totalorder %s12, 4
    // Predicated region
    $region29: #{resblock_forward.3} parent=5 // pred_check
      %p220 = pneg %p219
    $region30: #{resblock_forward.3} parent=5 // pred_check_branch
      %222 = sbr.rel (%p220) target = $region32
    $region31: #{resblock_forward.3} parent=5 // pred_region
      // Predicated region
      $region33: #{resblock_forward.3} parent=31 // pred_check
        %p223 = pneg %p46
      $region34: #{resblock_forward.3} parent=31 // pred_check_branch
        %225 = sbr.rel (%p223) target = $region36
      $region35: #{resblock_forward.3} parent=31 // pred_region
        %p226 = scmp.lt.s32.totalorder %s19, 1
        %s227 = scalar_select %p226, %s19, 1
        %p228 = scmp.lt.s32.totalorder %s20, 1
        %s229 = scalar_select %p228, %s20, 1
        %s230 = smul.addr %s229, 30
        %s231 = smul.addr %s227, 60
        %s232 = sadd.s32 %s230, %s231
        %s233 = smul.addr %s232, 4
        %s234 = scalar_lea.vmem %s0, %s233
      $region36: #{resblock_forward.3} parent=31 // pred_fallthru
        _
      // Predicated region
      $region37: #{resblock_forward.3} parent=31 // pred_check
        %p235 = pneg %p74
      $region38: #{resblock_forward.3} parent=31 // pred_check_branch
        %237 = sbr.rel (%p235) target = $region40
      $region39: #{resblock_forward.3} parent=31 // pred_region
        %p238 = scmp.lt.s32.totalorder %s19, 1
        %s239 = scalar_select %p238, %s19, 1
        %p240 = scmp.lt.s32.totalorder %s20, 1
        %s241 = scalar_select %p240, %s20, 1
        %s242 = smul.addr %s241, 16
        %s243 = smul.addr %s239, 32
        %s244 = sadd.s32 %s242, %s243
        %s245 = smul.addr %s244, 4
        %s246 = scalar_lea.vmem %s1, %s245
      $region40: #{resblock_forward.3} parent=31 // pred_fallthru
        _
    $region32: #{resblock_forward.3} parent=5 // pred_fallthru
      _
    %p247 = scmp.le.s32.totalorder 1, %s12
    %p248 = scmp.lt.s32.totalorder %s12, 5
    %p249 = pnand %p247, %p248
    %p250 = pneg %p249
    // Predicated region
    $region41: #{resblock_forward.3} parent=5 // pred_check
      _
    $region42: #{resblock_forward.3} parent=5 // pred_check_branch
      %252 = sbr.rel (%p249) target = $region44
    $region43: #{resblock_forward.3} parent=5 // pred_region
      %s253 = ssub.s32 %s12, 1
      %p254 = scmp.lt.s32.totalorder %s21, 1
      %s255 = scalar_select %p254, %s21, 1
      %p256 = scmp.lt.s32.totalorder %s22, 1
      %s257 = scalar_select %p256, %s22, 1
      %s258 = smul.addr %s257, 30
      %s259 = smul.addr %s255, 60
      %s260 = sadd.s32 %s258, %s259
      %s261 = smul.addr %s260, 4
      %s262 = scalar_lea.vmem %s0, %s261
      %p263 = pneg %p52
      %p264 = pneg %p49
      %p265 = scmp.lt.s32.totalorder %s21, 1
      %s266 = scalar_select %p265, %s21, 1
      %p267 = scmp.lt.s32.totalorder %s22, 1
      %s268 = scalar_select %p267, %s22, 1
      %s269 = smul.addr %s268, 16
      %s270 = smul.addr %s266, 32
      %s271 = sadd.s32 %s269, %s270
      %s272 = smul.addr %s271, 4
      %s273 = scalar_lea.vmem %s1, %s272
      %p274 = pneg %p80
      %p275 = pneg %p77
      %p276 = pneg %p101
      %p277 = pneg %p98
      %p278 = pneg %p122
      %p279 = pneg %p119
      %p280 = pneg %p143
      %p281 = pneg %p140
      %p282 = pneg %p164
      %p283 = pneg %p161
      %p284 = pneg %p192
      %p285 = pneg %p189
      %p286 = scmp.lt.s32.totalorder %s21, 1
      %s287 = scalar_select %p286, %s21, 1
      %p288 = scmp.lt.s32.totalorder %s22, 1
      %s289 = scalar_select %p288, %s22, 1
      %s290 = smul.addr %s289, 4
      %s291 = smul.addr %s287, 8
      %s292 = sadd.s32 %s290, %s291
      %s293 = smul.addr %s292, 8
      %s294 = scalar_lea.vmem %s6, %s293
      %p295 = scmp.lt.s32.totalorder %s21, 1
      %s296 = scalar_select %p295, %s21, 1
      %p297 = scmp.lt.s32.totalorder %s22, 1
      %s298 = scalar_select %p297, %s22, 1
      %s299 = smul.addr %s298, 30
      %s300 = smul.addr %s296, 60
      %s301 = sadd.s32 %s299, %s300
      %s302 = smul.addr %s301, 4
      %s303 = scalar_lea.vmem %s0, %s302
      %p304 = scmp.lt.s32.totalorder %s21, 1
      %s305 = scalar_select %p304, %s21, 1
      %p306 = scmp.lt.s32.totalorder %s22, 1
      %s307 = scalar_select %p306, %s22, 1
      %s308 = smul.addr %s307, 16
      %s309 = smul.addr %s305, 32
      %s310 = sadd.s32 %s308, %s309
      %s311 = smul.addr %s310, 4
      %s312 = scalar_lea.vmem %s1, %s311
      %p313 = scmp.lt.s32.totalorder %s21, 1
      %s314 = scalar_select %p313, %s21, 1
      %p315 = scmp.lt.s32.totalorder %s22, 1
      %s316 = scalar_select %p315, %s22, 1
      %s317 = smul.addr %s316, 4
      %s318 = smul.addr %s314, 8
      %s319 = sadd.s32 %s317, %s318
      %s320 = smul.addr %s319, 8
      %s321 = scalar_lea.vmem %s6, %s320
      %v323 = vld [vmem:[%s303] sm:$0xf]
      %v324 = vld [vmem:[%s303 + $0x4] sm:$0xf]
      %v325 = vld [vmem:[%s303 + $0xc] sm:$0xf]
      %v326 = vld [vmem:[%s303 + $0x10] sm:$0xf]
      %v327 = vld [vmem:[%s303 + $0x18] sm:$0xf]
      %v328 = vld [vmem:[%s303 + $0x1c] sm:$0xf]
      %v329 = vld [vmem:[%s303 + $0x24] sm:$0xf]
      %v330 = vld [vmem:[%s303 + $0x28] sm:$0xf]
      %v331 = vld [vmem:[%s303 + $0x30] sm:$0xf]
      %v332 = vld [vmem:[%s303 + $0x34] sm:$0xf]
      %v333 = vld [vmem:[%s303 + $0x3c] sm:$0xf]
      %v334 = vld [vmem:[%s303 + $0x40] sm:$0xf]
      %v335 = vld [vmem:[%s303 + $0x48] sm:$0xf]
      %v336 = vld [vmem:[%s303 + $0x4c] sm:$0xf]
      %v337 = vld [vmem:[%s303 + $0x54] sm:$0xf]
      %v338 = vld [vmem:[%s303 + $0x58] sm:$0xf]
      %v339 = vld [vmem:[%s2] sm:$0xf]
      %v340 = vld [vmem:[%s2 + $0x4] sm:$0xf]
      %v341 = vld [vmem:[%s2 + $0x8] sm:$0xf]
      %v342 = vld [vmem:[%s2 + $0xc] sm:$0xf]
      %v343 = vld [vmem:[%s2 + $0x10] sm:$0xf]
      %v344 = vld [vmem:[%s2 + $0x14] sm:$0xf]
      %v345 = vld [vmem:[%s2 + $0x18] sm:$0xf]
      %v346 = vld [vmem:[%s2 + $0x1c] sm:$0xf]
      %v347 = vld [vmem:[%s2 + $0x20] sm:$0xf]
      %v348 = vld [vmem:[%s2 + $0x24] sm:$0xf]
      %v349 = vld [vmem:[%s2 + $0x28] sm:$0xf]
      %v350 = vld [vmem:[%s2 + $0x2c] sm:$0xf]
      %v351 = vld [vmem:[%s2 + $0x30] sm:$0xf]
      %v352 = vld [vmem:[%s2 + $0x34] sm:$0xf]
      %v353 = vld [vmem:[%s2 + $0x38] sm:$0xf]
      %v354 = vld [vmem:[%s2 + $0x3c] sm:$0xf]
      %v355 = vld [vmem:[%s303 + $0x8] sm:$0x1]
      %v356 = vld [vmem:[%s303 + $0x14] sm:$0x1]
      %v357 = vld [vmem:[%s303 + $0x20] sm:$0x1]
      %v358 = vld [vmem:[%s303 + $0x2c] sm:$0x1]
      %v359 = vld [vmem:[%s303 + $0x38] sm:$0x1]
      %v360 = vld [vmem:[%s303 + $0x44] sm:$0x1]
      %v361 = vld [vmem:[%s303 + $0x50] sm:$0x1]
      %v362 = vld [vmem:[%s303 + $0x5c] sm:$0x1]
      %vm363 = vsmask.f32 3328
      %vm364 = vsmask.f32 7440
      %vm365 = vmor %vm363, %vm364
      %v367 = vshrl.u32 %v323, 16
      %v369 = vrot.slane %v367, 4
      %v370 = vshll.u32 %v323, 16
      %v372 = vrot.slane %v370, 5
      %v373 = vor.u32 %v369, %v372
      %v374 = vrot.slane %v373, 4
      %v376 = vshll.u32 %v324, 16
      %v378 = vrot.slane %v376, 5
      %v379 = vsel %vm365, %v374, %v378
      %v380 = vshrl.u32 %v324, 16
      %v382 = vrot.slane %v380, 4
      %v383 = vor.u32 %v382, %v378
      %v384 = vrot.slane %v383, 4
      %v386 = vshll.u32 %v355, 16
      %v388 = vrot.slane %v386, 5
      %v389 = vsel %vm365, %v384, %v388
      %v391 = vshrl.u32 %v325, 16
      %v393 = vrot.slane %v391, 4
      %v394 = vshll.u32 %v325, 16
      %v396 = vrot.slane %v394, 5
      %v397 = vor.u32 %v393, %v396
      %v398 = vrot.slane %v397, 4
      %v400 = vshll.u32 %v326, 16
      %v402 = vrot.slane %v400, 5
      %v403 = vsel %vm365, %v398, %v402
      %v404 = vshrl.u32 %v326, 16
      %v406 = vrot.slane %v404, 4
      %v407 = vor.u32 %v406, %v402
      %v408 = vrot.slane %v407, 4
      %v410 = vshll.u32 %v356, 16
      %v412 = vrot.slane %v410, 5
      %v413 = vsel %vm365, %v408, %v412
      %v415 = vshrl.u32 %v327, 16
      %v417 = vrot.slane %v415, 4
      %v418 = vshll.u32 %v327, 16
      %v420 = vrot.slane %v418, 5
      %v421 = vor.u32 %v417, %v420
      %v422 = vrot.slane %v421, 4
      %v424 = vshll.u32 %v328, 16
      %v426 = vrot.slane %v424, 5
      %v427 = vsel %vm365, %v422, %v426
      %v428 = vshrl.u32 %v328, 16
      %v430 = vrot.slane %v428, 4
      %v431 = vor.u32 %v430, %v426
      %v432 = vrot.slane %v431, 4
      %v434 = vshll.u32 %v357, 16
      %v436 = vrot.slane %v434, 5
      %v437 = vsel %vm365, %v432, %v436
      %v439 = vshrl.u32 %v329, 16
      %v441 = vrot.slane %v439, 4
      %v442 = vshll.u32 %v329, 16
      %v444 = vrot.slane %v442, 5
      %v445 = vor.u32 %v441, %v444
      %v446 = vrot.slane %v445, 4
      %v448 = vshll.u32 %v330, 16
      %v450 = vrot.slane %v448, 5
      %v451 = vsel %vm365, %v446, %v450
      %v452 = vshrl.u32 %v330, 16
      %v454 = vrot.slane %v452, 4
      %v455 = vor.u32 %v454, %v450
      %v456 = vrot.slane %v455, 4
      %v458 = vshll.u32 %v358, 16
      %v460 = vrot.slane %v458, 5
      %v461 = vsel %vm365, %v456, %v460
      %v463 = vshrl.u32 %v331, 16
      %v465 = vrot.slane %v463, 4
      %v466 = vshll.u32 %v331, 16
      %v468 = vrot.slane %v466, 5
      %v469 = vor.u32 %v465, %v468
      %v470 = vrot.slane %v469, 4
      %v472 = vshll.u32 %v332, 16
      %v474 = vrot.slane %v472, 5
      %v475 = vsel %vm365, %v470, %v474
      %v476 = vshrl.u32 %v332, 16
      %v478 = vrot.slane %v476, 4
      %v479 = vor.u32 %v478, %v474
      %v480 = vrot.slane %v479, 4
      %v482 = vshll.u32 %v359, 16
      %v484 = vrot.slane %v482, 5
      %v485 = vsel %vm365, %v480, %v484
      %v487 = vshrl.u32 %v333, 16
      %v489 = vrot.slane %v487, 4
      %v490 = vshll.u32 %v333, 16
      %v492 = vrot.slane %v490, 5
      %v493 = vor.u32 %v489, %v492
      %v494 = vrot.slane %v493, 4
      %v496 = vshll.u32 %v334, 16
      %v498 = vrot.slane %v496, 5
      %v499 = vsel %vm365, %v494, %v498
      %v500 = vshrl.u32 %v334, 16
      %v502 = vrot.slane %v500, 4
      %v503 = vor.u32 %v502, %v498
      %v504 = vrot.slane %v503, 4
      %v506 = vshll.u32 %v360, 16
      %v508 = vrot.slane %v506, 5
      %v509 = vsel %vm365, %v504, %v508
      %v511 = vshrl.u32 %v335, 16
      %v513 = vrot.slane %v511, 4
      %v514 = vshll.u32 %v335, 16
      %v516 = vrot.slane %v514, 5
      %v517 = vor.u32 %v513, %v516
      %v518 = vrot.slane %v517, 4
      %v520 = vshll.u32 %v336, 16
      %v522 = vrot.slane %v520, 5
      %v523 = vsel %vm365, %v518, %v522
      %v524 = vshrl.u32 %v336, 16
      %v526 = vrot.slane %v524, 4
      %v527 = vor.u32 %v526, %v522
      %v528 = vrot.slane %v527, 4
      %v530 = vshll.u32 %v361, 16
      %v532 = vrot.slane %v530, 5
      %v533 = vsel %vm365, %v528, %v532
      %v535 = vshrl.u32 %v337, 16
      %v537 = vrot.slane %v535, 4
      %v538 = vshll.u32 %v337, 16
      %v540 = vrot.slane %v538, 5
      %v541 = vor.u32 %v537, %v540
      %v542 = vrot.slane %v541, 4
      %v544 = vshll.u32 %v338, 16
      %v546 = vrot.slane %v544, 5
      %v547 = vsel %vm365, %v542, %v546
      %v548 = vshrl.u32 %v338, 16
      %v550 = vrot.slane %v548, 4
      %v551 = vor.u32 %v550, %v546
      %v552 = vrot.slane %v551, 4
      %v554 = vshll.u32 %v362, 16
      %v556 = vrot.slane %v554, 5
      %v557 = vsel %vm365, %v552, %v556
      %s558 = scalar_lea.vmem %s2, 64
      %v559 = vld [vmem:[%s558] sm:$0xf]
      %v560 = vld [vmem:[%s558 + $0x4] sm:$0xf]
      %v561 = vld [vmem:[%s558 + $0x8] sm:$0xf]
      %v562 = vld [vmem:[%s558 + $0xc] sm:$0xf]
      %v563 = vld [vmem:[%s558 + $0x10] sm:$0xf]
      %v564 = vld [vmem:[%s558 + $0x14] sm:$0xf]
      %v565 = vld [vmem:[%s558 + $0x18] sm:$0xf]
      %v566 = vld [vmem:[%s558 + $0x1c] sm:$0xf]
      %v567 = vld [vmem:[%s558 + $0x20] sm:$0xf]
      %v568 = vld [vmem:[%s558 + $0x24] sm:$0xf]
      %v569 = vld [vmem:[%s558 + $0x28] sm:$0xf]
      %v570 = vld [vmem:[%s558 + $0x2c] sm:$0xf]
      %v571 = vld [vmem:[%s558 + $0x30] sm:$0xf]
      %v572 = vld [vmem:[%s558 + $0x34] sm:$0xf]
      %v573 = vld [vmem:[%s558 + $0x38] sm:$0xf]
      %v574 = vld [vmem:[%s558 + $0x3c] sm:$0xf]
      %v575 = vunpack.c.l.b16 %v379
      %v576 = vunpack.c.l.b16 %v389
      %v577 = vunpack.c.l.b16 %v403
      %v578 = vunpack.c.l.b16 %v413
      %v579 = vunpack.c.l.b16 %v427
      %v580 = vunpack.c.l.b16 %v437
      %v581 = vunpack.c.l.b16 %v451
      %v582 = vunpack.c.l.b16 %v461
      %v583 = vunpack.c.l.b16 %v475
      %v584 = vunpack.c.l.b16 %v485
      %v585 = vunpack.c.l.b16 %v499
      %v586 = vunpack.c.l.b16 %v509
      %v587 = vunpack.c.l.b16 %v523
      %v588 = vunpack.c.l.b16 %v533
      %v589 = vunpack.c.l.b16 %v547
      %v590 = vunpack.c.l.b16 %v557
      %v591 = vpack.c.b16 %v576, %v575
      %v592 = vpack.c.b16 %v578, %v577
      %v593 = vpack.c.b16 %v580, %v579
      %v594 = vpack.c.b16 %v582, %v581
      %v595 = vpack.c.b16 %v584, %v583
      %v596 = vpack.c.b16 %v586, %v585
      %v597 = vpack.c.b16 %v588, %v587
      %v598 = vpack.c.b16 %v590, %v589
      %v623 = vunpack.c.l.b16 %v559
      %v624 = vunpack.c.l.b16 %v560
      %v625 = vunpack.c.l.b16 %v561
      %v626 = vunpack.c.l.b16 %v562
      %v627 = vunpack.c.l.b16 %v563
      %v628 = vunpack.c.l.b16 %v564
      %v629 = vunpack.c.l.b16 %v565
      %v630 = vunpack.c.l.b16 %v566
      %v631 = vunpack.c.l.b16 %v567
      %v632 = vunpack.c.l.b16 %v568
      %v633 = vunpack.c.l.b16 %v569
      %v634 = vunpack.c.l.b16 %v570
      %v635 = vunpack.c.l.b16 %v571
      %v636 = vunpack.c.l.b16 %v572
      %v637 = vunpack.c.l.b16 %v573
      %v638 = vunpack.c.l.b16 %v574
      %v639 = vpack.c.b16 %v624, %v623
      %v640 = vpack.c.b16 %v626, %v625
      %v641 = vpack.c.b16 %v628, %v627
      %v642 = vpack.c.b16 %v630, %v629
      %v643 = vpack.c.b16 %v632, %v631
      %v644 = vpack.c.b16 %v634, %v633
      %v645 = vpack.c.b16 %v636, %v635
      %v646 = vpack.c.b16 %v638, %v637
      %655 = vmatprep.subr.bf16.mxu0 0
      %656 = vmatpush1.bf16.msra.mxu0 %v639
      %657 = vmatprep.subr.bf16.mxu0 0
      %658 = vmatpush1.bf16.msra.mxu0 %v640
      %659 = vmatprep.subr.bf16.mxu0 0
      %660 = vmatpush1.bf16.msra.mxu0 %v641
      %661 = vmatprep.subr.bf16.mxu0 0
      %662 = vmatpush1.bf16.msra.mxu0 %v642
      %663 = vmatprep.subr.bf16.mxu0 0
      %664 = vmatpush1.bf16.msra.mxu0 %v643
      %665 = vmatprep.subr.bf16.mxu0 0
      %666 = vmatpush1.bf16.msra.mxu0 %v644
      %667 = vmatprep.subr.bf16.mxu0 0
      %668 = vmatpush1.bf16.msra.mxu0 %v645
      %669 = vmatprep.subr.bf16.mxu0 0
      %670 = vmatpush1.bf16.msra.mxu0 %v646
      %671 = vmatprep.subr.bf16.mxu0 0
      %672 = vmatpush1.bf16.msra.mxu0 0
      %673 = vmatprep.subr.bf16.mxu0 0
      %674 = vmatpush1.bf16.msra.mxu0 0
      %675 = vmatprep.subr.bf16.mxu0 0
      %676 = vmatpush1.bf16.msra.mxu0 0
      %677 = vmatprep.subr.bf16.mxu0 0
      %678 = vmatpush1.bf16.msra.mxu0 0
      %679 = vmatprep.subr.bf16.mxu0 0
      %680 = vmatpush1.bf16.msra.mxu0 0
      %681 = vmatprep.subr.bf16.mxu0 0
      %682 = vmatpush1.bf16.msra.mxu0 0
      %683 = vmatprep.subr.bf16.mxu0 0
      %684 = vmatpush1.bf16.msra.mxu0 0
      %685 = vmatprep.subr.bf16.mxu0 0
      %686 = vmatpush1.bf16.msra.mxu0 0
      %687 = vmatprep.mubr.bf16.mxu0 0
      %688 = vmatmul.mubr.bf16.gmra.mrb[0].mxu0 %v591
      %v689 = vpop.f32.mrb[0].mxu0
      %v690 = vadd.f32 0.0, %v689
      %v691 = vpop.f32.mrb[0].mxu0
      %v692 = vpop.f32.mrb[0].mxu0
      %v693 = vadd.f32 0.0, %v692
      %v694 = vpop.f32.mrb[0].mxu0
      %695 = vmatprep.mubr.bf16.mxu0 0
      %696 = vmatmul.mubr.bf16.gmra.mrb[0].mxu0 %v592
      %v697 = vpop.f32.mrb[0].mxu0
      %v698 = vadd.f32 0.0, %v697
      %v699 = vpop.f32.mrb[0].mxu0
      %v700 = vpop.f32.mrb[0].mxu0
      %v701 = vadd.f32 0.0, %v700
      %v702 = vpop.f32.mrb[0].mxu0
      %703 = vmatprep.mubr.bf16.mxu0 0
      %704 = vmatmul.mubr.bf16.gmra.mrb[0].mxu0 %v593
      %v705 = vpop.f32.mrb[0].mxu0
      %v706 = vadd.f32 0.0, %v705
      %v707 = vpop.f32.mrb[0].mxu0
      %v708 = vpop.f32.mrb[0].mxu0
      %v709 = vadd.f32 0.0, %v708
      %v710 = vpop.f32.mrb[0].mxu0
      %711 = vmatprep.mubr.bf16.mxu0 0
      %712 = vmatmul.mubr.bf16.gmra.mrb[0].mxu0 %v594
      %v713 = vpop.f32.mrb[0].mxu0
      %v714 = vadd.f32 0.0, %v713
      %v715 = vpop.f32.mrb[0].mxu0
      %v716 = vpop.f32.mrb[0].mxu0
      %v717 = vadd.f32 0.0, %v716
      %v718 = vpop.f32.mrb[0].mxu0
      %719 = vmatprep.mubr.bf16.mxu0 0
      %720 = vmatmul.mubr.bf16.gmra.mrb[0].mxu0 %v595
      %v721 = vpop.f32.mrb[0].mxu0
      %v722 = vadd.f32 0.0, %v721
      %v723 = vpop.f32.mrb[0].mxu0
      %v724 = vpop.f32.mrb[0].mxu0
      %v725 = vadd.f32 0.0, %v724
      %v726 = vpop.f32.mrb[0].mxu0
      %727 = vmatprep.mubr.bf16.mxu0 0
      %728 = vmatmul.mubr.bf16.gmra.mrb[0].mxu0 %v596
      %v729 = vpop.f32.mrb[0].mxu0
      %v730 = vadd.f32 0.0, %v729
      %v731 = vpop.f32.mrb[0].mxu0
      %v732 = vpop.f32.mrb[0].mxu0
      %v733 = vadd.f32 0.0, %v732
      %v734 = vpop.f32.mrb[0].mxu0
      %735 = vmatprep.mubr.bf16.mxu0 0
      %736 = vmatmul.mubr.bf16.gmra.mrb[0].mxu0 %v597
      %v737 = vpop.f32.mrb[0].mxu0
      %v738 = vadd.f32 0.0, %v737
      %v739 = vpop.f32.mrb[0].mxu0
      %v740 = vpop.f32.mrb[0].mxu0
      %v741 = vadd.f32 0.0, %v740
      %v742 = vpop.f32.mrb[0].mxu0
      %743 = vmatprep.mubr.bf16.mxu0 0
      %744 = vmatmul.mubr.bf16.gmra.mrb[0].mxu0 %v598
      %v745 = vpop.f32.mrb[0].mxu0
      %v746 = vadd.f32 0.0, %v745
      %v747 = vpop.f32.mrb[0].mxu0
      %v748 = vpop.f32.mrb[0].mxu0
      %v749 = vadd.f32 0.0, %v748
      %v750 = vpop.f32.mrb[0].mxu0
      %751 = vdwg.mxu0
      %v768 = vunpack.c.l.b16 %v323
      %v769 = vunpack.c.l.b16 %v324
      %v770 = vunpack.c.l.b16 %v325
      %v771 = vunpack.c.l.b16 %v326
      %v772 = vunpack.c.l.b16 %v327
      %v773 = vunpack.c.l.b16 %v328
      %v774 = vunpack.c.l.b16 %v329
      %v775 = vunpack.c.l.b16 %v330
      %v776 = vunpack.c.l.b16 %v331
      %v777 = vunpack.c.l.b16 %v332
      %v778 = vunpack.c.l.b16 %v333
      %v779 = vunpack.c.l.b16 %v334
      %v780 = vunpack.c.l.b16 %v335
      %v781 = vunpack.c.l.b16 %v336
      %v782 = vunpack.c.l.b16 %v337
      %v783 = vunpack.c.l.b16 %v338
      %v784 = vpack.c.b16 %v769, %v768
      %v785 = vpack.c.b16 %v771, %v770
      %v786 = vpack.c.b16 %v773, %v772
      %v787 = vpack.c.b16 %v775, %v774
      %v788 = vpack.c.b16 %v777, %v776
      %v789 = vpack.c.b16 %v779, %v778
      %v790 = vpack.c.b16 %v781, %v780
      %v791 = vpack.c.b16 %v783, %v782
      %v816 = vunpack.c.l.b16 %v339
      %v817 = vunpack.c.l.b16 %v340
      %v818 = vunpack.c.l.b16 %v341
      %v819 = vunpack.c.l.b16 %v342
      %v820 = vunpack.c.l.b16 %v343
      %v821 = vunpack.c.l.b16 %v344
      %v822 = vunpack.c.l.b16 %v345
      %v823 = vunpack.c.l.b16 %v346
      %v824 = vunpack.c.l.b16 %v347
      %v825 = vunpack.c.l.b16 %v348
      %v826 = vunpack.c.l.b16 %v349
      %v827 = vunpack.c.l.b16 %v350
      %v828 = vunpack.c.l.b16 %v351
      %v829 = vunpack.c.l.b16 %v352
      %v830 = vunpack.c.l.b16 %v353
      %v831 = vunpack.c.l.b16 %v354
      %v832 = vpack.c.b16 %v817, %v816
      %v833 = vpack.c.b16 %v819, %v818
      %v834 = vpack.c.b16 %v821, %v820
      %v835 = vpack.c.b16 %v823, %v822
      %v836 = vpack.c.b16 %v825, %v824
      %v837 = vpack.c.b16 %v827, %v826
      %v838 = vpack.c.b16 %v829, %v828
      %v839 = vpack.c.b16 %v831, %v830
      %848 = vmatprep.subr.bf16.mxu0 0
      %849 = vmatpush1.bf16.msra.mxu0 %v832
      %850 = vmatprep.subr.bf16.mxu0 0
      %851 = vmatpush1.bf16.msra.mxu0 %v833
      %852 = vmatprep.subr.bf16.mxu0 0
      %853 = vmatpush1.bf16.msra.mxu0 %v834
      %854 = vmatprep.subr.bf16.mxu0 0
      %855 = vmatpush1.bf16.msra.mxu0 %v835
      %856 = vmatprep.subr.bf16.mxu0 0
      %857 = vmatpush1.bf16.msra.mxu0 %v836
      %858 = vmatprep.subr.bf16.mxu0 0
      %859 = vmatpush1.bf16.msra.mxu0 %v837
      %860 = vmatprep.subr.bf16.mxu0 0
      %861 = vmatpush1.bf16.msra.mxu0 %v838
      %862 = vmatprep.subr.bf16.mxu0 0
      %863 = vmatpush1.bf16.msra.mxu0 %v839
      %864 = vmatprep.subr.bf16.mxu0 0
      %865 = vmatpush1.bf16.msra.mxu0 0
      %866 = vmatprep.subr.bf16.mxu0 0
      %867 = vmatpush1.bf16.msra.mxu0 0
      %868 = vmatprep.subr.bf16.mxu0 0
      %869 = vmatpush1.bf16.msra.mxu0 0
      %870 = vmatprep.subr.bf16.mxu0 0
      %871 = vmatpush1.bf16.msra.mxu0 0
      %872 = vmatprep.subr.bf16.mxu0 0
      %873 = vmatpush1.bf16.msra.mxu0 0
      %874 = vmatprep.subr.bf16.mxu0 0
      %875 = vmatpush1.bf16.msra.mxu0 0
      %876 = vmatprep.subr.bf16.mxu0 0
      %877 = vmatpush1.bf16.msra.mxu0 0
      %878 = vmatprep.subr.bf16.mxu0 0
      %879 = vmatpush1.bf16.msra.mxu0 0
      %880 = vmatprep.mubr.bf16.mxu0 0
      %881 = vmatmul.mubr.bf16.gmra.mrb[0].mxu0 %v784
      %v882 = vpop.f32.mrb[0].mxu0
      %v883 = vadd.f32 %v690, %v882
      %v884 = vpop.f32.mrb[0].mxu0
      %v885 = vpop.f32.mrb[0].mxu0
      %v886 = vadd.f32 %v693, %v885
      %v887 = vpop.f32.mrb[0].mxu0
      %888 = vmatprep.mubr.bf16.mxu0 0
      %889 = vmatmul.mubr.bf16.gmra.mrb[0].mxu0 %v785
      %v890 = vpop.f32.mrb[0].mxu0
      %v891 = vadd.f32 %v698, %v890
      %v892 = vpop.f32.mrb[0].mxu0
      %v893 = vpop.f32.mrb[0].mxu0
      %v894 = vadd.f32 %v701, %v893
      %v895 = vpop.f32.mrb[0].mxu0
      %896 = vmatprep.mubr.bf16.mxu0 0
      %897 = vmatmul.mubr.bf16.gmra.mrb[0].mxu0 %v786
      %v898 = vpop.f32.mrb[0].mxu0
      %v899 = vadd.f32 %v706, %v898
      %v900 = vpop.f32.mrb[0].mxu0
      %v901 = vpop.f32.mrb[0].mxu0
      %v902 = vadd.f32 %v709, %v901
      %v903 = vpop.f32.mrb[0].mxu0
      %904 = vmatprep.mubr.bf16.mxu0 0
      %905 = vmatmul.mubr.bf16.gmra.mrb[0].mxu0 %v787
      %v906 = vpop.f32.mrb[0].mxu0
      %v907 = vadd.f32 %v714, %v906
      %v908 = vpop.f32.mrb[0].mxu0
      %v909 = vpop.f32.mrb[0].mxu0
      %v910 = vadd.f32 %v717, %v909
      %v911 = vpop.f32.mrb[0].mxu0
      %912 = vmatprep.mubr.bf16.mxu0 0
      %913 = vmatmul.mubr.bf16.gmra.mrb[0].mxu0 %v788
      %v914 = vpop.f32.mrb[0].mxu0
      %v915 = vadd.f32 %v722, %v914
      %v916 = vpop.f32.mrb[0].mxu0
      %v917 = vpop.f32.mrb[0].mxu0
      %v918 = vadd.f32 %v725, %v917
      %v919 = vpop.f32.mrb[0].mxu0
      %920 = vmatprep.mubr.bf16.mxu0 0
      %921 = vmatmul.mubr.bf16.gmra.mrb[0].mxu0 %v789
      %v922 = vpop.f32.mrb[0].mxu0
      %v923 = vadd.f32 %v730, %v922
      %v924 = vpop.f32.mrb[0].mxu0
      %v925 = vpop.f32.mrb[0].mxu0
      %v926 = vadd.f32 %v733, %v925
      %v927 = vpop.f32.mrb[0].mxu0
      %928 = vmatprep.mubr.bf16.mxu0 0
      %929 = vmatmul.mubr.bf16.gmra.mrb[0].mxu0 %v790
      %v930 = vpop.f32.mrb[0].mxu0
      %v931 = vadd.f32 %v738, %v930
      %v932 = vpop.f32.mrb[0].mxu0
      %v933 = vpop.f32.mrb[0].mxu0
      %v934 = vadd.f32 %v741, %v933
      %v935 = vpop.f32.mrb[0].mxu0
      %936 = vmatprep.mubr.bf16.mxu0 0
      %937 = vmatmul.mubr.bf16.gmra.mrb[0].mxu0 %v791
      %v938 = vpop.f32.mrb[0].mxu0
      %v939 = vadd.f32 %v746, %v938
      %v940 = vpop.f32.mrb[0].mxu0
      %v941 = vpop.f32.mrb[0].mxu0
      %v942 = vadd.f32 %v749, %v941
      %v943 = vpop.f32.mrb[0].mxu0
      %944 = vdwg.mxu0
      %v945 = vld [vmem:[%s303] sm:$0xe]
      %v946 = vld [vmem:[%s303 + $0xc] sm:$0xe]
      %v947 = vld [vmem:[%s303 + $0x18] sm:$0xe]
      %v948 = vld [vmem:[%s303 + $0x24] sm:$0xe]
      %v949 = vld [vmem:[%s303 + $0x30] sm:$0xe]
      %v950 = vld [vmem:[%s303 + $0x3c] sm:$0xe]
      %v951 = vld [vmem:[%s303 + $0x48] sm:$0xe]
      %v952 = vld [vmem:[%s303 + $0x54] sm:$0xe]
      %vm969 = vcmask 1042432
      %vm970 = vcmask 1046532
      %vm971 = vmor %vm969, %vm970
      %v972 = vrot.slane %v945, 5
      %v973 = vrot.slane %v972, 4
      %v974 = vrot.slane %v324, 5
      %v975 = vsel %vm971, %v973, %v974
      %v976 = vrot.slane %v974, 4
      %v977 = vrot.slane %v355, 5
      %v978 = vsel %vm971, %v976, %v977
      %v979 = vrot.slane %v946, 5
      %v980 = vrot.slane %v979, 4
      %v981 = vrot.slane %v326, 5
      %v982 = vsel %vm971, %v980, %v981
      %v983 = vrot.slane %v981, 4
      %v984 = vrot.slane %v356, 5
      %v985 = vsel %vm971, %v983, %v984
      %v986 = vrot.slane %v947, 5
      %v987 = vrot.slane %v986, 4
      %v988 = vrot.slane %v328, 5
      %v989 = vsel %vm971, %v987, %v988
      %v990 = vrot.slane %v988, 4
      %v991 = vrot.slane %v357, 5
      %v992 = vsel %vm971, %v990, %v991
      %v993 = vrot.slane %v948, 5
      %v994 = vrot.slane %v993, 4
      %v995 = vrot.slane %v330, 5
      %v996 = vsel %vm971, %v994, %v995
      %v997 = vrot.slane %v995, 4
      %v998 = vrot.slane %v358, 5
      %v999 = vsel %vm971, %v997, %v998
      %v1000 = vrot.slane %v949, 5
      %v1001 = vrot.slane %v1000, 4
      %v1002 = vrot.slane %v332, 5
      %v1003 = vsel %vm971, %v1001, %v1002
      %v1004 = vrot.slane %v1002, 4
      %v1005 = vrot.slane %v359, 5
      %v1006 = vsel %vm971, %v1004, %v1005
      %v1007 = vrot.slane %v950, 5
      %v1008 = vrot.slane %v1007, 4
      %v1009 = vrot.slane %v334, 5
      %v1010 = vsel %vm971, %v1008, %v1009
      %v1011 = vrot.slane %v1009, 4
      %v1012 = vrot.slane %v360, 5
      %v1013 = vsel %vm971, %v1011, %v1012
      %v1014 = vrot.slane %v951, 5
      %v1015 = vrot.slane %v1014, 4
      %v1016 = vrot.slane %v336, 5
      %v1017 = vsel %vm971, %v1015, %v1016
      %v1018 = vrot.slane %v1016, 4
      %v1019 = vrot.slane %v361, 5
      %v1020 = vsel %vm971, %v1018, %v1019
      %v1021 = vrot.slane %v952, 5
      %v1022 = vrot.slane %v1021, 4
      %v1023 = vrot.slane %v338, 5
      %v1024 = vsel %vm971, %v1022, %v1023
      %v1025 = vrot.slane %v1023, 4
      %v1026 = vrot.slane %v362, 5
      %v1027 = vsel %vm971, %v1025, %v1026
      %s1028 = scalar_lea.vmem %s2, 128
      %v1029 = vld [vmem:[%s1028] sm:$0xf]
      %v1030 = vld [vmem:[%s1028 + $0x4] sm:$0xf]
      %v1031 = vld [vmem:[%s1028 + $0x8] sm:$0xf]
      %v1032 = vld [vmem:[%s1028 + $0xc] sm:$0xf]
      %v1033 = vld [vmem:[%s1028 + $0x10] sm:$0xf]
      %v1034 = vld [vmem:[%s1028 + $0x14] sm:$0xf]
      %v1035 = vld [vmem:[%s1028 + $0x18] sm:$0xf]
      %v1036 = vld [vmem:[%s1028 + $0x1c] sm:$0xf]
      %v1037 = vld [vmem:[%s1028 + $0x20] sm:$0xf]
      %v1038 = vld [vmem:[%s1028 + $0x24] sm:$0xf]
      %v1039 = vld [vmem:[%s1028 + $0x28] sm:$0xf]
      %v1040 = vld [vmem:[%s1028 + $0x2c] sm:$0xf]
      %v1041 = vld [vmem:[%s1028 + $0x30] sm:$0xf]
      %v1042 = vld [vmem:[%s1028 + $0x34] sm:$0xf]
      %v1043 = vld [vmem:[%s1028 + $0x38] sm:$0xf]
      %v1044 = vld [vmem:[%s1028 + $0x3c] sm:$0xf]
      %v1045 = vunpack.c.l.b16 %v975
      %v1046 = vunpack.c.l.b16 %v978
      %v1047 = vunpack.c.l.b16 %v982
      %v1048 = vunpack.c.l.b16 %v985
      %v1049 = vunpack.c.l.b16 %v989
      %v1050 = vunpack.c.l.b16 %v992
      %v1051 = vunpack.c.l.b16 %v996
      %v1052 = vunpack.c.l.b16 %v999
      %v1053 = vunpack.c.l.b16 %v1003
      %v1054 = vunpack.c.l.b16 %v1006
      %v1055 = vunpack.c.l.b16 %v1010
      %v1056 = vunpack.c.l.b16 %v1013
      %v1057 = vunpack.c.l.b16 %v1017
      %v1058 = vunpack.c.l.b16 %v1020
      %v1059 = vunpack.c.l.b16 %v1024
      %v1060 = vunpack.c.l.b16 %v1027
      %v1061 = vpack.c.b16 %v1046, %v1045
      %v1062 = vpack.c.b16 %v1048, %v1047
      %v1063 = vpack.c.b16 %v1050, %v1049
      %v1064 = vpack.c.b16 %v1052, %v1051
      %v1065 = vpack.c.b16 %v1054, %v1053
      %v1066 = vpack.c.b16 %v1056, %v1055
      %v1067 = vpack.c.b16 %v1058, %v1057
      %v1068 = vpack.c.b16 %v1060, %v1059
      %v1093 = vunpack.c.l.b16 %v1029
      %v1094 = vunpack.c.l.b16 %v1030
      %v1095 = vunpack.c.l.b16 %v1031
      %v1096 = vunpack.c.l.b16 %v1032
      %v1097 = vunpack.c.l.b16 %v1033
      %v1098 = vunpack.c.l.b16 %v1034
      %v1099 = vunpack.c.l.b16 %v1035
      %v1100 = vunpack.c.l.b16 %v1036
      %v1101 = vunpack.c.l.b16 %v1037
      %v1102 = vunpack.c.l.b16 %v1038
      %v1103 = vunpack.c.l.b16 %v1039
      %v1104 = vunpack.c.l.b16 %v1040
      %v1105 = vunpack.c.l.b16 %v1041
      %v1106 = vunpack.c.l.b16 %v1042
      %v1107 = vunpack.c.l.b16 %v1043
      %v1108 = vunpack.c.l.b16 %v1044
      %v1109 = vpack.c.b16 %v1094, %v1093
      %v1110 = vpack.c.b16 %v1096, %v1095
      %v1111 = vpack.c.b16 %v1098, %v1097
      %v1112 = vpack.c.b16 %v1100, %v1099
      %v1113 = vpack.c.b16 %v1102, %v1101
      %v1114 = vpack.c.b16 %v1104, %v1103
      %v1115 = vpack.c.b16 %v1106, %v1105
      %v1116 = vpack.c.b16 %v1108, %v1107
      %1125 = vmatprep.subr.bf16.mxu0 0
      %1126 = vmatpush1.bf16.msra.mxu0 %v1109
      %1127 = vmatprep.subr.bf16.mxu0 0
      %1128 = vmatpush1.bf16.msra.mxu0 %v1110
      %1129 = vmatprep.subr.bf16.mxu0 0
      %1130 = vmatpush1.bf16.msra.mxu0 %v1111
      %1131 = vmatprep.subr.bf16.mxu0 0
      %1132 = vmatpush1.bf16.msra.mxu0 %v1112
      %1133 = vmatprep.subr.bf16.mxu0 0
      %1134 = vmatpush1.bf16.msra.mxu0 %v1113
      %1135 = vmatprep.subr.bf16.mxu0 0
      %1136 = vmatpush1.bf16.msra.mxu0 %v1114
      %1137 = vmatprep.subr.bf16.mxu0 0
      %1138 = vmatpush1.bf16.msra.mxu0 %v1115
      %1139 = vmatprep.subr.bf16.mxu0 0
      %1140 = vmatpush1.bf16.msra.mxu0 %v1116
      %1141 = vmatprep.subr.bf16.mxu0 0
      %1142 = vmatpush1.bf16.msra.mxu0 0
      %1143 = vmatprep.subr.bf16.mxu0 0
      %1144 = vmatpush1.bf16.msra.mxu0 0
      %1145 = vmatprep.subr.bf16.mxu0 0
      %1146 = vmatpush1.bf16.msra.mxu0 0
      %1147 = vmatprep.subr.bf16.mxu0 0
      %1148 = vmatpush1.bf16.msra.mxu0 0
      %1149 = vmatprep.subr.bf16.mxu0 0
      %1150 = vmatpush1.bf16.msra.mxu0 0
      %1151 = vmatprep.subr.bf16.mxu0 0
      %1152 = vmatpush1.bf16.msra.mxu0 0
      %1153 = vmatprep.subr.bf16.mxu0 0
      %1154 = vmatpush1.bf16.msra.mxu0 0
      %1155 = vmatprep.subr.bf16.mxu0 0
      %1156 = vmatpush1.bf16.msra.mxu0 0
      %1157 = vmatprep.mubr.bf16.mxu0 0
      %1158 = vmatmul.mubr.bf16.gmra.mrb[0].mxu0 %v1061
      %v1159 = vpop.f32.mrb[0].mxu0
      %v1160 = vadd.f32 0.0, %v1159
      %v1161 = vpop.f32.mrb[0].mxu0
      %v1162 = vpop.f32.mrb[0].mxu0
      %v1163 = vadd.f32 0.0, %v1162
      %v1164 = vpop.f32.mrb[0].mxu0
      %1165 = vmatprep.mubr.bf16.mxu0 0
      %1166 = vmatmul.mubr.bf16.gmra.mrb[0].mxu0 %v1062
      %v1167 = vpop.f32.mrb[0].mxu0
      %v1168 = vadd.f32 0.0, %v1167
      %v1169 = vpop.f32.mrb[0].mxu0
      %v1170 = vpop.f32.mrb[0].mxu0
      %v1171 = vadd.f32 0.0, %v1170
      %v1172 = vpop.f32.mrb[0].mxu0
      %1173 = vmatprep.mubr.bf16.mxu0 0
      %1174 = vmatmul.mubr.bf16.gmra.mrb[0].mxu0 %v1063
      %v1175 = vpop.f32.mrb[0].mxu0
      %v1176 = vadd.f32 0.0, %v1175
      %v1177 = vpop.f32.mrb[0].mxu0
      %v1178 = vpop.f32.mrb[0].mxu0
      %v1179 = vadd.f32 0.0, %v1178
      %v1180 = vpop.f32.mrb[0].mxu0
      %1181 = vmatprep.mubr.bf16.mxu0 0
      %1182 = vmatmul.mubr.bf16.gmra.mrb[0].mxu0 %v1064
      %v1183 = vpop.f32.mrb[0].mxu0
      %v1184 = vadd.f32 0.0, %v1183
      %v1185 = vpop.f32.mrb[0].mxu0
      %v1186 = vpop.f32.mrb[0].mxu0
      %v1187 = vadd.f32 0.0, %v1186
      %v1188 = vpop.f32.mrb[0].mxu0
      %1189 = vmatprep.mubr.bf16.mxu0 0
      %1190 = vmatmul.mubr.bf16.gmra.mrb[0].mxu0 %v1065
      %v1191 = vpop.f32.mrb[0].mxu0
      %v1192 = vadd.f32 0.0, %v1191
      %v1193 = vpop.f32.mrb[0].mxu0
      %v1194 = vpop.f32.mrb[0].mxu0
      %v1195 = vadd.f32 0.0, %v1194
      %v1196 = vpop.f32.mrb[0].mxu0
      %1197 = vmatprep.mubr.bf16.mxu0 0
      %1198 = vmatmul.mubr.bf16.gmra.mrb[0].mxu0 %v1066
      %v1199 = vpop.f32.mrb[0].mxu0
      %v1200 = vadd.f32 0.0, %v1199
      %v1201 = vpop.f32.mrb[0].mxu0
      %v1202 = vpop.f32.mrb[0].mxu0
      %v1203 = vadd.f32 0.0, %v1202
      %v1204 = vpop.f32.mrb[0].mxu0
      %1205 = vmatprep.mubr.bf16.mxu0 0
      %1206 = vmatmul.mubr.bf16.gmra.mrb[0].mxu0 %v1067
      %v1207 = vpop.f32.mrb[0].mxu0
      %v1208 = vadd.f32 0.0, %v1207
      %v1209 = vpop.f32.mrb[0].mxu0
      %v1210 = vpop.f32.mrb[0].mxu0
      %v1211 = vadd.f32 0.0, %v1210
      %v1212 = vpop.f32.mrb[0].mxu0
      %1213 = vmatprep.mubr.bf16.mxu0 0
      %1214 = vmatmul.mubr.bf16.gmra.mrb[0].mxu0 %v1068
      %v1215 = vpop.f32.mrb[0].mxu0
      %v1216 = vadd.f32 0.0, %v1215
      %v1217 = vpop.f32.mrb[0].mxu0
      %v1218 = vpop.f32.mrb[0].mxu0
      %v1219 = vadd.f32 0.0, %v1218
      %v1220 = vpop.f32.mrb[0].mxu0
      %1221 = vdwg.mxu0
      %v1222 = vadd.f32 %v883, %v1160
      %v1223 = vadd.f32 %v886, %v1163
      %v1224 = vadd.f32 %v891, %v1168
      %v1225 = vadd.f32 %v894, %v1171
      %v1226 = vadd.f32 %v899, %v1176
      %v1227 = vadd.f32 %v902, %v1179
      %v1228 = vadd.f32 %v907, %v1184
      %v1229 = vadd.f32 %v910, %v1187
      %v1230 = vadd.f32 %v915, %v1192
      %v1231 = vadd.f32 %v918, %v1195
      %v1232 = vadd.f32 %v923, %v1200
      %v1233 = vadd.f32 %v926, %v1203
      %v1234 = vadd.f32 %v931, %v1208
      %v1235 = vadd.f32 %v934, %v1211
      %v1236 = vadd.f32 %v939, %v1216
      %v1237 = vadd.f32 %v942, %v1219
      %s1238 = scalar_lea.vmem %s303, 12
      %v1239 = vld [vmem:[%s1238] sm:$0xf]
      %v1240 = vld [vmem:[%s1238 + $0x4] sm:$0xf]
      %v1241 = vld [vmem:[%s1238 + $0xc] sm:$0xf]
      %v1242 = vld [vmem:[%s1238 + $0x10] sm:$0xf]
      %v1243 = vld [vmem:[%s1238 + $0x18] sm:$0xf]
      %v1244 = vld [vmem:[%s1238 + $0x1c] sm:$0xf]
      %v1245 = vld [vmem:[%s1238 + $0x24] sm:$0xf]
      %v1246 = vld [vmem:[%s1238 + $0x28] sm:$0xf]
      %v1247 = vld [vmem:[%s1238 + $0x30] sm:$0xf]
      %v1248 = vld [vmem:[%s1238 + $0x34] sm:$0xf]
      %v1249 = vld [vmem:[%s1238 + $0x3c] sm:$0xf]
      %v1250 = vld [vmem:[%s1238 + $0x40] sm:$0xf]
      %v1251 = vld [vmem:[%s1238 + $0x48] sm:$0xf]
      %v1252 = vld [vmem:[%s1238 + $0x4c] sm:$0xf]
      %v1253 = vld [vmem:[%s1238 + $0x54] sm:$0xf]
      %v1254 = vld [vmem:[%s1238 + $0x58] sm:$0xf]
      %s1255 = scalar_lea.vmem %s2, 192
      %v1256 = vld [vmem:[%s1255] sm:$0xf]
      %v1257 = vld [vmem:[%s1255 + $0x4] sm:$0xf]
      %v1258 = vld [vmem:[%s1255 + $0x8] sm:$0xf]
      %v1259 = vld [vmem:[%s1255 + $0xc] sm:$0xf]
      %v1260 = vld [vmem:[%s1255 + $0x10] sm:$0xf]
      %v1261 = vld [vmem:[%s1255 + $0x14] sm:$0xf]
      %v1262 = vld [vmem:[%s1255 + $0x18] sm:$0xf]
      %v1263 = vld [vmem:[%s1255 + $0x1c] sm:$0xf]
      %v1264 = vld [vmem:[%s1255 + $0x20] sm:$0xf]
      %v1265 = vld [vmem:[%s1255 + $0x24] sm:$0xf]
      %v1266 = vld [vmem:[%s1255 + $0x28] sm:$0xf]
      %v1267 = vld [vmem:[%s1255 + $0x2c] sm:$0xf]
      %v1268 = vld [vmem:[%s1255 + $0x30] sm:$0xf]
      %v1269 = vld [vmem:[%s1255 + $0x34] sm:$0xf]
      %v1270 = vld [vmem:[%s1255 + $0x38] sm:$0xf]
      %v1271 = vld [vmem:[%s1255 + $0x3c] sm:$0xf]
      %v1288 = vunpack.c.l.b16 %v1239
      %v1289 = vunpack.c.l.b16 %v1240
      %v1290 = vunpack.c.l.b16 %v1241
      %v1291 = vunpack.c.l.b16 %v1242
      %v1292 = vunpack.c.l.b16 %v1243
      %v1293 = vunpack.c.l.b16 %v1244
      %v1294 = vunpack.c.l.b16 %v1245
      %v1295 = vunpack.c.l.b16 %v1246
      %v1296 = vunpack.c.l.b16 %v1247
      %v1297 = vunpack.c.l.b16 %v1248
      %v1298 = vunpack.c.l.b16 %v1249
      %v1299 = vunpack.c.l.b16 %v1250
      %v1300 = vunpack.c.l.b16 %v1251
      %v1301 = vunpack.c.l.b16 %v1252
      %v1302 = vunpack.c.l.b16 %v1253
      %v1303 = vunpack.c.l.b16 %v1254
      %v1304 = vpack.c.b16 %v1289, %v1288
      %v1305 = vpack.c.b16 %v1291, %v1290
      %v1306 = vpack.c.b16 %v1293, %v1292
      %v1307 = vpack.c.b16 %v1295, %v1294
      %v1308 = vpack.c.b16 %v1297, %v1296
      %v1309 = vpack.c.b16 %v1299, %v1298
      %v1310 = vpack.c.b16 %v1301, %v1300
      %v1311 = vpack.c.b16 %v1303, %v1302
      %v1336 = vunpack.c.l.b16 %v1256
      %v1337 = vunpack.c.l.b16 %v1257
      %v1338 = vunpack.c.l.b16 %v1258
      %v1339 = vunpack.c.l.b16 %v1259
      %v1340 = vunpack.c.l.b16 %v1260
      %v1341 = vunpack.c.l.b16 %v1261
      %v1342 = vunpack.c.l.b16 %v1262
      %v1343 = vunpack.c.l.b16 %v1263
      %v1344 = vunpack.c.l.b16 %v1264
      %v1345 = vunpack.c.l.b16 %v1265
      %v1346 = vunpack.c.l.b16 %v1266
      %v1347 = vunpack.c.l.b16 %v1267
      %v1348 = vunpack.c.l.b16 %v1268
      %v1349 = vunpack.c.l.b16 %v1269
      %v1350 = vunpack.c.l.b16 %v1270
      %v1351 = vunpack.c.l.b16 %v1271
      %v1352 = vpack.c.b16 %v1337, %v1336
      %v1353 = vpack.c.b16 %v1339, %v1338
      %v1354 = vpack.c.b16 %v1341, %v1340
      %v1355 = vpack.c.b16 %v1343, %v1342
      %v1356 = vpack.c.b16 %v1345, %v1344
      %v1357 = vpack.c.b16 %v1347, %v1346
      %v1358 = vpack.c.b16 %v1349, %v1348
      %v1359 = vpack.c.b16 %v1351, %v1350
      %1368 = vmatprep.subr.bf16.mxu0 0
      %1369 = vmatpush1.bf16.msra.mxu0 %v1352
      %1370 = vmatprep.subr.bf16.mxu0 0
      %1371 = vmatpush1.bf16.msra.mxu0 %v1353
      %1372 = vmatprep.subr.bf16.mxu0 0
      %1373 = vmatpush1.bf16.msra.mxu0 %v1354
      %1374 = vmatprep.subr.bf16.mxu0 0
      %1375 = vmatpush1.bf16.msra.mxu0 %v1355
      %1376 = vmatprep.subr.bf16.mxu0 0
      %1377 = vmatpush1.bf16.msra.mxu0 %v1356
      %1378 = vmatprep.subr.bf16.mxu0 0
      %1379 = vmatpush1.bf16.msra.mxu0 %v1357
      %1380 = vmatprep.subr.bf16.mxu0 0
      %1381 = vmatpush1.bf16.msra.mxu0 %v1358
      %1382 = vmatprep.subr.bf16.mxu0 0
      %1383 = vmatpush1.bf16.msra.mxu0 %v1359
      %1384 = vmatprep.subr.bf16.mxu0 0
      %1385 = vmatpush1.bf16.msra.mxu0 0
      %1386 = vmatprep.subr.bf16.mxu0 0
      %1387 = vmatpush1.bf16.msra.mxu0 0
      %1388 = vmatprep.subr.bf16.mxu0 0
      %1389 = vmatpush1.bf16.msra.mxu0 0
      %1390 = vmatprep.subr.bf16.mxu0 0
      %1391 = vmatpush1.bf16.msra.mxu0 0
      %1392 = vmatprep.subr.bf16.mxu0 0
      %1393 = vmatpush1.bf16.msra.mxu0 0
      %1394 = vmatprep.subr.bf16.mxu0 0
      %1395 = vmatpush1.bf16.msra.mxu0 0
      %1396 = vmatprep.subr.bf16.mxu0 0
      %1397 = vmatpush1.bf16.msra.mxu0 0
      %1398 = vmatprep.subr.bf16.mxu0 0
      %1399 = vmatpush1.bf16.msra.mxu0 0
      %1400 = vmatprep.mubr.bf16.mxu0 0
      %1401 = vmatmul.mubr.bf16.gmra.mrb[0].mxu0 %v1304
      %v1402 = vpop.f32.mrb[0].mxu0
      %v1403 = vadd.f32 0.0, %v1402
      %v1404 = vpop.f32.mrb[0].mxu0
      %v1405 = vpop.f32.mrb[0].mxu0
      %v1406 = vadd.f32 0.0, %v1405
      %v1407 = vpop.f32.mrb[0].mxu0
      %1408 = vmatprep.mubr.bf16.mxu0 0
      %1409 = vmatmul.mubr.bf16.gmra.mrb[0].mxu0 %v1305
      %v1410 = vpop.f32.mrb[0].mxu0
      %v1411 = vadd.f32 0.0, %v1410
      %v1412 = vpop.f32.mrb[0].mxu0
      %v1413 = vpop.f32.mrb[0].mxu0
      %v1414 = vadd.f32 0.0, %v1413
      %v1415 = vpop.f32.mrb[0].mxu0
      %1416 = vmatprep.mubr.bf16.mxu0 0
      %1417 = vmatmul.mubr.bf16.gmra.mrb[0].mxu0 %v1306
      %v1418 = vpop.f32.mrb[0].mxu0
      %v1419 = vadd.f32 0.0, %v1418
      %v1420 = vpop.f32.mrb[0].mxu0
      %v1421 = vpop.f32.mrb[0].mxu0
      %v1422 = vadd.f32 0.0, %v1421
      %v1423 = vpop.f32.mrb[0].mxu0
      %1424 = vmatprep.mubr.bf16.mxu0 0
      %1425 = vmatmul.mubr.bf16.gmra.mrb[0].mxu0 %v1307
      %v1426 = vpop.f32.mrb[0].mxu0
      %v1427 = vadd.f32 0.0, %v1426
      %v1428 = vpop.f32.mrb[0].mxu0
      %v1429 = vpop.f32.mrb[0].mxu0
      %v1430 = vadd.f32 0.0, %v1429
      %v1431 = vpop.f32.mrb[0].mxu0
      %1432 = vmatprep.mubr.bf16.mxu0 0
      %1433 = vmatmul.mubr.bf16.gmra.mrb[0].mxu0 %v1308
      %v1434 = vpop.f32.mrb[0].mxu0
      %v1435 = vadd.f32 0.0, %v1434
      %v1436 = vpop.f32.mrb[0].mxu0
      %v1437 = vpop.f32.mrb[0].mxu0
      %v1438 = vadd.f32 0.0, %v1437
      %v1439 = vpop.f32.mrb[0].mxu0
      %1440 = vmatprep.mubr.bf16.mxu0 0
      %1441 = vmatmul.mubr.bf16.gmra.mrb[0].mxu0 %v1309
      %v1442 = vpop.f32.mrb[0].mxu0
      %v1443 = vadd.f32 0.0, %v1442
      %v1444 = vpop.f32.mrb[0].mxu0
      %v1445 = vpop.f32.mrb[0].mxu0
      %v1446 = vadd.f32 0.0, %v1445
      %v1447 = vpop.f32.mrb[0].mxu0
      %1448 = vmatprep.mubr.bf16.mxu0 0
      %1449 = vmatmul.mubr.bf16.gmra.mrb[0].mxu0 %v1310
      %v1450 = vpop.f32.mrb[0].mxu0
      %v1451 = vadd.f32 0.0, %v1450
      %v1452 = vpop.f32.mrb[0].mxu0
      %v1453 = vpop.f32.mrb[0].mxu0
      %v1454 = vadd.f32 0.0, %v1453
      %v1455 = vpop.f32.mrb[0].mxu0
      %1456 = vmatprep.mubr.bf16.mxu0 0
      %1457 = vmatmul.mubr.bf16.gmra.mrb[0].mxu0 %v1311
      %v1458 = vpop.f32.mrb[0].mxu0
      %v1459 = vadd.f32 0.0, %v1458
      %v1460 = vpop.f32.mrb[0].mxu0
      %v1461 = vpop.f32.mrb[0].mxu0
      %v1462 = vadd.f32 0.0, %v1461
      %v1463 = vpop.f32.mrb[0].mxu0
      %1464 = vdwg.mxu0
      %v1465 = vadd.f32 %v1222, %v1403
      %v1466 = vadd.f32 %v1223, %v1406
      %v1467 = vadd.f32 %v1224, %v1411
      %v1468 = vadd.f32 %v1225, %v1414
      %v1469 = vadd.f32 %v1226, %v1419
      %v1470 = vadd.f32 %v1227, %v1422
      %v1471 = vadd.f32 %v1228, %v1427
      %v1472 = vadd.f32 %v1229, %v1430
      %v1473 = vadd.f32 %v1230, %v1435
      %v1474 = vadd.f32 %v1231, %v1438
      %v1475 = vadd.f32 %v1232, %v1443
      %v1476 = vadd.f32 %v1233, %v1446
      %v1477 = vadd.f32 %v1234, %v1451
      %v1478 = vadd.f32 %v1235, %v1454
      %v1479 = vadd.f32 %v1236, %v1459
      %v1480 = vadd.f32 %v1237, %v1462
      %v1481 = vld [vmem:[%s1238] sm:$0xf]
      %v1482 = vld [vmem:[%s1238 + $0x4] sm:$0xf]
      %v1483 = vld [vmem:[%s1238 + $0x8] sm:$0x1]
      %v1484 = vld [vmem:[%s1238 + $0xc] sm:$0xf]
      %v1485 = vld [vmem:[%s1238 + $0x10] sm:$0xf]
      %v1486 = vld [vmem:[%s1238 + $0x14] sm:$0x1]
      %v1487 = vld [vmem:[%s1238 + $0x18] sm:$0xf]
      %v1488 = vld [vmem:[%s1238 + $0x1c] sm:$0xf]
      %v1489 = vld [vmem:[%s1238 + $0x20] sm:$0x1]
      %v1490 = vld [vmem:[%s1238 + $0x24] sm:$0xf]
      %v1491 = vld [vmem:[%s1238 + $0x28] sm:$0xf]
      %v1492 = vld [vmem:[%s1238 + $0x2c] sm:$0x1]
      %v1493 = vld [vmem:[%s1238 + $0x30] sm:$0xf]
      %v1494 = vld [vmem:[%s1238 + $0x34] sm:$0xf]
      %v1495 = vld [vmem:[%s1238 + $0x38] sm:$0x1]
      %v1496 = vld [vmem:[%s1238 + $0x3c] sm:$0xf]
      %v1497 = vld [vmem:[%s1238 + $0x40] sm:$0xf]
      %v1498 = vld [vmem:[%s1238 + $0x44] sm:$0x1]
      %v1499 = vld [vmem:[%s1238 + $0x48] sm:$0xf]
      %v1500 = vld [vmem:[%s1238 + $0x4c] sm:$0xf]
      %v1501 = vld [vmem:[%s1238 + $0x50] sm:$0x1]
      %v1502 = vld [vmem:[%s1238 + $0x54] sm:$0xf]
      %v1503 = vld [vmem:[%s1238 + $0x58] sm:$0xf]
      %v1504 = vld [vmem:[%s1238 + $0x5c] sm:$0x1]
      %v1506 = vshrl.u32 %v1481, 16
      %v1508 = vrot.slane %v1506, 4
      %v1509 = vshll.u32 %v1481, 16
      %v1511 = vrot.slane %v1509, 5
      %v1512 = vor.u32 %v1508, %v1511
      %v1513 = vrot.slane %v1512, 4
      %v1515 = vshll.u32 %v1482, 16
      %v1517 = vrot.slane %v1515, 5
      %v1518 = vsel %vm365, %v1513, %v1517
      %v1519 = vshrl.u32 %v1482, 16
      %v1521 = vrot.slane %v1519, 4
      %v1522 = vor.u32 %v1521, %v1517
      %v1523 = vrot.slane %v1522, 4
      %v1525 = vshll.u32 %v1483, 16
      %v1527 = vrot.slane %v1525, 5
      %v1528 = vsel %vm365, %v1523, %v1527
      %v1530 = vshrl.u32 %v1484, 16
      %v1532 = vrot.slane %v1530, 4
      %v1533 = vshll.u32 %v1484, 16
      %v1535 = vrot.slane %v1533, 5
      %v1536 = vor.u32 %v1532, %v1535
      %v1537 = vrot.slane %v1536, 4
      %v1539 = vshll.u32 %v1485, 16
      %v1541 = vrot.slane %v1539, 5
      %v1542 = vsel %vm365, %v1537, %v1541
      %v1543 = vshrl.u32 %v1485, 16
      %v1545 = vrot.slane %v1543, 4
      %v1546 = vor.u32 %v1545, %v1541
      %v1547 = vrot.slane %v1546, 4
      %v1549 = vshll.u32 %v1486, 16
      %v1551 = vrot.slane %v1549, 5
      %v1552 = vsel %vm365, %v1547, %v1551
      %v1554 = vshrl.u32 %v1487, 16
      %v1556 = vrot.slane %v1554, 4
      %v1557 = vshll.u32 %v1487, 16
      %v1559 = vrot.slane %v1557, 5
      %v1560 = vor.u32 %v1556, %v1559
      %v1561 = vrot.slane %v1560, 4
      %v1563 = vshll.u32 %v1488, 16
      %v1565 = vrot.slane %v1563, 5
      %v1566 = vsel %vm365, %v1561, %v1565
      %v1567 = vshrl.u32 %v1488, 16
      %v1569 = vrot.slane %v1567, 4
      %v1570 = vor.u32 %v1569, %v1565
      %v1571 = vrot.slane %v1570, 4
      %v1573 = vshll.u32 %v1489, 16
      %v1575 = vrot.slane %v1573, 5
      %v1576 = vsel %vm365, %v1571, %v1575
      %v1578 = vshrl.u32 %v1490, 16
      %v1580 = vrot.slane %v1578, 4
      %v1581 = vshll.u32 %v1490, 16
      %v1583 = vrot.slane %v1581, 5
      %v1584 = vor.u32 %v1580, %v1583
      %v1585 = vrot.slane %v1584, 4
      %v1587 = vshll.u32 %v1491, 16
      %v1589 = vrot.slane %v1587, 5
      %v1590 = vsel %vm365, %v1585, %v1589
      %v1591 = vshrl.u32 %v1491, 16
      %v1593 = vrot.slane %v1591, 4
      %v1594 = vor.u32 %v1593, %v1589
      %v1595 = vrot.slane %v1594, 4
      %v1597 = vshll.u32 %v1492, 16
      %v1599 = vrot.slane %v1597, 5
      %v1600 = vsel %vm365, %v1595, %v1599
      %v1602 = vshrl.u32 %v1493, 16
      %v1604 = vrot.slane %v1602, 4
      %v1605 = vshll.u32 %v1493, 16
      %v1607 = vrot.slane %v1605, 5
      %v1608 = vor.u32 %v1604, %v1607
      %v1609 = vrot.slane %v1608, 4
      %v1611 = vshll.u32 %v1494, 16
      %v1613 = vrot.slane %v1611, 5
      %v1614 = vsel %vm365, %v1609, %v1613
      %v1615 = vshrl.u32 %v1494, 16
      %v1617 = vrot.slane %v1615, 4
      %v1618 = vor.u32 %v1617, %v1613
      %v1619 = vrot.slane %v1618, 4
      %v1621 = vshll.u32 %v1495, 16
      %v1623 = vrot.slane %v1621, 5
      %v1624 = vsel %vm365, %v1619, %v1623
      %v1626 = vshrl.u32 %v1496, 16
      %v1628 = vrot.slane %v1626, 4
      %v1629 = vshll.u32 %v1496, 16
      %v1631 = vrot.slane %v1629, 5
      %v1632 = vor.u32 %v1628, %v1631
      %v1633 = vrot.slane %v1632, 4
      %v1635 = vshll.u32 %v1497, 16
      %v1637 = vrot.slane %v1635, 5
      %v1638 = vsel %vm365, %v1633, %v1637
      %v1639 = vshrl.u32 %v1497, 16
      %v1641 = vrot.slane %v1639, 4
      %v1642 = vor.u32 %v1641, %v1637
      %v1643 = vrot.slane %v1642, 4
      %v1645 = vshll.u32 %v1498, 16
      %v1647 = vrot.slane %v1645, 5
      %v1648 = vsel %vm365, %v1643, %v1647
      %v1650 = vshrl.u32 %v1499, 16
      %v1652 = vrot.slane %v1650, 4
      %v1653 = vshll.u32 %v1499, 16
      %v1655 = vrot.slane %v1653, 5
      %v1656 = vor.u32 %v1652, %v1655
      %v1657 = vrot.slane %v1656, 4
      %v1659 = vshll.u32 %v1500, 16
      %v1661 = vrot.slane %v1659, 5
      %v1662 = vsel %vm365, %v1657, %v1661
      %v1663 = vshrl.u32 %v1500, 16
      %v1665 = vrot.slane %v1663, 4
      %v1666 = vor.u32 %v1665, %v1661
      %v1667 = vrot.slane %v1666, 4
      %v1669 = vshll.u32 %v1501, 16
      %v1671 = vrot.slane %v1669, 5
      %v1672 = vsel %vm365, %v1667, %v1671
      %v1674 = vshrl.u32 %v1502, 16
      %v1676 = vrot.slane %v1674, 4
      %v1677 = vshll.u32 %v1502, 16
      %v1679 = vrot.slane %v1677, 5
      %v1680 = vor.u32 %v1676, %v1679
      %v1681 = vrot.slane %v1680, 4
      %v1683 = vshll.u32 %v1503, 16
      %v1685 = vrot.slane %v1683, 5
      %v1686 = vsel %vm365, %v1681, %v1685
      %v1687 = vshrl.u32 %v1503, 16
      %v1689 = vrot.slane %v1687, 4
      %v1690 = vor.u32 %v1689, %v1685
      %v1691 = vrot.slane %v1690, 4
      %v1693 = vshll.u32 %v1504, 16
      %v1695 = vrot.slane %v1693, 5
      %v1696 = vsel %vm365, %v1691, %v1695
      %s1697 = scalar_lea.vmem %s2, 256
      %v1698 = vld [vmem:[%s1697] sm:$0xf]
      %v1699 = vld [vmem:[%s1697 + $0x4] sm:$0xf]
      %v1700 = vld [vmem:[%s1697 + $0x8] sm:$0xf]
      %v1701 = vld [vmem:[%s1697 + $0xc] sm:$0xf]
      %v1702 = vld [vmem:[%s1697 + $0x10] sm:$0xf]
      %v1703 = vld [vmem:[%s1697 + $0x14] sm:$0xf]
      %v1704 = vld [vmem:[%s1697 + $0x18] sm:$0xf]
      %v1705 = vld [vmem:[%s1697 + $0x1c] sm:$0xf]
      %v1706 = vld [vmem:[%s1697 + $0x20] sm:$0xf]
      %v1707 = vld [vmem:[%s1697 + $0x24] sm:$0xf]
      %v1708 = vld [vmem:[%s1697 + $0x28] sm:$0xf]
      %v1709 = vld [vmem:[%s1697 + $0x2c] sm:$0xf]
      %v1710 = vld [vmem:[%s1697 + $0x30] sm:$0xf]
      %v1711 = vld [vmem:[%s1697 + $0x34] sm:$0xf]
      %v1712 = vld [vmem:[%s1697 + $0x38] sm:$0xf]
      %v1713 = vld [vmem:[%s1697 + $0x3c] sm:$0xf]
      %v1714 = vunpack.c.l.b16 %v1518
      %v1715 = vunpack.c.l.b16 %v1528
      %v1716 = vunpack.c.l.b16 %v1542
      %v1717 = vunpack.c.l.b16 %v1552
      %v1718 = vunpack.c.l.b16 %v1566
      %v1719 = vunpack.c.l.b16 %v1576
      %v1720 = vunpack.c.l.b16 %v1590
      %v1721 = vunpack.c.l.b16 %v1600
      %v1722 = vunpack.c.l.b16 %v1614
      %v1723 = vunpack.c.l.b16 %v1624
      %v1724 = vunpack.c.l.b16 %v1638
      %v1725 = vunpack.c.l.b16 %v1648
      %v1726 = vunpack.c.l.b16 %v1662
      %v1727 = vunpack.c.l.b16 %v1672
      %v1728 = vunpack.c.l.b16 %v1686
      %v1729 = vunpack.c.l.b16 %v1696
      %v1730 = vpack.c.b16 %v1715, %v1714
      %v1731 = vpack.c.b16 %v1717, %v1716
      %v1732 = vpack.c.b16 %v1719, %v1718
      %v1733 = vpack.c.b16 %v1721, %v1720
      %v1734 = vpack.c.b16 %v1723, %v1722
      %v1735 = vpack.c.b16 %v1725, %v1724
      %v1736 = vpack.c.b16 %v1727, %v1726
      %v1737 = vpack.c.b16 %v1729, %v1728
      %v1762 = vunpack.c.l.b16 %v1698
      %v1763 = vunpack.c.l.b16 %v1699
      %v1764 = vunpack.c.l.b16 %v1700
      %v1765 = vunpack.c.l.b16 %v1701
      %v1766 = vunpack.c.l.b16 %v1702
      %v1767 = vunpack.c.l.b16 %v1703
      %v1768 = vunpack.c.l.b16 %v1704
      %v1769 = vunpack.c.l.b16 %v1705
      %v1770 = vunpack.c.l.b16 %v1706
      %v1771 = vunpack.c.l.b16 %v1707
      %v1772 = vunpack.c.l.b16 %v1708
      %v1773 = vunpack.c.l.b16 %v1709
      %v1774 = vunpack.c.l.b16 %v1710
      %v1775 = vunpack.c.l.b16 %v1711
      %v1776 = vunpack.c.l.b16 %v1712
      %v1777 = vunpack.c.l.b16 %v1713
      %v1778 = vpack.c.b16 %v1763, %v1762
      %v1779 = vpack.c.b16 %v1765, %v1764
      %v1780 = vpack.c.b16 %v1767, %v1766
      %v1781 = vpack.c.b16 %v1769, %v1768
      %v1782 = vpack.c.b16 %v1771, %v1770
      %v1783 = vpack.c.b16 %v1773, %v1772
      %v1784 = vpack.c.b16 %v1775, %v1774
      %v1785 = vpack.c.b16 %v1777, %v1776
      %1794 = vmatprep.subr.bf16.mxu0 0
      %1795 = vmatpush1.bf16.msra.mxu0 %v1778
      %1796 = vmatprep.subr.bf16.mxu0 0
      %1797 = vmatpush1.bf16.msra.mxu0 %v1779
      %1798 = vmatprep.subr.bf16.mxu0 0
      %1799 = vmatpush1.bf16.msra.mxu0 %v1780
      %1800 = vmatprep.subr.bf16.mxu0 0
      %1801 = vmatpush1.bf16.msra.mxu0 %v1781
      %1802 = vmatprep.subr.bf16.mxu0 0
      %1803 = vmatpush1.bf16.msra.mxu0 %v1782
      %1804 = vmatprep.subr.bf16.mxu0 0
      %1805 = vmatpush1.bf16.msra.mxu0 %v1783
      %1806 = vmatprep.subr.bf16.mxu0 0
      %1807 = vmatpush1.bf16.msra.mxu0 %v1784
      %1808 = vmatprep.subr.bf16.mxu0 0
      %1809 = vmatpush1.bf16.msra.mxu0 %v1785
      %1810 = vmatprep.subr.bf16.mxu0 0
      %1811 = vmatpush1.bf16.msra.mxu0 0
      %1812 = vmatprep.subr.bf16.mxu0 0
      %1813 = vmatpush1.bf16.msra.mxu0 0
      %1814 = vmatprep.subr.bf16.mxu0 0
      %1815 = vmatpush1.bf16.msra.mxu0 0
      %1816 = vmatprep.subr.bf16.mxu0 0
      %1817 = vmatpush1.bf16.msra.mxu0 0
      %1818 = vmatprep.subr.bf16.mxu0 0
      %1819 = vmatpush1.bf16.msra.mxu0 0
      %1820 = vmatprep.subr.bf16.mxu0 0
      %1821 = vmatpush1.bf16.msra.mxu0 0
      %1822 = vmatprep.subr.bf16.mxu0 0
      %1823 = vmatpush1.bf16.msra.mxu0 0
      %1824 = vmatprep.subr.bf16.mxu0 0
      %1825 = vmatpush1.bf16.msra.mxu0 0
      %1826 = vmatprep.mubr.bf16.mxu0 0
      %1827 = vmatmul.mubr.bf16.gmra.mrb[0].mxu0 %v1730
      %v1828 = vpop.f32.mrb[0].mxu0
      %v1829 = vadd.f32 0.0, %v1828
      %v1830 = vpop.f32.mrb[0].mxu0
      %v1831 = vpop.f32.mrb[0].mxu0
      %v1832 = vadd.f32 0.0, %v1831
      %v1833 = vpop.f32.mrb[0].mxu0
      %1834 = vmatprep.mubr.bf16.mxu0 0
      %1835 = vmatmul.mubr.bf16.gmra.mrb[0].mxu0 %v1731
      %v1836 = vpop.f32.mrb[0].mxu0
      %v1837 = vadd.f32 0.0, %v1836
      %v1838 = vpop.f32.mrb[0].mxu0
      %v1839 = vpop.f32.mrb[0].mxu0
      %v1840 = vadd.f32 0.0, %v1839
      %v1841 = vpop.f32.mrb[0].mxu0
      %1842 = vmatprep.mubr.bf16.mxu0 0
      %1843 = vmatmul.mubr.bf16.gmra.mrb[0].mxu0 %v1732
      %v1844 = vpop.f32.mrb[0].mxu0
      %v1845 = vadd.f32 0.0, %v1844
      %v1846 = vpop.f32.mrb[0].mxu0
      %v1847 = vpop.f32.mrb[0].mxu0
      %v1848 = vadd.f32 0.0, %v1847
      %v1849 = vpop.f32.mrb[0].mxu0
      %1850 = vmatprep.mubr.bf16.mxu0 0
      %1851 = vmatmul.mubr.bf16.gmra.mrb[0].mxu0 %v1733
      %v1852 = vpop.f32.mrb[0].mxu0
      %v1853 = vadd.f32 0.0, %v1852
      %v1854 = vpop.f32.mrb[0].mxu0
      %v1855 = vpop.f32.mrb[0].mxu0
      %v1856 = vadd.f32 0.0, %v1855
      %v1857 = vpop.f32.mrb[0].mxu0
      %1858 = vmatprep.mubr.bf16.mxu0 0
      %1859 = vmatmul.mubr.bf16.gmra.mrb[0].mxu0 %v1734
      %v1860 = vpop.f32.mrb[0].mxu0
      %v1861 = vadd.f32 0.0, %v1860
      %v1862 = vpop.f32.mrb[0].mxu0
      %v1863 = vpop.f32.mrb[0].mxu0
      %v1864 = vadd.f32 0.0, %v1863
      %v1865 = vpop.f32.mrb[0].mxu0
      %1866 = vmatprep.mubr.bf16.mxu0 0
      %1867 = vmatmul.mubr.bf16.gmra.mrb[0].mxu0 %v1735
      %v1868 = vpop.f32.mrb[0].mxu0
      %v1869 = vadd.f32 0.0, %v1868
      %v1870 = vpop.f32.mrb[0].mxu0
      %v1871 = vpop.f32.mrb[0].mxu0
      %v1872 = vadd.f32 0.0, %v1871
      %v1873 = vpop.f32.mrb[0].mxu0
      %1874 = vmatprep.mubr.bf16.mxu0 0
      %1875 = vmatmul.mubr.bf16.gmra.mrb[0].mxu0 %v1736
      %v1876 = vpop.f32.mrb[0].mxu0
      %v1877 = vadd.f32 0.0, %v1876
      %v1878 = vpop.f32.mrb[0].mxu0
      %v1879 = vpop.f32.mrb[0].mxu0
      %v1880 = vadd.f32 0.0, %v1879
      %v1881 = vpop.f32.mrb[0].mxu0
      %1882 = vmatprep.mubr.bf16.mxu0 0
      %1883 = vmatmul.mubr.bf16.gmra.mrb[0].mxu0 %v1737
      %v1884 = vpop.f32.mrb[0].mxu0
      %v1885 = vadd.f32 0.0, %v1884
      %v1886 = vpop.f32.mrb[0].mxu0
      %v1887 = vpop.f32.mrb[0].mxu0
      %v1888 = vadd.f32 0.0, %v1887
      %v1889 = vpop.f32.mrb[0].mxu0
      %1890 = vdwg.mxu0
      %v1891 = vadd.f32 %v1465, %v1829
      %v1892 = vadd.f32 %v1466, %v1832
      %v1893 = vadd.f32 %v1467, %v1837
      %v1894 = vadd.f32 %v1468, %v1840
      %v1895 = vadd.f32 %v1469, %v1845
      %v1896 = vadd.f32 %v1470, %v1848
      %v1897 = vadd.f32 %v1471, %v1853
      %v1898 = vadd.f32 %v1472, %v1856
      %v1899 = vadd.f32 %v1473, %v1861
      %v1900 = vadd.f32 %v1474, %v1864
      %v1901 = vadd.f32 %v1475, %v1869
      %v1902 = vadd.f32 %v1476, %v1872
      %v1903 = vadd.f32 %v1477, %v1877
      %v1904 = vadd.f32 %v1478, %v1880
      %v1905 = vadd.f32 %v1479, %v1885
      %v1906 = vadd.f32 %v1480, %v1888
      %v1907 = vld [vmem:[%s1238] sm:$0xe]
      %v1908 = vld [vmem:[%s1238 + $0xc] sm:$0xe]
      %v1909 = vld [vmem:[%s1238 + $0x18] sm:$0xe]
      %v1910 = vld [vmem:[%s1238 + $0x24] sm:$0xe]
      %v1911 = vld [vmem:[%s1238 + $0x30] sm:$0xe]
      %v1912 = vld [vmem:[%s1238 + $0x3c] sm:$0xe]
      %v1913 = vld [vmem:[%s1238 + $0x48] sm:$0xe]
      %v1914 = vld [vmem:[%s1238 + $0x54] sm:$0xe]
      %v1939 = vrot.slane %v1907, 5
      %v1940 = vrot.slane %v1939, 4
      %v1941 = vrot.slane %v1482, 5
      %v1942 = vsel %vm971, %v1940, %v1941
      %v1943 = vrot.slane %v1941, 4
      %v1944 = vrot.slane %v1483, 5
      %v1945 = vsel %vm971, %v1943, %v1944
      %v1946 = vrot.slane %v1908, 5
      %v1947 = vrot.slane %v1946, 4
      %v1948 = vrot.slane %v1485, 5
      %v1949 = vsel %vm971, %v1947, %v1948
      %v1950 = vrot.slane %v1948, 4
      %v1951 = vrot.slane %v1486, 5
      %v1952 = vsel %vm971, %v1950, %v1951
      %v1953 = vrot.slane %v1909, 5
      %v1954 = vrot.slane %v1953, 4
      %v1955 = vrot.slane %v1488, 5
      %v1956 = vsel %vm971, %v1954, %v1955
      %v1957 = vrot.slane %v1955, 4
      %v1958 = vrot.slane %v1489, 5
      %v1959 = vsel %vm971, %v1957, %v1958
      %v1960 = vrot.slane %v1910, 5
      %v1961 = vrot.slane %v1960, 4
      %v1962 = vrot.slane %v1491, 5
      %v1963 = vsel %vm971, %v1961, %v1962
      %v1964 = vrot.slane %v1962, 4
      %v1965 = vrot.slane %v1492, 5
      %v1966 = vsel %vm971, %v1964, %v1965
      %v1967 = vrot.slane %v1911, 5
      %v1968 = vrot.slane %v1967, 4
      %v1969 = vrot.slane %v1494, 5
      %v1970 = vsel %vm971, %v1968, %v1969
      %v1971 = vrot.slane %v1969, 4
      %v1972 = vrot.slane %v1495, 5
      %v1973 = vsel %vm971, %v1971, %v1972
      %v1974 = vrot.slane %v1912, 5
      %v1975 = vrot.slane %v1974, 4
      %v1976 = vrot.slane %v1497, 5
      %v1977 = vsel %vm971, %v1975, %v1976
      %v1978 = vrot.slane %v1976, 4
      %v1979 = vrot.slane %v1498, 5
      %v1980 = vsel %vm971, %v1978, %v1979
      %v1981 = vrot.slane %v1913, 5
      %v1982 = vrot.slane %v1981, 4
      %v1983 = vrot.slane %v1500, 5
      %v1984 = vsel %vm971, %v1982, %v1983
      %v1985 = vrot.slane %v1983, 4
      %v1986 = vrot.slane %v1501, 5
      %v1987 = vsel %vm971, %v1985, %v1986
      %v1988 = vrot.slane %v1914, 5
      %v1989 = vrot.slane %v1988, 4
      %v1990 = vrot.slane %v1503, 5
      %v1991 = vsel %vm971, %v1989, %v1990
      %v1992 = vrot.slane %v1990, 4
      %v1993 = vrot.slane %v1504, 5
      %v1994 = vsel %vm971, %v1992, %v1993
      %s1995 = scalar_lea.vmem %s2, 320
      %v1996 = vld [vmem:[%s1995] sm:$0xf]
      %v1997 = vld [vmem:[%s1995 + $0x4] sm:$0xf]
      %v1998 = vld [vmem:[%s1995 + $0x8] sm:$0xf]
      %v1999 = vld [vmem:[%s1995 + $0xc] sm:$0xf]
      %v2000 = vld [vmem:[%s1995 + $0x10] sm:$0xf]
      %v2001 = vld [vmem:[%s1995 + $0x14] sm:$0xf]
      %v2002 = vld [vmem:[%s1995 + $0x18] sm:$0xf]
      %v2003 = vld [vmem:[%s1995 + $0x1c] sm:$0xf]
      %v2004 = vld [vmem:[%s1995 + $0x20] sm:$0xf]
      %v2005 = vld [vmem:[%s1995 + $0x24] sm:$0xf]
      %v2006 = vld [vmem:[%s1995 + $0x28] sm:$0xf]
      %v2007 = vld [vmem:[%s1995 + $0x2c] sm:$0xf]
      %v2008 = vld [vmem:[%s1995 + $0x30] sm:$0xf]
      %v2009 = vld [vmem:[%s1995 + $0x34] sm:$0xf]
      %v2010 = vld [vmem:[%s1995 + $0x38] sm:$0xf]
      %v2011 = vld [vmem:[%s1995 + $0x3c] sm:$0xf]
      %v2012 = vunpack.c.l.b16 %v1942
      %v2013 = vunpack.c.l.b16 %v1945
      %v2014 = vunpack.c.l.b16 %v1949
      %v2015 = vunpack.c.l.b16 %v1952
      %v2016 = vunpack.c.l.b16 %v1956
      %v2017 = vunpack.c.l.b16 %v1959
      %v2018 = vunpack.c.l.b16 %v1963
      %v2019 = vunpack.c.l.b16 %v1966
      %v2020 = vunpack.c.l.b16 %v1970
      %v2021 = vunpack.c.l.b16 %v1973
      %v2022 = vunpack.c.l.b16 %v1977
      %v2023 = vunpack.c.l.b16 %v1980
      %v2024 = vunpack.c.l.b16 %v1984
      %v2025 = vunpack.c.l.b16 %v1987
      %v2026 = vunpack.c.l.b16 %v1991
      %v2027 = vunpack.c.l.b16 %v1994
      %v2028 = vpack.c.b16 %v2013, %v2012
      %v2029 = vpack.c.b16 %v2015, %v2014
      %v2030 = vpack.c.b16 %v2017, %v2016
      %v2031 = vpack.c.b16 %v2019, %v2018
      %v2032 = vpack.c.b16 %v2021, %v2020
      %v2033 = vpack.c.b16 %v2023, %v2022
      %v2034 = vpack.c.b16 %v2025, %v2024
      %v2035 = vpack.c.b16 %v2027, %v2026
      %v2060 = vunpack.c.l.b16 %v1996
      %v2061 = vunpack.c.l.b16 %v1997
      %v2062 = vunpack.c.l.b16 %v1998
      %v2063 = vunpack.c.l.b16 %v1999
      %v2064 = vunpack.c.l.b16 %v2000
      %v2065 = vunpack.c.l.b16 %v2001
      %v2066 = vunpack.c.l.b16 %v2002
      %v2067 = vunpack.c.l.b16 %v2003
      %v2068 = vunpack.c.l.b16 %v2004
      %v2069 = vunpack.c.l.b16 %v2005
      %v2070 = vunpack.c.l.b16 %v2006
      %v2071 = vunpack.c.l.b16 %v2007
      %v2072 = vunpack.c.l.b16 %v2008
      %v2073 = vunpack.c.l.b16 %v2009
      %v2074 = vunpack.c.l.b16 %v2010
      %v2075 = vunpack.c.l.b16 %v2011
      %v2076 = vpack.c.b16 %v2061, %v2060
      %v2077 = vpack.c.b16 %v2063, %v2062
      %v2078 = vpack.c.b16 %v2065, %v2064
      %v2079 = vpack.c.b16 %v2067, %v2066
      %v2080 = vpack.c.b16 %v2069, %v2068
      %v2081 = vpack.c.b16 %v2071, %v2070
      %v2082 = vpack.c.b16 %v2073, %v2072
      %v2083 = vpack.c.b16 %v2075, %v2074
      %2092 = vmatprep.subr.bf16.mxu0 0
      %2093 = vmatpush1.bf16.msra.mxu0 %v2076
      %2094 = vmatprep.subr.bf16.mxu0 0
      %2095 = vmatpush1.bf16.msra.mxu0 %v2077
      %2096 = vmatprep.subr.bf16.mxu0 0
      %2097 = vmatpush1.bf16.msra.mxu0 %v2078
      %2098 = vmatprep.subr.bf16.mxu0 0
      %2099 = vmatpush1.bf16.msra.mxu0 %v2079
      %2100 = vmatprep.subr.bf16.mxu0 0
      %2101 = vmatpush1.bf16.msra.mxu0 %v2080
      %2102 = vmatprep.subr.bf16.mxu0 0
      %2103 = vmatpush1.bf16.msra.mxu0 %v2081
      %2104 = vmatprep.subr.bf16.mxu0 0
      %2105 = vmatpush1.bf16.msra.mxu0 %v2082
      %2106 = vmatprep.subr.bf16.mxu0 0
      %2107 = vmatpush1.bf16.msra.mxu0 %v2083
      %2108 = vmatprep.subr.bf16.mxu0 0
      %2109 = vmatpush1.bf16.msra.mxu0 0
      %2110 = vmatprep.subr.bf16.mxu0 0
      %2111 = vmatpush1.bf16.msra.mxu0 0
      %2112 = vmatprep.subr.bf16.mxu0 0
      %2113 = vmatpush1.bf16.msra.mxu0 0
      %2114 = vmatprep.subr.bf16.mxu0 0
      %2115 = vmatpush1.bf16.msra.mxu0 0
      %2116 = vmatprep.subr.bf16.mxu0 0
      %2117 = vmatpush1.bf16.msra.mxu0 0
      %2118 = vmatprep.subr.bf16.mxu0 0
      %2119 = vmatpush1.bf16.msra.mxu0 0
      %2120 = vmatprep.subr.bf16.mxu0 0
      %2121 = vmatpush1.bf16.msra.mxu0 0
      %2122 = vmatprep.subr.bf16.mxu0 0
      %2123 = vmatpush1.bf16.msra.mxu0 0
      %2124 = vmatprep.mubr.bf16.mxu0 0
      %2125 = vmatmul.mubr.bf16.gmra.mrb[0].mxu0 %v2028
      %v2126 = vpop.f32.mrb[0].mxu0
      %v2127 = vadd.f32 0.0, %v2126
      %v2128 = vpop.f32.mrb[0].mxu0
      %v2129 = vpop.f32.mrb[0].mxu0
      %v2130 = vadd.f32 0.0, %v2129
      %v2131 = vpop.f32.mrb[0].mxu0
      %2132 = vmatprep.mubr.bf16.mxu0 0
      %2133 = vmatmul.mubr.bf16.gmra.mrb[0].mxu0 %v2029
      %v2134 = vpop.f32.mrb[0].mxu0
      %v2135 = vadd.f32 0.0, %v2134
      %v2136 = vpop.f32.mrb[0].mxu0
      %v2137 = vpop.f32.mrb[0].mxu0
      %v2138 = vadd.f32 0.0, %v2137
      %v2139 = vpop.f32.mrb[0].mxu0
      %2140 = vmatprep.mubr.bf16.mxu0 0
      %2141 = vmatmul.mubr.bf16.gmra.mrb[0].mxu0 %v2030
      %v2142 = vpop.f32.mrb[0].mxu0
      %v2143 = vadd.f32 0.0, %v2142
      %v2144 = vpop.f32.mrb[0].mxu0
      %v2145 = vpop.f32.mrb[0].mxu0
      %v2146 = vadd.f32 0.0, %v2145
      %v2147 = vpop.f32.mrb[0].mxu0
      %2148 = vmatprep.mubr.bf16.mxu0 0
      %2149 = vmatmul.mubr.bf16.gmra.mrb[0].mxu0 %v2031
      %v2150 = vpop.f32.mrb[0].mxu0
      %v2151 = vadd.f32 0.0, %v2150
      %v2152 = vpop.f32.mrb[0].mxu0
      %v2153 = vpop.f32.mrb[0].mxu0
      %v2154 = vadd.f32 0.0, %v2153
      %v2155 = vpop.f32.mrb[0].mxu0
      %2156 = vmatprep.mubr.bf16.mxu0 0
      %2157 = vmatmul.mubr.bf16.gmra.mrb[0].mxu0 %v2032
      %v2158 = vpop.f32.mrb[0].mxu0
      %v2159 = vadd.f32 0.0, %v2158
      %v2160 = vpop.f32.mrb[0].mxu0
      %v2161 = vpop.f32.mrb[0].mxu0
      %v2162 = vadd.f32 0.0, %v2161
      %v2163 = vpop.f32.mrb[0].mxu0
      %2164 = vmatprep.mubr.bf16.mxu0 0
      %2165 = vmatmul.mubr.bf16.gmra.mrb[0].mxu0 %v2033
      %v2166 = vpop.f32.mrb[0].mxu0
      %v2167 = vadd.f32 0.0, %v2166
      %v2168 = vpop.f32.mrb[0].mxu0
      %v2169 = vpop.f32.mrb[0].mxu0
      %v2170 = vadd.f32 0.0, %v2169
      %v2171 = vpop.f32.mrb[0].mxu0
      %2172 = vmatprep.mubr.bf16.mxu0 0
      %2173 = vmatmul.mubr.bf16.gmra.mrb[0].mxu0 %v2034
      %v2174 = vpop.f32.mrb[0].mxu0
      %v2175 = vadd.f32 0.0, %v2174
      %v2176 = vpop.f32.mrb[0].mxu0
      %v2177 = vpop.f32.mrb[0].mxu0
      %v2178 = vadd.f32 0.0, %v2177
      %v2179 = vpop.f32.mrb[0].mxu0
      %2180 = vmatprep.mubr.bf16.mxu0 0
      %2181 = vmatmul.mubr.bf16.gmra.mrb[0].mxu0 %v2035
      %v2182 = vpop.f32.mrb[0].mxu0
      %v2183 = vadd.f32 0.0, %v2182
      %v2184 = vpop.f32.mrb[0].mxu0
      %v2185 = vpop.f32.mrb[0].mxu0
      %v2186 = vadd.f32 0.0, %v2185
      %v2187 = vpop.f32.mrb[0].mxu0
      %2188 = vdwg.mxu0
      %v2189 = vadd.f32 %v1891, %v2127
      %v2190 = vadd.f32 %v1892, %v2130
      %v2191 = vadd.f32 %v1893, %v2135
      %v2192 = vadd.f32 %v1894, %v2138
      %v2193 = vadd.f32 %v1895, %v2143
      %v2194 = vadd.f32 %v1896, %v2146
      %v2195 = vadd.f32 %v1897, %v2151
      %v2196 = vadd.f32 %v1898, %v2154
      %v2197 = vadd.f32 %v1899, %v2159
      %v2198 = vadd.f32 %v1900, %v2162
      %v2199 = vadd.f32 %v1901, %v2167
      %v2200 = vadd.f32 %v1902, %v2170
      %v2201 = vadd.f32 %v1903, %v2175
      %v2202 = vadd.f32 %v1904, %v2178
      %v2203 = vadd.f32 %v1905, %v2183
      %v2204 = vadd.f32 %v1906, %v2186
      %s2205 = scalar_lea.vmem %s303, 24
      %v2206 = vld [vmem:[%s2205] sm:$0xf]
      %v2207 = vld [vmem:[%s2205 + $0x4] sm:$0xf]
      %v2208 = vld [vmem:[%s2205 + $0xc] sm:$0xf]
      %v2209 = vld [vmem:[%s2205 + $0x10] sm:$0xf]
      %v2210 = vld [vmem:[%s2205 + $0x18] sm:$0xf]
      %v2211 = vld [vmem:[%s2205 + $0x1c] sm:$0xf]
      %v2212 = vld [vmem:[%s2205 + $0x24] sm:$0xf]
      %v2213 = vld [vmem:[%s2205 + $0x28] sm:$0xf]
      %v2214 = vld [vmem:[%s2205 + $0x30] sm:$0xf]
      %v2215 = vld [vmem:[%s2205 + $0x34] sm:$0xf]
      %v2216 = vld [vmem:[%s2205 + $0x3c] sm:$0xf]
      %v2217 = vld [vmem:[%s2205 + $0x40] sm:$0xf]
      %v2218 = vld [vmem:[%s2205 + $0x48] sm:$0xf]
      %v2219 = vld [vmem:[%s2205 + $0x4c] sm:$0xf]
      %v2220 = vld [vmem:[%s2205 + $0x54] sm:$0xf]
      %v2221 = vld [vmem:[%s2205 + $0x58] sm:$0xf]
      %s2222 = scalar_lea.vmem %s2, 384
      %v2223 = vld [vmem:[%s2222] sm:$0xf]
      %v2224 = vld [vmem:[%s2222 + $0x4] sm:$0xf]
      %v2225 = vld [vmem:[%s2222 + $0x8] sm:$0xf]
      %v2226 = vld [vmem:[%s2222 + $0xc] sm:$0xf]
      %v2227 = vld [vmem:[%s2222 + $0x10] sm:$0xf]
      %v2228 = vld [vmem:[%s2222 + $0x14] sm:$0xf]
      %v2229 = vld [vmem:[%s2222 + $0x18] sm:$0xf]
      %v2230 = vld [vmem:[%s2222 + $0x1c] sm:$0xf]
      %v2231 = vld [vmem:[%s2222 + $0x20] sm:$0xf]
      %v2232 = vld [vmem:[%s2222 + $0x24] sm:$0xf]
      %v2233 = vld [vmem:[%s2222 + $0x28] sm:$0xf]
      %v2234 = vld [vmem:[%s2222 + $0x2c] sm:$0xf]
      %v2235 = vld [vmem:[%s2222 + $0x30] sm:$0xf]
      %v2236 = vld [vmem:[%s2222 + $0x34] sm:$0xf]
      %v2237 = vld [vmem:[%s2222 + $0x38] sm:$0xf]
      %v2238 = vld [vmem:[%s2222 + $0x3c] sm:$0xf]
      %v2255 = vunpack.c.l.b16 %v2206
      %v2256 = vunpack.c.l.b16 %v2207
      %v2257 = vunpack.c.l.b16 %v2208
      %v2258 = vunpack.c.l.b16 %v2209
      %v2259 = vunpack.c.l.b16 %v2210
      %v2260 = vunpack.c.l.b16 %v2211
      %v2261 = vunpack.c.l.b16 %v2212
      %v2262 = vunpack.c.l.b16 %v2213
      %v2263 = vunpack.c.l.b16 %v2214
      %v2264 = vunpack.c.l.b16 %v2215
      %v2265 = vunpack.c.l.b16 %v2216
      %v2266 = vunpack.c.l.b16 %v2217
      %v2267 = vunpack.c.l.b16 %v2218
      %v2268 = vunpack.c.l.b16 %v2219
      %v2269 = vunpack.c.l.b16 %v2220
      %v2270 = vunpack.c.l.b16 %v2221
      %v2271 = vpack.c.b16 %v2256, %v2255
      %v2272 = vpack.c.b16 %v2258, %v2257
      %v2273 = vpack.c.b16 %v2260, %v2259
      %v2274 = vpack.c.b16 %v2262, %v2261
      %v2275 = vpack.c.b16 %v2264, %v2263
      %v2276 = vpack.c.b16 %v2266, %v2265
      %v2277 = vpack.c.b16 %v2268, %v2267
      %v2278 = vpack.c.b16 %v2270, %v2269
      %v2303 = vunpack.c.l.b16 %v2223
      %v2304 = vunpack.c.l.b16 %v2224
      %v2305 = vunpack.c.l.b16 %v2225
      %v2306 = vunpack.c.l.b16 %v2226
      %v2307 = vunpack.c.l.b16 %v2227
      %v2308 = vunpack.c.l.b16 %v2228
      %v2309 = vunpack.c.l.b16 %v2229
      %v2310 = vunpack.c.l.b16 %v2230
      %v2311 = vunpack.c.l.b16 %v2231
      %v2312 = vunpack.c.l.b16 %v2232
      %v2313 = vunpack.c.l.b16 %v2233
      %v2314 = vunpack.c.l.b16 %v2234
      %v2315 = vunpack.c.l.b16 %v2235
      %v2316 = vunpack.c.l.b16 %v2236
      %v2317 = vunpack.c.l.b16 %v2237
      %v2318 = vunpack.c.l.b16 %v2238
      %v2319 = vpack.c.b16 %v2304, %v2303
      %v2320 = vpack.c.b16 %v2306, %v2305
      %v2321 = vpack.c.b16 %v2308, %v2307
      %v2322 = vpack.c.b16 %v2310, %v2309
      %v2323 = vpack.c.b16 %v2312, %v2311
      %v2324 = vpack.c.b16 %v2314, %v2313
      %v2325 = vpack.c.b16 %v2316, %v2315
      %v2326 = vpack.c.b16 %v2318, %v2317
      %2335 = vmatprep.subr.bf16.mxu0 0
      %2336 = vmatpush1.bf16.msra.mxu0 %v2319
      %2337 = vmatprep.subr.bf16.mxu0 0
      %2338 = vmatpush1.bf16.msra.mxu0 %v2320
      %2339 = vmatprep.subr.bf16.mxu0 0
      %2340 = vmatpush1.bf16.msra.mxu0 %v2321
      %2341 = vmatprep.subr.bf16.mxu0 0
      %2342 = vmatpush1.bf16.msra.mxu0 %v2322
      %2343 = vmatprep.subr.bf16.mxu0 0
      %2344 = vmatpush1.bf16.msra.mxu0 %v2323
      %2345 = vmatprep.subr.bf16.mxu0 0
      %2346 = vmatpush1.bf16.msra.mxu0 %v2324
      %2347 = vmatprep.subr.bf16.mxu0 0
      %2348 = vmatpush1.bf16.msra.mxu0 %v2325
      %2349 = vmatprep.subr.bf16.mxu0 0
      %2350 = vmatpush1.bf16.msra.mxu0 %v2326
      %2351 = vmatprep.subr.bf16.mxu0 0
      %2352 = vmatpush1.bf16.msra.mxu0 0
      %2353 = vmatprep.subr.bf16.mxu0 0
      %2354 = vmatpush1.bf16.msra.mxu0 0
      %2355 = vmatprep.subr.bf16.mxu0 0
      %2356 = vmatpush1.bf16.msra.mxu0 0
      %2357 = vmatprep.subr.bf16.mxu0 0
      %2358 = vmatpush1.bf16.msra.mxu0 0
      %2359 = vmatprep.subr.bf16.mxu0 0
      %2360 = vmatpush1.bf16.msra.mxu0 0
      %2361 = vmatprep.subr.bf16.mxu0 0
      %2362 = vmatpush1.bf16.msra.mxu0 0
      %2363 = vmatprep.subr.bf16.mxu0 0
      %2364 = vmatpush1.bf16.msra.mxu0 0
      %2365 = vmatprep.subr.bf16.mxu0 0
      %2366 = vmatpush1.bf16.msra.mxu0 0
      %2367 = vmatprep.mubr.bf16.mxu0 0
      %2368 = vmatmul.mubr.bf16.gmra.mrb[0].mxu0 %v2271
      %v2369 = vpop.f32.mrb[0].mxu0
      %v2370 = vadd.f32 0.0, %v2369
      %v2371 = vpop.f32.mrb[0].mxu0
      %v2372 = vpop.f32.mrb[0].mxu0
      %v2373 = vadd.f32 0.0, %v2372
      %v2374 = vpop.f32.mrb[0].mxu0
      %2375 = vmatprep.mubr.bf16.mxu0 0
      %2376 = vmatmul.mubr.bf16.gmra.mrb[0].mxu0 %v2272
      %v2377 = vpop.f32.mrb[0].mxu0
      %v2378 = vadd.f32 0.0, %v2377
      %v2379 = vpop.f32.mrb[0].mxu0
      %v2380 = vpop.f32.mrb[0].mxu0
      %v2381 = vadd.f32 0.0, %v2380
      %v2382 = vpop.f32.mrb[0].mxu0
      %2383 = vmatprep.mubr.bf16.mxu0 0
      %2384 = vmatmul.mubr.bf16.gmra.mrb[0].mxu0 %v2273
      %v2385 = vpop.f32.mrb[0].mxu0
      %v2386 = vadd.f32 0.0, %v2385
      %v2387 = vpop.f32.mrb[0].mxu0
      %v2388 = vpop.f32.mrb[0].mxu0
      %v2389 = vadd.f32 0.0, %v2388
      %v2390 = vpop.f32.mrb[0].mxu0
      %2391 = vmatprep.mubr.bf16.mxu0 0
      %2392 = vmatmul.mubr.bf16.gmra.mrb[0].mxu0 %v2274
      %v2393 = vpop.f32.mrb[0].mxu0
      %v2394 = vadd.f32 0.0, %v2393
      %v2395 = vpop.f32.mrb[0].mxu0
      %v2396 = vpop.f32.mrb[0].mxu0
      %v2397 = vadd.f32 0.0, %v2396
      %v2398 = vpop.f32.mrb[0].mxu0
      %2399 = vmatprep.mubr.bf16.mxu0 0
      %2400 = vmatmul.mubr.bf16.gmra.mrb[0].mxu0 %v2275
      %v2401 = vpop.f32.mrb[0].mxu0
      %v2402 = vadd.f32 0.0, %v2401
      %v2403 = vpop.f32.mrb[0].mxu0
      %v2404 = vpop.f32.mrb[0].mxu0
      %v2405 = vadd.f32 0.0, %v2404
      %v2406 = vpop.f32.mrb[0].mxu0
      %2407 = vmatprep.mubr.bf16.mxu0 0
      %2408 = vmatmul.mubr.bf16.gmra.mrb[0].mxu0 %v2276
      %v2409 = vpop.f32.mrb[0].mxu0
      %v2410 = vadd.f32 0.0, %v2409
      %v2411 = vpop.f32.mrb[0].mxu0
      %v2412 = vpop.f32.mrb[0].mxu0
      %v2413 = vadd.f32 0.0, %v2412
      %v2414 = vpop.f32.mrb[0].mxu0
      %2415 = vmatprep.mubr.bf16.mxu0 0
      %2416 = vmatmul.mubr.bf16.gmra.mrb[0].mxu0 %v2277
      %v2417 = vpop.f32.mrb[0].mxu0
      %v2418 = vadd.f32 0.0, %v2417
      %v2419 = vpop.f32.mrb[0].mxu0
      %v2420 = vpop.f32.mrb[0].mxu0
      %v2421 = vadd.f32 0.0, %v2420
      %v2422 = vpop.f32.mrb[0].mxu0
      %2423 = vmatprep.mubr.bf16.mxu0 0
      %2424 = vmatmul.mubr.bf16.gmra.mrb[0].mxu0 %v2278
      %v2425 = vpop.f32.mrb[0].mxu0
      %v2426 = vadd.f32 0.0, %v2425
      %v2427 = vpop.f32.mrb[0].mxu0
      %v2428 = vpop.f32.mrb[0].mxu0
      %v2429 = vadd.f32 0.0, %v2428
      %v2430 = vpop.f32.mrb[0].mxu0
      %2431 = vdwg.mxu0
      %v2432 = vadd.f32 %v2189, %v2370
      %v2433 = vadd.f32 %v2190, %v2373
      %v2434 = vadd.f32 %v2191, %v2378
      %v2435 = vadd.f32 %v2192, %v2381
      %v2436 = vadd.f32 %v2193, %v2386
      %v2437 = vadd.f32 %v2194, %v2389
      %v2438 = vadd.f32 %v2195, %v2394
      %v2439 = vadd.f32 %v2196, %v2397
      %v2440 = vadd.f32 %v2197, %v2402
      %v2441 = vadd.f32 %v2198, %v2405
      %v2442 = vadd.f32 %v2199, %v2410
      %v2443 = vadd.f32 %v2200, %v2413
      %v2444 = vadd.f32 %v2201, %v2418
      %v2445 = vadd.f32 %v2202, %v2421
      %v2446 = vadd.f32 %v2203, %v2426
      %v2447 = vadd.f32 %v2204, %v2429
      %v2448 = vld [vmem:[%s2205] sm:$0xf]
      %v2449 = vld [vmem:[%s2205 + $0x4] sm:$0xf]
      %v2450 = vld [vmem:[%s2205 + $0x8] sm:$0x1]
      %v2451 = vld [vmem:[%s2205 + $0xc] sm:$0xf]
      %v2452 = vld [vmem:[%s2205 + $0x10] sm:$0xf]
      %v2453 = vld [vmem:[%s2205 + $0x14] sm:$0x1]
      %v2454 = vld [vmem:[%s2205 + $0x18] sm:$0xf]
      %v2455 = vld [vmem:[%s2205 + $0x1c] sm:$0xf]
      %v2456 = vld [vmem:[%s2205 + $0x20] sm:$0x1]
      %v2457 = vld [vmem:[%s2205 + $0x24] sm:$0xf]
      %v2458 = vld [vmem:[%s2205 + $0x28] sm:$0xf]
      %v2459 = vld [vmem:[%s2205 + $0x2c] sm:$0x1]
      %v2460 = vld [vmem:[%s2205 + $0x30] sm:$0xf]
      %v2461 = vld [vmem:[%s2205 + $0x34] sm:$0xf]
      %v2462 = vld [vmem:[%s2205 + $0x38] sm:$0x1]
      %v2463 = vld [vmem:[%s2205 + $0x3c] sm:$0xf]
      %v2464 = vld [vmem:[%s2205 + $0x40] sm:$0xf]
      %v2465 = vld [vmem:[%s2205 + $0x44] sm:$0x1]
      %v2466 = vld [vmem:[%s2205 + $0x48] sm:$0xf]
      %v2467 = vld [vmem:[%s2205 + $0x4c] sm:$0xf]
      %v2468 = vld [vmem:[%s2205 + $0x50] sm:$0x1]
      %v2469 = vld [vmem:[%s2205 + $0x54] sm:$0xf]
      %v2470 = vld [vmem:[%s2205 + $0x58] sm:$0xf]
      %v2471 = vld [vmem:[%s2205 + $0x5c] sm:$0x1]
      %v2473 = vshrl.u32 %v2448, 16
      %v2475 = vrot.slane %v2473, 4
      %v2476 = vshll.u32 %v2448, 16
      %v2478 = vrot.slane %v2476, 5
      %v2479 = vor.u32 %v2475, %v2478
      %v2480 = vrot.slane %v2479, 4
      %v2482 = vshll.u32 %v2449, 16
      %v2484 = vrot.slane %v2482, 5
      %v2485 = vsel %vm365, %v2480, %v2484
      %v2486 = vshrl.u32 %v2449, 16
      %v2488 = vrot.slane %v2486, 4
      %v2489 = vor.u32 %v2488, %v2484
      %v2490 = vrot.slane %v2489, 4
      %v2492 = vshll.u32 %v2450, 16
      %v2494 = vrot.slane %v2492, 5
      %v2495 = vsel %vm365, %v2490, %v2494
      %v2497 = vshrl.u32 %v2451, 16
      %v2499 = vrot.slane %v2497, 4
      %v2500 = vshll.u32 %v2451, 16
      %v2502 = vrot.slane %v2500, 5
      %v2503 = vor.u32 %v2499, %v2502
      %v2504 = vrot.slane %v2503, 4
      %v2506 = vshll.u32 %v2452, 16
      %v2508 = vrot.slane %v2506, 5
      %v2509 = vsel %vm365, %v2504, %v2508
      %v2510 = vshrl.u32 %v2452, 16
      %v2512 = vrot.slane %v2510, 4
      %v2513 = vor.u32 %v2512, %v2508
      %v2514 = vrot.slane %v2513, 4
      %v2516 = vshll.u32 %v2453, 16
      %v2518 = vrot.slane %v2516, 5
      %v2519 = vsel %vm365, %v2514, %v2518
      %v2521 = vshrl.u32 %v2454, 16
      %v2523 = vrot.slane %v2521, 4
      %v2524 = vshll.u32 %v2454, 16
      %v2526 = vrot.slane %v2524, 5
      %v2527 = vor.u32 %v2523, %v2526
      %v2528 = vrot.slane %v2527, 4
      %v2530 = vshll.u32 %v2455, 16
      %v2532 = vrot.slane %v2530, 5
      %v2533 = vsel %vm365, %v2528, %v2532
      %v2534 = vshrl.u32 %v2455, 16
      %v2536 = vrot.slane %v2534, 4
      %v2537 = vor.u32 %v2536, %v2532
      %v2538 = vrot.slane %v2537, 4
      %v2540 = vshll.u32 %v2456, 16
      %v2542 = vrot.slane %v2540, 5
      %v2543 = vsel %vm365, %v2538, %v2542
      %v2545 = vshrl.u32 %v2457, 16
      %v2547 = vrot.slane %v2545, 4
      %v2548 = vshll.u32 %v2457, 16
      %v2550 = vrot.slane %v2548, 5
      %v2551 = vor.u32 %v2547, %v2550
      %v2552 = vrot.slane %v2551, 4
      %v2554 = vshll.u32 %v2458, 16
      %v2556 = vrot.slane %v2554, 5
      %v2557 = vsel %vm365, %v2552, %v2556
      %v2558 = vshrl.u32 %v2458, 16
      %v2560 = vrot.slane %v2558, 4
      %v2561 = vor.u32 %v2560, %v2556
      %v2562 = vrot.slane %v2561, 4
      %v2564 = vshll.u32 %v2459, 16
      %v2566 = vrot.slane %v2564, 5
      %v2567 = vsel %vm365, %v2562, %v2566
      %v2569 = vshrl.u32 %v2460, 16
      %v2571 = vrot.slane %v2569, 4
      %v2572 = vshll.u32 %v2460, 16
      %v2574 = vrot.slane %v2572, 5
      %v2575 = vor.u32 %v2571, %v2574
      %v2576 = vrot.slane %v2575, 4
      %v2578 = vshll.u32 %v2461, 16
      %v2580 = vrot.slane %v2578, 5
      %v2581 = vsel %vm365, %v2576, %v2580
      %v2582 = vshrl.u32 %v2461, 16
      %v2584 = vrot.slane %v2582, 4
      %v2585 = vor.u32 %v2584, %v2580
      %v2586 = vrot.slane %v2585, 4
      %v2588 = vshll.u32 %v2462, 16
      %v2590 = vrot.slane %v2588, 5
      %v2591 = vsel %vm365, %v2586, %v2590
      %v2593 = vshrl.u32 %v2463, 16
      %v2595 = vrot.slane %v2593, 4
      %v2596 = vshll.u32 %v2463, 16
      %v2598 = vrot.slane %v2596, 5
      %v2599 = vor.u32 %v2595, %v2598
      %v2600 = vrot.slane %v2599, 4
      %v2602 = vshll.u32 %v2464, 16
      %v2604 = vrot.slane %v2602, 5
      %v2605 = vsel %vm365, %v2600, %v2604
      %v2606 = vshrl.u32 %v2464, 16
      %v2608 = vrot.slane %v2606, 4
      %v2609 = vor.u32 %v2608, %v2604
      %v2610 = vrot.slane %v2609, 4
      %v2612 = vshll.u32 %v2465, 16
      %v2614 = vrot.slane %v2612, 5
      %v2615 = vsel %vm365, %v2610, %v2614
      %v2617 = vshrl.u32 %v2466, 16
      %v2619 = vrot.slane %v2617, 4
      %v2620 = vshll.u32 %v2466, 16
      %v2622 = vrot.slane %v2620, 5
      %v2623 = vor.u32 %v2619, %v2622
      %v2624 = vrot.slane %v2623, 4
      %v2626 = vshll.u32 %v2467, 16
      %v2628 = vrot.slane %v2626, 5
      %v2629 = vsel %vm365, %v2624, %v2628
      %v2630 = vshrl.u32 %v2467, 16
      %v2632 = vrot.slane %v2630, 4
      %v2633 = vor.u32 %v2632, %v2628
      %v2634 = vrot.slane %v2633, 4
      %v2636 = vshll.u32 %v2468, 16
      %v2638 = vrot.slane %v2636, 5
      %v2639 = vsel %vm365, %v2634, %v2638
      %v2641 = vshrl.u32 %v2469, 16
      %v2643 = vrot.slane %v2641, 4
      %v2644 = vshll.u32 %v2469, 16
      %v2646 = vrot.slane %v2644, 5
      %v2647 = vor.u32 %v2643, %v2646
      %v2648 = vrot.slane %v2647, 4
      %v2650 = vshll.u32 %v2470, 16
      %v2652 = vrot.slane %v2650, 5
      %v2653 = vsel %vm365, %v2648, %v2652
      %v2654 = vshrl.u32 %v2470, 16
      %v2656 = vrot.slane %v2654, 4
      %v2657 = vor.u32 %v2656, %v2652
      %v2658 = vrot.slane %v2657, 4
      %v2660 = vshll.u32 %v2471, 16
      %v2662 = vrot.slane %v2660, 5
      %v2663 = vsel %vm365, %v2658, %v2662
      %s2664 = scalar_lea.vmem %s2, 448
      %v2665 = vld [vmem:[%s2664] sm:$0xf]
      %v2666 = vld [vmem:[%s2664 + $0x4] sm:$0xf]
      %v2667 = vld [vmem:[%s2664 + $0x8] sm:$0xf]
      %v2668 = vld [vmem:[%s2664 + $0xc] sm:$0xf]
      %v2669 = vld [vmem:[%s2664 + $0x10] sm:$0xf]
      %v2670 = vld [vmem:[%s2664 + $0x14] sm:$0xf]
      %v2671 = vld [vmem:[%s2664 + $0x18] sm:$0xf]
      %v2672 = vld [vmem:[%s2664 + $0x1c] sm:$0xf]
      %v2673 = vld [vmem:[%s2664 + $0x20] sm:$0xf]
      %v2674 = vld [vmem:[%s2664 + $0x24] sm:$0xf]
      %v2675 = vld [vmem:[%s2664 + $0x28] sm:$0xf]
      %v2676 = vld [vmem:[%s2664 + $0x2c] sm:$0xf]
      %v2677 = vld [vmem:[%s2664 + $0x30] sm:$0xf]
      %v2678 = vld [vmem:[%s2664 + $0x34] sm:$0xf]
      %v2679 = vld [vmem:[%s2664 + $0x38] sm:$0xf]
      %v2680 = vld [vmem:[%s2664 + $0x3c] sm:$0xf]
      %v2681 = vunpack.c.l.b16 %v2485
      %v2682 = vunpack.c.l.b16 %v2495
      %v2683 = vunpack.c.l.b16 %v2509
      %v2684 = vunpack.c.l.b16 %v2519
      %v2685 = vunpack.c.l.b16 %v2533
      %v2686 = vunpack.c.l.b16 %v2543
      %v2687 = vunpack.c.l.b16 %v2557
      %v2688 = vunpack.c.l.b16 %v2567
      %v2689 = vunpack.c.l.b16 %v2581
      %v2690 = vunpack.c.l.b16 %v2591
      %v2691 = vunpack.c.l.b16 %v2605
      %v2692 = vunpack.c.l.b16 %v2615
      %v2693 = vunpack.c.l.b16 %v2629
      %v2694 = vunpack.c.l.b16 %v2639
      %v2695 = vunpack.c.l.b16 %v2653
      %v2696 = vunpack.c.l.b16 %v2663
      %v2697 = vpack.c.b16 %v2682, %v2681
      %v2698 = vpack.c.b16 %v2684, %v2683
      %v2699 = vpack.c.b16 %v2686, %v2685
      %v2700 = vpack.c.b16 %v2688, %v2687
      %v2701 = vpack.c.b16 %v2690, %v2689
      %v2702 = vpack.c.b16 %v2692, %v2691
      %v2703 = vpack.c.b16 %v2694, %v2693
      %v2704 = vpack.c.b16 %v2696, %v2695
      %v2729 = vunpack.c.l.b16 %v2665
      %v2730 = vunpack.c.l.b16 %v2666
      %v2731 = vunpack.c.l.b16 %v2667
      %v2732 = vunpack.c.l.b16 %v2668
      %v2733 = vunpack.c.l.b16 %v2669
      %v2734 = vunpack.c.l.b16 %v2670
      %v2735 = vunpack.c.l.b16 %v2671
      %v2736 = vunpack.c.l.b16 %v2672
      %v2737 = vunpack.c.l.b16 %v2673
      %v2738 = vunpack.c.l.b16 %v2674
      %v2739 = vunpack.c.l.b16 %v2675
      %v2740 = vunpack.c.l.b16 %v2676
      %v2741 = vunpack.c.l.b16 %v2677
      %v2742 = vunpack.c.l.b16 %v2678
      %v2743 = vunpack.c.l.b16 %v2679
      %v2744 = vunpack.c.l.b16 %v2680
      %v2745 = vpack.c.b16 %v2730, %v2729
      %v2746 = vpack.c.b16 %v2732, %v2731
      %v2747 = vpack.c.b16 %v2734, %v2733
      %v2748 = vpack.c.b16 %v2736, %v2735
      %v2749 = vpack.c.b16 %v2738, %v2737
      %v2750 = vpack.c.b16 %v2740, %v2739
      %v2751 = vpack.c.b16 %v2742, %v2741
      %v2752 = vpack.c.b16 %v2744, %v2743
      %2761 = vmatprep.subr.bf16.mxu0 0
      %2762 = vmatpush1.bf16.msra.mxu0 %v2745
      %2763 = vmatprep.subr.bf16.mxu0 0
      %2764 = vmatpush1.bf16.msra.mxu0 %v2746
      %2765 = vmatprep.subr.bf16.mxu0 0
      %2766 = vmatpush1.bf16.msra.mxu0 %v2747
      %2767 = vmatprep.subr.bf16.mxu0 0
      %2768 = vmatpush1.bf16.msra.mxu0 %v2748
      %2769 = vmatprep.subr.bf16.mxu0 0
      %2770 = vmatpush1.bf16.msra.mxu0 %v2749
      %2771 = vmatprep.subr.bf16.mxu0 0
      %2772 = vmatpush1.bf16.msra.mxu0 %v2750
      %2773 = vmatprep.subr.bf16.mxu0 0
      %2774 = vmatpush1.bf16.msra.mxu0 %v2751
      %2775 = vmatprep.subr.bf16.mxu0 0
      %2776 = vmatpush1.bf16.msra.mxu0 %v2752
      %2777 = vmatprep.subr.bf16.mxu0 0
      %2778 = vmatpush1.bf16.msra.mxu0 0
      %2779 = vmatprep.subr.bf16.mxu0 0
      %2780 = vmatpush1.bf16.msra.mxu0 0
      %2781 = vmatprep.subr.bf16.mxu0 0
      %2782 = vmatpush1.bf16.msra.mxu0 0
      %2783 = vmatprep.subr.bf16.mxu0 0
      %2784 = vmatpush1.bf16.msra.mxu0 0
      %2785 = vmatprep.subr.bf16.mxu0 0
      %2786 = vmatpush1.bf16.msra.mxu0 0
      %2787 = vmatprep.subr.bf16.mxu0 0
      %2788 = vmatpush1.bf16.msra.mxu0 0
      %2789 = vmatprep.subr.bf16.mxu0 0
      %2790 = vmatpush1.bf16.msra.mxu0 0
      %2791 = vmatprep.subr.bf16.mxu0 0
      %2792 = vmatpush1.bf16.msra.mxu0 0
      %2793 = vmatprep.mubr.bf16.mxu0 0
      %2794 = vmatmul.mubr.bf16.gmra.mrb[0].mxu0 %v2697
      %v2795 = vpop.f32.mrb[0].mxu0
      %v2796 = vadd.f32 0.0, %v2795
      %v2797 = vpop.f32.mrb[0].mxu0
      %v2798 = vpop.f32.mrb[0].mxu0
      %v2799 = vadd.f32 0.0, %v2798
      %v2800 = vpop.f32.mrb[0].mxu0
      %2801 = vmatprep.mubr.bf16.mxu0 0
      %2802 = vmatmul.mubr.bf16.gmra.mrb[0].mxu0 %v2698
      %v2803 = vpop.f32.mrb[0].mxu0
      %v2804 = vadd.f32 0.0, %v2803
      %v2805 = vpop.f32.mrb[0].mxu0
      %v2806 = vpop.f32.mrb[0].mxu0
      %v2807 = vadd.f32 0.0, %v2806
      %v2808 = vpop.f32.mrb[0].mxu0
      %2809 = vmatprep.mubr.bf16.mxu0 0
      %2810 = vmatmul.mubr.bf16.gmra.mrb[0].mxu0 %v2699
      %v2811 = vpop.f32.mrb[0].mxu0
      %v2812 = vadd.f32 0.0, %v2811
      %v2813 = vpop.f32.mrb[0].mxu0
      %v2814 = vpop.f32.mrb[0].mxu0
      %v2815 = vadd.f32 0.0, %v2814
      %v2816 = vpop.f32.mrb[0].mxu0
      %2817 = vmatprep.mubr.bf16.mxu0 0
      %2818 = vmatmul.mubr.bf16.gmra.mrb[0].mxu0 %v2700
      %v2819 = vpop.f32.mrb[0].mxu0
      %v2820 = vadd.f32 0.0, %v2819
      %v2821 = vpop.f32.mrb[0].mxu0
      %v2822 = vpop.f32.mrb[0].mxu0
      %v2823 = vadd.f32 0.0, %v2822
      %v2824 = vpop.f32.mrb[0].mxu0
      %2825 = vmatprep.mubr.bf16.mxu0 0
      %2826 = vmatmul.mubr.bf16.gmra.mrb[0].mxu0 %v2701
      %v2827 = vpop.f32.mrb[0].mxu0
      %v2828 = vadd.f32 0.0, %v2827
      %v2829 = vpop.f32.mrb[0].mxu0
      %v2830 = vpop.f32.mrb[0].mxu0
      %v2831 = vadd.f32 0.0, %v2830
      %v2832 = vpop.f32.mrb[0].mxu0
      %2833 = vmatprep.mubr.bf16.mxu0 0
      %2834 = vmatmul.mubr.bf16.gmra.mrb[0].mxu0 %v2702
      %v2835 = vpop.f32.mrb[0].mxu0
      %v2836 = vadd.f32 0.0, %v2835
      %v2837 = vpop.f32.mrb[0].mxu0
      %v2838 = vpop.f32.mrb[0].mxu0
      %v2839 = vadd.f32 0.0, %v2838
      %v2840 = vpop.f32.mrb[0].mxu0
      %2841 = vmatprep.mubr.bf16.mxu0 0
      %2842 = vmatmul.mubr.bf16.gmra.mrb[0].mxu0 %v2703
      %v2843 = vpop.f32.mrb[0].mxu0
      %v2844 = vadd.f32 0.0, %v2843
      %v2845 = vpop.f32.mrb[0].mxu0
      %v2846 = vpop.f32.mrb[0].mxu0
      %v2847 = vadd.f32 0.0, %v2846
      %v2848 = vpop.f32.mrb[0].mxu0
      %2849 = vmatprep.mubr.bf16.mxu0 0
      %2850 = vmatmul.mubr.bf16.gmra.mrb[0].mxu0 %v2704
      %v2851 = vpop.f32.mrb[0].mxu0
      %v2852 = vadd.f32 0.0, %v2851
      %v2853 = vpop.f32.mrb[0].mxu0
      %v2854 = vpop.f32.mrb[0].mxu0
      %v2855 = vadd.f32 0.0, %v2854
      %v2856 = vpop.f32.mrb[0].mxu0
      %2857 = vdwg.mxu0
      %v2858 = vadd.f32 %v2432, %v2796
      %v2859 = vadd.f32 %v2433, %v2799
      %v2860 = vadd.f32 %v2434, %v2804
      %v2861 = vadd.f32 %v2435, %v2807
      %v2862 = vadd.f32 %v2436, %v2812
      %v2863 = vadd.f32 %v2437, %v2815
      %v2864 = vadd.f32 %v2438, %v2820
      %v2865 = vadd.f32 %v2439, %v2823
      %v2866 = vadd.f32 %v2440, %v2828
      %v2867 = vadd.f32 %v2441, %v2831
      %v2868 = vadd.f32 %v2442, %v2836
      %v2869 = vadd.f32 %v2443, %v2839
      %v2870 = vadd.f32 %v2444, %v2844
      %v2871 = vadd.f32 %v2445, %v2847
      %v2872 = vadd.f32 %v2446, %v2852
      %v2873 = vadd.f32 %v2447, %v2855
      %v2874 = vld [vmem:[%s2205] sm:$0xe]
      %v2875 = vld [vmem:[%s2205 + $0xc] sm:$0xe]
      %v2876 = vld [vmem:[%s2205 + $0x18] sm:$0xe]
      %v2877 = vld [vmem:[%s2205 + $0x24] sm:$0xe]
      %v2878 = vld [vmem:[%s2205 + $0x30] sm:$0xe]
      %v2879 = vld [vmem:[%s2205 + $0x3c] sm:$0xe]
      %v2880 = vld [vmem:[%s2205 + $0x48] sm:$0xe]
      %v2881 = vld [vmem:[%s2205 + $0x54] sm:$0xe]
      %v2906 = vrot.slane %v2874, 5
      %v2907 = vrot.slane %v2906, 4
      %v2908 = vrot.slane %v2449, 5
      %v2909 = vsel %vm971, %v2907, %v2908
      %v2910 = vrot.slane %v2908, 4
      %v2911 = vrot.slane %v2450, 5
      %v2912 = vsel %vm971, %v2910, %v2911
      %v2913 = vrot.slane %v2875, 5
      %v2914 = vrot.slane %v2913, 4
      %v2915 = vrot.slane %v2452, 5
      %v2916 = vsel %vm971, %v2914, %v2915
      %v2917 = vrot.slane %v2915, 4
      %v2918 = vrot.slane %v2453, 5
      %v2919 = vsel %vm971, %v2917, %v2918
      %v2920 = vrot.slane %v2876, 5
      %v2921 = vrot.slane %v2920, 4
      %v2922 = vrot.slane %v2455, 5
      %v2923 = vsel %vm971, %v2921, %v2922
      %v2924 = vrot.slane %v2922, 4
      %v2925 = vrot.slane %v2456, 5
      %v2926 = vsel %vm971, %v2924, %v2925
      %v2927 = vrot.slane %v2877, 5
      %v2928 = vrot.slane %v2927, 4
      %v2929 = vrot.slane %v2458, 5
      %v2930 = vsel %vm971, %v2928, %v2929
      %v2931 = vrot.slane %v2929, 4
      %v2932 = vrot.slane %v2459, 5
      %v2933 = vsel %vm971, %v2931, %v2932
      %v2934 = vrot.slane %v2878, 5
      %v2935 = vrot.slane %v2934, 4
      %v2936 = vrot.slane %v2461, 5
      %v2937 = vsel %vm971, %v2935, %v2936
      %v2938 = vrot.slane %v2936, 4
      %v2939 = vrot.slane %v2462, 5
      %v2940 = vsel %vm971, %v2938, %v2939
      %v2941 = vrot.slane %v2879, 5
      %v2942 = vrot.slane %v2941, 4
      %v2943 = vrot.slane %v2464, 5
      %v2944 = vsel %vm971, %v2942, %v2943
      %v2945 = vrot.slane %v2943, 4
      %v2946 = vrot.slane %v2465, 5
      %v2947 = vsel %vm971, %v2945, %v2946
      %v2948 = vrot.slane %v2880, 5
      %v2949 = vrot.slane %v2948, 4
      %v2950 = vrot.slane %v2467, 5
      %v2951 = vsel %vm971, %v2949, %v2950
      %v2952 = vrot.slane %v2950, 4
      %v2953 = vrot.slane %v2468, 5
      %v2954 = vsel %vm971, %v2952, %v2953
      %v2955 = vrot.slane %v2881, 5
      %v2956 = vrot.slane %v2955, 4
      %v2957 = vrot.slane %v2470, 5
      %v2958 = vsel %vm971, %v2956, %v2957
      %v2959 = vrot.slane %v2957, 4
      %v2960 = vrot.slane %v2471, 5
      %v2961 = vsel %vm971, %v2959, %v2960
      %s2962 = scalar_lea.vmem %s2, 512
      %v2963 = vld [vmem:[%s2962] sm:$0xf]
      %v2964 = vld [vmem:[%s2962 + $0x4] sm:$0xf]
      %v2965 = vld [vmem:[%s2962 + $0x8] sm:$0xf]
      %v2966 = vld [vmem:[%s2962 + $0xc] sm:$0xf]
      %v2967 = vld [vmem:[%s2962 + $0x10] sm:$0xf]
      %v2968 = vld [vmem:[%s2962 + $0x14] sm:$0xf]
      %v2969 = vld [vmem:[%s2962 + $0x18] sm:$0xf]
      %v2970 = vld [vmem:[%s2962 + $0x1c] sm:$0xf]
      %v2971 = vld [vmem:[%s2962 + $0x20] sm:$0xf]
      %v2972 = vld [vmem:[%s2962 + $0x24] sm:$0xf]
      %v2973 = vld [vmem:[%s2962 + $0x28] sm:$0xf]
      %v2974 = vld [vmem:[%s2962 + $0x2c] sm:$0xf]
      %v2975 = vld [vmem:[%s2962 + $0x30] sm:$0xf]
      %v2976 = vld [vmem:[%s2962 + $0x34] sm:$0xf]
      %v2977 = vld [vmem:[%s2962 + $0x38] sm:$0xf]
      %v2978 = vld [vmem:[%s2962 + $0x3c] sm:$0xf]
      %v2979 = vunpack.c.l.b16 %v2909
      %v2980 = vunpack.c.l.b16 %v2912
      %v2981 = vunpack.c.l.b16 %v2916
      %v2982 = vunpack.c.l.b16 %v2919
      %v2983 = vunpack.c.l.b16 %v2923
      %v2984 = vunpack.c.l.b16 %v2926
      %v2985 = vunpack.c.l.b16 %v2930
      %v2986 = vunpack.c.l.b16 %v2933
      %v2987 = vunpack.c.l.b16 %v2937
      %v2988 = vunpack.c.l.b16 %v2940
      %v2989 = vunpack.c.l.b16 %v2944
      %v2990 = vunpack.c.l.b16 %v2947
      %v2991 = vunpack.c.l.b16 %v2951
      %v2992 = vunpack.c.l.b16 %v2954
      %v2993 = vunpack.c.l.b16 %v2958
      %v2994 = vunpack.c.l.b16 %v2961
      %v2995 = vpack.c.b16 %v2980, %v2979
      %v2996 = vpack.c.b16 %v2982, %v2981
      %v2997 = vpack.c.b16 %v2984, %v2983
      %v2998 = vpack.c.b16 %v2986, %v2985
      %v2999 = vpack.c.b16 %v2988, %v2987
      %v3000 = vpack.c.b16 %v2990, %v2989
      %v3001 = vpack.c.b16 %v2992, %v2991
      %v3002 = vpack.c.b16 %v2994, %v2993
      %v3027 = vunpack.c.l.b16 %v2963
      %v3028 = vunpack.c.l.b16 %v2964
      %v3029 = vunpack.c.l.b16 %v2965
      %v3030 = vunpack.c.l.b16 %v2966
      %v3031 = vunpack.c.l.b16 %v2967
      %v3032 = vunpack.c.l.b16 %v2968
      %v3033 = vunpack.c.l.b16 %v2969
      %v3034 = vunpack.c.l.b16 %v2970
      %v3035 = vunpack.c.l.b16 %v2971
      %v3036 = vunpack.c.l.b16 %v2972
      %v3037 = vunpack.c.l.b16 %v2973
      %v3038 = vunpack.c.l.b16 %v2974
      %v3039 = vunpack.c.l.b16 %v2975
      %v3040 = vunpack.c.l.b16 %v2976
      %v3041 = vunpack.c.l.b16 %v2977
      %v3042 = vunpack.c.l.b16 %v2978
      %v3043 = vpack.c.b16 %v3028, %v3027
      %v3044 = vpack.c.b16 %v3030, %v3029
      %v3045 = vpack.c.b16 %v3032, %v3031
      %v3046 = vpack.c.b16 %v3034, %v3033
      %v3047 = vpack.c.b16 %v3036, %v3035
      %v3048 = vpack.c.b16 %v3038, %v3037
      %v3049 = vpack.c.b16 %v3040, %v3039
      %v3050 = vpack.c.b16 %v3042, %v3041
      %3059 = vmatprep.subr.bf16.mxu0 0
      %3060 = vmatpush1.bf16.msra.mxu0 %v3043
      %3061 = vmatprep.subr.bf16.mxu0 0
      %3062 = vmatpush1.bf16.msra.mxu0 %v3044
      %3063 = vmatprep.subr.bf16.mxu0 0
      %3064 = vmatpush1.bf16.msra.mxu0 %v3045
      %3065 = vmatprep.subr.bf16.mxu0 0
      %3066 = vmatpush1.bf16.msra.mxu0 %v3046
      %3067 = vmatprep.subr.bf16.mxu0 0
      %3068 = vmatpush1.bf16.msra.mxu0 %v3047
      %3069 = vmatprep.subr.bf16.mxu0 0
      %3070 = vmatpush1.bf16.msra.mxu0 %v3048
      %3071 = vmatprep.subr.bf16.mxu0 0
      %3072 = vmatpush1.bf16.msra.mxu0 %v3049
      %3073 = vmatprep.subr.bf16.mxu0 0
      %3074 = vmatpush1.bf16.msra.mxu0 %v3050
      %3075 = vmatprep.subr.bf16.mxu0 0
      %3076 = vmatpush1.bf16.msra.mxu0 0
      %3077 = vmatprep.subr.bf16.mxu0 0
      %3078 = vmatpush1.bf16.msra.mxu0 0
      %3079 = vmatprep.subr.bf16.mxu0 0
      %3080 = vmatpush1.bf16.msra.mxu0 0
      %3081 = vmatprep.subr.bf16.mxu0 0
      %3082 = vmatpush1.bf16.msra.mxu0 0
      %3083 = vmatprep.subr.bf16.mxu0 0
      %3084 = vmatpush1.bf16.msra.mxu0 0
      %3085 = vmatprep.subr.bf16.mxu0 0
      %3086 = vmatpush1.bf16.msra.mxu0 0
      %3087 = vmatprep.subr.bf16.mxu0 0
      %3088 = vmatpush1.bf16.msra.mxu0 0
      %3089 = vmatprep.subr.bf16.mxu0 0
      %3090 = vmatpush1.bf16.msra.mxu0 0
      %3091 = vmatprep.mubr.bf16.mxu0 0
      %3092 = vmatmul.mubr.bf16.gmra.mrb[0].mxu0 %v2995
      %v3093 = vpop.f32.mrb[0].mxu0
      %v3094 = vadd.f32 0.0, %v3093
      %v3095 = vpop.f32.mrb[0].mxu0
      %v3096 = vpop.f32.mrb[0].mxu0
      %v3097 = vadd.f32 0.0, %v3096
      %v3098 = vpop.f32.mrb[0].mxu0
      %3099 = vmatprep.mubr.bf16.mxu0 0
      %3100 = vmatmul.mubr.bf16.gmra.mrb[0].mxu0 %v2996
      %v3101 = vpop.f32.mrb[0].mxu0
      %v3102 = vadd.f32 0.0, %v3101
      %v3103 = vpop.f32.mrb[0].mxu0
      %v3104 = vpop.f32.mrb[0].mxu0
      %v3105 = vadd.f32 0.0, %v3104
      %v3106 = vpop.f32.mrb[0].mxu0
      %3107 = vmatprep.mubr.bf16.mxu0 0
      %3108 = vmatmul.mubr.bf16.gmra.mrb[0].mxu0 %v2997
      %v3109 = vpop.f32.mrb[0].mxu0
      %v3110 = vadd.f32 0.0, %v3109
      %v3111 = vpop.f32.mrb[0].mxu0
      %v3112 = vpop.f32.mrb[0].mxu0
      %v3113 = vadd.f32 0.0, %v3112
      %v3114 = vpop.f32.mrb[0].mxu0
      %3115 = vmatprep.mubr.bf16.mxu0 0
      %3116 = vmatmul.mubr.bf16.gmra.mrb[0].mxu0 %v2998
      %v3117 = vpop.f32.mrb[0].mxu0
      %v3118 = vadd.f32 0.0, %v3117
      %v3119 = vpop.f32.mrb[0].mxu0
      %v3120 = vpop.f32.mrb[0].mxu0
      %v3121 = vadd.f32 0.0, %v3120
      %v3122 = vpop.f32.mrb[0].mxu0
      %3123 = vmatprep.mubr.bf16.mxu0 0
      %3124 = vmatmul.mubr.bf16.gmra.mrb[0].mxu0 %v2999
      %v3125 = vpop.f32.mrb[0].mxu0
      %v3126 = vadd.f32 0.0, %v3125
      %v3127 = vpop.f32.mrb[0].mxu0
      %v3128 = vpop.f32.mrb[0].mxu0
      %v3129 = vadd.f32 0.0, %v3128
      %v3130 = vpop.f32.mrb[0].mxu0
      %3131 = vmatprep.mubr.bf16.mxu0 0
      %3132 = vmatmul.mubr.bf16.gmra.mrb[0].mxu0 %v3000
      %v3133 = vpop.f32.mrb[0].mxu0
      %v3134 = vadd.f32 0.0, %v3133
      %v3135 = vpop.f32.mrb[0].mxu0
      %v3136 = vpop.f32.mrb[0].mxu0
      %v3137 = vadd.f32 0.0, %v3136
      %v3138 = vpop.f32.mrb[0].mxu0
      %3139 = vmatprep.mubr.bf16.mxu0 0
      %3140 = vmatmul.mubr.bf16.gmra.mrb[0].mxu0 %v3001
      %v3141 = vpop.f32.mrb[0].mxu0
      %v3142 = vadd.f32 0.0, %v3141
      %v3143 = vpop.f32.mrb[0].mxu0
      %v3144 = vpop.f32.mrb[0].mxu0
      %v3145 = vadd.f32 0.0, %v3144
      %v3146 = vpop.f32.mrb[0].mxu0
      %3147 = vmatprep.mubr.bf16.mxu0 0
      %3148 = vmatmul.mubr.bf16.gmra.mrb[0].mxu0 %v3002
      %v3149 = vpop.f32.mrb[0].mxu0
      %v3150 = vadd.f32 0.0, %v3149
      %v3151 = vpop.f32.mrb[0].mxu0
      %v3152 = vpop.f32.mrb[0].mxu0
      %v3153 = vadd.f32 0.0, %v3152
      %v3154 = vpop.f32.mrb[0].mxu0
      %3155 = vdwg.mxu0
      %v3156 = vadd.f32 %v2858, %v3094
      %v3157 = vadd.f32 %v2859, %v3097
      %v3158 = vadd.f32 %v2860, %v3102
      %v3159 = vadd.f32 %v2861, %v3105
      %v3160 = vadd.f32 %v2862, %v3110
      %v3161 = vadd.f32 %v2863, %v3113
      %v3162 = vadd.f32 %v2864, %v3118
      %v3163 = vadd.f32 %v2865, %v3121
      %v3164 = vadd.f32 %v2866, %v3126
      %v3165 = vadd.f32 %v2867, %v3129
      %v3166 = vadd.f32 %v2868, %v3134
      %v3167 = vadd.f32 %v2869, %v3137
      %v3168 = vadd.f32 %v2870, %v3142
      %v3169 = vadd.f32 %v2871, %v3145
      %v3170 = vadd.f32 %v2872, %v3150
      %v3171 = vadd.f32 %v2873, %v3153
      %v3172 = vld [vmem:[%s3] sm:$0x1]
      %v3174 = vlaneseq
      %v3175 = vshrl.u32 %v3174, 7
      %v3176 = vsub.s32 0, %v3175
      %v3177 = vrot.slane %v3172, %v3176
      %v3179 = vadd.f32 %v3156, %v3177
      %v3180 = vadd.f32 %v3157, %v3177
      %v3181 = vadd.f32 %v3158, %v3177
      %v3182 = vadd.f32 %v3159, %v3177
      %v3183 = vadd.f32 %v3160, %v3177
      %v3184 = vadd.f32 %v3161, %v3177
      %v3185 = vadd.f32 %v3162, %v3177
      %v3186 = vadd.f32 %v3163, %v3177
      %v3187 = vadd.f32 %v3164, %v3177
      %v3188 = vadd.f32 %v3165, %v3177
      %v3189 = vadd.f32 %v3166, %v3177
      %v3190 = vadd.f32 %v3167, %v3177
      %v3191 = vadd.f32 %v3168, %v3177
      %v3192 = vadd.f32 %v3169, %v3177
      %v3193 = vadd.f32 %v3170, %v3177
      %v3194 = vadd.f32 %v3171, %v3177
      %v3195 = vld [vmem:[%s312] sm:$0xf]
      %v3196 = vld [vmem:[%s312 + $0x4] sm:$0xf]
      %v3197 = vld [vmem:[%s312 + $0x8] sm:$0xf]
      %v3198 = vld [vmem:[%s312 + $0xc] sm:$0xf]
      %v3199 = vld [vmem:[%s312 + $0x10] sm:$0xf]
      %v3200 = vld [vmem:[%s312 + $0x14] sm:$0xf]
      %v3201 = vld [vmem:[%s312 + $0x18] sm:$0xf]
      %v3202 = vld [vmem:[%s312 + $0x1c] sm:$0xf]
      %v3203 = vld [vmem:[%s312 + $0x20] sm:$0xf]
      %v3204 = vld [vmem:[%s312 + $0x24] sm:$0xf]
      %v3205 = vld [vmem:[%s312 + $0x28] sm:$0xf]
      %v3206 = vld [vmem:[%s312 + $0x2c] sm:$0xf]
      %v3207 = vld [vmem:[%s312 + $0x30] sm:$0xf]
      %v3208 = vld [vmem:[%s312 + $0x34] sm:$0xf]
      %v3209 = vld [vmem:[%s312 + $0x38] sm:$0xf]
      %v3210 = vld [vmem:[%s312 + $0x3c] sm:$0xf]
      %v3211 = vld [vmem:[%s4] sm:$0xf]
      %v3212 = vld [vmem:[%s4 + $0x4] sm:$0xf]
      %v3213 = vld [vmem:[%s4 + $0x8] sm:$0xf]
      %v3214 = vld [vmem:[%s4 + $0xc] sm:$0xf]
      %v3215 = vld [vmem:[%s4 + $0x10] sm:$0xf]
      %v3216 = vld [vmem:[%s4 + $0x14] sm:$0xf]
      %v3217 = vld [vmem:[%s4 + $0x18] sm:$0xf]
      %v3218 = vld [vmem:[%s4 + $0x1c] sm:$0xf]
      %v3219 = vld [vmem:[%s4 + $0x20] sm:$0xf]
      %v3220 = vld [vmem:[%s4 + $0x24] sm:$0xf]
      %v3221 = vld [vmem:[%s4 + $0x28] sm:$0xf]
      %v3222 = vld [vmem:[%s4 + $0x2c] sm:$0xf]
      %v3223 = vld [vmem:[%s4 + $0x30] sm:$0xf]
      %v3224 = vld [vmem:[%s4 + $0x34] sm:$0xf]
      %v3225 = vld [vmem:[%s4 + $0x38] sm:$0xf]
      %v3226 = vld [vmem:[%s4 + $0x3c] sm:$0xf]
      %v3227 = vld [vmem:[%s5] sm:$0x1]
      %v3229 = vlaneseq
      %v3230 = vshrl.u32 %v3229, 7
      %v3231 = vsub.s32 0, %v3230
      %v3232 = vrot.slane %v3227, %v3231
      %v3250 = vunpack.c.l.b16 %v3195
      %v3251 = vunpack.c.l.b16 %v3196
      %v3252 = vunpack.c.l.b16 %v3197
      %v3253 = vunpack.c.l.b16 %v3198
      %v3254 = vunpack.c.l.b16 %v3199
      %v3255 = vunpack.c.l.b16 %v3200
      %v3256 = vunpack.c.l.b16 %v3201
      %v3257 = vunpack.c.l.b16 %v3202
      %v3258 = vunpack.c.l.b16 %v3203
      %v3259 = vunpack.c.l.b16 %v3204
      %v3260 = vunpack.c.l.b16 %v3205
      %v3261 = vunpack.c.l.b16 %v3206
      %v3262 = vunpack.c.l.b16 %v3207
      %v3263 = vunpack.c.l.b16 %v3208
      %v3264 = vunpack.c.l.b16 %v3209
      %v3265 = vunpack.c.l.b16 %v3210
      %v3266 = vpack.c.b16 %v3251, %v3250
      %v3267 = vpack.c.b16 %v3253, %v3252
      %v3268 = vpack.c.b16 %v3255, %v3254
      %v3269 = vpack.c.b16 %v3257, %v3256
      %v3270 = vpack.c.b16 %v3259, %v3258
      %v3271 = vpack.c.b16 %v3261, %v3260
      %v3272 = vpack.c.b16 %v3263, %v3262
      %v3273 = vpack.c.b16 %v3265, %v3264
      %v3298 = vunpack.c.l.b16 %v3211
      %v3299 = vunpack.c.l.b16 %v3212
      %v3300 = vunpack.c.l.b16 %v3213
      %v3301 = vunpack.c.l.b16 %v3214
      %v3302 = vunpack.c.l.b16 %v3215
      %v3303 = vunpack.c.l.b16 %v3216
      %v3304 = vunpack.c.l.b16 %v3217
      %v3305 = vunpack.c.l.b16 %v3218
      %v3306 = vunpack.c.l.b16 %v3219
      %v3307 = vunpack.c.l.b16 %v3220
      %v3308 = vunpack.c.l.b16 %v3221
      %v3309 = vunpack.c.l.b16 %v3222
      %v3310 = vunpack.c.l.b16 %v3223
      %v3311 = vunpack.c.l.b16 %v3224
      %v3312 = vunpack.c.l.b16 %v3225
      %v3313 = vunpack.c.l.b16 %v3226
      %v3314 = vpack.c.b16 %v3299, %v3298
      %v3315 = vpack.c.b16 %v3301, %v3300
      %v3316 = vpack.c.b16 %v3303, %v3302
      %v3317 = vpack.c.b16 %v3305, %v3304
      %v3318 = vpack.c.b16 %v3307, %v3306
      %v3319 = vpack.c.b16 %v3309, %v3308
      %v3320 = vpack.c.b16 %v3311, %v3310
      %v3321 = vpack.c.b16 %v3313, %v3312
      %3330 = vmatprep.subr.bf16.mxu0 0
      %3331 = vmatpush1.bf16.msra.mxu0 %v3314
      %3332 = vmatprep.subr.bf16.mxu0 0
      %3333 = vmatpush1.bf16.msra.mxu0 %v3315
      %3334 = vmatprep.subr.bf16.mxu0 0
      %3335 = vmatpush1.bf16.msra.mxu0 %v3316
      %3336 = vmatprep.subr.bf16.mxu0 0
      %3337 = vmatpush1.bf16.msra.mxu0 %v3317
      %3338 = vmatprep.subr.bf16.mxu0 0
      %3339 = vmatpush1.bf16.msra.mxu0 %v3318
      %3340 = vmatprep.subr.bf16.mxu0 0
      %3341 = vmatpush1.bf16.msra.mxu0 %v3319
      %3342 = vmatprep.subr.bf16.mxu0 0
      %3343 = vmatpush1.bf16.msra.mxu0 %v3320
      %3344 = vmatprep.subr.bf16.mxu0 0
      %3345 = vmatpush1.bf16.msra.mxu0 %v3321
      %3346 = vmatprep.subr.bf16.mxu0 0
      %3347 = vmatpush1.bf16.msra.mxu0 0
      %3348 = vmatprep.subr.bf16.mxu0 0
      %3349 = vmatpush1.bf16.msra.mxu0 0
      %3350 = vmatprep.subr.bf16.mxu0 0
      %3351 = vmatpush1.bf16.msra.mxu0 0
      %3352 = vmatprep.subr.bf16.mxu0 0
      %3353 = vmatpush1.bf16.msra.mxu0 0
      %3354 = vmatprep.subr.bf16.mxu0 0
      %3355 = vmatpush1.bf16.msra.mxu0 0
      %3356 = vmatprep.subr.bf16.mxu0 0
      %3357 = vmatpush1.bf16.msra.mxu0 0
      %3358 = vmatprep.subr.bf16.mxu0 0
      %3359 = vmatpush1.bf16.msra.mxu0 0
      %3360 = vmatprep.subr.bf16.mxu0 0
      %3361 = vmatpush1.bf16.msra.mxu0 0
      %3362 = vmatprep.mubr.bf16.mxu0 0
      %3363 = vmatmul.mubr.bf16.gmra.mrb[0].mxu0 %v3266
      %v3364 = vpop.f32.mrb[0].mxu0
      %v3365 = vadd.f32 %v3232, %v3364
      %v3366 = vpop.f32.mrb[0].mxu0
      %v3367 = vpop.f32.mrb[0].mxu0
      %v3368 = vadd.f32 %v3232, %v3367
      %v3369 = vpop.f32.mrb[0].mxu0
      %3370 = vmatprep.mubr.bf16.mxu0 0
      %3371 = vmatmul.mubr.bf16.gmra.mrb[0].mxu0 %v3267
      %v3372 = vpop.f32.mrb[0].mxu0
      %v3373 = vadd.f32 %v3232, %v3372
      %v3374 = vpop.f32.mrb[0].mxu0
      %v3375 = vpop.f32.mrb[0].mxu0
      %v3376 = vadd.f32 %v3232, %v3375
      %v3377 = vpop.f32.mrb[0].mxu0
      %3378 = vmatprep.mubr.bf16.mxu0 0
      %3379 = vmatmul.mubr.bf16.gmra.mrb[0].mxu0 %v3268
      %v3380 = vpop.f32.mrb[0].mxu0
      %v3381 = vadd.f32 %v3232, %v3380
      %v3382 = vpop.f32.mrb[0].mxu0
      %v3383 = vpop.f32.mrb[0].mxu0
      %v3384 = vadd.f32 %v3232, %v3383
      %v3385 = vpop.f32.mrb[0].mxu0
      %3386 = vmatprep.mubr.bf16.mxu0 0
      %3387 = vmatmul.mubr.bf16.gmra.mrb[0].mxu0 %v3269
      %v3388 = vpop.f32.mrb[0].mxu0
      %v3389 = vadd.f32 %v3232, %v3388
      %v3390 = vpop.f32.mrb[0].mxu0
      %v3391 = vpop.f32.mrb[0].mxu0
      %v3392 = vadd.f32 %v3232, %v3391
      %v3393 = vpop.f32.mrb[0].mxu0
      %3394 = vmatprep.mubr.bf16.mxu0 0
      %3395 = vmatmul.mubr.bf16.gmra.mrb[0].mxu0 %v3270
      %v3396 = vpop.f32.mrb[0].mxu0
      %v3397 = vadd.f32 %v3232, %v3396
      %v3398 = vpop.f32.mrb[0].mxu0
      %v3399 = vpop.f32.mrb[0].mxu0
      %v3400 = vadd.f32 %v3232, %v3399
      %v3401 = vpop.f32.mrb[0].mxu0
      %3402 = vmatprep.mubr.bf16.mxu0 0
      %3403 = vmatmul.mubr.bf16.gmra.mrb[0].mxu0 %v3271
      %v3404 = vpop.f32.mrb[0].mxu0
      %v3405 = vadd.f32 %v3232, %v3404
      %v3406 = vpop.f32.mrb[0].mxu0
      %v3407 = vpop.f32.mrb[0].mxu0
      %v3408 = vadd.f32 %v3232, %v3407
      %v3409 = vpop.f32.mrb[0].mxu0
      %3410 = vmatprep.mubr.bf16.mxu0 0
      %3411 = vmatmul.mubr.bf16.gmra.mrb[0].mxu0 %v3272
      %v3412 = vpop.f32.mrb[0].mxu0
      %v3413 = vadd.f32 %v3232, %v3412
      %v3414 = vpop.f32.mrb[0].mxu0
      %v3415 = vpop.f32.mrb[0].mxu0
      %v3416 = vadd.f32 %v3232, %v3415
      %v3417 = vpop.f32.mrb[0].mxu0
      %3418 = vmatprep.mubr.bf16.mxu0 0
      %3419 = vmatmul.mubr.bf16.gmra.mrb[0].mxu0 %v3273
      %v3420 = vpop.f32.mrb[0].mxu0
      %v3421 = vadd.f32 %v3232, %v3420
      %v3422 = vpop.f32.mrb[0].mxu0
      %v3423 = vpop.f32.mrb[0].mxu0
      %v3424 = vadd.f32 %v3232, %v3423
      %v3425 = vpop.f32.mrb[0].mxu0
      %3426 = vdwg.mxu0
      %v3427 = vadd.f32 %v3179, %v3365
      %v3428 = vadd.f32 %v3180, %v3368
      %v3429 = vadd.f32 %v3181, %v3373
      %v3430 = vadd.f32 %v3182, %v3376
      %v3431 = vadd.f32 %v3183, %v3381
      %v3432 = vadd.f32 %v3184, %v3384
      %v3433 = vadd.f32 %v3185, %v3389
      %v3434 = vadd.f32 %v3186, %v3392
      %v3435 = vadd.f32 %v3187, %v3397
      %v3436 = vadd.f32 %v3188, %v3400
      %v3437 = vadd.f32 %v3189, %v3405
      %v3438 = vadd.f32 %v3190, %v3408
      %v3439 = vadd.f32 %v3191, %v3413
      %v3440 = vadd.f32 %v3192, %v3416
      %v3441 = vadd.f32 %v3193, %v3421
      %v3442 = vadd.f32 %v3194, %v3424
      %3443 = vst [vmem:[#allocation2] sm:$0xff] %v3427
      %3444 = vst [vmem:[#allocation2 + $0x8] sm:$0xff] %v3428
      %3445 = vst [vmem:[#allocation2 + $0x10] sm:$0xff] %v3429
      %3446 = vst [vmem:[#allocation2 + $0x18] sm:$0xff] %v3430
      %3447 = vst [vmem:[#allocation2 + $0x20] sm:$0xff] %v3431
      %3448 = vst [vmem:[#allocation2 + $0x28] sm:$0xff] %v3432
      %3449 = vst [vmem:[#allocation2 + $0x30] sm:$0xff] %v3433
      %3450 = vst [vmem:[#allocation2 + $0x38] sm:$0xff] %v3434
      %3451 = vst [vmem:[#allocation2 + $0x40] sm:$0xff] %v3435
      %3452 = vst [vmem:[#allocation2 + $0x48] sm:$0xff] %v3436
      %3453 = vst [vmem:[#allocation2 + $0x50] sm:$0xff] %v3437
      %3454 = vst [vmem:[#allocation2 + $0x58] sm:$0xff] %v3438
      %3455 = vst [vmem:[#allocation2 + $0x60] sm:$0xff] %v3439
      %3456 = vst [vmem:[#allocation2 + $0x68] sm:$0xff] %v3440
      %3457 = vst [vmem:[#allocation2 + $0x70] sm:$0xff] %v3441
      %3458 = vst [vmem:[#allocation2 + $0x78] sm:$0xff] %v3442
      %v3459 = vld [vmem:[#allocation2] ss:$2 sm:$0xff]
      %s3460 = scalar_lea.vmem [#allocation2], 1
      %v3461 = vld [vmem:[%s3460] ss:$2 sm:$0xff]
      %v3462 = vadd.f32 %v3459, %v3461
      %s3463 = scalar_lea.vmem [#allocation2], 16
      %v3464 = vld [vmem:[%s3463] ss:$2 sm:$0xff]
      %v3465 = vadd.f32 %v3462, %v3464
      %s3466 = scalar_lea.vmem [#allocation2], 17
      %v3467 = vld [vmem:[%s3466] ss:$2 sm:$0xff]
      %v3468 = vadd.f32 %v3465, %v3467
      %v3469 = vmul.f32 %v3468, 0.25
      %3470 = vst [vmem:[%s321] sm:$0xff] %v3469
      %s3471 = scalar_lea.vmem [#allocation2], 32
      %v3472 = vld [vmem:[%s3471] ss:$2 sm:$0xff]
      %s3473 = scalar_lea.vmem [#allocation2], 33
      %v3474 = vld [vmem:[%s3473] ss:$2 sm:$0xff]
      %v3475 = vadd.f32 %v3472, %v3474
      %s3476 = scalar_lea.vmem [#allocation2], 48
      %v3477 = vld [vmem:[%s3476] ss:$2 sm:$0xff]
      %v3478 = vadd.f32 %v3475, %v3477
      %s3479 = scalar_lea.vmem [#allocation2], 49
      %v3480 = vld [vmem:[%s3479] ss:$2 sm:$0xff]
      %v3481 = vadd.f32 %v3478, %v3480
      %v3482 = vmul.f32 %v3481, 0.25
      %3483 = vst [vmem:[%s321 + $0x8] sm:$0xff] %v3482
      %s3484 = scalar_lea.vmem [#allocation2], 64
      %v3485 = vld [vmem:[%s3484] ss:$2 sm:$0xff]
      %s3486 = scalar_lea.vmem [#allocation2], 65
      %v3487 = vld [vmem:[%s3486] ss:$2 sm:$0xff]
      %v3488 = vadd.f32 %v3485, %v3487
      %s3489 = scalar_lea.vmem [#allocation2], 80
      %v3490 = vld [vmem:[%s3489] ss:$2 sm:$0xff]
      %v3491 = vadd.f32 %v3488, %v3490
      %s3492 = scalar_lea.vmem [#allocation2], 81
      %v3493 = vld [vmem:[%s3492] ss:$2 sm:$0xff]
      %v3494 = vadd.f32 %v3491, %v3493
      %v3495 = vmul.f32 %v3494, 0.25
      %3496 = vst [vmem:[%s321 + $0x10] sm:$0xff] %v3495
      %s3497 = scalar_lea.vmem [#allocation2], 96
      %v3498 = vld [vmem:[%s3497] ss:$2 sm:$0xff]
      %s3499 = scalar_lea.vmem [#allocation2], 97
      %v3500 = vld [vmem:[%s3499] ss:$2 sm:$0xff]
      %v3501 = vadd.f32 %v3498, %v3500
      %s3502 = scalar_lea.vmem [#allocation2], 112
      %v3503 = vld [vmem:[%s3502] ss:$2 sm:$0xff]
      %v3504 = vadd.f32 %v3501, %v3503
      %s3505 = scalar_lea.vmem [#allocation2], 113
      %v3506 = vld [vmem:[%s3505] ss:$2 sm:$0xff]
      %v3507 = vadd.f32 %v3504, %v3506
      %v3508 = vmul.f32 %v3507, 0.25
      %3509 = vst [vmem:[%s321 + $0x18] sm:$0xff] %v3508
      %p3510 = scmp.lt.s32.totalorder %s21, 1
      %s3511 = scalar_select %p3510, %s21, 1
      %p3512 = scmp.lt.s32.totalorder %s22, 1
      %s3513 = scalar_select %p3512, %s22, 1
      %s3514 = smul.addr %s3513, 4
      %s3515 = smul.addr %s3511, 8
      %s3516 = sadd.s32 %s3514, %s3515
      %s3517 = smul.addr %s3516, 8
      %s3518 = scalar_lea.vmem %s6, %s3517
      // Predicated region
      $region45: #{resblock_forward.3} parent=43 // pred_check
        %p3519 = pneg %p189
      $region46: #{resblock_forward.3} parent=43 // pred_check_branch
        %3521 = sbr.rel (%p3519) target = $region48
      $region47: #{resblock_forward.3} parent=43 // pred_region
        _
      $region48: #{resblock_forward.3} parent=43 // pred_fallthru
        _
    $region44: #{resblock_forward.3} parent=5 // pred_fallthru
      _
    %p3522 = scmp.le.s32.totalorder 2, %s12
    // Predicated region
    $region49: #{resblock_forward.3} parent=5 // pred_check
      %p3523 = pneg %p3522
    $region50: #{resblock_forward.3} parent=5 // pred_check_branch
      %3525 = sbr.rel (%p3523) target = $region52
    $region51: #{resblock_forward.3} parent=5 // pred_region
      %s3526 = ssub.s32 %s12, 2
      // Predicated region
      $region53: #{resblock_forward.3} parent=51 // pred_check
        %p3527 = pneg %p195
      $region54: #{resblock_forward.3} parent=51 // pred_check_branch
        %3529 = sbr.rel (%p3527) target = $region56
      $region55: #{resblock_forward.3} parent=51 // pred_region
        %p3530 = scmp.lt.s32.totalorder %s23, 1
        %s3531 = scalar_select %p3530, %s23, 1
        %p3532 = scmp.lt.s32.totalorder %s24, 1
        %s3533 = scalar_select %p3532, %s24, 1
        %s3534 = smul.addr %s3533, 4
        %s3535 = smul.addr %s3531, 8
        %s3536 = sadd.s32 %s3534, %s3535
        %s3537 = smul.addr %s3536, 8
        %s3538 = scalar_lea.vmem %s6, %s3537
      $region56: #{resblock_forward.3} parent=51 // pred_fallthru
        _
    $region52: #{resblock_forward.3} parent=5 // pred_fallthru
      _
  $region6: #{resblock_forward.3} parent=0 // loop_footer
    %s16 = sadd.s32 1, %s12
  $region7: #{resblock_forward.3} parent=0 // loop_footer_branch
    %11 = sbr.rel target = $region3
  $region8: #{resblock_forward.3} parent=0 // loop_exit
    _

</llo_original>
